<compile_context>
chip_gen: v7x
topology: tpu7x:2x2x1
jax: 0.10.0
libtpu: 0.0.40
codegen_flags: <defaults>
</compile_context>

<pallas_src>
import functools

import numpy as np
import jax
import jax.numpy as jnp
from jax import lax
from jax.experimental import pallas as pl
from jax.experimental.pallas import tpu as pltpu

# f32 parity with the CUDA reference (TPU default f32 dot is lossy bf16).
_PRECISION = lax.Precision.HIGHEST


def _tri_matmul_kernel(L, oi_ref, oj_ref, kk_ref, ai_ref, ak_ref, bj_ref,
                       a_ref, b_ref, o_ref):
    idx = pl.program_id(0) * L + pl.program_id(1)
    i = oi_ref[idx]          # output row-block index
    j = oj_ref[idx]          # output col-block index
    k = kk_ref[idx]          # reduction block index (== G for no-op steps)
    T = o_ref.shape[0]

    @pl.when(i >= j)         # lower-triangular output block (or no-op: k == G)
    def _compute():
        @pl.when(k == 0)
        def _init():
            o_ref[...] = jnp.zeros_like(o_ref)

        # k-blocks strictly left of the diagonal block: plain MXU matmul.
        @pl.when(k < i)
        def _body():
            o_ref[...] += jnp.dot(a_ref[...], b_ref[...],
                                  preferred_element_type=jnp.float32,
                                  precision=_PRECISION)

        # Diagonal (straddling) k-block: the only block needing the tri mask,
        # and the last k-step for this output block.
        @pl.when(k == i)
        def _last():
            r = lax.broadcasted_iota(jnp.int32, (T, T), 0)
            c = lax.broadcasted_iota(jnp.int32, (T, T), 1)
            tri = c <= r     # local row/col == global offsets within block
            a_masked = jnp.where(tri, a_ref[...], 0.0)
            o_ref[...] += jnp.dot(a_masked, b_ref[...],
                                  preferred_element_type=jnp.float32,
                                  precision=_PRECISION)

            @pl.when(i == j)  # only diagonal output blocks need output masking
            def _mask_out():
                o_ref[...] = jnp.where(tri, o_ref[...], 0.0)

    @pl.when(i < j)          # strictly-upper output block: zero fill only
    def _zero():
        o_ref[...] = jnp.zeros_like(o_ref)


def _balanced_rows(G, num_cores):
    """Greedy bin-packing of row-blocks across cores by per-row step count."""
    work = [(i + 1) ** 2 + (G - 1 - i) for i in range(G)]
    order = sorted(range(G), key=lambda i: -work[i])
    rows = [[] for _ in range(num_cores)]
    load = [0] * num_cores
    for i in order:
        c = min(range(num_cores), key=lambda c: load[c])
        rows[c].append(i)
        load[c] += work[i]
    return [sorted(r) for r in rows]


def _core_schedule(rows, G):
    """Steps (oi, oj, kk, ai, ak, bj) for one core; A/B == None -> fill later."""
    steps = []
    zq = [(i, j) for i in rows for j in range(i + 1, G)]  # this core's zero blocks
    zp = 0
    for i in rows:
        for j in range(i + 1):
            for k in range(i + 1):
                steps.append((i, j, k, i, k, j))
            # Interleave one zero-fill step after each finished output block so
            # the upper-triangle writeback hides under compute.
            if zp < len(zq):
                zi, zj = zq[zp]
                zp += 1
                steps.append((zi, zj, 0, None, None, None))
    while zp < len(zq):      # leftovers (rare with balanced rows)
        zi, zj = zq[zp]
        zp += 1
        steps.append((zi, zj, 0, None, None, None))
    return steps


def _fill_ab(steps):
    """Give zero-fill / no-op steps A/B block indices that elide their DMAs."""
    steps = list(steps)
    n = len(steps)
    # Backward pass: mirror the NEXT step's A/B blocks -> the prefetch happens
    # one step early (under a real matmul) and the following step's DMA is a
    # no-op because the block index does not change.
    nxt = None
    for p in range(n - 1, -1, -1):
        if steps[p][3] is None:
            if nxt is not None:
                steps[p] = steps[p][:3] + nxt
        else:
            nxt = steps[p][3:]
    # Forward pass (trailing steps): mirror the previous step's A/B blocks.
    prv = (0, 0, 0)
    for p in range(n):
        if steps[p][3] is None:
            steps[p] = steps[p][:3] + prv
        else:
            prv = steps[p][3:]
    return steps


def _build_schedule(G, num_cores):
    per_core = [_core_schedule(r, G) for r in _balanced_rows(G, num_cores)]
    L = max(len(s) for s in per_core)
    padded = []
    for steps in per_core:
        last = steps[-1]
        # No-op padding: repeat the last step's output block; kk = G makes the
        # compute branch do nothing (zero blocks just rewrite zeros, harmless).
        noop = (last[0], last[1], G, None, None, None)
        steps = steps + [noop] * (L - len(steps))
        padded.append(_fill_ab(steps))
    flat = [t for core in padded for t in core]            # idx = c * L + t
    arr = np.asarray(flat, dtype=np.int32)
    return L, tuple(arr[:, col] for col in range(6))


def _round_up(x, m):
    return ((x + m - 1) // m) * m


@functools.partial(jax.jit, static_argnames=("block",))
def lower_triangular_matmul(A, B, *, block=512):
    N = A.shape[0]
    assert A.shape == (N, N) and B.shape == (N, N)
    A = A.astype(jnp.float32)
    B = B.astype(jnp.float32)

    # Lane/MXU-aligned tile (multiple of 128), never larger than padded N.
    T = min(_round_up(block, 128), _round_up(N, 128))
    G = pl.cdiv(N, T)
    Np = G * T
    if Np != N:
        pad = Np - N
        A = jnp.pad(A, ((0, pad), (0, pad)))
        B = jnp.pad(B, ((0, pad), (0, pad)))

    num_cores = 2 if G >= 2 else 1          # balanced megacore split (v7x)
    L, (oi, oj, kk, ai, ak, bj) = _build_schedule(G, num_cores)

    n_matmul = G * (G + 1) * (2 * G + 1) // 6
    cost = pl.CostEstimate(
        flops=2 * n_matmul * T ** 3,
        transcendentals=0,
        bytes_accessed=(2 * n_matmul + G * G) * T * T * 4,
    )

    kernel = functools.partial(_tri_matmul_kernel, L)

    def a_map(c, t, oi, oj, kk, ai, ak, bj):
        return (ai[c * L + t], ak[c * L + t])

    def b_map(c, t, oi, oj, kk, ai, ak, bj):
        return (ak[c * L + t], bj[c * L + t])

    def o_map(c, t, oi, oj, kk, ai, ak, bj):
        return (oi[c * L + t], oj[c * L + t])

    out = pl.pallas_call(
        kernel,
        out_shape=jax.ShapeDtypeStruct((Np, Np), jnp.float32),
        grid_spec=pltpu.PrefetchScalarGridSpec(
            num_scalar_prefetch=6,
            grid=(num_cores, L),
            in_specs=[
                pl.BlockSpec((T, T), a_map),   # A tile (row-block, k-block)
                pl.BlockSpec((T, T), b_map),   # B tile (k-block, col-block)
            ],
            out_specs=pl.BlockSpec((T, T), o_map),
        ),
        compiler_params=pltpu.CompilerParams(
            # Core axis sharded across TensorCores on v7x; inner flattened
            # (block, k) axis carries the resident output accumulator.
            dimension_semantics=("parallel", "arbitrary"),
            vmem_limit_bytes=48 * 1024 * 1024,   # safe on v5e/v6e/v7x
        ),
        cost_estimate=cost,
    )(jnp.asarray(oi), jnp.asarray(oj), jnp.asarray(kk),
      jnp.asarray(ai), jnp.asarray(ak), jnp.asarray(bj),
      A, B)

    if Np != N:
        out = out[:N, :N]
    return out


if __name__ == "__main__":
    key = jax.random.PRNGKey(0)

    def reference(A, B):
        # Exact (true-f32) semantics of the CUDA kernel.
        return jnp.tril(jnp.dot(jnp.tril(A), B,
                                precision=lax.Precision.HIGHEST,
                                preferred_element_type=jnp.float32))

    # (N, block): single-tile path, multi-block + megacore split, the padding /
    # lane-alignment path (N=200 -> T=256), and a 3x3-block padded case.
    for (N, blk) in [(256, 512), (384, 128), (200, 512), (640, 256)]:
        key, ka, kb = jax.random.split(key, 3)
        A = jax.random.normal(ka, (N, N), dtype=jnp.float32)
        B = jax.random.normal(kb, (N, N), dtype=jnp.float32)

        C = jax.block_until_ready(lower_triangular_matmul(A, B, block=blk))
        C_ref = reference(A, B)
        assert jnp.allclose(C, C_ref, atol=1e-3, rtol=1e-3), f"mismatch at N={N}"

    print("KERNEL_OK")
</pallas_src>

<mosaic_0001>
module attributes {stable_mosaic.version = 11 : i64} {
  func.func @_tri_matmul_kernel(%arg0: i32, %arg1: i32, %arg2: memref<1xi32, #tpu.memory_space<smem>>, %arg3: memref<1xi32, #tpu.memory_space<smem>>, %arg4: memref<1xi32, #tpu.memory_space<smem>>, %arg5: memref<1xi32, #tpu.memory_space<smem>>, %arg6: memref<1xi32, #tpu.memory_space<smem>>, %arg7: memref<1xi32, #tpu.memory_space<smem>>, %arg8: memref<256x256xf32, #tpu.memory_space<vmem>>, %arg9: memref<256x256xf32, #tpu.memory_space<vmem>>, %arg10: memref<256x256xf32, #tpu.memory_space<vmem>>) attributes {dimension_semantics = [#tpu.dimension_semantics<parallel>, #tpu.dimension_semantics<arbitrary>], iteration_bounds = array<i64: 1, 1>, scalar_prefetch = 6 : i64, scratch_operands = 0 : i64, tpu.core_type = #tpu.core_type<tc>, window_params = [{transform_indices = @transform_0, window_bounds = array<i64: 256, 256>}, {transform_indices = @transform_1, window_bounds = array<i64: 256, 256>}, {transform_indices = @transform_2, window_bounds = array<i64: 256, 256>}]} {
    %c1_i32 = arith.constant 1 : i32
    %0 = arith.muli %arg0, %c1_i32 : i32
    %1 = arith.addi %0, %arg1 : i32
    %2 = arith.index_cast %1 : i32 to index
    %3 = memref.load %arg2[%2] : memref<1xi32, #tpu.memory_space<smem>>
    %4 = arith.index_cast %1 : i32 to index
    %5 = memref.load %arg3[%4] : memref<1xi32, #tpu.memory_space<smem>>
    %6 = arith.index_cast %1 : i32 to index
    %7 = memref.load %arg4[%6] : memref<1xi32, #tpu.memory_space<smem>>
    %8 = arith.cmpi sge, %3, %5 : i32
    %9 = arith.extui %8 : i1 to i32
    %c0_i32 = arith.constant 0 : i32
    %10 = arith.cmpi ne, %9, %c0_i32 : i32
    scf.if %10 {
      %c0_i32_1 = arith.constant 0 : i32
      %14 = arith.cmpi eq, %7, %c0_i32_1 : i32
      %15 = arith.extui %14 : i1 to i32
      %c0_i32_2 = arith.constant 0 : i32
      %16 = arith.cmpi ne, %15, %c0_i32_2 : i32
      scf.if %16 {
        %cst = arith.constant 0.000000e+00 : f32
        %23 = vector.broadcast %cst : f32 to vector<256x256xf32>
        %c0 = arith.constant 0 : index
        %c0_5 = arith.constant 0 : index
        %24 = vector.load %arg10[%c0, %c0_5] : memref<256x256xf32, #tpu.memory_space<vmem>>, vector<256x256xf32>
        tpu.vector_store %arg10[%c0, %c0_5], %23 {strides = array<i32>} : memref<256x256xf32, #tpu.memory_space<vmem>>, vector<256x256xf32>,
      } else {
      }
      %17 = arith.cmpi slt, %7, %3 : i32
      %18 = arith.extui %17 : i1 to i32
      %c0_i32_3 = arith.constant 0 : i32
      %19 = arith.cmpi ne, %18, %c0_i32_3 : i32
      scf.if %19 {
        %c0 = arith.constant 0 : index
        %c0_5 = arith.constant 0 : index
        %23 = vector.load %arg10[%c0, %c0_5] : memref<256x256xf32, #tpu.memory_space<vmem>>, vector<256x256xf32>
        %c0_6 = arith.constant 0 : index
        %c0_7 = arith.constant 0 : index
        %24 = vector.load %arg8[%c0_6, %c0_7] : memref<256x256xf32, #tpu.memory_space<vmem>>, vector<256x256xf32>
        %c0_8 = arith.constant 0 : index
        %c0_9 = arith.constant 0 : index
        %25 = vector.load %arg9[%c0_8, %c0_9] : memref<256x256xf32, #tpu.memory_space<vmem>>, vector<256x256xf32>
        %cst = arith.constant dense<0.000000e+00> : vector<256x256xf32>
        %26 = tpu.matmul %24, %25, %cst {dimension_numbers = #tpu.dot_dimension_numbers<[1], [0], [0], [1], [0, 0, 1, 1], [], []>, precision = #tpu.contract_precision<fp32>} : vector<256x256xf32>, vector<256x256xf32>, vector<256x256xf32> -> vector<256x256xf32>
        %27 = arith.addf %23, %26 : vector<256x256xf32>
        %c0_10 = arith.constant 0 : index
        %c0_11 = arith.constant 0 : index
        %28 = vector.load %arg10[%c0_10, %c0_11] : memref<256x256xf32, #tpu.memory_space<vmem>>, vector<256x256xf32>
        tpu.vector_store %arg10[%c0_10, %c0_11], %27 {strides = array<i32>} : memref<256x256xf32, #tpu.memory_space<vmem>>, vector<256x256xf32>,
      } else {
      }
      %20 = arith.cmpi eq, %7, %3 : i32
      %21 = arith.extui %20 : i1 to i32
      %c0_i32_4 = arith.constant 0 : i32
      %22 = arith.cmpi ne, %21, %c0_i32_4 : i32
      scf.if %22 {
        %23 = tpu.iota {dimensions = array<i32: 0>} : vector<256x256xi32>
        %24 = tpu.iota {dimensions = array<i32: 1>} : vector<256x256xi32>
        %25 = arith.cmpi sle, %24, %23 : vector<256x256xi32>
        %c0 = arith.constant 0 : index
        %c0_5 = arith.constant 0 : index
        %26 = vector.load %arg8[%c0, %c0_5] : memref<256x256xf32, #tpu.memory_space<vmem>>, vector<256x256xf32>
        %cst = arith.constant 0.000000e+00 : f32
        %27 = vector.broadcast %cst : f32 to vector<256x256xf32>
        %28 = arith.select %25, %26, %27 : vector<256x256xi1>, vector<256x256xf32>
        %c0_6 = arith.constant 0 : index
        %c0_7 = arith.constant 0 : index
        %29 = vector.load %arg10[%c0_6, %c0_7] : memref<256x256xf32, #tpu.memory_space<vmem>>, vector<256x256xf32>
        %c0_8 = arith.constant 0 : index
        %c0_9 = arith.constant 0 : index
        %30 = vector.load %arg9[%c0_8, %c0_9] : memref<256x256xf32, #tpu.memory_space<vmem>>, vector<256x256xf32>
        %cst_10 = arith.constant dense<0.000000e+00> : vector<256x256xf32>
        %31 = tpu.matmul %28, %30, %cst_10 {dimension_numbers = #tpu.dot_dimension_numbers<[1], [0], [0], [1], [0, 0, 1, 1], [], []>, precision = #tpu.contract_precision<fp32>} : vector<256x256xf32>, vector<256x256xf32>, vector<256x256xf32> -> vector<256x256xf32>
        %32 = arith.addf %29, %31 : vector<256x256xf32>
        %c0_11 = arith.constant 0 : index
        %c0_12 = arith.constant 0 : index
        %33 = vector.load %arg10[%c0_11, %c0_12] : memref<256x256xf32, #tpu.memory_space<vmem>>, vector<256x256xf32>
        tpu.vector_store %arg10[%c0_11, %c0_12], %32 {strides = array<i32>} : memref<256x256xf32, #tpu.memory_space<vmem>>, vector<256x256xf32>,
        %34 = arith.cmpi eq, %3, %5 : i32
        %35 = arith.extui %34 : i1 to i32
        %c0_i32_13 = arith.constant 0 : i32
        %36 = arith.cmpi ne, %35, %c0_i32_13 : i32
        scf.if %36 {
          %c0_14 = arith.constant 0 : index
          %c0_15 = arith.constant 0 : index
          %37 = vector.load %arg10[%c0_14, %c0_15] : memref<256x256xf32, #tpu.memory_space<vmem>>, vector<256x256xf32>
          %cst_16 = arith.constant 0.000000e+00 : f32
          %38 = vector.broadcast %cst_16 : f32 to vector<256x256xf32>
          %39 = arith.select %25, %37, %38 : vector<256x256xi1>, vector<256x256xf32>
          %c0_17 = arith.constant 0 : index
          %c0_18 = arith.constant 0 : index
          %40 = vector.load %arg10[%c0_17, %c0_18] : memref<256x256xf32, #tpu.memory_space<vmem>>, vector<256x256xf32>
          tpu.vector_store %arg10[%c0_17, %c0_18], %39 {strides = array<i32>} : memref<256x256xf32, #tpu.memory_space<vmem>>, vector<256x256xf32>,
        } else {
        }
      } else {
      }
    } else {
    }
    %11 = arith.cmpi slt, %3, %5 : i32
    %12 = arith.extui %11 : i1 to i32
    %c0_i32_0 = arith.constant 0 : i32
    %13 = arith.cmpi ne, %12, %c0_i32_0 : i32
    scf.if %13 {
      %cst = arith.constant 0.000000e+00 : f32
      %14 = vector.broadcast %cst : f32 to vector<256x256xf32>
      %c0 = arith.constant 0 : index
      %c0_1 = arith.constant 0 : index
      %15 = vector.load %arg10[%c0, %c0_1] : memref<256x256xf32, #tpu.memory_space<vmem>>, vector<256x256xf32>
      tpu.vector_store %arg10[%c0, %c0_1], %14 {strides = array<i32>} : memref<256x256xf32, #tpu.memory_space<vmem>>, vector<256x256xf32>,
    } else {
    }
    return
  }
  func.func @transform_0(%arg0: i32, %arg1: i32, %arg2: memref<1xi32, #tpu.memory_space<smem>>, %arg3: memref<1xi32, #tpu.memory_space<smem>>, %arg4: memref<1xi32, #tpu.memory_space<smem>>, %arg5: memref<1xi32, #tpu.memory_space<smem>>, %arg6: memref<1xi32, #tpu.memory_space<smem>>, %arg7: memref<1xi32, #tpu.memory_space<smem>>) -> (i32, i32) {
    %c1_i32 = arith.constant 1 : i32
    %0 = arith.muli %arg0, %c1_i32 : i32
    %1 = arith.addi %0, %arg1 : i32
    %2 = arith.index_cast %1 : i32 to index
    %3 = memref.load %arg5[%2] : memref<1xi32, #tpu.memory_space<smem>>
    %c1_i32_0 = arith.constant 1 : i32
    %4 = arith.muli %arg0, %c1_i32_0 : i32
    %5 = arith.addi %4, %arg1 : i32
    %6 = arith.index_cast %5 : i32 to index
    %7 = memref.load %arg6[%6] : memref<1xi32, #tpu.memory_space<smem>>
    %c0_i32 = arith.constant 0 : i32
    return %3, %7 : i32, i32
  }
  func.func @transform_1(%arg0: i32, %arg1: i32, %arg2: memref<1xi32, #tpu.memory_space<smem>>, %arg3: memref<1xi32, #tpu.memory_space<smem>>, %arg4: memref<1xi32, #tpu.memory_space<smem>>, %arg5: memref<1xi32, #tpu.memory_space<smem>>, %arg6: memref<1xi32, #tpu.memory_space<smem>>, %arg7: memref<1xi32, #tpu.memory_space<smem>>) -> (i32, i32) {
    %c1_i32 = arith.constant 1 : i32
    %0 = arith.muli %arg0, %c1_i32 : i32
    %1 = arith.addi %0, %arg1 : i32
    %2 = arith.index_cast %1 : i32 to index
    %3 = memref.load %arg6[%2] : memref<1xi32, #tpu.memory_space<smem>>
    %c1_i32_0 = arith.constant 1 : i32
    %4 = arith.muli %arg0, %c1_i32_0 : i32
    %5 = arith.addi %4, %arg1 : i32
    %6 = arith.index_cast %5 : i32 to index
    %7 = memref.load %arg7[%6] : memref<1xi32, #tpu.memory_space<smem>>
    %c0_i32 = arith.constant 0 : i32
    return %3, %7 : i32, i32
  }
  func.func @transform_2(%arg0: i32, %arg1: i32, %arg2: memref<1xi32, #tpu.memory_space<smem>>, %arg3: memref<1xi32, #tpu.memory_space<smem>>, %arg4: memref<1xi32, #tpu.memory_space<smem>>, %arg5: memref<1xi32, #tpu.memory_space<smem>>, %arg6: memref<1xi32, #tpu.memory_space<smem>>, %arg7: memref<1xi32, #tpu.memory_space<smem>>) -> (i32, i32) {
    %c1_i32 = arith.constant 1 : i32
    %0 = arith.muli %arg0, %c1_i32 : i32
    %1 = arith.addi %0, %arg1 : i32
    %2 = arith.index_cast %1 : i32 to index
    %3 = memref.load %arg2[%2] : memref<1xi32, #tpu.memory_space<smem>>
    %c1_i32_0 = arith.constant 1 : i32
    %4 = arith.muli %arg0, %c1_i32_0 : i32
    %5 = arith.addi %4, %arg1 : i32
    %6 = arith.index_cast %5 : i32 to index
    %7 = memref.load %arg3[%6] : memref<1xi32, #tpu.memory_space<smem>>
    %c0_i32 = arith.constant 0 : i32
    return %3, %7 : i32, i32
  }
}

</mosaic_0001>

<llo_original>
// kernel: lower_triangular_matmul.1
$region0: #{lower_triangular_matmul.1}
  #allocation0 [shape = 'u32[]', space=smem, size = 0x4, offset = 0x4, fixed_abs, tag = 'smem constant byte address 0x4 - core index']
  #allocation1 [shape = 'u32[144,128]{1,0:T(1,128)}', space=vmem, size = 0x12000, scoped, tag = 'internal scratch']
  #allocation2 [shape = 's32[1]{0}', space=sflag, size = 0x4, scoped, tag = 'scoped memory for lower_triangular_matmul.1']
  #allocation3 [shape = 's32[1]{0:T(128)S(6)}', space=smem, size = 0x200, scoped, tag = 'prefetched SMEM operand 0']
  #allocation4 [shape = 's32[1]{0:T(128)S(6)}', space=smem, size = 0x200, scoped, tag = 'prefetched SMEM operand 1']
  #allocation5 [shape = 's32[1]{0:T(128)S(6)}', space=smem, size = 0x200, scoped, tag = 'prefetched SMEM operand 2']
  #allocation6 [shape = 's32[1]{0:T(128)S(6)}', space=smem, size = 0x200, scoped, tag = 'prefetched SMEM operand 3']
  #allocation7 [shape = 's32[1]{0:T(128)S(6)}', space=smem, size = 0x200, scoped, tag = 'prefetched SMEM operand 4']
  #allocation8 [shape = 's32[1]{0:T(128)S(6)}', space=smem, size = 0x200, scoped, tag = 'prefetched SMEM operand 5']
  %s0 = inlined_call_operand.<no memory space> [shape: s32[1], index: 0, kind: input, shape index: {}, may-alias: {0,1,2,3,4,5}]
  %s1 = inlined_call_operand.<no memory space> [shape: s32[1], index: 1, kind: input, shape index: {}, may-alias: {0,1,2,3,4,5}]
  %s2 = inlined_call_operand.<no memory space> [shape: s32[1], index: 2, kind: input, shape index: {}, may-alias: {0,1,2,3,4,5}]
  %s3 = inlined_call_operand.<no memory space> [shape: s32[1], index: 3, kind: input, shape index: {}, may-alias: {0,1,2,3,4,5}]
  %s4 = inlined_call_operand.<no memory space> [shape: s32[1], index: 4, kind: input, shape index: {}, may-alias: {0,1,2,3,4,5}]
  %s5 = inlined_call_operand.<no memory space> [shape: s32[1], index: 5, kind: input, shape index: {}, may-alias: {0,1,2,3,4,5}]
  %s6 = inlined_call_operand.hbm [shape: f32[256,256], index: 6, kind: input, shape index: {}]
  %s7 = inlined_call_operand.hbm [shape: f32[256,256], index: 7, kind: input, shape index: {}]
  %s8 = inlined_call_operand.hbm [shape: f32[256,256], index: 8, kind: output, shape index: {}]
  %s9 = sld [smem:[#allocation0]]
  $region50: #{lower_triangular_matmul.1} parent=0
    _
  %s11 = ssub.s32 1, %s9
  %s12 = scalar_select 0, %s11, %s9
  %13 = sst [smem:[#allocation3]] %s0
  %14 = sst [smem:[#allocation4]] %s1
  %15 = sst [smem:[#allocation5]] %s2
  %16 = sst [smem:[#allocation6]] %s3
  %17 = sst [smem:[#allocation7]] %s4
  %18 = sst [smem:[#allocation8]] %s5
  $region1: #{lower_triangular_matmul.1} parent=0
    #allocation9 [shape = 'u8[262144]{0}', space=vmem, size = 0x40000, scoped, tag = 'input window, operand 6, single buffered']
    #allocation10 [shape = 's32[1]{0}', space=sflag, size = 0x4, scoped, tag = 'scoped memory for lower_triangular_matmul.1']
    #allocation11 [shape = 's32[1]{0}', space=sflag, size = 0x4, scoped, tag = 'scoped memory for lower_triangular_matmul.1']
    #allocation12 [shape = 'u8[262144]{0}', space=vmem, size = 0x40000, scoped, tag = 'input window, operand 7, single buffered']
    #allocation13 [shape = 's32[1]{0}', space=sflag, size = 0x4, scoped, tag = 'scoped memory for lower_triangular_matmul.1']
    #allocation14 [shape = 'u8[262144]{0}', space=vmem, size = 0x40000, scoped, tag = 'output window, operand 0, single buffered']
    %19 = vsyncpa [#allocation10], 0
    %20 = vsyncpa [#allocation13], 0
    %21 = vsyncpa [#allocation11], 0
    // Predicated region
    $region2: #{lower_triangular_matmul.1} parent=1 // pred_check
      _
    $region3: #{lower_triangular_matmul.1} parent=1 // pred_check_branch
      %23 = sbr.rel (0) target = $region5
    $region4: #{lower_triangular_matmul.1} parent=1 // pred_region
      %s24 = sadd.s32 0, 0
      %s25 = sld [smem:[#allocation6 + %s24]]
      %s26 = sld [smem:[#allocation7 + %s24]]
      %s27 = smul.u32 32, %s25
      %s28 = smul.u32 2, %s26
      %s30 = ssub.s32 8192, 8192
      %31 = vsyncadd [#allocation10], %s30
      %s32 = smul.addr %s27, 2
      %s33 = sadd.s32 %s28, %s32
      %s34 = smul.addr %s33, 128
      %s35 = scalar_lea.hbm %s6, %s34
      %s36 = sshll.u32 [#allocation9], 4
      %s37 = int_to_ptr.vmem [resolvable:$true] %s36
      %42 = dma.hbm_to_vmem [thread:$0]  %s35, 8192, %s37, [#allocation10], 256, 256, 16
    $region5: #{lower_triangular_matmul.1} parent=1 // pred_fallthru
      _
    // Predicated region
    $region6: #{lower_triangular_matmul.1} parent=1 // pred_check
      _
    $region7: #{lower_triangular_matmul.1} parent=1 // pred_check_branch
      %44 = sbr.rel (0) target = $region9
    $region8: #{lower_triangular_matmul.1} parent=1 // pred_region
      %s45 = sadd.s32 0, 0
      %s46 = sld [smem:[#allocation7 + %s45]]
      %s47 = sld [smem:[#allocation8 + %s45]]
      %s48 = smul.u32 32, %s46
      %s49 = smul.u32 2, %s47
      %s51 = ssub.s32 8192, 8192
      %52 = vsyncadd [#allocation13], %s51
      %s53 = smul.addr %s48, 2
      %s54 = sadd.s32 %s49, %s53
      %s55 = smul.addr %s54, 128
      %s56 = scalar_lea.hbm %s7, %s55
      %s57 = sshll.u32 [#allocation12], 4
      %s58 = int_to_ptr.vmem [resolvable:$true] %s57
      %63 = dma.hbm_to_vmem [thread:$0]  %s56, 8192, %s58, [#allocation13], 256, 256, 16
    $region9: #{lower_triangular_matmul.1} parent=1 // pred_fallthru
      _
    // Predicated region
    $region10: #{lower_triangular_matmul.1} parent=1 // pred_check
      _
    $region11: #{lower_triangular_matmul.1} parent=1 // pred_check_branch
      %65 = sbr.rel (0) target = $region13
    $region12: #{lower_triangular_matmul.1} parent=1 // pred_region
      %66 = dma.done [#allocation10], 8192
    $region13: #{lower_triangular_matmul.1} parent=1 // pred_fallthru
      _
    // Predicated region
    $region14: #{lower_triangular_matmul.1} parent=1 // pred_check
      _
    $region15: #{lower_triangular_matmul.1} parent=1 // pred_check_branch
      %68 = sbr.rel (0) target = $region17
    $region16: #{lower_triangular_matmul.1} parent=1 // pred_region
      %69 = dma.done [#allocation13], 8192
    $region17: #{lower_triangular_matmul.1} parent=1 // pred_fallthru
      _
    %s70 = sadd.s32 0, 0
    %s71 = sld [smem:[#allocation6 + %s70]]
    %s72 = sld [smem:[#allocation7 + %s70]]
    %s73 = smul.u32 32, %s71
    %s74 = smul.u32 2, %s72
    %s75 = sadd.s32 0, 0
    %s76 = sld [smem:[#allocation7 + %s75]]
    %s77 = sld [smem:[#allocation8 + %s75]]
    %s78 = smul.u32 32, %s76
    %s79 = smul.u32 2, %s77
    %s80 = sadd.s32 0, 0
    %s81 = sld [smem:[#allocation3 + %s80]]
    %s82 = sld [smem:[#allocation4 + %s80]]
    %s83 = smul.u32 32, %s81
    %s84 = smul.u32 2, %s82
    %s85 = sadd.s32 0, 0
    %s86 = sld [smem:[#allocation3 + %s85]]
    %s87 = sld [smem:[#allocation4 + %s85]]
    %s88 = sld [smem:[#allocation5 + %s85]]
    %p89 = scmp.ge.s32.totalorder %s86, %s87
    // Predicated region
    $region18: #{lower_triangular_matmul.1} parent=1 // pred_check
      %p90 = pneg %p89
    $region19: #{lower_triangular_matmul.1} parent=1 // pred_check_branch
      %92 = sbr.rel (%p90) target = $region21
    $region20: #{lower_triangular_matmul.1} parent=1 // pred_region
      %p93 = scmp.eq.s32.totalorder %s88, 0
      // Predicated region
      $region22: #{lower_triangular_matmul.1} parent=20 // pred_check
        %p94 = pneg %p93
      $region23: #{lower_triangular_matmul.1} parent=20 // pred_check_branch
        %96 = sbr.rel (%p94) target = $region25
      $region24: #{lower_triangular_matmul.1} parent=20 // pred_region
        %97 = vst [vmem:[#allocation14] sm:$0xff] 0.0
        %98 = vst [vmem:[#allocation14 + $0x8] sm:$0xff] 0.0
        %99 = vst [vmem:[#allocation14 + $0x10] sm:$0xff] 0.0
        %100 = vst [vmem:[#allocation14 + $0x18] sm:$0xff] 0.0
        %101 = vst [vmem:[#allocation14 + $0x20] sm:$0xff] 0.0
        %102 = vst [vmem:[#allocation14 + $0x28] sm:$0xff] 0.0
        %103 = vst [vmem:[#allocation14 + $0x30] sm:$0xff] 0.0
        %104 = vst [vmem:[#allocation14 + $0x38] sm:$0xff] 0.0
        %105 = vst [vmem:[#allocation14 + $0x40] sm:$0xff] 0.0
        %106 = vst [vmem:[#allocation14 + $0x48] sm:$0xff] 0.0
        %107 = vst [vmem:[#allocation14 + $0x50] sm:$0xff] 0.0
        %108 = vst [vmem:[#allocation14 + $0x58] sm:$0xff] 0.0
        %109 = vst [vmem:[#allocation14 + $0x60] sm:$0xff] 0.0
        %110 = vst [vmem:[#allocation14 + $0x68] sm:$0xff] 0.0
        %111 = vst [vmem:[#allocation14 + $0x70] sm:$0xff] 0.0
        %112 = vst [vmem:[#allocation14 + $0x78] sm:$0xff] 0.0
        %113 = vst [vmem:[#allocation14 + $0x80] sm:$0xff] 0.0
        %114 = vst [vmem:[#allocation14 + $0x88] sm:$0xff] 0.0
        %115 = vst [vmem:[#allocation14 + $0x90] sm:$0xff] 0.0
        %116 = vst [vmem:[#allocation14 + $0x98] sm:$0xff] 0.0
        %117 = vst [vmem:[#allocation14 + $0xa0] sm:$0xff] 0.0
        %118 = vst [vmem:[#allocation14 + $0xa8] sm:$0xff] 0.0
        %119 = vst [vmem:[#allocation14 + $0xb0] sm:$0xff] 0.0
        %120 = vst [vmem:[#allocation14 + $0xb8] sm:$0xff] 0.0
        %121 = vst [vmem:[#allocation14 + $0xc0] sm:$0xff] 0.0
        %122 = vst [vmem:[#allocation14 + $0xc8] sm:$0xff] 0.0
        %123 = vst [vmem:[#allocation14 + $0xd0] sm:$0xff] 0.0
        %124 = vst [vmem:[#allocation14 + $0xd8] sm:$0xff] 0.0
        %125 = vst [vmem:[#allocation14 + $0xe0] sm:$0xff] 0.0
        %126 = vst [vmem:[#allocation14 + $0xe8] sm:$0xff] 0.0
        %127 = vst [vmem:[#allocation14 + $0xf0] sm:$0xff] 0.0
        %128 = vst [vmem:[#allocation14 + $0xf8] sm:$0xff] 0.0
        %129 = vst [vmem:[#allocation14 + $0x100] sm:$0xff] 0.0
        %130 = vst [vmem:[#allocation14 + $0x108] sm:$0xff] 0.0
        %131 = vst [vmem:[#allocation14 + $0x110] sm:$0xff] 0.0
        %132 = vst [vmem:[#allocation14 + $0x118] sm:$0xff] 0.0
        %133 = vst [vmem:[#allocation14 + $0x120] sm:$0xff] 0.0
        %134 = vst [vmem:[#allocation14 + $0x128] sm:$0xff] 0.0
        %135 = vst [vmem:[#allocation14 + $0x130] sm:$0xff] 0.0
        %136 = vst [vmem:[#allocation14 + $0x138] sm:$0xff] 0.0
        %137 = vst [vmem:[#allocation14 + $0x140] sm:$0xff] 0.0
        %138 = vst [vmem:[#allocation14 + $0x148] sm:$0xff] 0.0
        %139 = vst [vmem:[#allocation14 + $0x150] sm:$0xff] 0.0
        %140 = vst [vmem:[#allocation14 + $0x158] sm:$0xff] 0.0
        %141 = vst [vmem:[#allocation14 + $0x160] sm:$0xff] 0.0
        %142 = vst [vmem:[#allocation14 + $0x168] sm:$0xff] 0.0
        %143 = vst [vmem:[#allocation14 + $0x170] sm:$0xff] 0.0
        %144 = vst [vmem:[#allocation14 + $0x178] sm:$0xff] 0.0
        %145 = vst [vmem:[#allocation14 + $0x180] sm:$0xff] 0.0
        %146 = vst [vmem:[#allocation14 + $0x188] sm:$0xff] 0.0
        %147 = vst [vmem:[#allocation14 + $0x190] sm:$0xff] 0.0
        %148 = vst [vmem:[#allocation14 + $0x198] sm:$0xff] 0.0
        %149 = vst [vmem:[#allocation14 + $0x1a0] sm:$0xff] 0.0
        %150 = vst [vmem:[#allocation14 + $0x1a8] sm:$0xff] 0.0
        %151 = vst [vmem:[#allocation14 + $0x1b0] sm:$0xff] 0.0
        %152 = vst [vmem:[#allocation14 + $0x1b8] sm:$0xff] 0.0
        %153 = vst [vmem:[#allocation14 + $0x1c0] sm:$0xff] 0.0
        %154 = vst [vmem:[#allocation14 + $0x1c8] sm:$0xff] 0.0
        %155 = vst [vmem:[#allocation14 + $0x1d0] sm:$0xff] 0.0
        %156 = vst [vmem:[#allocation14 + $0x1d8] sm:$0xff] 0.0
        %157 = vst [vmem:[#allocation14 + $0x1e0] sm:$0xff] 0.0
        %158 = vst [vmem:[#allocation14 + $0x1e8] sm:$0xff] 0.0
        %159 = vst [vmem:[#allocation14 + $0x1f0] sm:$0xff] 0.0
        %160 = vst [vmem:[#allocation14 + $0x1f8] sm:$0xff] 0.0
      $region25: #{lower_triangular_matmul.1} parent=20 // pred_fallthru
        _
      %p161 = scmp.lt.s32.totalorder %s88, %s86
      // Predicated region
      $region26: #{lower_triangular_matmul.1} parent=20 // pred_check
        %p162 = pneg %p161
      $region27: #{lower_triangular_matmul.1} parent=20 // pred_check_branch
        %164 = sbr.rel (%p162) target = $region29
      $region28: #{lower_triangular_matmul.1} parent=20 // pred_region
        %v165 = vld [vmem:[#allocation14] sm:$0xff]
        %v166 = vld [vmem:[#allocation14 + $0x8] sm:$0xff]
        %v167 = vld [vmem:[#allocation14 + $0x10] sm:$0xff]
        %v168 = vld [vmem:[#allocation14 + $0x18] sm:$0xff]
        %v169 = vld [vmem:[#allocation14 + $0x20] sm:$0xff]
        %v170 = vld [vmem:[#allocation14 + $0x28] sm:$0xff]
        %v171 = vld [vmem:[#allocation14 + $0x30] sm:$0xff]
        %v172 = vld [vmem:[#allocation14 + $0x38] sm:$0xff]
        %v173 = vld [vmem:[#allocation14 + $0x40] sm:$0xff]
        %v174 = vld [vmem:[#allocation14 + $0x48] sm:$0xff]
        %v175 = vld [vmem:[#allocation14 + $0x50] sm:$0xff]
        %v176 = vld [vmem:[#allocation14 + $0x58] sm:$0xff]
        %v177 = vld [vmem:[#allocation14 + $0x60] sm:$0xff]
        %v178 = vld [vmem:[#allocation14 + $0x68] sm:$0xff]
        %v179 = vld [vmem:[#allocation14 + $0x70] sm:$0xff]
        %v180 = vld [vmem:[#allocation14 + $0x78] sm:$0xff]
        %v181 = vld [vmem:[#allocation14 + $0x80] sm:$0xff]
        %v182 = vld [vmem:[#allocation14 + $0x88] sm:$0xff]
        %v183 = vld [vmem:[#allocation14 + $0x90] sm:$0xff]
        %v184 = vld [vmem:[#allocation14 + $0x98] sm:$0xff]
        %v185 = vld [vmem:[#allocation14 + $0xa0] sm:$0xff]
        %v186 = vld [vmem:[#allocation14 + $0xa8] sm:$0xff]
        %v187 = vld [vmem:[#allocation14 + $0xb0] sm:$0xff]
        %v188 = vld [vmem:[#allocation14 + $0xb8] sm:$0xff]
        %v189 = vld [vmem:[#allocation14 + $0xc0] sm:$0xff]
        %v190 = vld [vmem:[#allocation14 + $0xc8] sm:$0xff]
        %v191 = vld [vmem:[#allocation14 + $0xd0] sm:$0xff]
        %v192 = vld [vmem:[#allocation14 + $0xd8] sm:$0xff]
        %v193 = vld [vmem:[#allocation14 + $0xe0] sm:$0xff]
        %v194 = vld [vmem:[#allocation14 + $0xe8] sm:$0xff]
        %v195 = vld [vmem:[#allocation14 + $0xf0] sm:$0xff]
        %v196 = vld [vmem:[#allocation14 + $0xf8] sm:$0xff]
        %v197 = vld [vmem:[#allocation14 + $0x100] sm:$0xff]
        %v198 = vld [vmem:[#allocation14 + $0x108] sm:$0xff]
        %v199 = vld [vmem:[#allocation14 + $0x110] sm:$0xff]
        %v200 = vld [vmem:[#allocation14 + $0x118] sm:$0xff]
        %v201 = vld [vmem:[#allocation14 + $0x120] sm:$0xff]
        %v202 = vld [vmem:[#allocation14 + $0x128] sm:$0xff]
        %v203 = vld [vmem:[#allocation14 + $0x130] sm:$0xff]
        %v204 = vld [vmem:[#allocation14 + $0x138] sm:$0xff]
        %v205 = vld [vmem:[#allocation14 + $0x140] sm:$0xff]
        %v206 = vld [vmem:[#allocation14 + $0x148] sm:$0xff]
        %v207 = vld [vmem:[#allocation14 + $0x150] sm:$0xff]
        %v208 = vld [vmem:[#allocation14 + $0x158] sm:$0xff]
        %v209 = vld [vmem:[#allocation14 + $0x160] sm:$0xff]
        %v210 = vld [vmem:[#allocation14 + $0x168] sm:$0xff]
        %v211 = vld [vmem:[#allocation14 + $0x170] sm:$0xff]
        %v212 = vld [vmem:[#allocation14 + $0x178] sm:$0xff]
        %v213 = vld [vmem:[#allocation14 + $0x180] sm:$0xff]
        %v214 = vld [vmem:[#allocation14 + $0x188] sm:$0xff]
        %v215 = vld [vmem:[#allocation14 + $0x190] sm:$0xff]
        %v216 = vld [vmem:[#allocation14 + $0x198] sm:$0xff]
        %v217 = vld [vmem:[#allocation14 + $0x1a0] sm:$0xff]
        %v218 = vld [vmem:[#allocation14 + $0x1a8] sm:$0xff]
        %v219 = vld [vmem:[#allocation14 + $0x1b0] sm:$0xff]
        %v220 = vld [vmem:[#allocation14 + $0x1b8] sm:$0xff]
        %v221 = vld [vmem:[#allocation14 + $0x1c0] sm:$0xff]
        %v222 = vld [vmem:[#allocation14 + $0x1c8] sm:$0xff]
        %v223 = vld [vmem:[#allocation14 + $0x1d0] sm:$0xff]
        %v224 = vld [vmem:[#allocation14 + $0x1d8] sm:$0xff]
        %v225 = vld [vmem:[#allocation14 + $0x1e0] sm:$0xff]
        %v226 = vld [vmem:[#allocation14 + $0x1e8] sm:$0xff]
        %v227 = vld [vmem:[#allocation14 + $0x1f0] sm:$0xff]
        %v228 = vld [vmem:[#allocation14 + $0x1f8] sm:$0xff]
        %v229 = vld [vmem:[#allocation9] sm:$0xff]
        %v230 = vld [vmem:[#allocation9 + $0x8] sm:$0xff]
        %v231 = vld [vmem:[#allocation9 + $0x10] sm:$0xff]
        %v232 = vld [vmem:[#allocation9 + $0x18] sm:$0xff]
        %v233 = vld [vmem:[#allocation9 + $0x20] sm:$0xff]
        %v234 = vld [vmem:[#allocation9 + $0x28] sm:$0xff]
        %v235 = vld [vmem:[#allocation9 + $0x30] sm:$0xff]
        %v236 = vld [vmem:[#allocation9 + $0x38] sm:$0xff]
        %v237 = vld [vmem:[#allocation9 + $0x40] sm:$0xff]
        %v238 = vld [vmem:[#allocation9 + $0x48] sm:$0xff]
        %v239 = vld [vmem:[#allocation9 + $0x50] sm:$0xff]
        %v240 = vld [vmem:[#allocation9 + $0x58] sm:$0xff]
        %v241 = vld [vmem:[#allocation9 + $0x60] sm:$0xff]
        %v242 = vld [vmem:[#allocation9 + $0x68] sm:$0xff]
        %v243 = vld [vmem:[#allocation9 + $0x70] sm:$0xff]
        %v244 = vld [vmem:[#allocation9 + $0x78] sm:$0xff]
        %v245 = vld [vmem:[#allocation9 + $0x80] sm:$0xff]
        %v246 = vld [vmem:[#allocation9 + $0x88] sm:$0xff]
        %v247 = vld [vmem:[#allocation9 + $0x90] sm:$0xff]
        %v248 = vld [vmem:[#allocation9 + $0x98] sm:$0xff]
        %v249 = vld [vmem:[#allocation9 + $0xa0] sm:$0xff]
        %v250 = vld [vmem:[#allocation9 + $0xa8] sm:$0xff]
        %v251 = vld [vmem:[#allocation9 + $0xb0] sm:$0xff]
        %v252 = vld [vmem:[#allocation9 + $0xb8] sm:$0xff]
        %v253 = vld [vmem:[#allocation9 + $0xc0] sm:$0xff]
        %v254 = vld [vmem:[#allocation9 + $0xc8] sm:$0xff]
        %v255 = vld [vmem:[#allocation9 + $0xd0] sm:$0xff]
        %v256 = vld [vmem:[#allocation9 + $0xd8] sm:$0xff]
        %v257 = vld [vmem:[#allocation9 + $0xe0] sm:$0xff]
        %v258 = vld [vmem:[#allocation9 + $0xe8] sm:$0xff]
        %v259 = vld [vmem:[#allocation9 + $0xf0] sm:$0xff]
        %v260 = vld [vmem:[#allocation9 + $0xf8] sm:$0xff]
        %v261 = vld [vmem:[#allocation9 + $0x100] sm:$0xff]
        %v262 = vld [vmem:[#allocation9 + $0x108] sm:$0xff]
        %v263 = vld [vmem:[#allocation9 + $0x110] sm:$0xff]
        %v264 = vld [vmem:[#allocation9 + $0x118] sm:$0xff]
        %v265 = vld [vmem:[#allocation9 + $0x120] sm:$0xff]
        %v266 = vld [vmem:[#allocation9 + $0x128] sm:$0xff]
        %v267 = vld [vmem:[#allocation9 + $0x130] sm:$0xff]
        %v268 = vld [vmem:[#allocation9 + $0x138] sm:$0xff]
        %v269 = vld [vmem:[#allocation9 + $0x140] sm:$0xff]
        %v270 = vld [vmem:[#allocation9 + $0x148] sm:$0xff]
        %v271 = vld [vmem:[#allocation9 + $0x150] sm:$0xff]
        %v272 = vld [vmem:[#allocation9 + $0x158] sm:$0xff]
        %v273 = vld [vmem:[#allocation9 + $0x160] sm:$0xff]
        %v274 = vld [vmem:[#allocation9 + $0x168] sm:$0xff]
        %v275 = vld [vmem:[#allocation9 + $0x170] sm:$0xff]
        %v276 = vld [vmem:[#allocation9 + $0x178] sm:$0xff]
        %v277 = vld [vmem:[#allocation9 + $0x180] sm:$0xff]
        %v278 = vld [vmem:[#allocation9 + $0x188] sm:$0xff]
        %v279 = vld [vmem:[#allocation9 + $0x190] sm:$0xff]
        %v280 = vld [vmem:[#allocation9 + $0x198] sm:$0xff]
        %v281 = vld [vmem:[#allocation9 + $0x1a0] sm:$0xff]
        %v282 = vld [vmem:[#allocation9 + $0x1a8] sm:$0xff]
        %v283 = vld [vmem:[#allocation9 + $0x1b0] sm:$0xff]
        %v284 = vld [vmem:[#allocation9 + $0x1b8] sm:$0xff]
        %v285 = vld [vmem:[#allocation9 + $0x1c0] sm:$0xff]
        %v286 = vld [vmem:[#allocation9 + $0x1c8] sm:$0xff]
        %v287 = vld [vmem:[#allocation9 + $0x1d0] sm:$0xff]
        %v288 = vld [vmem:[#allocation9 + $0x1d8] sm:$0xff]
        %v289 = vld [vmem:[#allocation9 + $0x1e0] sm:$0xff]
        %v290 = vld [vmem:[#allocation9 + $0x1e8] sm:$0xff]
        %v291 = vld [vmem:[#allocation9 + $0x1f0] sm:$0xff]
        %v292 = vld [vmem:[#allocation9 + $0x1f8] sm:$0xff]
        %v293 = vld [vmem:[#allocation12] sm:$0xff]
        %v294 = vld [vmem:[#allocation12 + $0x8] sm:$0xff]
        %v295 = vld [vmem:[#allocation12 + $0x10] sm:$0xff]
        %v296 = vld [vmem:[#allocation12 + $0x18] sm:$0xff]
        %v297 = vld [vmem:[#allocation12 + $0x20] sm:$0xff]
        %v298 = vld [vmem:[#allocation12 + $0x28] sm:$0xff]
        %v299 = vld [vmem:[#allocation12 + $0x30] sm:$0xff]
        %v300 = vld [vmem:[#allocation12 + $0x38] sm:$0xff]
        %v301 = vld [vmem:[#allocation12 + $0x40] sm:$0xff]
        %v302 = vld [vmem:[#allocation12 + $0x48] sm:$0xff]
        %v303 = vld [vmem:[#allocation12 + $0x50] sm:$0xff]
        %v304 = vld [vmem:[#allocation12 + $0x58] sm:$0xff]
        %v305 = vld [vmem:[#allocation12 + $0x60] sm:$0xff]
        %v306 = vld [vmem:[#allocation12 + $0x68] sm:$0xff]
        %v307 = vld [vmem:[#allocation12 + $0x70] sm:$0xff]
        %v308 = vld [vmem:[#allocation12 + $0x78] sm:$0xff]
        %v309 = vld [vmem:[#allocation12 + $0x80] sm:$0xff]
        %v310 = vld [vmem:[#allocation12 + $0x88] sm:$0xff]
        %v311 = vld [vmem:[#allocation12 + $0x90] sm:$0xff]
        %v312 = vld [vmem:[#allocation12 + $0x98] sm:$0xff]
        %v313 = vld [vmem:[#allocation12 + $0xa0] sm:$0xff]
        %v314 = vld [vmem:[#allocation12 + $0xa8] sm:$0xff]
        %v315 = vld [vmem:[#allocation12 + $0xb0] sm:$0xff]
        %v316 = vld [vmem:[#allocation12 + $0xb8] sm:$0xff]
        %v317 = vld [vmem:[#allocation12 + $0xc0] sm:$0xff]
        %v318 = vld [vmem:[#allocation12 + $0xc8] sm:$0xff]
        %v319 = vld [vmem:[#allocation12 + $0xd0] sm:$0xff]
        %v320 = vld [vmem:[#allocation12 + $0xd8] sm:$0xff]
        %v321 = vld [vmem:[#allocation12 + $0xe0] sm:$0xff]
        %v322 = vld [vmem:[#allocation12 + $0xe8] sm:$0xff]
        %v323 = vld [vmem:[#allocation12 + $0xf0] sm:$0xff]
        %v324 = vld [vmem:[#allocation12 + $0xf8] sm:$0xff]
        %v325 = vld [vmem:[#allocation12 + $0x100] sm:$0xff]
        %v326 = vld [vmem:[#allocation12 + $0x108] sm:$0xff]
        %v327 = vld [vmem:[#allocation12 + $0x110] sm:$0xff]
        %v328 = vld [vmem:[#allocation12 + $0x118] sm:$0xff]
        %v329 = vld [vmem:[#allocation12 + $0x120] sm:$0xff]
        %v330 = vld [vmem:[#allocation12 + $0x128] sm:$0xff]
        %v331 = vld [vmem:[#allocation12 + $0x130] sm:$0xff]
        %v332 = vld [vmem:[#allocation12 + $0x138] sm:$0xff]
        %v333 = vld [vmem:[#allocation12 + $0x140] sm:$0xff]
        %v334 = vld [vmem:[#allocation12 + $0x148] sm:$0xff]
        %v335 = vld [vmem:[#allocation12 + $0x150] sm:$0xff]
        %v336 = vld [vmem:[#allocation12 + $0x158] sm:$0xff]
        %v337 = vld [vmem:[#allocation12 + $0x160] sm:$0xff]
        %v338 = vld [vmem:[#allocation12 + $0x168] sm:$0xff]
        %v339 = vld [vmem:[#allocation12 + $0x170] sm:$0xff]
        %v340 = vld [vmem:[#allocation12 + $0x178] sm:$0xff]
        %v341 = vld [vmem:[#allocation12 + $0x180] sm:$0xff]
        %v342 = vld [vmem:[#allocation12 + $0x188] sm:$0xff]
        %v343 = vld [vmem:[#allocation12 + $0x190] sm:$0xff]
        %v344 = vld [vmem:[#allocation12 + $0x198] sm:$0xff]
        %v345 = vld [vmem:[#allocation12 + $0x1a0] sm:$0xff]
        %v346 = vld [vmem:[#allocation12 + $0x1a8] sm:$0xff]
        %v347 = vld [vmem:[#allocation12 + $0x1b0] sm:$0xff]
        %v348 = vld [vmem:[#allocation12 + $0x1b8] sm:$0xff]
        %v349 = vld [vmem:[#allocation12 + $0x1c0] sm:$0xff]
        %v350 = vld [vmem:[#allocation12 + $0x1c8] sm:$0xff]
        %v351 = vld [vmem:[#allocation12 + $0x1d0] sm:$0xff]
        %v352 = vld [vmem:[#allocation12 + $0x1d8] sm:$0xff]
        %v353 = vld [vmem:[#allocation12 + $0x1e0] sm:$0xff]
        %v354 = vld [vmem:[#allocation12 + $0x1e8] sm:$0xff]
        %v355 = vld [vmem:[#allocation12 + $0x1f0] sm:$0xff]
        %v356 = vld [vmem:[#allocation12 + $0x1f8] sm:$0xff]
        %v357 = vand.u32 %v294, 4294901760
        %358 = vmatprep.subr.mxu0 %v357
        %v359 = vand.u32 %v293, 4294901760
        %360 = vmatpush1.msra.mxu0 %v359
        %v361 = vand.u32 %v296, 4294901760
        %362 = vmatprep.subr.mxu0 %v361
        %v363 = vand.u32 %v295, 4294901760
        %364 = vmatpush1.msra.mxu0 %v363
        %v365 = vand.u32 %v298, 4294901760
        %366 = vmatprep.subr.mxu0 %v365
        %v367 = vand.u32 %v297, 4294901760
        %368 = vmatpush1.msra.mxu0 %v367
        %v369 = vand.u32 %v300, 4294901760
        %370 = vmatprep.subr.mxu0 %v369
        %v371 = vand.u32 %v299, 4294901760
        %372 = vmatpush1.msra.mxu0 %v371
        %v373 = vand.u32 %v302, 4294901760
        %374 = vmatprep.subr.mxu0 %v373
        %v375 = vand.u32 %v301, 4294901760
        %376 = vmatpush1.msra.mxu0 %v375
        %v377 = vand.u32 %v304, 4294901760
        %378 = vmatprep.subr.mxu0 %v377
        %v379 = vand.u32 %v303, 4294901760
        %380 = vmatpush1.msra.mxu0 %v379
        %v381 = vand.u32 %v306, 4294901760
        %382 = vmatprep.subr.mxu0 %v381
        %v383 = vand.u32 %v305, 4294901760
        %384 = vmatpush1.msra.mxu0 %v383
        %v385 = vand.u32 %v308, 4294901760
        %386 = vmatprep.subr.mxu0 %v385
        %v387 = vand.u32 %v307, 4294901760
        %388 = vmatpush1.msra.mxu0 %v387
        %v389 = vand.u32 %v310, 4294901760
        %390 = vmatprep.subr.mxu0 %v389
        %v391 = vand.u32 %v309, 4294901760
        %392 = vmatpush1.msra.mxu0 %v391
        %v393 = vand.u32 %v312, 4294901760
        %394 = vmatprep.subr.mxu0 %v393
        %v395 = vand.u32 %v311, 4294901760
        %396 = vmatpush1.msra.mxu0 %v395
        %v397 = vand.u32 %v314, 4294901760
        %398 = vmatprep.subr.mxu0 %v397
        %v399 = vand.u32 %v313, 4294901760
        %400 = vmatpush1.msra.mxu0 %v399
        %v401 = vand.u32 %v316, 4294901760
        %402 = vmatprep.subr.mxu0 %v401
        %v403 = vand.u32 %v315, 4294901760
        %404 = vmatpush1.msra.mxu0 %v403
        %v405 = vand.u32 %v318, 4294901760
        %406 = vmatprep.subr.mxu0 %v405
        %v407 = vand.u32 %v317, 4294901760
        %408 = vmatpush1.msra.mxu0 %v407
        %v409 = vand.u32 %v320, 4294901760
        %410 = vmatprep.subr.mxu0 %v409
        %v411 = vand.u32 %v319, 4294901760
        %412 = vmatpush1.msra.mxu0 %v411
        %v413 = vand.u32 %v322, 4294901760
        %414 = vmatprep.subr.mxu0 %v413
        %v415 = vand.u32 %v321, 4294901760
        %416 = vmatpush1.msra.mxu0 %v415
        %v417 = vand.u32 %v324, 4294901760
        %418 = vmatprep.subr.mxu0 %v417
        %v419 = vand.u32 %v323, 4294901760
        %420 = vmatpush1.msra.mxu0 %v419
        %v421 = vand.u32 %v326, 4294901760
        %422 = vmatprep.subr.mxu0 %v421
        %v423 = vand.u32 %v325, 4294901760
        %424 = vmatpush1.msra.mxu0 %v423
        %v425 = vand.u32 %v328, 4294901760
        %426 = vmatprep.subr.mxu0 %v425
        %v427 = vand.u32 %v327, 4294901760
        %428 = vmatpush1.msra.mxu0 %v427
        %v429 = vand.u32 %v330, 4294901760
        %430 = vmatprep.subr.mxu0 %v429
        %v431 = vand.u32 %v329, 4294901760
        %432 = vmatpush1.msra.mxu0 %v431
        %v433 = vand.u32 %v332, 4294901760
        %434 = vmatprep.subr.mxu0 %v433
        %v435 = vand.u32 %v331, 4294901760
        %436 = vmatpush1.msra.mxu0 %v435
        %v437 = vand.u32 %v334, 4294901760
        %438 = vmatprep.subr.mxu0 %v437
        %v439 = vand.u32 %v333, 4294901760
        %440 = vmatpush1.msra.mxu0 %v439
        %v441 = vand.u32 %v336, 4294901760
        %442 = vmatprep.subr.mxu0 %v441
        %v443 = vand.u32 %v335, 4294901760
        %444 = vmatpush1.msra.mxu0 %v443
        %v445 = vand.u32 %v338, 4294901760
        %446 = vmatprep.subr.mxu0 %v445
        %v447 = vand.u32 %v337, 4294901760
        %448 = vmatpush1.msra.mxu0 %v447
        %v449 = vand.u32 %v340, 4294901760
        %450 = vmatprep.subr.mxu0 %v449
        %v451 = vand.u32 %v339, 4294901760
        %452 = vmatpush1.msra.mxu0 %v451
        %v453 = vand.u32 %v342, 4294901760
        %454 = vmatprep.subr.mxu0 %v453
        %v455 = vand.u32 %v341, 4294901760
        %456 = vmatpush1.msra.mxu0 %v455
        %v457 = vand.u32 %v344, 4294901760
        %458 = vmatprep.subr.mxu0 %v457
        %v459 = vand.u32 %v343, 4294901760
        %460 = vmatpush1.msra.mxu0 %v459
        %v461 = vand.u32 %v346, 4294901760
        %462 = vmatprep.subr.mxu0 %v461
        %v463 = vand.u32 %v345, 4294901760
        %464 = vmatpush1.msra.mxu0 %v463
        %v465 = vand.u32 %v348, 4294901760
        %466 = vmatprep.subr.mxu0 %v465
        %v467 = vand.u32 %v347, 4294901760
        %468 = vmatpush1.msra.mxu0 %v467
        %v469 = vand.u32 %v350, 4294901760
        %470 = vmatprep.subr.mxu0 %v469
        %v471 = vand.u32 %v349, 4294901760
        %472 = vmatpush1.msra.mxu0 %v471
        %v473 = vand.u32 %v352, 4294901760
        %474 = vmatprep.subr.mxu0 %v473
        %v475 = vand.u32 %v351, 4294901760
        %476 = vmatpush1.msra.mxu0 %v475
        %v477 = vand.u32 %v354, 4294901760
        %478 = vmatprep.subr.mxu0 %v477
        %v479 = vand.u32 %v353, 4294901760
        %480 = vmatpush1.msra.mxu0 %v479
        %v481 = vand.u32 %v356, 4294901760
        %482 = vmatprep.subr.mxu0 %v481
        %v483 = vand.u32 %v355, 4294901760
        %484 = vmatpush1.msra.mxu0 %v483
        %v485 = vand.u32 %v230, 4294901760
        %v486 = vsub.f32 %v230, %v485
        %v487 = vand.u32 %v486, 4294901760
        %v488 = vsub.f32 %v486, %v487
        %v489 = vand.u32 %v488, 4294901760
        %490 = vmatprep.mubr.f32.mxu0 %v489
        %v491 = vand.u32 %v229, 4294901760
        %v492 = vsub.f32 %v229, %v491
        %v493 = vand.u32 %v492, 4294901760
        %v494 = vsub.f32 %v492, %v493
        %v495 = vand.u32 %v494, 4294901760
        %496 = vmatmul.mubr.f32.gmra.mrb[0].mxu0 %v495
        %v497 = vpop.f32.mrb[0].mxu0
        %v498 = vadd.f32 0.0, %v497
        %v499 = vpop.f32.mrb[0].mxu0
        %v500 = vadd.f32 0.0, %v499
        %v501 = vand.u32 %v232, 4294901760
        %v502 = vsub.f32 %v232, %v501
        %v503 = vand.u32 %v502, 4294901760
        %v504 = vsub.f32 %v502, %v503
        %v505 = vand.u32 %v504, 4294901760
        %506 = vmatprep.mubr.f32.mxu0 %v505
        %v507 = vand.u32 %v231, 4294901760
        %v508 = vsub.f32 %v231, %v507
        %v509 = vand.u32 %v508, 4294901760
        %v510 = vsub.f32 %v508, %v509
        %v511 = vand.u32 %v510, 4294901760
        %512 = vmatmul.mubr.f32.gmra.mrb[0].mxu0 %v511
        %v513 = vpop.f32.mrb[0].mxu0
        %v514 = vadd.f32 0.0, %v513
        %v515 = vpop.f32.mrb[0].mxu0
        %v516 = vadd.f32 0.0, %v515
        %v517 = vand.u32 %v234, 4294901760
        %v518 = vsub.f32 %v234, %v517
        %v519 = vand.u32 %v518, 4294901760
        %v520 = vsub.f32 %v518, %v519
        %v521 = vand.u32 %v520, 4294901760
        %522 = vmatprep.mubr.f32.mxu0 %v521
        %v523 = vand.u32 %v233, 4294901760
        %v524 = vsub.f32 %v233, %v523
        %v525 = vand.u32 %v524, 4294901760
        %v526 = vsub.f32 %v524, %v525
        %v527 = vand.u32 %v526, 4294901760
        %528 = vmatmul.mubr.f32.gmra.mrb[0].mxu0 %v527
        %v529 = vpop.f32.mrb[0].mxu0
        %v530 = vadd.f32 0.0, %v529
        %v531 = vpop.f32.mrb[0].mxu0
        %v532 = vadd.f32 0.0, %v531
        %v533 = vand.u32 %v236, 4294901760
        %v534 = vsub.f32 %v236, %v533
        %v535 = vand.u32 %v534, 4294901760
        %v536 = vsub.f32 %v534, %v535
        %v537 = vand.u32 %v536, 4294901760
        %538 = vmatprep.mubr.f32.mxu0 %v537
        %v539 = vand.u32 %v235, 4294901760
        %v540 = vsub.f32 %v235, %v539
        %v541 = vand.u32 %v540, 4294901760
        %v542 = vsub.f32 %v540, %v541
        %v543 = vand.u32 %v542, 4294901760
        %544 = vmatmul.mubr.f32.gmra.mrb[0].mxu0 %v543
        %v545 = vpop.f32.mrb[0].mxu0
        %v546 = vadd.f32 0.0, %v545
        %v547 = vpop.f32.mrb[0].mxu0
        %v548 = vadd.f32 0.0, %v547
        %v549 = vand.u32 %v238, 4294901760
        %v550 = vsub.f32 %v238, %v549
        %v551 = vand.u32 %v550, 4294901760
        %v552 = vsub.f32 %v550, %v551
        %v553 = vand.u32 %v552, 4294901760
        %554 = vmatprep.mubr.f32.mxu0 %v553
        %v555 = vand.u32 %v237, 4294901760
        %v556 = vsub.f32 %v237, %v555
        %v557 = vand.u32 %v556, 4294901760
        %v558 = vsub.f32 %v556, %v557
        %v559 = vand.u32 %v558, 4294901760
        %560 = vmatmul.mubr.f32.gmra.mrb[0].mxu0 %v559
        %v561 = vpop.f32.mrb[0].mxu0
        %v562 = vadd.f32 0.0, %v561
        %v563 = vpop.f32.mrb[0].mxu0
        %v564 = vadd.f32 0.0, %v563
        %v565 = vand.u32 %v240, 4294901760
        %v566 = vsub.f32 %v240, %v565
        %v567 = vand.u32 %v566, 4294901760
        %v568 = vsub.f32 %v566, %v567
        %v569 = vand.u32 %v568, 4294901760
        %570 = vmatprep.mubr.f32.mxu0 %v569
        %v571 = vand.u32 %v239, 4294901760
        %v572 = vsub.f32 %v239, %v571
        %v573 = vand.u32 %v572, 4294901760
        %v574 = vsub.f32 %v572, %v573
        %v575 = vand.u32 %v574, 4294901760
        %576 = vmatmul.mubr.f32.gmra.mrb[0].mxu0 %v575
        %v577 = vpop.f32.mrb[0].mxu0
        %v578 = vadd.f32 0.0, %v577
        %v579 = vpop.f32.mrb[0].mxu0
        %v580 = vadd.f32 0.0, %v579
        %v581 = vand.u32 %v242, 4294901760
        %v582 = vsub.f32 %v242, %v581
        %v583 = vand.u32 %v582, 4294901760
        %v584 = vsub.f32 %v582, %v583
        %v585 = vand.u32 %v584, 4294901760
        %586 = vmatprep.mubr.f32.mxu0 %v585
        %v587 = vand.u32 %v241, 4294901760
        %v588 = vsub.f32 %v241, %v587
        %v589 = vand.u32 %v588, 4294901760
        %v590 = vsub.f32 %v588, %v589
        %v591 = vand.u32 %v590, 4294901760
        %592 = vmatmul.mubr.f32.gmra.mrb[0].mxu0 %v591
        %v593 = vpop.f32.mrb[0].mxu0
        %v594 = vadd.f32 0.0, %v593
        %v595 = vpop.f32.mrb[0].mxu0
        %v596 = vadd.f32 0.0, %v595
        %v597 = vand.u32 %v244, 4294901760
        %v598 = vsub.f32 %v244, %v597
        %v599 = vand.u32 %v598, 4294901760
        %v600 = vsub.f32 %v598, %v599
        %v601 = vand.u32 %v600, 4294901760
        %602 = vmatprep.mubr.f32.mxu0 %v601
        %v603 = vand.u32 %v243, 4294901760
        %v604 = vsub.f32 %v243, %v603
        %v605 = vand.u32 %v604, 4294901760
        %v606 = vsub.f32 %v604, %v605
        %v607 = vand.u32 %v606, 4294901760
        %608 = vmatmul.mubr.f32.gmra.mrb[0].mxu0 %v607
        %v609 = vpop.f32.mrb[0].mxu0
        %v610 = vadd.f32 0.0, %v609
        %v611 = vpop.f32.mrb[0].mxu0
        %v612 = vadd.f32 0.0, %v611
        %v613 = vand.u32 %v246, 4294901760
        %v614 = vsub.f32 %v246, %v613
        %v615 = vand.u32 %v614, 4294901760
        %v616 = vsub.f32 %v614, %v615
        %v617 = vand.u32 %v616, 4294901760
        %618 = vmatprep.mubr.f32.mxu0 %v617
        %v619 = vand.u32 %v245, 4294901760
        %v620 = vsub.f32 %v245, %v619
        %v621 = vand.u32 %v620, 4294901760
        %v622 = vsub.f32 %v620, %v621
        %v623 = vand.u32 %v622, 4294901760
        %624 = vmatmul.mubr.f32.gmra.mrb[0].mxu0 %v623
        %v625 = vpop.f32.mrb[0].mxu0
        %v626 = vadd.f32 0.0, %v625
        %v627 = vpop.f32.mrb[0].mxu0
        %v628 = vadd.f32 0.0, %v627
        %v629 = vand.u32 %v248, 4294901760
        %v630 = vsub.f32 %v248, %v629
        %v631 = vand.u32 %v630, 4294901760
        %v632 = vsub.f32 %v630, %v631
        %v633 = vand.u32 %v632, 4294901760
        %634 = vmatprep.mubr.f32.mxu0 %v633
        %v635 = vand.u32 %v247, 4294901760
        %v636 = vsub.f32 %v247, %v635
        %v637 = vand.u32 %v636, 4294901760
        %v638 = vsub.f32 %v636, %v637
        %v639 = vand.u32 %v638, 4294901760
        %640 = vmatmul.mubr.f32.gmra.mrb[0].mxu0 %v639
        %v641 = vpop.f32.mrb[0].mxu0
        %v642 = vadd.f32 0.0, %v641
        %v643 = vpop.f32.mrb[0].mxu0
        %v644 = vadd.f32 0.0, %v643
        %v645 = vand.u32 %v250, 4294901760
        %v646 = vsub.f32 %v250, %v645
        %v647 = vand.u32 %v646, 4294901760
        %v648 = vsub.f32 %v646, %v647
        %v649 = vand.u32 %v648, 4294901760
        %650 = vmatprep.mubr.f32.mxu0 %v649
        %v651 = vand.u32 %v249, 4294901760
        %v652 = vsub.f32 %v249, %v651
        %v653 = vand.u32 %v652, 4294901760
        %v654 = vsub.f32 %v652, %v653
        %v655 = vand.u32 %v654, 4294901760
        %656 = vmatmul.mubr.f32.gmra.mrb[0].mxu0 %v655
        %v657 = vpop.f32.mrb[0].mxu0
        %v658 = vadd.f32 0.0, %v657
        %v659 = vpop.f32.mrb[0].mxu0
        %v660 = vadd.f32 0.0, %v659
        %v661 = vand.u32 %v252, 4294901760
        %v662 = vsub.f32 %v252, %v661
        %v663 = vand.u32 %v662, 4294901760
        %v664 = vsub.f32 %v662, %v663
        %v665 = vand.u32 %v664, 4294901760
        %666 = vmatprep.mubr.f32.mxu0 %v665
        %v667 = vand.u32 %v251, 4294901760
        %v668 = vsub.f32 %v251, %v667
        %v669 = vand.u32 %v668, 4294901760
        %v670 = vsub.f32 %v668, %v669
        %v671 = vand.u32 %v670, 4294901760
        %672 = vmatmul.mubr.f32.gmra.mrb[0].mxu0 %v671
        %v673 = vpop.f32.mrb[0].mxu0
        %v674 = vadd.f32 0.0, %v673
        %v675 = vpop.f32.mrb[0].mxu0
        %v676 = vadd.f32 0.0, %v675
        %v677 = vand.u32 %v254, 4294901760
        %v678 = vsub.f32 %v254, %v677
        %v679 = vand.u32 %v678, 4294901760
        %v680 = vsub.f32 %v678, %v679
        %v681 = vand.u32 %v680, 4294901760
        %682 = vmatprep.mubr.f32.mxu0 %v681
        %v683 = vand.u32 %v253, 4294901760
        %v684 = vsub.f32 %v253, %v683
        %v685 = vand.u32 %v684, 4294901760
        %v686 = vsub.f32 %v684, %v685
        %v687 = vand.u32 %v686, 4294901760
        %688 = vmatmul.mubr.f32.gmra.mrb[0].mxu0 %v687
        %v689 = vpop.f32.mrb[0].mxu0
        %v690 = vadd.f32 0.0, %v689
        %v691 = vpop.f32.mrb[0].mxu0
        %v692 = vadd.f32 0.0, %v691
        %v693 = vand.u32 %v256, 4294901760
        %v694 = vsub.f32 %v256, %v693
        %v695 = vand.u32 %v694, 4294901760
        %v696 = vsub.f32 %v694, %v695
        %v697 = vand.u32 %v696, 4294901760
        %698 = vmatprep.mubr.f32.mxu0 %v697
        %v699 = vand.u32 %v255, 4294901760
        %v700 = vsub.f32 %v255, %v699
        %v701 = vand.u32 %v700, 4294901760
        %v702 = vsub.f32 %v700, %v701
        %v703 = vand.u32 %v702, 4294901760
        %704 = vmatmul.mubr.f32.gmra.mrb[0].mxu0 %v703
        %v705 = vpop.f32.mrb[0].mxu0
        %v706 = vadd.f32 0.0, %v705
        %v707 = vpop.f32.mrb[0].mxu0
        %v708 = vadd.f32 0.0, %v707
        %v709 = vand.u32 %v258, 4294901760
        %v710 = vsub.f32 %v258, %v709
        %v711 = vand.u32 %v710, 4294901760
        %v712 = vsub.f32 %v710, %v711
        %v713 = vand.u32 %v712, 4294901760
        %714 = vmatprep.mubr.f32.mxu0 %v713
        %v715 = vand.u32 %v257, 4294901760
        %v716 = vsub.f32 %v257, %v715
        %v717 = vand.u32 %v716, 4294901760
        %v718 = vsub.f32 %v716, %v717
        %v719 = vand.u32 %v718, 4294901760
        %720 = vmatmul.mubr.f32.gmra.mrb[0].mxu0 %v719
        %v721 = vpop.f32.mrb[0].mxu0
        %v722 = vadd.f32 0.0, %v721
        %v723 = vpop.f32.mrb[0].mxu0
        %v724 = vadd.f32 0.0, %v723
        %v725 = vand.u32 %v260, 4294901760
        %v726 = vsub.f32 %v260, %v725
        %v727 = vand.u32 %v726, 4294901760
        %v728 = vsub.f32 %v726, %v727
        %v729 = vand.u32 %v728, 4294901760
        %730 = vmatprep.mubr.f32.mxu0 %v729
        %v731 = vand.u32 %v259, 4294901760
        %v732 = vsub.f32 %v259, %v731
        %v733 = vand.u32 %v732, 4294901760
        %v734 = vsub.f32 %v732, %v733
        %v735 = vand.u32 %v734, 4294901760
        %736 = vmatmul.mubr.f32.gmra.mrb[0].mxu0 %v735
        %v737 = vpop.f32.mrb[0].mxu0
        %v738 = vadd.f32 0.0, %v737
        %v739 = vpop.f32.mrb[0].mxu0
        %v740 = vadd.f32 0.0, %v739
        %v741 = vand.u32 %v262, 4294901760
        %v742 = vsub.f32 %v262, %v741
        %v743 = vand.u32 %v742, 4294901760
        %v744 = vsub.f32 %v742, %v743
        %v745 = vand.u32 %v744, 4294901760
        %746 = vmatprep.mubr.f32.mxu0 %v745
        %v747 = vand.u32 %v261, 4294901760
        %v748 = vsub.f32 %v261, %v747
        %v749 = vand.u32 %v748, 4294901760
        %v750 = vsub.f32 %v748, %v749
        %v751 = vand.u32 %v750, 4294901760
        %752 = vmatmul.mubr.f32.gmra.mrb[0].mxu0 %v751
        %v753 = vpop.f32.mrb[0].mxu0
        %v754 = vadd.f32 0.0, %v753
        %v755 = vpop.f32.mrb[0].mxu0
        %v756 = vadd.f32 0.0, %v755
        %v757 = vand.u32 %v264, 4294901760
        %v758 = vsub.f32 %v264, %v757
        %v759 = vand.u32 %v758, 4294901760
        %v760 = vsub.f32 %v758, %v759
        %v761 = vand.u32 %v760, 4294901760
        %762 = vmatprep.mubr.f32.mxu0 %v761
        %v763 = vand.u32 %v263, 4294901760
        %v764 = vsub.f32 %v263, %v763
        %v765 = vand.u32 %v764, 4294901760
        %v766 = vsub.f32 %v764, %v765
        %v767 = vand.u32 %v766, 4294901760
        %768 = vmatmul.mubr.f32.gmra.mrb[0].mxu0 %v767
        %v769 = vpop.f32.mrb[0].mxu0
        %v770 = vadd.f32 0.0, %v769
        %v771 = vpop.f32.mrb[0].mxu0
        %v772 = vadd.f32 0.0, %v771
        %v773 = vand.u32 %v266, 4294901760
        %v774 = vsub.f32 %v266, %v773
        %v775 = vand.u32 %v774, 4294901760
        %v776 = vsub.f32 %v774, %v775
        %v777 = vand.u32 %v776, 4294901760
        %778 = vmatprep.mubr.f32.mxu0 %v777
        %v779 = vand.u32 %v265, 4294901760
        %v780 = vsub.f32 %v265, %v779
        %v781 = vand.u32 %v780, 4294901760
        %v782 = vsub.f32 %v780, %v781
        %v783 = vand.u32 %v782, 4294901760
        %784 = vmatmul.mubr.f32.gmra.mrb[0].mxu0 %v783
        %v785 = vpop.f32.mrb[0].mxu0
        %v786 = vadd.f32 0.0, %v785
        %v787 = vpop.f32.mrb[0].mxu0
        %v788 = vadd.f32 0.0, %v787
        %v789 = vand.u32 %v268, 4294901760
        %v790 = vsub.f32 %v268, %v789
        %v791 = vand.u32 %v790, 4294901760
        %v792 = vsub.f32 %v790, %v791
        %v793 = vand.u32 %v792, 4294901760
        %794 = vmatprep.mubr.f32.mxu0 %v793
        %v795 = vand.u32 %v267, 4294901760
        %v796 = vsub.f32 %v267, %v795
        %v797 = vand.u32 %v796, 4294901760
        %v798 = vsub.f32 %v796, %v797
        %v799 = vand.u32 %v798, 4294901760
        %800 = vmatmul.mubr.f32.gmra.mrb[0].mxu0 %v799
        %v801 = vpop.f32.mrb[0].mxu0
        %v802 = vadd.f32 0.0, %v801
        %v803 = vpop.f32.mrb[0].mxu0
        %v804 = vadd.f32 0.0, %v803
        %v805 = vand.u32 %v270, 4294901760
        %v806 = vsub.f32 %v270, %v805
        %v807 = vand.u32 %v806, 4294901760
        %v808 = vsub.f32 %v806, %v807
        %v809 = vand.u32 %v808, 4294901760
        %810 = vmatprep.mubr.f32.mxu0 %v809
        %v811 = vand.u32 %v269, 4294901760
        %v812 = vsub.f32 %v269, %v811
        %v813 = vand.u32 %v812, 4294901760
        %v814 = vsub.f32 %v812, %v813
        %v815 = vand.u32 %v814, 4294901760
        %816 = vmatmul.mubr.f32.gmra.mrb[0].mxu0 %v815
        %v817 = vpop.f32.mrb[0].mxu0
        %v818 = vadd.f32 0.0, %v817
        %v819 = vpop.f32.mrb[0].mxu0
        %v820 = vadd.f32 0.0, %v819
        %v821 = vand.u32 %v272, 4294901760
        %v822 = vsub.f32 %v272, %v821
        %v823 = vand.u32 %v822, 4294901760
        %v824 = vsub.f32 %v822, %v823
        %v825 = vand.u32 %v824, 4294901760
        %826 = vmatprep.mubr.f32.mxu0 %v825
        %v827 = vand.u32 %v271, 4294901760
        %v828 = vsub.f32 %v271, %v827
        %v829 = vand.u32 %v828, 4294901760
        %v830 = vsub.f32 %v828, %v829
        %v831 = vand.u32 %v830, 4294901760
        %832 = vmatmul.mubr.f32.gmra.mrb[0].mxu0 %v831
        %v833 = vpop.f32.mrb[0].mxu0
        %v834 = vadd.f32 0.0, %v833
        %v835 = vpop.f32.mrb[0].mxu0
        %v836 = vadd.f32 0.0, %v835
        %v837 = vand.u32 %v274, 4294901760
        %v838 = vsub.f32 %v274, %v837
        %v839 = vand.u32 %v838, 4294901760
        %v840 = vsub.f32 %v838, %v839
        %v841 = vand.u32 %v840, 4294901760
        %842 = vmatprep.mubr.f32.mxu0 %v841
        %v843 = vand.u32 %v273, 4294901760
        %v844 = vsub.f32 %v273, %v843
        %v845 = vand.u32 %v844, 4294901760
        %v846 = vsub.f32 %v844, %v845
        %v847 = vand.u32 %v846, 4294901760
        %848 = vmatmul.mubr.f32.gmra.mrb[0].mxu0 %v847
        %v849 = vpop.f32.mrb[0].mxu0
        %v850 = vadd.f32 0.0, %v849
        %v851 = vpop.f32.mrb[0].mxu0
        %v852 = vadd.f32 0.0, %v851
        %v853 = vand.u32 %v276, 4294901760
        %v854 = vsub.f32 %v276, %v853
        %v855 = vand.u32 %v854, 4294901760
        %v856 = vsub.f32 %v854, %v855
        %v857 = vand.u32 %v856, 4294901760
        %858 = vmatprep.mubr.f32.mxu0 %v857
        %v859 = vand.u32 %v275, 4294901760
        %v860 = vsub.f32 %v275, %v859
        %v861 = vand.u32 %v860, 4294901760
        %v862 = vsub.f32 %v860, %v861
        %v863 = vand.u32 %v862, 4294901760
        %864 = vmatmul.mubr.f32.gmra.mrb[0].mxu0 %v863
        %v865 = vpop.f32.mrb[0].mxu0
        %v866 = vadd.f32 0.0, %v865
        %v867 = vpop.f32.mrb[0].mxu0
        %v868 = vadd.f32 0.0, %v867
        %v869 = vand.u32 %v278, 4294901760
        %v870 = vsub.f32 %v278, %v869
        %v871 = vand.u32 %v870, 4294901760
        %v872 = vsub.f32 %v870, %v871
        %v873 = vand.u32 %v872, 4294901760
        %874 = vmatprep.mubr.f32.mxu0 %v873
        %v875 = vand.u32 %v277, 4294901760
        %v876 = vsub.f32 %v277, %v875
        %v877 = vand.u32 %v876, 4294901760
        %v878 = vsub.f32 %v876, %v877
        %v879 = vand.u32 %v878, 4294901760
        %880 = vmatmul.mubr.f32.gmra.mrb[0].mxu0 %v879
        %v881 = vpop.f32.mrb[0].mxu0
        %v882 = vadd.f32 0.0, %v881
        %v883 = vpop.f32.mrb[0].mxu0
        %v884 = vadd.f32 0.0, %v883
        %v885 = vand.u32 %v280, 4294901760
        %v886 = vsub.f32 %v280, %v885
        %v887 = vand.u32 %v886, 4294901760
        %v888 = vsub.f32 %v886, %v887
        %v889 = vand.u32 %v888, 4294901760
        %890 = vmatprep.mubr.f32.mxu0 %v889
        %v891 = vand.u32 %v279, 4294901760
        %v892 = vsub.f32 %v279, %v891
        %v893 = vand.u32 %v892, 4294901760
        %v894 = vsub.f32 %v892, %v893
        %v895 = vand.u32 %v894, 4294901760
        %896 = vmatmul.mubr.f32.gmra.mrb[0].mxu0 %v895
        %v897 = vpop.f32.mrb[0].mxu0
        %v898 = vadd.f32 0.0, %v897
        %v899 = vpop.f32.mrb[0].mxu0
        %v900 = vadd.f32 0.0, %v899
        %v901 = vand.u32 %v282, 4294901760
        %v902 = vsub.f32 %v282, %v901
        %v903 = vand.u32 %v902, 4294901760
        %v904 = vsub.f32 %v902, %v903
        %v905 = vand.u32 %v904, 4294901760
        %906 = vmatprep.mubr.f32.mxu0 %v905
        %v907 = vand.u32 %v281, 4294901760
        %v908 = vsub.f32 %v281, %v907
        %v909 = vand.u32 %v908, 4294901760
        %v910 = vsub.f32 %v908, %v909
        %v911 = vand.u32 %v910, 4294901760
        %912 = vmatmul.mubr.f32.gmra.mrb[0].mxu0 %v911
        %v913 = vpop.f32.mrb[0].mxu0
        %v914 = vadd.f32 0.0, %v913
        %v915 = vpop.f32.mrb[0].mxu0
        %v916 = vadd.f32 0.0, %v915
        %v917 = vand.u32 %v284, 4294901760
        %v918 = vsub.f32 %v284, %v917
        %v919 = vand.u32 %v918, 4294901760
        %v920 = vsub.f32 %v918, %v919
        %v921 = vand.u32 %v920, 4294901760
        %922 = vmatprep.mubr.f32.mxu0 %v921
        %v923 = vand.u32 %v283, 4294901760
        %v924 = vsub.f32 %v283, %v923
        %v925 = vand.u32 %v924, 4294901760
        %v926 = vsub.f32 %v924, %v925
        %v927 = vand.u32 %v926, 4294901760
        %928 = vmatmul.mubr.f32.gmra.mrb[0].mxu0 %v927
        %v929 = vpop.f32.mrb[0].mxu0
        %v930 = vadd.f32 0.0, %v929
        %v931 = vpop.f32.mrb[0].mxu0
        %v932 = vadd.f32 0.0, %v931
        %v933 = vand.u32 %v286, 4294901760
        %v934 = vsub.f32 %v286, %v933
        %v935 = vand.u32 %v934, 4294901760
        %v936 = vsub.f32 %v934, %v935
        %v937 = vand.u32 %v936, 4294901760
        %938 = vmatprep.mubr.f32.mxu0 %v937
        %v939 = vand.u32 %v285, 4294901760
        %v940 = vsub.f32 %v285, %v939
        %v941 = vand.u32 %v940, 4294901760
        %v942 = vsub.f32 %v940, %v941
        %v943 = vand.u32 %v942, 4294901760
        %944 = vmatmul.mubr.f32.gmra.mrb[0].mxu0 %v943
        %v945 = vpop.f32.mrb[0].mxu0
        %v946 = vadd.f32 0.0, %v945
        %v947 = vpop.f32.mrb[0].mxu0
        %v948 = vadd.f32 0.0, %v947
        %v949 = vand.u32 %v288, 4294901760
        %v950 = vsub.f32 %v288, %v949
        %v951 = vand.u32 %v950, 4294901760
        %v952 = vsub.f32 %v950, %v951
        %v953 = vand.u32 %v952, 4294901760
        %954 = vmatprep.mubr.f32.mxu0 %v953
        %v955 = vand.u32 %v287, 4294901760
        %v956 = vsub.f32 %v287, %v955
        %v957 = vand.u32 %v956, 4294901760
        %v958 = vsub.f32 %v956, %v957
        %v959 = vand.u32 %v958, 4294901760
        %960 = vmatmul.mubr.f32.gmra.mrb[0].mxu0 %v959
        %v961 = vpop.f32.mrb[0].mxu0
        %v962 = vadd.f32 0.0, %v961
        %v963 = vpop.f32.mrb[0].mxu0
        %v964 = vadd.f32 0.0, %v963
        %v965 = vand.u32 %v290, 4294901760
        %v966 = vsub.f32 %v290, %v965
        %v967 = vand.u32 %v966, 4294901760
        %v968 = vsub.f32 %v966, %v967
        %v969 = vand.u32 %v968, 4294901760
        %970 = vmatprep.mubr.f32.mxu0 %v969
        %v971 = vand.u32 %v289, 4294901760
        %v972 = vsub.f32 %v289, %v971
        %v973 = vand.u32 %v972, 4294901760
        %v974 = vsub.f32 %v972, %v973
        %v975 = vand.u32 %v974, 4294901760
        %976 = vmatmul.mubr.f32.gmra.mrb[0].mxu0 %v975
        %v977 = vpop.f32.mrb[0].mxu0
        %v978 = vadd.f32 0.0, %v977
        %v979 = vpop.f32.mrb[0].mxu0
        %v980 = vadd.f32 0.0, %v979
        %v981 = vand.u32 %v292, 4294901760
        %v982 = vsub.f32 %v292, %v981
        %v983 = vand.u32 %v982, 4294901760
        %v984 = vsub.f32 %v982, %v983
        %v985 = vand.u32 %v984, 4294901760
        %986 = vmatprep.mubr.f32.mxu0 %v985
        %v987 = vand.u32 %v291, 4294901760
        %v988 = vsub.f32 %v291, %v987
        %v989 = vand.u32 %v988, 4294901760
        %v990 = vsub.f32 %v988, %v989
        %v991 = vand.u32 %v990, 4294901760
        %992 = vmatmul.mubr.f32.gmra.mrb[0].mxu0 %v991
        %v993 = vpop.f32.mrb[0].mxu0
        %v994 = vadd.f32 0.0, %v993
        %v995 = vpop.f32.mrb[0].mxu0
        %v996 = vadd.f32 0.0, %v995
        %997 = vdwg.mxu0
        %v998 = vand.u32 %v294, 4294901760
        %v999 = vsub.f32 %v294, %v998
        %v1000 = vand.u32 %v999, 4294901760
        %v1001 = vsub.f32 %v999, %v1000
        %v1002 = vand.u32 %v1001, 4294901760
        %1003 = vmatprep.subr.mxu0 %v1002
        %v1004 = vand.u32 %v293, 4294901760
        %v1005 = vsub.f32 %v293, %v1004
        %v1006 = vand.u32 %v1005, 4294901760
        %v1007 = vsub.f32 %v1005, %v1006
        %v1008 = vand.u32 %v1007, 4294901760
        %1009 = vmatpush1.msra.mxu0 %v1008
        %v1010 = vand.u32 %v296, 4294901760
        %v1011 = vsub.f32 %v296, %v1010
        %v1012 = vand.u32 %v1011, 4294901760
        %v1013 = vsub.f32 %v1011, %v1012
        %v1014 = vand.u32 %v1013, 4294901760
        %1015 = vmatprep.subr.mxu0 %v1014
        %v1016 = vand.u32 %v295, 4294901760
        %v1017 = vsub.f32 %v295, %v1016
        %v1018 = vand.u32 %v1017, 4294901760
        %v1019 = vsub.f32 %v1017, %v1018
        %v1020 = vand.u32 %v1019, 4294901760
        %1021 = vmatpush1.msra.mxu0 %v1020
        %v1022 = vand.u32 %v298, 4294901760
        %v1023 = vsub.f32 %v298, %v1022
        %v1024 = vand.u32 %v1023, 4294901760
        %v1025 = vsub.f32 %v1023, %v1024
        %v1026 = vand.u32 %v1025, 4294901760
        %1027 = vmatprep.subr.mxu0 %v1026
        %v1028 = vand.u32 %v297, 4294901760
        %v1029 = vsub.f32 %v297, %v1028
        %v1030 = vand.u32 %v1029, 4294901760
        %v1031 = vsub.f32 %v1029, %v1030
        %v1032 = vand.u32 %v1031, 4294901760
        %1033 = vmatpush1.msra.mxu0 %v1032
        %v1034 = vand.u32 %v300, 4294901760
        %v1035 = vsub.f32 %v300, %v1034
        %v1036 = vand.u32 %v1035, 4294901760
        %v1037 = vsub.f32 %v1035, %v1036
        %v1038 = vand.u32 %v1037, 4294901760
        %1039 = vmatprep.subr.mxu0 %v1038
        %v1040 = vand.u32 %v299, 4294901760
        %v1041 = vsub.f32 %v299, %v1040
        %v1042 = vand.u32 %v1041, 4294901760
        %v1043 = vsub.f32 %v1041, %v1042
        %v1044 = vand.u32 %v1043, 4294901760
        %1045 = vmatpush1.msra.mxu0 %v1044
        %v1046 = vand.u32 %v302, 4294901760
        %v1047 = vsub.f32 %v302, %v1046
        %v1048 = vand.u32 %v1047, 4294901760
        %v1049 = vsub.f32 %v1047, %v1048
        %v1050 = vand.u32 %v1049, 4294901760
        %1051 = vmatprep.subr.mxu0 %v1050
        %v1052 = vand.u32 %v301, 4294901760
        %v1053 = vsub.f32 %v301, %v1052
        %v1054 = vand.u32 %v1053, 4294901760
        %v1055 = vsub.f32 %v1053, %v1054
        %v1056 = vand.u32 %v1055, 4294901760
        %1057 = vmatpush1.msra.mxu0 %v1056
        %v1058 = vand.u32 %v304, 4294901760
        %v1059 = vsub.f32 %v304, %v1058
        %v1060 = vand.u32 %v1059, 4294901760
        %v1061 = vsub.f32 %v1059, %v1060
        %v1062 = vand.u32 %v1061, 4294901760
        %1063 = vmatprep.subr.mxu0 %v1062
        %v1064 = vand.u32 %v303, 4294901760
        %v1065 = vsub.f32 %v303, %v1064
        %v1066 = vand.u32 %v1065, 4294901760
        %v1067 = vsub.f32 %v1065, %v1066
        %v1068 = vand.u32 %v1067, 4294901760
        %1069 = vmatpush1.msra.mxu0 %v1068
        %v1070 = vand.u32 %v306, 4294901760
        %v1071 = vsub.f32 %v306, %v1070
        %v1072 = vand.u32 %v1071, 4294901760
        %v1073 = vsub.f32 %v1071, %v1072
        %v1074 = vand.u32 %v1073, 4294901760
        %1075 = vmatprep.subr.mxu0 %v1074
        %v1076 = vand.u32 %v305, 4294901760
        %v1077 = vsub.f32 %v305, %v1076
        %v1078 = vand.u32 %v1077, 4294901760
        %v1079 = vsub.f32 %v1077, %v1078
        %v1080 = vand.u32 %v1079, 4294901760
        %1081 = vmatpush1.msra.mxu0 %v1080
        %v1082 = vand.u32 %v308, 4294901760
        %v1083 = vsub.f32 %v308, %v1082
        %v1084 = vand.u32 %v1083, 4294901760
        %v1085 = vsub.f32 %v1083, %v1084
        %v1086 = vand.u32 %v1085, 4294901760
        %1087 = vmatprep.subr.mxu0 %v1086
        %v1088 = vand.u32 %v307, 4294901760
        %v1089 = vsub.f32 %v307, %v1088
        %v1090 = vand.u32 %v1089, 4294901760
        %v1091 = vsub.f32 %v1089, %v1090
        %v1092 = vand.u32 %v1091, 4294901760
        %1093 = vmatpush1.msra.mxu0 %v1092
        %v1094 = vand.u32 %v310, 4294901760
        %v1095 = vsub.f32 %v310, %v1094
        %v1096 = vand.u32 %v1095, 4294901760
        %v1097 = vsub.f32 %v1095, %v1096
        %v1098 = vand.u32 %v1097, 4294901760
        %1099 = vmatprep.subr.mxu0 %v1098
        %v1100 = vand.u32 %v309, 4294901760
        %v1101 = vsub.f32 %v309, %v1100
        %v1102 = vand.u32 %v1101, 4294901760
        %v1103 = vsub.f32 %v1101, %v1102
        %v1104 = vand.u32 %v1103, 4294901760
        %1105 = vmatpush1.msra.mxu0 %v1104
        %v1106 = vand.u32 %v312, 4294901760
        %v1107 = vsub.f32 %v312, %v1106
        %v1108 = vand.u32 %v1107, 4294901760
        %v1109 = vsub.f32 %v1107, %v1108
        %v1110 = vand.u32 %v1109, 4294901760
        %1111 = vmatprep.subr.mxu0 %v1110
        %v1112 = vand.u32 %v311, 4294901760
        %v1113 = vsub.f32 %v311, %v1112
        %v1114 = vand.u32 %v1113, 4294901760
        %v1115 = vsub.f32 %v1113, %v1114
        %v1116 = vand.u32 %v1115, 4294901760
        %1117 = vmatpush1.msra.mxu0 %v1116
        %v1118 = vand.u32 %v314, 4294901760
        %v1119 = vsub.f32 %v314, %v1118
        %v1120 = vand.u32 %v1119, 4294901760
        %v1121 = vsub.f32 %v1119, %v1120
        %v1122 = vand.u32 %v1121, 4294901760
        %1123 = vmatprep.subr.mxu0 %v1122
        %v1124 = vand.u32 %v313, 4294901760
        %v1125 = vsub.f32 %v313, %v1124
        %v1126 = vand.u32 %v1125, 4294901760
        %v1127 = vsub.f32 %v1125, %v1126
        %v1128 = vand.u32 %v1127, 4294901760
        %1129 = vmatpush1.msra.mxu0 %v1128
        %v1130 = vand.u32 %v316, 4294901760
        %v1131 = vsub.f32 %v316, %v1130
        %v1132 = vand.u32 %v1131, 4294901760
        %v1133 = vsub.f32 %v1131, %v1132
        %v1134 = vand.u32 %v1133, 4294901760
        %1135 = vmatprep.subr.mxu0 %v1134
        %v1136 = vand.u32 %v315, 4294901760
        %v1137 = vsub.f32 %v315, %v1136
        %v1138 = vand.u32 %v1137, 4294901760
        %v1139 = vsub.f32 %v1137, %v1138
        %v1140 = vand.u32 %v1139, 4294901760
        %1141 = vmatpush1.msra.mxu0 %v1140
        %v1142 = vand.u32 %v318, 4294901760
        %v1143 = vsub.f32 %v318, %v1142
        %v1144 = vand.u32 %v1143, 4294901760
        %v1145 = vsub.f32 %v1143, %v1144
        %v1146 = vand.u32 %v1145, 4294901760
        %1147 = vmatprep.subr.mxu0 %v1146
        %v1148 = vand.u32 %v317, 4294901760
        %v1149 = vsub.f32 %v317, %v1148
        %v1150 = vand.u32 %v1149, 4294901760
        %v1151 = vsub.f32 %v1149, %v1150
        %v1152 = vand.u32 %v1151, 4294901760
        %1153 = vmatpush1.msra.mxu0 %v1152
        %v1154 = vand.u32 %v320, 4294901760
        %v1155 = vsub.f32 %v320, %v1154
        %v1156 = vand.u32 %v1155, 4294901760
        %v1157 = vsub.f32 %v1155, %v1156
        %v1158 = vand.u32 %v1157, 4294901760
        %1159 = vmatprep.subr.mxu0 %v1158
        %v1160 = vand.u32 %v319, 4294901760
        %v1161 = vsub.f32 %v319, %v1160
        %v1162 = vand.u32 %v1161, 4294901760
        %v1163 = vsub.f32 %v1161, %v1162
        %v1164 = vand.u32 %v1163, 4294901760
        %1165 = vmatpush1.msra.mxu0 %v1164
        %v1166 = vand.u32 %v322, 4294901760
        %v1167 = vsub.f32 %v322, %v1166
        %v1168 = vand.u32 %v1167, 4294901760
        %v1169 = vsub.f32 %v1167, %v1168
        %v1170 = vand.u32 %v1169, 4294901760
        %1171 = vmatprep.subr.mxu0 %v1170
        %v1172 = vand.u32 %v321, 4294901760
        %v1173 = vsub.f32 %v321, %v1172
        %v1174 = vand.u32 %v1173, 4294901760
        %v1175 = vsub.f32 %v1173, %v1174
        %v1176 = vand.u32 %v1175, 4294901760
        %1177 = vmatpush1.msra.mxu0 %v1176
        %v1178 = vand.u32 %v324, 4294901760
        %v1179 = vsub.f32 %v324, %v1178
        %v1180 = vand.u32 %v1179, 4294901760
        %v1181 = vsub.f32 %v1179, %v1180
        %v1182 = vand.u32 %v1181, 4294901760
        %1183 = vmatprep.subr.mxu0 %v1182
        %v1184 = vand.u32 %v323, 4294901760
        %v1185 = vsub.f32 %v323, %v1184
        %v1186 = vand.u32 %v1185, 4294901760
        %v1187 = vsub.f32 %v1185, %v1186
        %v1188 = vand.u32 %v1187, 4294901760
        %1189 = vmatpush1.msra.mxu0 %v1188
        %v1190 = vand.u32 %v326, 4294901760
        %v1191 = vsub.f32 %v326, %v1190
        %v1192 = vand.u32 %v1191, 4294901760
        %v1193 = vsub.f32 %v1191, %v1192
        %v1194 = vand.u32 %v1193, 4294901760
        %1195 = vmatprep.subr.mxu0 %v1194
        %v1196 = vand.u32 %v325, 4294901760
        %v1197 = vsub.f32 %v325, %v1196
        %v1198 = vand.u32 %v1197, 4294901760
        %v1199 = vsub.f32 %v1197, %v1198
        %v1200 = vand.u32 %v1199, 4294901760
        %1201 = vmatpush1.msra.mxu0 %v1200
        %v1202 = vand.u32 %v328, 4294901760
        %v1203 = vsub.f32 %v328, %v1202
        %v1204 = vand.u32 %v1203, 4294901760
        %v1205 = vsub.f32 %v1203, %v1204
        %v1206 = vand.u32 %v1205, 4294901760
        %1207 = vmatprep.subr.mxu0 %v1206
        %v1208 = vand.u32 %v327, 4294901760
        %v1209 = vsub.f32 %v327, %v1208
        %v1210 = vand.u32 %v1209, 4294901760
        %v1211 = vsub.f32 %v1209, %v1210
        %v1212 = vand.u32 %v1211, 4294901760
        %1213 = vmatpush1.msra.mxu0 %v1212
        %v1214 = vand.u32 %v330, 4294901760
        %v1215 = vsub.f32 %v330, %v1214
        %v1216 = vand.u32 %v1215, 4294901760
        %v1217 = vsub.f32 %v1215, %v1216
        %v1218 = vand.u32 %v1217, 4294901760
        %1219 = vmatprep.subr.mxu0 %v1218
        %v1220 = vand.u32 %v329, 4294901760
        %v1221 = vsub.f32 %v329, %v1220
        %v1222 = vand.u32 %v1221, 4294901760
        %v1223 = vsub.f32 %v1221, %v1222
        %v1224 = vand.u32 %v1223, 4294901760
        %1225 = vmatpush1.msra.mxu0 %v1224
        %v1226 = vand.u32 %v332, 4294901760
        %v1227 = vsub.f32 %v332, %v1226
        %v1228 = vand.u32 %v1227, 4294901760
        %v1229 = vsub.f32 %v1227, %v1228
        %v1230 = vand.u32 %v1229, 4294901760
        %1231 = vmatprep.subr.mxu0 %v1230
        %v1232 = vand.u32 %v331, 4294901760
        %v1233 = vsub.f32 %v331, %v1232
        %v1234 = vand.u32 %v1233, 4294901760
        %v1235 = vsub.f32 %v1233, %v1234
        %v1236 = vand.u32 %v1235, 4294901760
        %1237 = vmatpush1.msra.mxu0 %v1236
        %v1238 = vand.u32 %v334, 4294901760
        %v1239 = vsub.f32 %v334, %v1238
        %v1240 = vand.u32 %v1239, 4294901760
        %v1241 = vsub.f32 %v1239, %v1240
        %v1242 = vand.u32 %v1241, 4294901760
        %1243 = vmatprep.subr.mxu0 %v1242
        %v1244 = vand.u32 %v333, 4294901760
        %v1245 = vsub.f32 %v333, %v1244
        %v1246 = vand.u32 %v1245, 4294901760
        %v1247 = vsub.f32 %v1245, %v1246
        %v1248 = vand.u32 %v1247, 4294901760
        %1249 = vmatpush1.msra.mxu0 %v1248
        %v1250 = vand.u32 %v336, 4294901760
        %v1251 = vsub.f32 %v336, %v1250
        %v1252 = vand.u32 %v1251, 4294901760
        %v1253 = vsub.f32 %v1251, %v1252
        %v1254 = vand.u32 %v1253, 4294901760
        %1255 = vmatprep.subr.mxu0 %v1254
        %v1256 = vand.u32 %v335, 4294901760
        %v1257 = vsub.f32 %v335, %v1256
        %v1258 = vand.u32 %v1257, 4294901760
        %v1259 = vsub.f32 %v1257, %v1258
        %v1260 = vand.u32 %v1259, 4294901760
        %1261 = vmatpush1.msra.mxu0 %v1260
        %v1262 = vand.u32 %v338, 4294901760
        %v1263 = vsub.f32 %v338, %v1262
        %v1264 = vand.u32 %v1263, 4294901760
        %v1265 = vsub.f32 %v1263, %v1264
        %v1266 = vand.u32 %v1265, 4294901760
        %1267 = vmatprep.subr.mxu0 %v1266
        %v1268 = vand.u32 %v337, 4294901760
        %v1269 = vsub.f32 %v337, %v1268
        %v1270 = vand.u32 %v1269, 4294901760
        %v1271 = vsub.f32 %v1269, %v1270
        %v1272 = vand.u32 %v1271, 4294901760
        %1273 = vmatpush1.msra.mxu0 %v1272
        %v1274 = vand.u32 %v340, 4294901760
        %v1275 = vsub.f32 %v340, %v1274
        %v1276 = vand.u32 %v1275, 4294901760
        %v1277 = vsub.f32 %v1275, %v1276
        %v1278 = vand.u32 %v1277, 4294901760
        %1279 = vmatprep.subr.mxu0 %v1278
        %v1280 = vand.u32 %v339, 4294901760
        %v1281 = vsub.f32 %v339, %v1280
        %v1282 = vand.u32 %v1281, 4294901760
        %v1283 = vsub.f32 %v1281, %v1282
        %v1284 = vand.u32 %v1283, 4294901760
        %1285 = vmatpush1.msra.mxu0 %v1284
        %v1286 = vand.u32 %v342, 4294901760
        %v1287 = vsub.f32 %v342, %v1286
        %v1288 = vand.u32 %v1287, 4294901760
        %v1289 = vsub.f32 %v1287, %v1288
        %v1290 = vand.u32 %v1289, 4294901760
        %1291 = vmatprep.subr.mxu0 %v1290
        %v1292 = vand.u32 %v341, 4294901760
        %v1293 = vsub.f32 %v341, %v1292
        %v1294 = vand.u32 %v1293, 4294901760
        %v1295 = vsub.f32 %v1293, %v1294
        %v1296 = vand.u32 %v1295, 4294901760
        %1297 = vmatpush1.msra.mxu0 %v1296
        %v1298 = vand.u32 %v344, 4294901760
        %v1299 = vsub.f32 %v344, %v1298
        %v1300 = vand.u32 %v1299, 4294901760
        %v1301 = vsub.f32 %v1299, %v1300
        %v1302 = vand.u32 %v1301, 4294901760
        %1303 = vmatprep.subr.mxu0 %v1302
        %v1304 = vand.u32 %v343, 4294901760
        %v1305 = vsub.f32 %v343, %v1304
        %v1306 = vand.u32 %v1305, 4294901760
        %v1307 = vsub.f32 %v1305, %v1306
        %v1308 = vand.u32 %v1307, 4294901760
        %1309 = vmatpush1.msra.mxu0 %v1308
        %v1310 = vand.u32 %v346, 4294901760
        %v1311 = vsub.f32 %v346, %v1310
        %v1312 = vand.u32 %v1311, 4294901760
        %v1313 = vsub.f32 %v1311, %v1312
        %v1314 = vand.u32 %v1313, 4294901760
        %1315 = vmatprep.subr.mxu0 %v1314
        %v1316 = vand.u32 %v345, 4294901760
        %v1317 = vsub.f32 %v345, %v1316
        %v1318 = vand.u32 %v1317, 4294901760
        %v1319 = vsub.f32 %v1317, %v1318
        %v1320 = vand.u32 %v1319, 4294901760
        %1321 = vmatpush1.msra.mxu0 %v1320
        %v1322 = vand.u32 %v348, 4294901760
        %v1323 = vsub.f32 %v348, %v1322
        %v1324 = vand.u32 %v1323, 4294901760
        %v1325 = vsub.f32 %v1323, %v1324
        %v1326 = vand.u32 %v1325, 4294901760
        %1327 = vmatprep.subr.mxu0 %v1326
        %v1328 = vand.u32 %v347, 4294901760
        %v1329 = vsub.f32 %v347, %v1328
        %v1330 = vand.u32 %v1329, 4294901760
        %v1331 = vsub.f32 %v1329, %v1330
        %v1332 = vand.u32 %v1331, 4294901760
        %1333 = vmatpush1.msra.mxu0 %v1332
        %v1334 = vand.u32 %v350, 4294901760
        %v1335 = vsub.f32 %v350, %v1334
        %v1336 = vand.u32 %v1335, 4294901760
        %v1337 = vsub.f32 %v1335, %v1336
        %v1338 = vand.u32 %v1337, 4294901760
        %1339 = vmatprep.subr.mxu0 %v1338
        %v1340 = vand.u32 %v349, 4294901760
        %v1341 = vsub.f32 %v349, %v1340
        %v1342 = vand.u32 %v1341, 4294901760
        %v1343 = vsub.f32 %v1341, %v1342
        %v1344 = vand.u32 %v1343, 4294901760
        %1345 = vmatpush1.msra.mxu0 %v1344
        %v1346 = vand.u32 %v352, 4294901760
        %v1347 = vsub.f32 %v352, %v1346
        %v1348 = vand.u32 %v1347, 4294901760
        %v1349 = vsub.f32 %v1347, %v1348
        %v1350 = vand.u32 %v1349, 4294901760
        %1351 = vmatprep.subr.mxu0 %v1350
        %v1352 = vand.u32 %v351, 4294901760
        %v1353 = vsub.f32 %v351, %v1352
        %v1354 = vand.u32 %v1353, 4294901760
        %v1355 = vsub.f32 %v1353, %v1354
        %v1356 = vand.u32 %v1355, 4294901760
        %1357 = vmatpush1.msra.mxu0 %v1356
        %v1358 = vand.u32 %v354, 4294901760
        %v1359 = vsub.f32 %v354, %v1358
        %v1360 = vand.u32 %v1359, 4294901760
        %v1361 = vsub.f32 %v1359, %v1360
        %v1362 = vand.u32 %v1361, 4294901760
        %1363 = vmatprep.subr.mxu0 %v1362
        %v1364 = vand.u32 %v353, 4294901760
        %v1365 = vsub.f32 %v353, %v1364
        %v1366 = vand.u32 %v1365, 4294901760
        %v1367 = vsub.f32 %v1365, %v1366
        %v1368 = vand.u32 %v1367, 4294901760
        %1369 = vmatpush1.msra.mxu0 %v1368
        %v1370 = vand.u32 %v356, 4294901760
        %v1371 = vsub.f32 %v356, %v1370
        %v1372 = vand.u32 %v1371, 4294901760
        %v1373 = vsub.f32 %v1371, %v1372
        %v1374 = vand.u32 %v1373, 4294901760
        %1375 = vmatprep.subr.mxu0 %v1374
        %v1376 = vand.u32 %v355, 4294901760
        %v1377 = vsub.f32 %v355, %v1376
        %v1378 = vand.u32 %v1377, 4294901760
        %v1379 = vsub.f32 %v1377, %v1378
        %v1380 = vand.u32 %v1379, 4294901760
        %1381 = vmatpush1.msra.mxu0 %v1380
        %v1382 = vand.u32 %v230, 4294901760
        %1383 = vmatprep.mubr.f32.mxu0 %v1382
        %v1384 = vand.u32 %v229, 4294901760
        %1385 = vmatmul.mubr.f32.gmra.mrb[0].mxu0 %v1384
        %v1386 = vpop.f32.mrb[0].mxu0
        %v1387 = vadd.f32 %v498, %v1386
        %v1388 = vpop.f32.mrb[0].mxu0
        %v1389 = vadd.f32 %v500, %v1388
        %v1390 = vand.u32 %v232, 4294901760
        %1391 = vmatprep.mubr.f32.mxu0 %v1390
        %v1392 = vand.u32 %v231, 4294901760
        %1393 = vmatmul.mubr.f32.gmra.mrb[0].mxu0 %v1392
        %v1394 = vpop.f32.mrb[0].mxu0
        %v1395 = vadd.f32 %v514, %v1394
        %v1396 = vpop.f32.mrb[0].mxu0
        %v1397 = vadd.f32 %v516, %v1396
        %v1398 = vand.u32 %v234, 4294901760
        %1399 = vmatprep.mubr.f32.mxu0 %v1398
        %v1400 = vand.u32 %v233, 4294901760
        %1401 = vmatmul.mubr.f32.gmra.mrb[0].mxu0 %v1400
        %v1402 = vpop.f32.mrb[0].mxu0
        %v1403 = vadd.f32 %v530, %v1402
        %v1404 = vpop.f32.mrb[0].mxu0
        %v1405 = vadd.f32 %v532, %v1404
        %v1406 = vand.u32 %v236, 4294901760
        %1407 = vmatprep.mubr.f32.mxu0 %v1406
        %v1408 = vand.u32 %v235, 4294901760
        %1409 = vmatmul.mubr.f32.gmra.mrb[0].mxu0 %v1408
        %v1410 = vpop.f32.mrb[0].mxu0
        %v1411 = vadd.f32 %v546, %v1410
        %v1412 = vpop.f32.mrb[0].mxu0
        %v1413 = vadd.f32 %v548, %v1412
        %v1414 = vand.u32 %v238, 4294901760
        %1415 = vmatprep.mubr.f32.mxu0 %v1414
        %v1416 = vand.u32 %v237, 4294901760
        %1417 = vmatmul.mubr.f32.gmra.mrb[0].mxu0 %v1416
        %v1418 = vpop.f32.mrb[0].mxu0
        %v1419 = vadd.f32 %v562, %v1418
        %v1420 = vpop.f32.mrb[0].mxu0
        %v1421 = vadd.f32 %v564, %v1420
        %v1422 = vand.u32 %v240, 4294901760
        %1423 = vmatprep.mubr.f32.mxu0 %v1422
        %v1424 = vand.u32 %v239, 4294901760
        %1425 = vmatmul.mubr.f32.gmra.mrb[0].mxu0 %v1424
        %v1426 = vpop.f32.mrb[0].mxu0
        %v1427 = vadd.f32 %v578, %v1426
        %v1428 = vpop.f32.mrb[0].mxu0
        %v1429 = vadd.f32 %v580, %v1428
        %v1430 = vand.u32 %v242, 4294901760
        %1431 = vmatprep.mubr.f32.mxu0 %v1430
        %v1432 = vand.u32 %v241, 4294901760
        %1433 = vmatmul.mubr.f32.gmra.mrb[0].mxu0 %v1432
        %v1434 = vpop.f32.mrb[0].mxu0
        %v1435 = vadd.f32 %v594, %v1434
        %v1436 = vpop.f32.mrb[0].mxu0
        %v1437 = vadd.f32 %v596, %v1436
        %v1438 = vand.u32 %v244, 4294901760
        %1439 = vmatprep.mubr.f32.mxu0 %v1438
        %v1440 = vand.u32 %v243, 4294901760
        %1441 = vmatmul.mubr.f32.gmra.mrb[0].mxu0 %v1440
        %v1442 = vpop.f32.mrb[0].mxu0
        %v1443 = vadd.f32 %v610, %v1442
        %v1444 = vpop.f32.mrb[0].mxu0
        %v1445 = vadd.f32 %v612, %v1444
        %v1446 = vand.u32 %v246, 4294901760
        %1447 = vmatprep.mubr.f32.mxu0 %v1446
        %v1448 = vand.u32 %v245, 4294901760
        %1449 = vmatmul.mubr.f32.gmra.mrb[0].mxu0 %v1448
        %v1450 = vpop.f32.mrb[0].mxu0
        %v1451 = vadd.f32 %v626, %v1450
        %v1452 = vpop.f32.mrb[0].mxu0
        %v1453 = vadd.f32 %v628, %v1452
        %v1454 = vand.u32 %v248, 4294901760
        %1455 = vmatprep.mubr.f32.mxu0 %v1454
        %v1456 = vand.u32 %v247, 4294901760
        %1457 = vmatmul.mubr.f32.gmra.mrb[0].mxu0 %v1456
        %v1458 = vpop.f32.mrb[0].mxu0
        %v1459 = vadd.f32 %v642, %v1458
        %v1460 = vpop.f32.mrb[0].mxu0
        %v1461 = vadd.f32 %v644, %v1460
        %v1462 = vand.u32 %v250, 4294901760
        %1463 = vmatprep.mubr.f32.mxu0 %v1462
        %v1464 = vand.u32 %v249, 4294901760
        %1465 = vmatmul.mubr.f32.gmra.mrb[0].mxu0 %v1464
        %v1466 = vpop.f32.mrb[0].mxu0
        %v1467 = vadd.f32 %v658, %v1466
        %v1468 = vpop.f32.mrb[0].mxu0
        %v1469 = vadd.f32 %v660, %v1468
        %v1470 = vand.u32 %v252, 4294901760
        %1471 = vmatprep.mubr.f32.mxu0 %v1470
        %v1472 = vand.u32 %v251, 4294901760
        %1473 = vmatmul.mubr.f32.gmra.mrb[0].mxu0 %v1472
        %v1474 = vpop.f32.mrb[0].mxu0
        %v1475 = vadd.f32 %v674, %v1474
        %v1476 = vpop.f32.mrb[0].mxu0
        %v1477 = vadd.f32 %v676, %v1476
        %v1478 = vand.u32 %v254, 4294901760
        %1479 = vmatprep.mubr.f32.mxu0 %v1478
        %v1480 = vand.u32 %v253, 4294901760
        %1481 = vmatmul.mubr.f32.gmra.mrb[0].mxu0 %v1480
        %v1482 = vpop.f32.mrb[0].mxu0
        %v1483 = vadd.f32 %v690, %v1482
        %v1484 = vpop.f32.mrb[0].mxu0
        %v1485 = vadd.f32 %v692, %v1484
        %v1486 = vand.u32 %v256, 4294901760
        %1487 = vmatprep.mubr.f32.mxu0 %v1486
        %v1488 = vand.u32 %v255, 4294901760
        %1489 = vmatmul.mubr.f32.gmra.mrb[0].mxu0 %v1488
        %v1490 = vpop.f32.mrb[0].mxu0
        %v1491 = vadd.f32 %v706, %v1490
        %v1492 = vpop.f32.mrb[0].mxu0
        %v1493 = vadd.f32 %v708, %v1492
        %v1494 = vand.u32 %v258, 4294901760
        %1495 = vmatprep.mubr.f32.mxu0 %v1494
        %v1496 = vand.u32 %v257, 4294901760
        %1497 = vmatmul.mubr.f32.gmra.mrb[0].mxu0 %v1496
        %v1498 = vpop.f32.mrb[0].mxu0
        %v1499 = vadd.f32 %v722, %v1498
        %v1500 = vpop.f32.mrb[0].mxu0
        %v1501 = vadd.f32 %v724, %v1500
        %v1502 = vand.u32 %v260, 4294901760
        %1503 = vmatprep.mubr.f32.mxu0 %v1502
        %v1504 = vand.u32 %v259, 4294901760
        %1505 = vmatmul.mubr.f32.gmra.mrb[0].mxu0 %v1504
        %v1506 = vpop.f32.mrb[0].mxu0
        %v1507 = vadd.f32 %v738, %v1506
        %v1508 = vpop.f32.mrb[0].mxu0
        %v1509 = vadd.f32 %v740, %v1508
        %v1510 = vand.u32 %v262, 4294901760
        %1511 = vmatprep.mubr.f32.mxu0 %v1510
        %v1512 = vand.u32 %v261, 4294901760
        %1513 = vmatmul.mubr.f32.gmra.mrb[0].mxu0 %v1512
        %v1514 = vpop.f32.mrb[0].mxu0
        %v1515 = vadd.f32 %v754, %v1514
        %v1516 = vpop.f32.mrb[0].mxu0
        %v1517 = vadd.f32 %v756, %v1516
        %v1518 = vand.u32 %v264, 4294901760
        %1519 = vmatprep.mubr.f32.mxu0 %v1518
        %v1520 = vand.u32 %v263, 4294901760
        %1521 = vmatmul.mubr.f32.gmra.mrb[0].mxu0 %v1520
        %v1522 = vpop.f32.mrb[0].mxu0
        %v1523 = vadd.f32 %v770, %v1522
        %v1524 = vpop.f32.mrb[0].mxu0
        %v1525 = vadd.f32 %v772, %v1524
        %v1526 = vand.u32 %v266, 4294901760
        %1527 = vmatprep.mubr.f32.mxu0 %v1526
        %v1528 = vand.u32 %v265, 4294901760
        %1529 = vmatmul.mubr.f32.gmra.mrb[0].mxu0 %v1528
        %v1530 = vpop.f32.mrb[0].mxu0
        %v1531 = vadd.f32 %v786, %v1530
        %v1532 = vpop.f32.mrb[0].mxu0
        %v1533 = vadd.f32 %v788, %v1532
        %v1534 = vand.u32 %v268, 4294901760
        %1535 = vmatprep.mubr.f32.mxu0 %v1534
        %v1536 = vand.u32 %v267, 4294901760
        %1537 = vmatmul.mubr.f32.gmra.mrb[0].mxu0 %v1536
        %v1538 = vpop.f32.mrb[0].mxu0
        %v1539 = vadd.f32 %v802, %v1538
        %v1540 = vpop.f32.mrb[0].mxu0
        %v1541 = vadd.f32 %v804, %v1540
        %v1542 = vand.u32 %v270, 4294901760
        %1543 = vmatprep.mubr.f32.mxu0 %v1542
        %v1544 = vand.u32 %v269, 4294901760
        %1545 = vmatmul.mubr.f32.gmra.mrb[0].mxu0 %v1544
        %v1546 = vpop.f32.mrb[0].mxu0
        %v1547 = vadd.f32 %v818, %v1546
        %v1548 = vpop.f32.mrb[0].mxu0
        %v1549 = vadd.f32 %v820, %v1548
        %v1550 = vand.u32 %v272, 4294901760
        %1551 = vmatprep.mubr.f32.mxu0 %v1550
        %v1552 = vand.u32 %v271, 4294901760
        %1553 = vmatmul.mubr.f32.gmra.mrb[0].mxu0 %v1552
        %v1554 = vpop.f32.mrb[0].mxu0
        %v1555 = vadd.f32 %v834, %v1554
        %v1556 = vpop.f32.mrb[0].mxu0
        %v1557 = vadd.f32 %v836, %v1556
        %v1558 = vand.u32 %v274, 4294901760
        %1559 = vmatprep.mubr.f32.mxu0 %v1558
        %v1560 = vand.u32 %v273, 4294901760
        %1561 = vmatmul.mubr.f32.gmra.mrb[0].mxu0 %v1560
        %v1562 = vpop.f32.mrb[0].mxu0
        %v1563 = vadd.f32 %v850, %v1562
        %v1564 = vpop.f32.mrb[0].mxu0
        %v1565 = vadd.f32 %v852, %v1564
        %v1566 = vand.u32 %v276, 4294901760
        %1567 = vmatprep.mubr.f32.mxu0 %v1566
        %v1568 = vand.u32 %v275, 4294901760
        %1569 = vmatmul.mubr.f32.gmra.mrb[0].mxu0 %v1568
        %v1570 = vpop.f32.mrb[0].mxu0
        %v1571 = vadd.f32 %v866, %v1570
        %v1572 = vpop.f32.mrb[0].mxu0
        %v1573 = vadd.f32 %v868, %v1572
        %v1574 = vand.u32 %v278, 4294901760
        %1575 = vmatprep.mubr.f32.mxu0 %v1574
        %v1576 = vand.u32 %v277, 4294901760
        %1577 = vmatmul.mubr.f32.gmra.mrb[0].mxu0 %v1576
        %v1578 = vpop.f32.mrb[0].mxu0
        %v1579 = vadd.f32 %v882, %v1578
        %v1580 = vpop.f32.mrb[0].mxu0
        %v1581 = vadd.f32 %v884, %v1580
        %v1582 = vand.u32 %v280, 4294901760
        %1583 = vmatprep.mubr.f32.mxu0 %v1582
        %v1584 = vand.u32 %v279, 4294901760
        %1585 = vmatmul.mubr.f32.gmra.mrb[0].mxu0 %v1584
        %v1586 = vpop.f32.mrb[0].mxu0
        %v1587 = vadd.f32 %v898, %v1586
        %v1588 = vpop.f32.mrb[0].mxu0
        %v1589 = vadd.f32 %v900, %v1588
        %v1590 = vand.u32 %v282, 4294901760
        %1591 = vmatprep.mubr.f32.mxu0 %v1590
        %v1592 = vand.u32 %v281, 4294901760
        %1593 = vmatmul.mubr.f32.gmra.mrb[0].mxu0 %v1592
        %v1594 = vpop.f32.mrb[0].mxu0
        %v1595 = vadd.f32 %v914, %v1594
        %v1596 = vpop.f32.mrb[0].mxu0
        %v1597 = vadd.f32 %v916, %v1596
        %v1598 = vand.u32 %v284, 4294901760
        %1599 = vmatprep.mubr.f32.mxu0 %v1598
        %v1600 = vand.u32 %v283, 4294901760
        %1601 = vmatmul.mubr.f32.gmra.mrb[0].mxu0 %v1600
        %v1602 = vpop.f32.mrb[0].mxu0
        %v1603 = vadd.f32 %v930, %v1602
        %v1604 = vpop.f32.mrb[0].mxu0
        %v1605 = vadd.f32 %v932, %v1604
        %v1606 = vand.u32 %v286, 4294901760
        %1607 = vmatprep.mubr.f32.mxu0 %v1606
        %v1608 = vand.u32 %v285, 4294901760
        %1609 = vmatmul.mubr.f32.gmra.mrb[0].mxu0 %v1608
        %v1610 = vpop.f32.mrb[0].mxu0
        %v1611 = vadd.f32 %v946, %v1610
        %v1612 = vpop.f32.mrb[0].mxu0
        %v1613 = vadd.f32 %v948, %v1612
        %v1614 = vand.u32 %v288, 4294901760
        %1615 = vmatprep.mubr.f32.mxu0 %v1614
        %v1616 = vand.u32 %v287, 4294901760
        %1617 = vmatmul.mubr.f32.gmra.mrb[0].mxu0 %v1616
        %v1618 = vpop.f32.mrb[0].mxu0
        %v1619 = vadd.f32 %v962, %v1618
        %v1620 = vpop.f32.mrb[0].mxu0
        %v1621 = vadd.f32 %v964, %v1620
        %v1622 = vand.u32 %v290, 4294901760
        %1623 = vmatprep.mubr.f32.mxu0 %v1622
        %v1624 = vand.u32 %v289, 4294901760
        %1625 = vmatmul.mubr.f32.gmra.mrb[0].mxu0 %v1624
        %v1626 = vpop.f32.mrb[0].mxu0
        %v1627 = vadd.f32 %v978, %v1626
        %v1628 = vpop.f32.mrb[0].mxu0
        %v1629 = vadd.f32 %v980, %v1628
        %v1630 = vand.u32 %v292, 4294901760
        %1631 = vmatprep.mubr.f32.mxu0 %v1630
        %v1632 = vand.u32 %v291, 4294901760
        %1633 = vmatmul.mubr.f32.gmra.mrb[0].mxu0 %v1632
        %v1634 = vpop.f32.mrb[0].mxu0
        %v1635 = vadd.f32 %v994, %v1634
        %v1636 = vpop.f32.mrb[0].mxu0
        %v1637 = vadd.f32 %v996, %v1636
        %1638 = vdwg.mxu0
        %v1639 = vand.u32 %v294, 4294901760
        %v1640 = vsub.f32 %v294, %v1639
        %1641 = vmatprep.subr.mxu0 %v1640
        %v1642 = vand.u32 %v293, 4294901760
        %v1643 = vsub.f32 %v293, %v1642
        %1644 = vmatpush1.msra.mxu0 %v1643
        %v1645 = vand.u32 %v296, 4294901760
        %v1646 = vsub.f32 %v296, %v1645
        %1647 = vmatprep.subr.mxu0 %v1646
        %v1648 = vand.u32 %v295, 4294901760
        %v1649 = vsub.f32 %v295, %v1648
        %1650 = vmatpush1.msra.mxu0 %v1649
        %v1651 = vand.u32 %v298, 4294901760
        %v1652 = vsub.f32 %v298, %v1651
        %1653 = vmatprep.subr.mxu0 %v1652
        %v1654 = vand.u32 %v297, 4294901760
        %v1655 = vsub.f32 %v297, %v1654
        %1656 = vmatpush1.msra.mxu0 %v1655
        %v1657 = vand.u32 %v300, 4294901760
        %v1658 = vsub.f32 %v300, %v1657
        %1659 = vmatprep.subr.mxu0 %v1658
        %v1660 = vand.u32 %v299, 4294901760
        %v1661 = vsub.f32 %v299, %v1660
        %1662 = vmatpush1.msra.mxu0 %v1661
        %v1663 = vand.u32 %v302, 4294901760
        %v1664 = vsub.f32 %v302, %v1663
        %1665 = vmatprep.subr.mxu0 %v1664
        %v1666 = vand.u32 %v301, 4294901760
        %v1667 = vsub.f32 %v301, %v1666
        %1668 = vmatpush1.msra.mxu0 %v1667
        %v1669 = vand.u32 %v304, 4294901760
        %v1670 = vsub.f32 %v304, %v1669
        %1671 = vmatprep.subr.mxu0 %v1670
        %v1672 = vand.u32 %v303, 4294901760
        %v1673 = vsub.f32 %v303, %v1672
        %1674 = vmatpush1.msra.mxu0 %v1673
        %v1675 = vand.u32 %v306, 4294901760
        %v1676 = vsub.f32 %v306, %v1675
        %1677 = vmatprep.subr.mxu0 %v1676
        %v1678 = vand.u32 %v305, 4294901760
        %v1679 = vsub.f32 %v305, %v1678
        %1680 = vmatpush1.msra.mxu0 %v1679
        %v1681 = vand.u32 %v308, 4294901760
        %v1682 = vsub.f32 %v308, %v1681
        %1683 = vmatprep.subr.mxu0 %v1682
        %v1684 = vand.u32 %v307, 4294901760
        %v1685 = vsub.f32 %v307, %v1684
        %1686 = vmatpush1.msra.mxu0 %v1685
        %v1687 = vand.u32 %v310, 4294901760
        %v1688 = vsub.f32 %v310, %v1687
        %1689 = vmatprep.subr.mxu0 %v1688
        %v1690 = vand.u32 %v309, 4294901760
        %v1691 = vsub.f32 %v309, %v1690
        %1692 = vmatpush1.msra.mxu0 %v1691
        %v1693 = vand.u32 %v312, 4294901760
        %v1694 = vsub.f32 %v312, %v1693
        %1695 = vmatprep.subr.mxu0 %v1694
        %v1696 = vand.u32 %v311, 4294901760
        %v1697 = vsub.f32 %v311, %v1696
        %1698 = vmatpush1.msra.mxu0 %v1697
        %v1699 = vand.u32 %v314, 4294901760
        %v1700 = vsub.f32 %v314, %v1699
        %1701 = vmatprep.subr.mxu0 %v1700
        %v1702 = vand.u32 %v313, 4294901760
        %v1703 = vsub.f32 %v313, %v1702
        %1704 = vmatpush1.msra.mxu0 %v1703
        %v1705 = vand.u32 %v316, 4294901760
        %v1706 = vsub.f32 %v316, %v1705
        %1707 = vmatprep.subr.mxu0 %v1706
        %v1708 = vand.u32 %v315, 4294901760
        %v1709 = vsub.f32 %v315, %v1708
        %1710 = vmatpush1.msra.mxu0 %v1709
        %v1711 = vand.u32 %v318, 4294901760
        %v1712 = vsub.f32 %v318, %v1711
        %1713 = vmatprep.subr.mxu0 %v1712
        %v1714 = vand.u32 %v317, 4294901760
        %v1715 = vsub.f32 %v317, %v1714
        %1716 = vmatpush1.msra.mxu0 %v1715
        %v1717 = vand.u32 %v320, 4294901760
        %v1718 = vsub.f32 %v320, %v1717
        %1719 = vmatprep.subr.mxu0 %v1718
        %v1720 = vand.u32 %v319, 4294901760
        %v1721 = vsub.f32 %v319, %v1720
        %1722 = vmatpush1.msra.mxu0 %v1721
        %v1723 = vand.u32 %v322, 4294901760
        %v1724 = vsub.f32 %v322, %v1723
        %1725 = vmatprep.subr.mxu0 %v1724
        %v1726 = vand.u32 %v321, 4294901760
        %v1727 = vsub.f32 %v321, %v1726
        %1728 = vmatpush1.msra.mxu0 %v1727
        %v1729 = vand.u32 %v324, 4294901760
        %v1730 = vsub.f32 %v324, %v1729
        %1731 = vmatprep.subr.mxu0 %v1730
        %v1732 = vand.u32 %v323, 4294901760
        %v1733 = vsub.f32 %v323, %v1732
        %1734 = vmatpush1.msra.mxu0 %v1733
        %v1735 = vand.u32 %v326, 4294901760
        %v1736 = vsub.f32 %v326, %v1735
        %1737 = vmatprep.subr.mxu0 %v1736
        %v1738 = vand.u32 %v325, 4294901760
        %v1739 = vsub.f32 %v325, %v1738
        %1740 = vmatpush1.msra.mxu0 %v1739
        %v1741 = vand.u32 %v328, 4294901760
        %v1742 = vsub.f32 %v328, %v1741
        %1743 = vmatprep.subr.mxu0 %v1742
        %v1744 = vand.u32 %v327, 4294901760
        %v1745 = vsub.f32 %v327, %v1744
        %1746 = vmatpush1.msra.mxu0 %v1745
        %v1747 = vand.u32 %v330, 4294901760
        %v1748 = vsub.f32 %v330, %v1747
        %1749 = vmatprep.subr.mxu0 %v1748
        %v1750 = vand.u32 %v329, 4294901760
        %v1751 = vsub.f32 %v329, %v1750
        %1752 = vmatpush1.msra.mxu0 %v1751
        %v1753 = vand.u32 %v332, 4294901760
        %v1754 = vsub.f32 %v332, %v1753
        %1755 = vmatprep.subr.mxu0 %v1754
        %v1756 = vand.u32 %v331, 4294901760
        %v1757 = vsub.f32 %v331, %v1756
        %1758 = vmatpush1.msra.mxu0 %v1757
        %v1759 = vand.u32 %v334, 4294901760
        %v1760 = vsub.f32 %v334, %v1759
        %1761 = vmatprep.subr.mxu0 %v1760
        %v1762 = vand.u32 %v333, 4294901760
        %v1763 = vsub.f32 %v333, %v1762
        %1764 = vmatpush1.msra.mxu0 %v1763
        %v1765 = vand.u32 %v336, 4294901760
        %v1766 = vsub.f32 %v336, %v1765
        %1767 = vmatprep.subr.mxu0 %v1766
        %v1768 = vand.u32 %v335, 4294901760
        %v1769 = vsub.f32 %v335, %v1768
        %1770 = vmatpush1.msra.mxu0 %v1769
        %v1771 = vand.u32 %v338, 4294901760
        %v1772 = vsub.f32 %v338, %v1771
        %1773 = vmatprep.subr.mxu0 %v1772
        %v1774 = vand.u32 %v337, 4294901760
        %v1775 = vsub.f32 %v337, %v1774
        %1776 = vmatpush1.msra.mxu0 %v1775
        %v1777 = vand.u32 %v340, 4294901760
        %v1778 = vsub.f32 %v340, %v1777
        %1779 = vmatprep.subr.mxu0 %v1778
        %v1780 = vand.u32 %v339, 4294901760
        %v1781 = vsub.f32 %v339, %v1780
        %1782 = vmatpush1.msra.mxu0 %v1781
        %v1783 = vand.u32 %v342, 4294901760
        %v1784 = vsub.f32 %v342, %v1783
        %1785 = vmatprep.subr.mxu0 %v1784
        %v1786 = vand.u32 %v341, 4294901760
        %v1787 = vsub.f32 %v341, %v1786
        %1788 = vmatpush1.msra.mxu0 %v1787
        %v1789 = vand.u32 %v344, 4294901760
        %v1790 = vsub.f32 %v344, %v1789
        %1791 = vmatprep.subr.mxu0 %v1790
        %v1792 = vand.u32 %v343, 4294901760
        %v1793 = vsub.f32 %v343, %v1792
        %1794 = vmatpush1.msra.mxu0 %v1793
        %v1795 = vand.u32 %v346, 4294901760
        %v1796 = vsub.f32 %v346, %v1795
        %1797 = vmatprep.subr.mxu0 %v1796
        %v1798 = vand.u32 %v345, 4294901760
        %v1799 = vsub.f32 %v345, %v1798
        %1800 = vmatpush1.msra.mxu0 %v1799
        %v1801 = vand.u32 %v348, 4294901760
        %v1802 = vsub.f32 %v348, %v1801
        %1803 = vmatprep.subr.mxu0 %v1802
        %v1804 = vand.u32 %v347, 4294901760
        %v1805 = vsub.f32 %v347, %v1804
        %1806 = vmatpush1.msra.mxu0 %v1805
        %v1807 = vand.u32 %v350, 4294901760
        %v1808 = vsub.f32 %v350, %v1807
        %1809 = vmatprep.subr.mxu0 %v1808
        %v1810 = vand.u32 %v349, 4294901760
        %v1811 = vsub.f32 %v349, %v1810
        %1812 = vmatpush1.msra.mxu0 %v1811
        %v1813 = vand.u32 %v352, 4294901760
        %v1814 = vsub.f32 %v352, %v1813
        %1815 = vmatprep.subr.mxu0 %v1814
        %v1816 = vand.u32 %v351, 4294901760
        %v1817 = vsub.f32 %v351, %v1816
        %1818 = vmatpush1.msra.mxu0 %v1817
        %v1819 = vand.u32 %v354, 4294901760
        %v1820 = vsub.f32 %v354, %v1819
        %1821 = vmatprep.subr.mxu0 %v1820
        %v1822 = vand.u32 %v353, 4294901760
        %v1823 = vsub.f32 %v353, %v1822
        %1824 = vmatpush1.msra.mxu0 %v1823
        %v1825 = vand.u32 %v356, 4294901760
        %v1826 = vsub.f32 %v356, %v1825
        %1827 = vmatprep.subr.mxu0 %v1826
        %v1828 = vand.u32 %v355, 4294901760
        %v1829 = vsub.f32 %v355, %v1828
        %1830 = vmatpush1.msra.mxu0 %v1829
        %v1831 = vand.u32 %v230, 4294901760
        %v1832 = vsub.f32 %v230, %v1831
        %1833 = vmatprep.mubr.f32.mxu0 %v1832
        %v1834 = vand.u32 %v229, 4294901760
        %v1835 = vsub.f32 %v229, %v1834
        %1836 = vmatmul.mubr.f32.gmra.mrb[0].mxu0 %v1835
        %v1837 = vpop.f32.mrb[0].mxu0
        %v1838 = vadd.f32 %v1387, %v1837
        %v1839 = vpop.f32.mrb[0].mxu0
        %v1840 = vadd.f32 %v1389, %v1839
        %v1841 = vand.u32 %v232, 4294901760
        %v1842 = vsub.f32 %v232, %v1841
        %1843 = vmatprep.mubr.f32.mxu0 %v1842
        %v1844 = vand.u32 %v231, 4294901760
        %v1845 = vsub.f32 %v231, %v1844
        %1846 = vmatmul.mubr.f32.gmra.mrb[0].mxu0 %v1845
        %v1847 = vpop.f32.mrb[0].mxu0
        %v1848 = vadd.f32 %v1395, %v1847
        %v1849 = vpop.f32.mrb[0].mxu0
        %v1850 = vadd.f32 %v1397, %v1849
        %v1851 = vand.u32 %v234, 4294901760
        %v1852 = vsub.f32 %v234, %v1851
        %1853 = vmatprep.mubr.f32.mxu0 %v1852
        %v1854 = vand.u32 %v233, 4294901760
        %v1855 = vsub.f32 %v233, %v1854
        %1856 = vmatmul.mubr.f32.gmra.mrb[0].mxu0 %v1855
        %v1857 = vpop.f32.mrb[0].mxu0
        %v1858 = vadd.f32 %v1403, %v1857
        %v1859 = vpop.f32.mrb[0].mxu0
        %v1860 = vadd.f32 %v1405, %v1859
        %v1861 = vand.u32 %v236, 4294901760
        %v1862 = vsub.f32 %v236, %v1861
        %1863 = vmatprep.mubr.f32.mxu0 %v1862
        %v1864 = vand.u32 %v235, 4294901760
        %v1865 = vsub.f32 %v235, %v1864
        %1866 = vmatmul.mubr.f32.gmra.mrb[0].mxu0 %v1865
        %v1867 = vpop.f32.mrb[0].mxu0
        %v1868 = vadd.f32 %v1411, %v1867
        %v1869 = vpop.f32.mrb[0].mxu0
        %v1870 = vadd.f32 %v1413, %v1869
        %v1871 = vand.u32 %v238, 4294901760
        %v1872 = vsub.f32 %v238, %v1871
        %1873 = vmatprep.mubr.f32.mxu0 %v1872
        %v1874 = vand.u32 %v237, 4294901760
        %v1875 = vsub.f32 %v237, %v1874
        %1876 = vmatmul.mubr.f32.gmra.mrb[0].mxu0 %v1875
        %v1877 = vpop.f32.mrb[0].mxu0
        %v1878 = vadd.f32 %v1419, %v1877
        %v1879 = vpop.f32.mrb[0].mxu0
        %v1880 = vadd.f32 %v1421, %v1879
        %v1881 = vand.u32 %v240, 4294901760
        %v1882 = vsub.f32 %v240, %v1881
        %1883 = vmatprep.mubr.f32.mxu0 %v1882
        %v1884 = vand.u32 %v239, 4294901760
        %v1885 = vsub.f32 %v239, %v1884
        %1886 = vmatmul.mubr.f32.gmra.mrb[0].mxu0 %v1885
        %v1887 = vpop.f32.mrb[0].mxu0
        %v1888 = vadd.f32 %v1427, %v1887
        %v1889 = vpop.f32.mrb[0].mxu0
        %v1890 = vadd.f32 %v1429, %v1889
        %v1891 = vand.u32 %v242, 4294901760
        %v1892 = vsub.f32 %v242, %v1891
        %1893 = vmatprep.mubr.f32.mxu0 %v1892
        %v1894 = vand.u32 %v241, 4294901760
        %v1895 = vsub.f32 %v241, %v1894
        %1896 = vmatmul.mubr.f32.gmra.mrb[0].mxu0 %v1895
        %v1897 = vpop.f32.mrb[0].mxu0
        %v1898 = vadd.f32 %v1435, %v1897
        %v1899 = vpop.f32.mrb[0].mxu0
        %v1900 = vadd.f32 %v1437, %v1899
        %v1901 = vand.u32 %v244, 4294901760
        %v1902 = vsub.f32 %v244, %v1901
        %1903 = vmatprep.mubr.f32.mxu0 %v1902
        %v1904 = vand.u32 %v243, 4294901760
        %v1905 = vsub.f32 %v243, %v1904
        %1906 = vmatmul.mubr.f32.gmra.mrb[0].mxu0 %v1905
        %v1907 = vpop.f32.mrb[0].mxu0
        %v1908 = vadd.f32 %v1443, %v1907
        %v1909 = vpop.f32.mrb[0].mxu0
        %v1910 = vadd.f32 %v1445, %v1909
        %v1911 = vand.u32 %v246, 4294901760
        %v1912 = vsub.f32 %v246, %v1911
        %1913 = vmatprep.mubr.f32.mxu0 %v1912
        %v1914 = vand.u32 %v245, 4294901760
        %v1915 = vsub.f32 %v245, %v1914
        %1916 = vmatmul.mubr.f32.gmra.mrb[0].mxu0 %v1915
        %v1917 = vpop.f32.mrb[0].mxu0
        %v1918 = vadd.f32 %v1451, %v1917
        %v1919 = vpop.f32.mrb[0].mxu0
        %v1920 = vadd.f32 %v1453, %v1919
        %v1921 = vand.u32 %v248, 4294901760
        %v1922 = vsub.f32 %v248, %v1921
        %1923 = vmatprep.mubr.f32.mxu0 %v1922
        %v1924 = vand.u32 %v247, 4294901760
        %v1925 = vsub.f32 %v247, %v1924
        %1926 = vmatmul.mubr.f32.gmra.mrb[0].mxu0 %v1925
        %v1927 = vpop.f32.mrb[0].mxu0
        %v1928 = vadd.f32 %v1459, %v1927
        %v1929 = vpop.f32.mrb[0].mxu0
        %v1930 = vadd.f32 %v1461, %v1929
        %v1931 = vand.u32 %v250, 4294901760
        %v1932 = vsub.f32 %v250, %v1931
        %1933 = vmatprep.mubr.f32.mxu0 %v1932
        %v1934 = vand.u32 %v249, 4294901760
        %v1935 = vsub.f32 %v249, %v1934
        %1936 = vmatmul.mubr.f32.gmra.mrb[0].mxu0 %v1935
        %v1937 = vpop.f32.mrb[0].mxu0
        %v1938 = vadd.f32 %v1467, %v1937
        %v1939 = vpop.f32.mrb[0].mxu0
        %v1940 = vadd.f32 %v1469, %v1939
        %v1941 = vand.u32 %v252, 4294901760
        %v1942 = vsub.f32 %v252, %v1941
        %1943 = vmatprep.mubr.f32.mxu0 %v1942
        %v1944 = vand.u32 %v251, 4294901760
        %v1945 = vsub.f32 %v251, %v1944
        %1946 = vmatmul.mubr.f32.gmra.mrb[0].mxu0 %v1945
        %v1947 = vpop.f32.mrb[0].mxu0
        %v1948 = vadd.f32 %v1475, %v1947
        %v1949 = vpop.f32.mrb[0].mxu0
        %v1950 = vadd.f32 %v1477, %v1949
        %v1951 = vand.u32 %v254, 4294901760
        %v1952 = vsub.f32 %v254, %v1951
        %1953 = vmatprep.mubr.f32.mxu0 %v1952
        %v1954 = vand.u32 %v253, 4294901760
        %v1955 = vsub.f32 %v253, %v1954
        %1956 = vmatmul.mubr.f32.gmra.mrb[0].mxu0 %v1955
        %v1957 = vpop.f32.mrb[0].mxu0
        %v1958 = vadd.f32 %v1483, %v1957
        %v1959 = vpop.f32.mrb[0].mxu0
        %v1960 = vadd.f32 %v1485, %v1959
        %v1961 = vand.u32 %v256, 4294901760
        %v1962 = vsub.f32 %v256, %v1961
        %1963 = vmatprep.mubr.f32.mxu0 %v1962
        %v1964 = vand.u32 %v255, 4294901760
        %v1965 = vsub.f32 %v255, %v1964
        %1966 = vmatmul.mubr.f32.gmra.mrb[0].mxu0 %v1965
        %v1967 = vpop.f32.mrb[0].mxu0
        %v1968 = vadd.f32 %v1491, %v1967
        %v1969 = vpop.f32.mrb[0].mxu0
        %v1970 = vadd.f32 %v1493, %v1969
        %v1971 = vand.u32 %v258, 4294901760
        %v1972 = vsub.f32 %v258, %v1971
        %1973 = vmatprep.mubr.f32.mxu0 %v1972
        %v1974 = vand.u32 %v257, 4294901760
        %v1975 = vsub.f32 %v257, %v1974
        %1976 = vmatmul.mubr.f32.gmra.mrb[0].mxu0 %v1975
        %v1977 = vpop.f32.mrb[0].mxu0
        %v1978 = vadd.f32 %v1499, %v1977
        %v1979 = vpop.f32.mrb[0].mxu0
        %v1980 = vadd.f32 %v1501, %v1979
        %v1981 = vand.u32 %v260, 4294901760
        %v1982 = vsub.f32 %v260, %v1981
        %1983 = vmatprep.mubr.f32.mxu0 %v1982
        %v1984 = vand.u32 %v259, 4294901760
        %v1985 = vsub.f32 %v259, %v1984
        %1986 = vmatmul.mubr.f32.gmra.mrb[0].mxu0 %v1985
        %v1987 = vpop.f32.mrb[0].mxu0
        %v1988 = vadd.f32 %v1507, %v1987
        %v1989 = vpop.f32.mrb[0].mxu0
        %v1990 = vadd.f32 %v1509, %v1989
        %v1991 = vand.u32 %v262, 4294901760
        %v1992 = vsub.f32 %v262, %v1991
        %1993 = vmatprep.mubr.f32.mxu0 %v1992
        %v1994 = vand.u32 %v261, 4294901760
        %v1995 = vsub.f32 %v261, %v1994
        %1996 = vmatmul.mubr.f32.gmra.mrb[0].mxu0 %v1995
        %v1997 = vpop.f32.mrb[0].mxu0
        %v1998 = vadd.f32 %v1515, %v1997
        %v1999 = vpop.f32.mrb[0].mxu0
        %v2000 = vadd.f32 %v1517, %v1999
        %v2001 = vand.u32 %v264, 4294901760
        %v2002 = vsub.f32 %v264, %v2001
        %2003 = vmatprep.mubr.f32.mxu0 %v2002
        %v2004 = vand.u32 %v263, 4294901760
        %v2005 = vsub.f32 %v263, %v2004
        %2006 = vmatmul.mubr.f32.gmra.mrb[0].mxu0 %v2005
        %v2007 = vpop.f32.mrb[0].mxu0
        %v2008 = vadd.f32 %v1523, %v2007
        %v2009 = vpop.f32.mrb[0].mxu0
        %v2010 = vadd.f32 %v1525, %v2009
        %v2011 = vand.u32 %v266, 4294901760
        %v2012 = vsub.f32 %v266, %v2011
        %2013 = vmatprep.mubr.f32.mxu0 %v2012
        %v2014 = vand.u32 %v265, 4294901760
        %v2015 = vsub.f32 %v265, %v2014
        %2016 = vmatmul.mubr.f32.gmra.mrb[0].mxu0 %v2015
        %v2017 = vpop.f32.mrb[0].mxu0
        %v2018 = vadd.f32 %v1531, %v2017
        %v2019 = vpop.f32.mrb[0].mxu0
        %v2020 = vadd.f32 %v1533, %v2019
        %v2021 = vand.u32 %v268, 4294901760
        %v2022 = vsub.f32 %v268, %v2021
        %2023 = vmatprep.mubr.f32.mxu0 %v2022
        %v2024 = vand.u32 %v267, 4294901760
        %v2025 = vsub.f32 %v267, %v2024
        %2026 = vmatmul.mubr.f32.gmra.mrb[0].mxu0 %v2025
        %v2027 = vpop.f32.mrb[0].mxu0
        %v2028 = vadd.f32 %v1539, %v2027
        %v2029 = vpop.f32.mrb[0].mxu0
        %v2030 = vadd.f32 %v1541, %v2029
        %v2031 = vand.u32 %v270, 4294901760
        %v2032 = vsub.f32 %v270, %v2031
        %2033 = vmatprep.mubr.f32.mxu0 %v2032
        %v2034 = vand.u32 %v269, 4294901760
        %v2035 = vsub.f32 %v269, %v2034
        %2036 = vmatmul.mubr.f32.gmra.mrb[0].mxu0 %v2035
        %v2037 = vpop.f32.mrb[0].mxu0
        %v2038 = vadd.f32 %v1547, %v2037
        %v2039 = vpop.f32.mrb[0].mxu0
        %v2040 = vadd.f32 %v1549, %v2039
        %v2041 = vand.u32 %v272, 4294901760
        %v2042 = vsub.f32 %v272, %v2041
        %2043 = vmatprep.mubr.f32.mxu0 %v2042
        %v2044 = vand.u32 %v271, 4294901760
        %v2045 = vsub.f32 %v271, %v2044
        %2046 = vmatmul.mubr.f32.gmra.mrb[0].mxu0 %v2045
        %v2047 = vpop.f32.mrb[0].mxu0
        %v2048 = vadd.f32 %v1555, %v2047
        %v2049 = vpop.f32.mrb[0].mxu0
        %v2050 = vadd.f32 %v1557, %v2049
        %v2051 = vand.u32 %v274, 4294901760
        %v2052 = vsub.f32 %v274, %v2051
        %2053 = vmatprep.mubr.f32.mxu0 %v2052
        %v2054 = vand.u32 %v273, 4294901760
        %v2055 = vsub.f32 %v273, %v2054
        %2056 = vmatmul.mubr.f32.gmra.mrb[0].mxu0 %v2055
        %v2057 = vpop.f32.mrb[0].mxu0
        %v2058 = vadd.f32 %v1563, %v2057
        %v2059 = vpop.f32.mrb[0].mxu0
        %v2060 = vadd.f32 %v1565, %v2059
        %v2061 = vand.u32 %v276, 4294901760
        %v2062 = vsub.f32 %v276, %v2061
        %2063 = vmatprep.mubr.f32.mxu0 %v2062
        %v2064 = vand.u32 %v275, 4294901760
        %v2065 = vsub.f32 %v275, %v2064
        %2066 = vmatmul.mubr.f32.gmra.mrb[0].mxu0 %v2065
        %v2067 = vpop.f32.mrb[0].mxu0
        %v2068 = vadd.f32 %v1571, %v2067
        %v2069 = vpop.f32.mrb[0].mxu0
        %v2070 = vadd.f32 %v1573, %v2069
        %v2071 = vand.u32 %v278, 4294901760
        %v2072 = vsub.f32 %v278, %v2071
        %2073 = vmatprep.mubr.f32.mxu0 %v2072
        %v2074 = vand.u32 %v277, 4294901760
        %v2075 = vsub.f32 %v277, %v2074
        %2076 = vmatmul.mubr.f32.gmra.mrb[0].mxu0 %v2075
        %v2077 = vpop.f32.mrb[0].mxu0
        %v2078 = vadd.f32 %v1579, %v2077
        %v2079 = vpop.f32.mrb[0].mxu0
        %v2080 = vadd.f32 %v1581, %v2079
        %v2081 = vand.u32 %v280, 4294901760
        %v2082 = vsub.f32 %v280, %v2081
        %2083 = vmatprep.mubr.f32.mxu0 %v2082
        %v2084 = vand.u32 %v279, 4294901760
        %v2085 = vsub.f32 %v279, %v2084
        %2086 = vmatmul.mubr.f32.gmra.mrb[0].mxu0 %v2085
        %v2087 = vpop.f32.mrb[0].mxu0
        %v2088 = vadd.f32 %v1587, %v2087
        %v2089 = vpop.f32.mrb[0].mxu0
        %v2090 = vadd.f32 %v1589, %v2089
        %v2091 = vand.u32 %v282, 4294901760
        %v2092 = vsub.f32 %v282, %v2091
        %2093 = vmatprep.mubr.f32.mxu0 %v2092
        %v2094 = vand.u32 %v281, 4294901760
        %v2095 = vsub.f32 %v281, %v2094
        %2096 = vmatmul.mubr.f32.gmra.mrb[0].mxu0 %v2095
        %v2097 = vpop.f32.mrb[0].mxu0
        %v2098 = vadd.f32 %v1595, %v2097
        %v2099 = vpop.f32.mrb[0].mxu0
        %v2100 = vadd.f32 %v1597, %v2099
        %v2101 = vand.u32 %v284, 4294901760
        %v2102 = vsub.f32 %v284, %v2101
        %2103 = vmatprep.mubr.f32.mxu0 %v2102
        %v2104 = vand.u32 %v283, 4294901760
        %v2105 = vsub.f32 %v283, %v2104
        %2106 = vmatmul.mubr.f32.gmra.mrb[0].mxu0 %v2105
        %v2107 = vpop.f32.mrb[0].mxu0
        %v2108 = vadd.f32 %v1603, %v2107
        %v2109 = vpop.f32.mrb[0].mxu0
        %v2110 = vadd.f32 %v1605, %v2109
        %v2111 = vand.u32 %v286, 4294901760
        %v2112 = vsub.f32 %v286, %v2111
        %2113 = vmatprep.mubr.f32.mxu0 %v2112
        %v2114 = vand.u32 %v285, 4294901760
        %v2115 = vsub.f32 %v285, %v2114
        %2116 = vmatmul.mubr.f32.gmra.mrb[0].mxu0 %v2115
        %v2117 = vpop.f32.mrb[0].mxu0
        %v2118 = vadd.f32 %v1611, %v2117
        %v2119 = vpop.f32.mrb[0].mxu0
        %v2120 = vadd.f32 %v1613, %v2119
        %v2121 = vand.u32 %v288, 4294901760
        %v2122 = vsub.f32 %v288, %v2121
        %2123 = vmatprep.mubr.f32.mxu0 %v2122
        %v2124 = vand.u32 %v287, 4294901760
        %v2125 = vsub.f32 %v287, %v2124
        %2126 = vmatmul.mubr.f32.gmra.mrb[0].mxu0 %v2125
        %v2127 = vpop.f32.mrb[0].mxu0
        %v2128 = vadd.f32 %v1619, %v2127
        %v2129 = vpop.f32.mrb[0].mxu0
        %v2130 = vadd.f32 %v1621, %v2129
        %v2131 = vand.u32 %v290, 4294901760
        %v2132 = vsub.f32 %v290, %v2131
        %2133 = vmatprep.mubr.f32.mxu0 %v2132
        %v2134 = vand.u32 %v289, 4294901760
        %v2135 = vsub.f32 %v289, %v2134
        %2136 = vmatmul.mubr.f32.gmra.mrb[0].mxu0 %v2135
        %v2137 = vpop.f32.mrb[0].mxu0
        %v2138 = vadd.f32 %v1627, %v2137
        %v2139 = vpop.f32.mrb[0].mxu0
        %v2140 = vadd.f32 %v1629, %v2139
        %v2141 = vand.u32 %v292, 4294901760
        %v2142 = vsub.f32 %v292, %v2141
        %2143 = vmatprep.mubr.f32.mxu0 %v2142
        %v2144 = vand.u32 %v291, 4294901760
        %v2145 = vsub.f32 %v291, %v2144
        %2146 = vmatmul.mubr.f32.gmra.mrb[0].mxu0 %v2145
        %v2147 = vpop.f32.mrb[0].mxu0
        %v2148 = vadd.f32 %v1635, %v2147
        %v2149 = vpop.f32.mrb[0].mxu0
        %v2150 = vadd.f32 %v1637, %v2149
        %2151 = vdwg.mxu0
        %v2152 = vand.u32 %v294, 4294901760
        %2153 = vmatprep.subr.mxu0 %v2152
        %v2154 = vand.u32 %v293, 4294901760
        %2155 = vmatpush1.msra.mxu0 %v2154
        %v2156 = vand.u32 %v296, 4294901760
        %2157 = vmatprep.subr.mxu0 %v2156
        %v2158 = vand.u32 %v295, 4294901760
        %2159 = vmatpush1.msra.mxu0 %v2158
        %v2160 = vand.u32 %v298, 4294901760
        %2161 = vmatprep.subr.mxu0 %v2160
        %v2162 = vand.u32 %v297, 4294901760
        %2163 = vmatpush1.msra.mxu0 %v2162
        %v2164 = vand.u32 %v300, 4294901760
        %2165 = vmatprep.subr.mxu0 %v2164
        %v2166 = vand.u32 %v299, 4294901760
        %2167 = vmatpush1.msra.mxu0 %v2166
        %v2168 = vand.u32 %v302, 4294901760
        %2169 = vmatprep.subr.mxu0 %v2168
        %v2170 = vand.u32 %v301, 4294901760
        %2171 = vmatpush1.msra.mxu0 %v2170
        %v2172 = vand.u32 %v304, 4294901760
        %2173 = vmatprep.subr.mxu0 %v2172
        %v2174 = vand.u32 %v303, 4294901760
        %2175 = vmatpush1.msra.mxu0 %v2174
        %v2176 = vand.u32 %v306, 4294901760
        %2177 = vmatprep.subr.mxu0 %v2176
        %v2178 = vand.u32 %v305, 4294901760
        %2179 = vmatpush1.msra.mxu0 %v2178
        %v2180 = vand.u32 %v308, 4294901760
        %2181 = vmatprep.subr.mxu0 %v2180
        %v2182 = vand.u32 %v307, 4294901760
        %2183 = vmatpush1.msra.mxu0 %v2182
        %v2184 = vand.u32 %v310, 4294901760
        %2185 = vmatprep.subr.mxu0 %v2184
        %v2186 = vand.u32 %v309, 4294901760
        %2187 = vmatpush1.msra.mxu0 %v2186
        %v2188 = vand.u32 %v312, 4294901760
        %2189 = vmatprep.subr.mxu0 %v2188
        %v2190 = vand.u32 %v311, 4294901760
        %2191 = vmatpush1.msra.mxu0 %v2190
        %v2192 = vand.u32 %v314, 4294901760
        %2193 = vmatprep.subr.mxu0 %v2192
        %v2194 = vand.u32 %v313, 4294901760
        %2195 = vmatpush1.msra.mxu0 %v2194
        %v2196 = vand.u32 %v316, 4294901760
        %2197 = vmatprep.subr.mxu0 %v2196
        %v2198 = vand.u32 %v315, 4294901760
        %2199 = vmatpush1.msra.mxu0 %v2198
        %v2200 = vand.u32 %v318, 4294901760
        %2201 = vmatprep.subr.mxu0 %v2200
        %v2202 = vand.u32 %v317, 4294901760
        %2203 = vmatpush1.msra.mxu0 %v2202
        %v2204 = vand.u32 %v320, 4294901760
        %2205 = vmatprep.subr.mxu0 %v2204
        %v2206 = vand.u32 %v319, 4294901760
        %2207 = vmatpush1.msra.mxu0 %v2206
        %v2208 = vand.u32 %v322, 4294901760
        %2209 = vmatprep.subr.mxu0 %v2208
        %v2210 = vand.u32 %v321, 4294901760
        %2211 = vmatpush1.msra.mxu0 %v2210
        %v2212 = vand.u32 %v324, 4294901760
        %2213 = vmatprep.subr.mxu0 %v2212
        %v2214 = vand.u32 %v323, 4294901760
        %2215 = vmatpush1.msra.mxu0 %v2214
        %v2216 = vand.u32 %v326, 4294901760
        %2217 = vmatprep.subr.mxu0 %v2216
        %v2218 = vand.u32 %v325, 4294901760
        %2219 = vmatpush1.msra.mxu0 %v2218
        %v2220 = vand.u32 %v328, 4294901760
        %2221 = vmatprep.subr.mxu0 %v2220
        %v2222 = vand.u32 %v327, 4294901760
        %2223 = vmatpush1.msra.mxu0 %v2222
        %v2224 = vand.u32 %v330, 4294901760
        %2225 = vmatprep.subr.mxu0 %v2224
        %v2226 = vand.u32 %v329, 4294901760
        %2227 = vmatpush1.msra.mxu0 %v2226
        %v2228 = vand.u32 %v332, 4294901760
        %2229 = vmatprep.subr.mxu0 %v2228
        %v2230 = vand.u32 %v331, 4294901760
        %2231 = vmatpush1.msra.mxu0 %v2230
        %v2232 = vand.u32 %v334, 4294901760
        %2233 = vmatprep.subr.mxu0 %v2232
        %v2234 = vand.u32 %v333, 4294901760
        %2235 = vmatpush1.msra.mxu0 %v2234
        %v2236 = vand.u32 %v336, 4294901760
        %2237 = vmatprep.subr.mxu0 %v2236
        %v2238 = vand.u32 %v335, 4294901760
        %2239 = vmatpush1.msra.mxu0 %v2238
        %v2240 = vand.u32 %v338, 4294901760
        %2241 = vmatprep.subr.mxu0 %v2240
        %v2242 = vand.u32 %v337, 4294901760
        %2243 = vmatpush1.msra.mxu0 %v2242
        %v2244 = vand.u32 %v340, 4294901760
        %2245 = vmatprep.subr.mxu0 %v2244
        %v2246 = vand.u32 %v339, 4294901760
        %2247 = vmatpush1.msra.mxu0 %v2246
        %v2248 = vand.u32 %v342, 4294901760
        %2249 = vmatprep.subr.mxu0 %v2248
        %v2250 = vand.u32 %v341, 4294901760
        %2251 = vmatpush1.msra.mxu0 %v2250
        %v2252 = vand.u32 %v344, 4294901760
        %2253 = vmatprep.subr.mxu0 %v2252
        %v2254 = vand.u32 %v343, 4294901760
        %2255 = vmatpush1.msra.mxu0 %v2254
        %v2256 = vand.u32 %v346, 4294901760
        %2257 = vmatprep.subr.mxu0 %v2256
        %v2258 = vand.u32 %v345, 4294901760
        %2259 = vmatpush1.msra.mxu0 %v2258
        %v2260 = vand.u32 %v348, 4294901760
        %2261 = vmatprep.subr.mxu0 %v2260
        %v2262 = vand.u32 %v347, 4294901760
        %2263 = vmatpush1.msra.mxu0 %v2262
        %v2264 = vand.u32 %v350, 4294901760
        %2265 = vmatprep.subr.mxu0 %v2264
        %v2266 = vand.u32 %v349, 4294901760
        %2267 = vmatpush1.msra.mxu0 %v2266
        %v2268 = vand.u32 %v352, 4294901760
        %2269 = vmatprep.subr.mxu0 %v2268
        %v2270 = vand.u32 %v351, 4294901760
        %2271 = vmatpush1.msra.mxu0 %v2270
        %v2272 = vand.u32 %v354, 4294901760
        %2273 = vmatprep.subr.mxu0 %v2272
        %v2274 = vand.u32 %v353, 4294901760
        %2275 = vmatpush1.msra.mxu0 %v2274
        %v2276 = vand.u32 %v356, 4294901760
        %2277 = vmatprep.subr.mxu0 %v2276
        %v2278 = vand.u32 %v355, 4294901760
        %2279 = vmatpush1.msra.mxu0 %v2278
        %v2280 = vand.u32 %v230, 4294901760
        %v2281 = vsub.f32 %v230, %v2280
        %v2282 = vand.u32 %v2281, 4294901760
        %2283 = vmatprep.mubr.f32.mxu0 %v2282
        %v2284 = vand.u32 %v229, 4294901760
        %v2285 = vsub.f32 %v229, %v2284
        %v2286 = vand.u32 %v2285, 4294901760
        %2287 = vmatmul.mubr.f32.gmra.mrb[0].mxu0 %v2286
        %v2288 = vpop.f32.mrb[0].mxu0
        %v2289 = vadd.f32 %v1838, %v2288
        %v2290 = vpop.f32.mrb[0].mxu0
        %v2291 = vadd.f32 %v1840, %v2290
        %v2292 = vand.u32 %v232, 4294901760
        %v2293 = vsub.f32 %v232, %v2292
        %v2294 = vand.u32 %v2293, 4294901760
        %2295 = vmatprep.mubr.f32.mxu0 %v2294
        %v2296 = vand.u32 %v231, 4294901760
        %v2297 = vsub.f32 %v231, %v2296
        %v2298 = vand.u32 %v2297, 4294901760
        %2299 = vmatmul.mubr.f32.gmra.mrb[0].mxu0 %v2298
        %v2300 = vpop.f32.mrb[0].mxu0
        %v2301 = vadd.f32 %v1848, %v2300
        %v2302 = vpop.f32.mrb[0].mxu0
        %v2303 = vadd.f32 %v1850, %v2302
        %v2304 = vand.u32 %v234, 4294901760
        %v2305 = vsub.f32 %v234, %v2304
        %v2306 = vand.u32 %v2305, 4294901760
        %2307 = vmatprep.mubr.f32.mxu0 %v2306
        %v2308 = vand.u32 %v233, 4294901760
        %v2309 = vsub.f32 %v233, %v2308
        %v2310 = vand.u32 %v2309, 4294901760
        %2311 = vmatmul.mubr.f32.gmra.mrb[0].mxu0 %v2310
        %v2312 = vpop.f32.mrb[0].mxu0
        %v2313 = vadd.f32 %v1858, %v2312
        %v2314 = vpop.f32.mrb[0].mxu0
        %v2315 = vadd.f32 %v1860, %v2314
        %v2316 = vand.u32 %v236, 4294901760
        %v2317 = vsub.f32 %v236, %v2316
        %v2318 = vand.u32 %v2317, 4294901760
        %2319 = vmatprep.mubr.f32.mxu0 %v2318
        %v2320 = vand.u32 %v235, 4294901760
        %v2321 = vsub.f32 %v235, %v2320
        %v2322 = vand.u32 %v2321, 4294901760
        %2323 = vmatmul.mubr.f32.gmra.mrb[0].mxu0 %v2322
        %v2324 = vpop.f32.mrb[0].mxu0
        %v2325 = vadd.f32 %v1868, %v2324
        %v2326 = vpop.f32.mrb[0].mxu0
        %v2327 = vadd.f32 %v1870, %v2326
        %v2328 = vand.u32 %v238, 4294901760
        %v2329 = vsub.f32 %v238, %v2328
        %v2330 = vand.u32 %v2329, 4294901760
        %2331 = vmatprep.mubr.f32.mxu0 %v2330
        %v2332 = vand.u32 %v237, 4294901760
        %v2333 = vsub.f32 %v237, %v2332
        %v2334 = vand.u32 %v2333, 4294901760
        %2335 = vmatmul.mubr.f32.gmra.mrb[0].mxu0 %v2334
        %v2336 = vpop.f32.mrb[0].mxu0
        %v2337 = vadd.f32 %v1878, %v2336
        %v2338 = vpop.f32.mrb[0].mxu0
        %v2339 = vadd.f32 %v1880, %v2338
        %v2340 = vand.u32 %v240, 4294901760
        %v2341 = vsub.f32 %v240, %v2340
        %v2342 = vand.u32 %v2341, 4294901760
        %2343 = vmatprep.mubr.f32.mxu0 %v2342
        %v2344 = vand.u32 %v239, 4294901760
        %v2345 = vsub.f32 %v239, %v2344
        %v2346 = vand.u32 %v2345, 4294901760
        %2347 = vmatmul.mubr.f32.gmra.mrb[0].mxu0 %v2346
        %v2348 = vpop.f32.mrb[0].mxu0
        %v2349 = vadd.f32 %v1888, %v2348
        %v2350 = vpop.f32.mrb[0].mxu0
        %v2351 = vadd.f32 %v1890, %v2350
        %v2352 = vand.u32 %v242, 4294901760
        %v2353 = vsub.f32 %v242, %v2352
        %v2354 = vand.u32 %v2353, 4294901760
        %2355 = vmatprep.mubr.f32.mxu0 %v2354
        %v2356 = vand.u32 %v241, 4294901760
        %v2357 = vsub.f32 %v241, %v2356
        %v2358 = vand.u32 %v2357, 4294901760
        %2359 = vmatmul.mubr.f32.gmra.mrb[0].mxu0 %v2358
        %v2360 = vpop.f32.mrb[0].mxu0
        %v2361 = vadd.f32 %v1898, %v2360
        %v2362 = vpop.f32.mrb[0].mxu0
        %v2363 = vadd.f32 %v1900, %v2362
        %v2364 = vand.u32 %v244, 4294901760
        %v2365 = vsub.f32 %v244, %v2364
        %v2366 = vand.u32 %v2365, 4294901760
        %2367 = vmatprep.mubr.f32.mxu0 %v2366
        %v2368 = vand.u32 %v243, 4294901760
        %v2369 = vsub.f32 %v243, %v2368
        %v2370 = vand.u32 %v2369, 4294901760
        %2371 = vmatmul.mubr.f32.gmra.mrb[0].mxu0 %v2370
        %v2372 = vpop.f32.mrb[0].mxu0
        %v2373 = vadd.f32 %v1908, %v2372
        %v2374 = vpop.f32.mrb[0].mxu0
        %v2375 = vadd.f32 %v1910, %v2374
        %v2376 = vand.u32 %v246, 4294901760
        %v2377 = vsub.f32 %v246, %v2376
        %v2378 = vand.u32 %v2377, 4294901760
        %2379 = vmatprep.mubr.f32.mxu0 %v2378
        %v2380 = vand.u32 %v245, 4294901760
        %v2381 = vsub.f32 %v245, %v2380
        %v2382 = vand.u32 %v2381, 4294901760
        %2383 = vmatmul.mubr.f32.gmra.mrb[0].mxu0 %v2382
        %v2384 = vpop.f32.mrb[0].mxu0
        %v2385 = vadd.f32 %v1918, %v2384
        %v2386 = vpop.f32.mrb[0].mxu0
        %v2387 = vadd.f32 %v1920, %v2386
        %v2388 = vand.u32 %v248, 4294901760
        %v2389 = vsub.f32 %v248, %v2388
        %v2390 = vand.u32 %v2389, 4294901760
        %2391 = vmatprep.mubr.f32.mxu0 %v2390
        %v2392 = vand.u32 %v247, 4294901760
        %v2393 = vsub.f32 %v247, %v2392
        %v2394 = vand.u32 %v2393, 4294901760
        %2395 = vmatmul.mubr.f32.gmra.mrb[0].mxu0 %v2394
        %v2396 = vpop.f32.mrb[0].mxu0
        %v2397 = vadd.f32 %v1928, %v2396
        %v2398 = vpop.f32.mrb[0].mxu0
        %v2399 = vadd.f32 %v1930, %v2398
        %v2400 = vand.u32 %v250, 4294901760
        %v2401 = vsub.f32 %v250, %v2400
        %v2402 = vand.u32 %v2401, 4294901760
        %2403 = vmatprep.mubr.f32.mxu0 %v2402
        %v2404 = vand.u32 %v249, 4294901760
        %v2405 = vsub.f32 %v249, %v2404
        %v2406 = vand.u32 %v2405, 4294901760
        %2407 = vmatmul.mubr.f32.gmra.mrb[0].mxu0 %v2406
        %v2408 = vpop.f32.mrb[0].mxu0
        %v2409 = vadd.f32 %v1938, %v2408
        %v2410 = vpop.f32.mrb[0].mxu0
        %v2411 = vadd.f32 %v1940, %v2410
        %v2412 = vand.u32 %v252, 4294901760
        %v2413 = vsub.f32 %v252, %v2412
        %v2414 = vand.u32 %v2413, 4294901760
        %2415 = vmatprep.mubr.f32.mxu0 %v2414
        %v2416 = vand.u32 %v251, 4294901760
        %v2417 = vsub.f32 %v251, %v2416
        %v2418 = vand.u32 %v2417, 4294901760
        %2419 = vmatmul.mubr.f32.gmra.mrb[0].mxu0 %v2418
        %v2420 = vpop.f32.mrb[0].mxu0
        %v2421 = vadd.f32 %v1948, %v2420
        %v2422 = vpop.f32.mrb[0].mxu0
        %v2423 = vadd.f32 %v1950, %v2422
        %v2424 = vand.u32 %v254, 4294901760
        %v2425 = vsub.f32 %v254, %v2424
        %v2426 = vand.u32 %v2425, 4294901760
        %2427 = vmatprep.mubr.f32.mxu0 %v2426
        %v2428 = vand.u32 %v253, 4294901760
        %v2429 = vsub.f32 %v253, %v2428
        %v2430 = vand.u32 %v2429, 4294901760
        %2431 = vmatmul.mubr.f32.gmra.mrb[0].mxu0 %v2430
        %v2432 = vpop.f32.mrb[0].mxu0
        %v2433 = vadd.f32 %v1958, %v2432
        %v2434 = vpop.f32.mrb[0].mxu0
        %v2435 = vadd.f32 %v1960, %v2434
        %v2436 = vand.u32 %v256, 4294901760
        %v2437 = vsub.f32 %v256, %v2436
        %v2438 = vand.u32 %v2437, 4294901760
        %2439 = vmatprep.mubr.f32.mxu0 %v2438
        %v2440 = vand.u32 %v255, 4294901760
        %v2441 = vsub.f32 %v255, %v2440
        %v2442 = vand.u32 %v2441, 4294901760
        %2443 = vmatmul.mubr.f32.gmra.mrb[0].mxu0 %v2442
        %v2444 = vpop.f32.mrb[0].mxu0
        %v2445 = vadd.f32 %v1968, %v2444
        %v2446 = vpop.f32.mrb[0].mxu0
        %v2447 = vadd.f32 %v1970, %v2446
        %v2448 = vand.u32 %v258, 4294901760
        %v2449 = vsub.f32 %v258, %v2448
        %v2450 = vand.u32 %v2449, 4294901760
        %2451 = vmatprep.mubr.f32.mxu0 %v2450
        %v2452 = vand.u32 %v257, 4294901760
        %v2453 = vsub.f32 %v257, %v2452
        %v2454 = vand.u32 %v2453, 4294901760
        %2455 = vmatmul.mubr.f32.gmra.mrb[0].mxu0 %v2454
        %v2456 = vpop.f32.mrb[0].mxu0
        %v2457 = vadd.f32 %v1978, %v2456
        %v2458 = vpop.f32.mrb[0].mxu0
        %v2459 = vadd.f32 %v1980, %v2458
        %v2460 = vand.u32 %v260, 4294901760
        %v2461 = vsub.f32 %v260, %v2460
        %v2462 = vand.u32 %v2461, 4294901760
        %2463 = vmatprep.mubr.f32.mxu0 %v2462
        %v2464 = vand.u32 %v259, 4294901760
        %v2465 = vsub.f32 %v259, %v2464
        %v2466 = vand.u32 %v2465, 4294901760
        %2467 = vmatmul.mubr.f32.gmra.mrb[0].mxu0 %v2466
        %v2468 = vpop.f32.mrb[0].mxu0
        %v2469 = vadd.f32 %v1988, %v2468
        %v2470 = vpop.f32.mrb[0].mxu0
        %v2471 = vadd.f32 %v1990, %v2470
        %v2472 = vand.u32 %v262, 4294901760
        %v2473 = vsub.f32 %v262, %v2472
        %v2474 = vand.u32 %v2473, 4294901760
        %2475 = vmatprep.mubr.f32.mxu0 %v2474
        %v2476 = vand.u32 %v261, 4294901760
        %v2477 = vsub.f32 %v261, %v2476
        %v2478 = vand.u32 %v2477, 4294901760
        %2479 = vmatmul.mubr.f32.gmra.mrb[0].mxu0 %v2478
        %v2480 = vpop.f32.mrb[0].mxu0
        %v2481 = vadd.f32 %v1998, %v2480
        %v2482 = vpop.f32.mrb[0].mxu0
        %v2483 = vadd.f32 %v2000, %v2482
        %v2484 = vand.u32 %v264, 4294901760
        %v2485 = vsub.f32 %v264, %v2484
        %v2486 = vand.u32 %v2485, 4294901760
        %2487 = vmatprep.mubr.f32.mxu0 %v2486
        %v2488 = vand.u32 %v263, 4294901760
        %v2489 = vsub.f32 %v263, %v2488
        %v2490 = vand.u32 %v2489, 4294901760
        %2491 = vmatmul.mubr.f32.gmra.mrb[0].mxu0 %v2490
        %v2492 = vpop.f32.mrb[0].mxu0
        %v2493 = vadd.f32 %v2008, %v2492
        %v2494 = vpop.f32.mrb[0].mxu0
        %v2495 = vadd.f32 %v2010, %v2494
        %v2496 = vand.u32 %v266, 4294901760
        %v2497 = vsub.f32 %v266, %v2496
        %v2498 = vand.u32 %v2497, 4294901760
        %2499 = vmatprep.mubr.f32.mxu0 %v2498
        %v2500 = vand.u32 %v265, 4294901760
        %v2501 = vsub.f32 %v265, %v2500
        %v2502 = vand.u32 %v2501, 4294901760
        %2503 = vmatmul.mubr.f32.gmra.mrb[0].mxu0 %v2502
        %v2504 = vpop.f32.mrb[0].mxu0
        %v2505 = vadd.f32 %v2018, %v2504
        %v2506 = vpop.f32.mrb[0].mxu0
        %v2507 = vadd.f32 %v2020, %v2506
        %v2508 = vand.u32 %v268, 4294901760
        %v2509 = vsub.f32 %v268, %v2508
        %v2510 = vand.u32 %v2509, 4294901760
        %2511 = vmatprep.mubr.f32.mxu0 %v2510
        %v2512 = vand.u32 %v267, 4294901760
        %v2513 = vsub.f32 %v267, %v2512
        %v2514 = vand.u32 %v2513, 4294901760
        %2515 = vmatmul.mubr.f32.gmra.mrb[0].mxu0 %v2514
        %v2516 = vpop.f32.mrb[0].mxu0
        %v2517 = vadd.f32 %v2028, %v2516
        %v2518 = vpop.f32.mrb[0].mxu0
        %v2519 = vadd.f32 %v2030, %v2518
        %v2520 = vand.u32 %v270, 4294901760
        %v2521 = vsub.f32 %v270, %v2520
        %v2522 = vand.u32 %v2521, 4294901760
        %2523 = vmatprep.mubr.f32.mxu0 %v2522
        %v2524 = vand.u32 %v269, 4294901760
        %v2525 = vsub.f32 %v269, %v2524
        %v2526 = vand.u32 %v2525, 4294901760
        %2527 = vmatmul.mubr.f32.gmra.mrb[0].mxu0 %v2526
        %v2528 = vpop.f32.mrb[0].mxu0
        %v2529 = vadd.f32 %v2038, %v2528
        %v2530 = vpop.f32.mrb[0].mxu0
        %v2531 = vadd.f32 %v2040, %v2530
        %v2532 = vand.u32 %v272, 4294901760
        %v2533 = vsub.f32 %v272, %v2532
        %v2534 = vand.u32 %v2533, 4294901760
        %2535 = vmatprep.mubr.f32.mxu0 %v2534
        %v2536 = vand.u32 %v271, 4294901760
        %v2537 = vsub.f32 %v271, %v2536
        %v2538 = vand.u32 %v2537, 4294901760
        %2539 = vmatmul.mubr.f32.gmra.mrb[0].mxu0 %v2538
        %v2540 = vpop.f32.mrb[0].mxu0
        %v2541 = vadd.f32 %v2048, %v2540
        %v2542 = vpop.f32.mrb[0].mxu0
        %v2543 = vadd.f32 %v2050, %v2542
        %v2544 = vand.u32 %v274, 4294901760
        %v2545 = vsub.f32 %v274, %v2544
        %v2546 = vand.u32 %v2545, 4294901760
        %2547 = vmatprep.mubr.f32.mxu0 %v2546
        %v2548 = vand.u32 %v273, 4294901760
        %v2549 = vsub.f32 %v273, %v2548
        %v2550 = vand.u32 %v2549, 4294901760
        %2551 = vmatmul.mubr.f32.gmra.mrb[0].mxu0 %v2550
        %v2552 = vpop.f32.mrb[0].mxu0
        %v2553 = vadd.f32 %v2058, %v2552
        %v2554 = vpop.f32.mrb[0].mxu0
        %v2555 = vadd.f32 %v2060, %v2554
        %v2556 = vand.u32 %v276, 4294901760
        %v2557 = vsub.f32 %v276, %v2556
        %v2558 = vand.u32 %v2557, 4294901760
        %2559 = vmatprep.mubr.f32.mxu0 %v2558
        %v2560 = vand.u32 %v275, 4294901760
        %v2561 = vsub.f32 %v275, %v2560
        %v2562 = vand.u32 %v2561, 4294901760
        %2563 = vmatmul.mubr.f32.gmra.mrb[0].mxu0 %v2562
        %v2564 = vpop.f32.mrb[0].mxu0
        %v2565 = vadd.f32 %v2068, %v2564
        %v2566 = vpop.f32.mrb[0].mxu0
        %v2567 = vadd.f32 %v2070, %v2566
        %v2568 = vand.u32 %v278, 4294901760
        %v2569 = vsub.f32 %v278, %v2568
        %v2570 = vand.u32 %v2569, 4294901760
        %2571 = vmatprep.mubr.f32.mxu0 %v2570
        %v2572 = vand.u32 %v277, 4294901760
        %v2573 = vsub.f32 %v277, %v2572
        %v2574 = vand.u32 %v2573, 4294901760
        %2575 = vmatmul.mubr.f32.gmra.mrb[0].mxu0 %v2574
        %v2576 = vpop.f32.mrb[0].mxu0
        %v2577 = vadd.f32 %v2078, %v2576
        %v2578 = vpop.f32.mrb[0].mxu0
        %v2579 = vadd.f32 %v2080, %v2578
        %v2580 = vand.u32 %v280, 4294901760
        %v2581 = vsub.f32 %v280, %v2580
        %v2582 = vand.u32 %v2581, 4294901760
        %2583 = vmatprep.mubr.f32.mxu0 %v2582
        %v2584 = vand.u32 %v279, 4294901760
        %v2585 = vsub.f32 %v279, %v2584
        %v2586 = vand.u32 %v2585, 4294901760
        %2587 = vmatmul.mubr.f32.gmra.mrb[0].mxu0 %v2586
        %v2588 = vpop.f32.mrb[0].mxu0
        %v2589 = vadd.f32 %v2088, %v2588
        %v2590 = vpop.f32.mrb[0].mxu0
        %v2591 = vadd.f32 %v2090, %v2590
        %v2592 = vand.u32 %v282, 4294901760
        %v2593 = vsub.f32 %v282, %v2592
        %v2594 = vand.u32 %v2593, 4294901760
        %2595 = vmatprep.mubr.f32.mxu0 %v2594
        %v2596 = vand.u32 %v281, 4294901760
        %v2597 = vsub.f32 %v281, %v2596
        %v2598 = vand.u32 %v2597, 4294901760
        %2599 = vmatmul.mubr.f32.gmra.mrb[0].mxu0 %v2598
        %v2600 = vpop.f32.mrb[0].mxu0
        %v2601 = vadd.f32 %v2098, %v2600
        %v2602 = vpop.f32.mrb[0].mxu0
        %v2603 = vadd.f32 %v2100, %v2602
        %v2604 = vand.u32 %v284, 4294901760
        %v2605 = vsub.f32 %v284, %v2604
        %v2606 = vand.u32 %v2605, 4294901760
        %2607 = vmatprep.mubr.f32.mxu0 %v2606
        %v2608 = vand.u32 %v283, 4294901760
        %v2609 = vsub.f32 %v283, %v2608
        %v2610 = vand.u32 %v2609, 4294901760
        %2611 = vmatmul.mubr.f32.gmra.mrb[0].mxu0 %v2610
        %v2612 = vpop.f32.mrb[0].mxu0
        %v2613 = vadd.f32 %v2108, %v2612
        %v2614 = vpop.f32.mrb[0].mxu0
        %v2615 = vadd.f32 %v2110, %v2614
        %v2616 = vand.u32 %v286, 4294901760
        %v2617 = vsub.f32 %v286, %v2616
        %v2618 = vand.u32 %v2617, 4294901760
        %2619 = vmatprep.mubr.f32.mxu0 %v2618
        %v2620 = vand.u32 %v285, 4294901760
        %v2621 = vsub.f32 %v285, %v2620
        %v2622 = vand.u32 %v2621, 4294901760
        %2623 = vmatmul.mubr.f32.gmra.mrb[0].mxu0 %v2622
        %v2624 = vpop.f32.mrb[0].mxu0
        %v2625 = vadd.f32 %v2118, %v2624
        %v2626 = vpop.f32.mrb[0].mxu0
        %v2627 = vadd.f32 %v2120, %v2626
        %v2628 = vand.u32 %v288, 4294901760
        %v2629 = vsub.f32 %v288, %v2628
        %v2630 = vand.u32 %v2629, 4294901760
        %2631 = vmatprep.mubr.f32.mxu0 %v2630
        %v2632 = vand.u32 %v287, 4294901760
        %v2633 = vsub.f32 %v287, %v2632
        %v2634 = vand.u32 %v2633, 4294901760
        %2635 = vmatmul.mubr.f32.gmra.mrb[0].mxu0 %v2634
        %v2636 = vpop.f32.mrb[0].mxu0
        %v2637 = vadd.f32 %v2128, %v2636
        %v2638 = vpop.f32.mrb[0].mxu0
        %v2639 = vadd.f32 %v2130, %v2638
        %v2640 = vand.u32 %v290, 4294901760
        %v2641 = vsub.f32 %v290, %v2640
        %v2642 = vand.u32 %v2641, 4294901760
        %2643 = vmatprep.mubr.f32.mxu0 %v2642
        %v2644 = vand.u32 %v289, 4294901760
        %v2645 = vsub.f32 %v289, %v2644
        %v2646 = vand.u32 %v2645, 4294901760
        %2647 = vmatmul.mubr.f32.gmra.mrb[0].mxu0 %v2646
        %v2648 = vpop.f32.mrb[0].mxu0
        %v2649 = vadd.f32 %v2138, %v2648
        %v2650 = vpop.f32.mrb[0].mxu0
        %v2651 = vadd.f32 %v2140, %v2650
        %v2652 = vand.u32 %v292, 4294901760
        %v2653 = vsub.f32 %v292, %v2652
        %v2654 = vand.u32 %v2653, 4294901760
        %2655 = vmatprep.mubr.f32.mxu0 %v2654
        %v2656 = vand.u32 %v291, 4294901760
        %v2657 = vsub.f32 %v291, %v2656
        %v2658 = vand.u32 %v2657, 4294901760
        %2659 = vmatmul.mubr.f32.gmra.mrb[0].mxu0 %v2658
        %v2660 = vpop.f32.mrb[0].mxu0
        %v2661 = vadd.f32 %v2148, %v2660
        %v2662 = vpop.f32.mrb[0].mxu0
        %v2663 = vadd.f32 %v2150, %v2662
        %2664 = vdwg.mxu0
        %v2665 = vand.u32 %v294, 4294901760
        %v2666 = vsub.f32 %v294, %v2665
        %v2667 = vand.u32 %v2666, 4294901760
        %2668 = vmatprep.subr.mxu0 %v2667
        %v2669 = vand.u32 %v293, 4294901760
        %v2670 = vsub.f32 %v293, %v2669
        %v2671 = vand.u32 %v2670, 4294901760
        %2672 = vmatpush1.msra.mxu0 %v2671
        %v2673 = vand.u32 %v296, 4294901760
        %v2674 = vsub.f32 %v296, %v2673
        %v2675 = vand.u32 %v2674, 4294901760
        %2676 = vmatprep.subr.mxu0 %v2675
        %v2677 = vand.u32 %v295, 4294901760
        %v2678 = vsub.f32 %v295, %v2677
        %v2679 = vand.u32 %v2678, 4294901760
        %2680 = vmatpush1.msra.mxu0 %v2679
        %v2681 = vand.u32 %v298, 4294901760
        %v2682 = vsub.f32 %v298, %v2681
        %v2683 = vand.u32 %v2682, 4294901760
        %2684 = vmatprep.subr.mxu0 %v2683
        %v2685 = vand.u32 %v297, 4294901760
        %v2686 = vsub.f32 %v297, %v2685
        %v2687 = vand.u32 %v2686, 4294901760
        %2688 = vmatpush1.msra.mxu0 %v2687
        %v2689 = vand.u32 %v300, 4294901760
        %v2690 = vsub.f32 %v300, %v2689
        %v2691 = vand.u32 %v2690, 4294901760
        %2692 = vmatprep.subr.mxu0 %v2691
        %v2693 = vand.u32 %v299, 4294901760
        %v2694 = vsub.f32 %v299, %v2693
        %v2695 = vand.u32 %v2694, 4294901760
        %2696 = vmatpush1.msra.mxu0 %v2695
        %v2697 = vand.u32 %v302, 4294901760
        %v2698 = vsub.f32 %v302, %v2697
        %v2699 = vand.u32 %v2698, 4294901760
        %2700 = vmatprep.subr.mxu0 %v2699
        %v2701 = vand.u32 %v301, 4294901760
        %v2702 = vsub.f32 %v301, %v2701
        %v2703 = vand.u32 %v2702, 4294901760
        %2704 = vmatpush1.msra.mxu0 %v2703
        %v2705 = vand.u32 %v304, 4294901760
        %v2706 = vsub.f32 %v304, %v2705
        %v2707 = vand.u32 %v2706, 4294901760
        %2708 = vmatprep.subr.mxu0 %v2707
        %v2709 = vand.u32 %v303, 4294901760
        %v2710 = vsub.f32 %v303, %v2709
        %v2711 = vand.u32 %v2710, 4294901760
        %2712 = vmatpush1.msra.mxu0 %v2711
        %v2713 = vand.u32 %v306, 4294901760
        %v2714 = vsub.f32 %v306, %v2713
        %v2715 = vand.u32 %v2714, 4294901760
        %2716 = vmatprep.subr.mxu0 %v2715
        %v2717 = vand.u32 %v305, 4294901760
        %v2718 = vsub.f32 %v305, %v2717
        %v2719 = vand.u32 %v2718, 4294901760
        %2720 = vmatpush1.msra.mxu0 %v2719
        %v2721 = vand.u32 %v308, 4294901760
        %v2722 = vsub.f32 %v308, %v2721
        %v2723 = vand.u32 %v2722, 4294901760
        %2724 = vmatprep.subr.mxu0 %v2723
        %v2725 = vand.u32 %v307, 4294901760
        %v2726 = vsub.f32 %v307, %v2725
        %v2727 = vand.u32 %v2726, 4294901760
        %2728 = vmatpush1.msra.mxu0 %v2727
        %v2729 = vand.u32 %v310, 4294901760
        %v2730 = vsub.f32 %v310, %v2729
        %v2731 = vand.u32 %v2730, 4294901760
        %2732 = vmatprep.subr.mxu0 %v2731
        %v2733 = vand.u32 %v309, 4294901760
        %v2734 = vsub.f32 %v309, %v2733
        %v2735 = vand.u32 %v2734, 4294901760
        %2736 = vmatpush1.msra.mxu0 %v2735
        %v2737 = vand.u32 %v312, 4294901760
        %v2738 = vsub.f32 %v312, %v2737
        %v2739 = vand.u32 %v2738, 4294901760
        %2740 = vmatprep.subr.mxu0 %v2739
        %v2741 = vand.u32 %v311, 4294901760
        %v2742 = vsub.f32 %v311, %v2741
        %v2743 = vand.u32 %v2742, 4294901760
        %2744 = vmatpush1.msra.mxu0 %v2743
        %v2745 = vand.u32 %v314, 4294901760
        %v2746 = vsub.f32 %v314, %v2745
        %v2747 = vand.u32 %v2746, 4294901760
        %2748 = vmatprep.subr.mxu0 %v2747
        %v2749 = vand.u32 %v313, 4294901760
        %v2750 = vsub.f32 %v313, %v2749
        %v2751 = vand.u32 %v2750, 4294901760
        %2752 = vmatpush1.msra.mxu0 %v2751
        %v2753 = vand.u32 %v316, 4294901760
        %v2754 = vsub.f32 %v316, %v2753
        %v2755 = vand.u32 %v2754, 4294901760
        %2756 = vmatprep.subr.mxu0 %v2755
        %v2757 = vand.u32 %v315, 4294901760
        %v2758 = vsub.f32 %v315, %v2757
        %v2759 = vand.u32 %v2758, 4294901760
        %2760 = vmatpush1.msra.mxu0 %v2759
        %v2761 = vand.u32 %v318, 4294901760
        %v2762 = vsub.f32 %v318, %v2761
        %v2763 = vand.u32 %v2762, 4294901760
        %2764 = vmatprep.subr.mxu0 %v2763
        %v2765 = vand.u32 %v317, 4294901760
        %v2766 = vsub.f32 %v317, %v2765
        %v2767 = vand.u32 %v2766, 4294901760
        %2768 = vmatpush1.msra.mxu0 %v2767
        %v2769 = vand.u32 %v320, 4294901760
        %v2770 = vsub.f32 %v320, %v2769
        %v2771 = vand.u32 %v2770, 4294901760
        %2772 = vmatprep.subr.mxu0 %v2771
        %v2773 = vand.u32 %v319, 4294901760
        %v2774 = vsub.f32 %v319, %v2773
        %v2775 = vand.u32 %v2774, 4294901760
        %2776 = vmatpush1.msra.mxu0 %v2775
        %v2777 = vand.u32 %v322, 4294901760
        %v2778 = vsub.f32 %v322, %v2777
        %v2779 = vand.u32 %v2778, 4294901760
        %2780 = vmatprep.subr.mxu0 %v2779
        %v2781 = vand.u32 %v321, 4294901760
        %v2782 = vsub.f32 %v321, %v2781
        %v2783 = vand.u32 %v2782, 4294901760
        %2784 = vmatpush1.msra.mxu0 %v2783
        %v2785 = vand.u32 %v324, 4294901760
        %v2786 = vsub.f32 %v324, %v2785
        %v2787 = vand.u32 %v2786, 4294901760
        %2788 = vmatprep.subr.mxu0 %v2787
        %v2789 = vand.u32 %v323, 4294901760
        %v2790 = vsub.f32 %v323, %v2789
        %v2791 = vand.u32 %v2790, 4294901760
        %2792 = vmatpush1.msra.mxu0 %v2791
        %v2793 = vand.u32 %v326, 4294901760
        %v2794 = vsub.f32 %v326, %v2793
        %v2795 = vand.u32 %v2794, 4294901760
        %2796 = vmatprep.subr.mxu0 %v2795
        %v2797 = vand.u32 %v325, 4294901760
        %v2798 = vsub.f32 %v325, %v2797
        %v2799 = vand.u32 %v2798, 4294901760
        %2800 = vmatpush1.msra.mxu0 %v2799
        %v2801 = vand.u32 %v328, 4294901760
        %v2802 = vsub.f32 %v328, %v2801
        %v2803 = vand.u32 %v2802, 4294901760
        %2804 = vmatprep.subr.mxu0 %v2803
        %v2805 = vand.u32 %v327, 4294901760
        %v2806 = vsub.f32 %v327, %v2805
        %v2807 = vand.u32 %v2806, 4294901760
        %2808 = vmatpush1.msra.mxu0 %v2807
        %v2809 = vand.u32 %v330, 4294901760
        %v2810 = vsub.f32 %v330, %v2809
        %v2811 = vand.u32 %v2810, 4294901760
        %2812 = vmatprep.subr.mxu0 %v2811
        %v2813 = vand.u32 %v329, 4294901760
        %v2814 = vsub.f32 %v329, %v2813
        %v2815 = vand.u32 %v2814, 4294901760
        %2816 = vmatpush1.msra.mxu0 %v2815
        %v2817 = vand.u32 %v332, 4294901760
        %v2818 = vsub.f32 %v332, %v2817
        %v2819 = vand.u32 %v2818, 4294901760
        %2820 = vmatprep.subr.mxu0 %v2819
        %v2821 = vand.u32 %v331, 4294901760
        %v2822 = vsub.f32 %v331, %v2821
        %v2823 = vand.u32 %v2822, 4294901760
        %2824 = vmatpush1.msra.mxu0 %v2823
        %v2825 = vand.u32 %v334, 4294901760
        %v2826 = vsub.f32 %v334, %v2825
        %v2827 = vand.u32 %v2826, 4294901760
        %2828 = vmatprep.subr.mxu0 %v2827
        %v2829 = vand.u32 %v333, 4294901760
        %v2830 = vsub.f32 %v333, %v2829
        %v2831 = vand.u32 %v2830, 4294901760
        %2832 = vmatpush1.msra.mxu0 %v2831
        %v2833 = vand.u32 %v336, 4294901760
        %v2834 = vsub.f32 %v336, %v2833
        %v2835 = vand.u32 %v2834, 4294901760
        %2836 = vmatprep.subr.mxu0 %v2835
        %v2837 = vand.u32 %v335, 4294901760
        %v2838 = vsub.f32 %v335, %v2837
        %v2839 = vand.u32 %v2838, 4294901760
        %2840 = vmatpush1.msra.mxu0 %v2839
        %v2841 = vand.u32 %v338, 4294901760
        %v2842 = vsub.f32 %v338, %v2841
        %v2843 = vand.u32 %v2842, 4294901760
        %2844 = vmatprep.subr.mxu0 %v2843
        %v2845 = vand.u32 %v337, 4294901760
        %v2846 = vsub.f32 %v337, %v2845
        %v2847 = vand.u32 %v2846, 4294901760
        %2848 = vmatpush1.msra.mxu0 %v2847
        %v2849 = vand.u32 %v340, 4294901760
        %v2850 = vsub.f32 %v340, %v2849
        %v2851 = vand.u32 %v2850, 4294901760
        %2852 = vmatprep.subr.mxu0 %v2851
        %v2853 = vand.u32 %v339, 4294901760
        %v2854 = vsub.f32 %v339, %v2853
        %v2855 = vand.u32 %v2854, 4294901760
        %2856 = vmatpush1.msra.mxu0 %v2855
        %v2857 = vand.u32 %v342, 4294901760
        %v2858 = vsub.f32 %v342, %v2857
        %v2859 = vand.u32 %v2858, 4294901760
        %2860 = vmatprep.subr.mxu0 %v2859
        %v2861 = vand.u32 %v341, 4294901760
        %v2862 = vsub.f32 %v341, %v2861
        %v2863 = vand.u32 %v2862, 4294901760
        %2864 = vmatpush1.msra.mxu0 %v2863
        %v2865 = vand.u32 %v344, 4294901760
        %v2866 = vsub.f32 %v344, %v2865
        %v2867 = vand.u32 %v2866, 4294901760
        %2868 = vmatprep.subr.mxu0 %v2867
        %v2869 = vand.u32 %v343, 4294901760
        %v2870 = vsub.f32 %v343, %v2869
        %v2871 = vand.u32 %v2870, 4294901760
        %2872 = vmatpush1.msra.mxu0 %v2871
        %v2873 = vand.u32 %v346, 4294901760
        %v2874 = vsub.f32 %v346, %v2873
        %v2875 = vand.u32 %v2874, 4294901760
        %2876 = vmatprep.subr.mxu0 %v2875
        %v2877 = vand.u32 %v345, 4294901760
        %v2878 = vsub.f32 %v345, %v2877
        %v2879 = vand.u32 %v2878, 4294901760
        %2880 = vmatpush1.msra.mxu0 %v2879
        %v2881 = vand.u32 %v348, 4294901760
        %v2882 = vsub.f32 %v348, %v2881
        %v2883 = vand.u32 %v2882, 4294901760
        %2884 = vmatprep.subr.mxu0 %v2883
        %v2885 = vand.u32 %v347, 4294901760
        %v2886 = vsub.f32 %v347, %v2885
        %v2887 = vand.u32 %v2886, 4294901760
        %2888 = vmatpush1.msra.mxu0 %v2887
        %v2889 = vand.u32 %v350, 4294901760
        %v2890 = vsub.f32 %v350, %v2889
        %v2891 = vand.u32 %v2890, 4294901760
        %2892 = vmatprep.subr.mxu0 %v2891
        %v2893 = vand.u32 %v349, 4294901760
        %v2894 = vsub.f32 %v349, %v2893
        %v2895 = vand.u32 %v2894, 4294901760
        %2896 = vmatpush1.msra.mxu0 %v2895
        %v2897 = vand.u32 %v352, 4294901760
        %v2898 = vsub.f32 %v352, %v2897
        %v2899 = vand.u32 %v2898, 4294901760
        %2900 = vmatprep.subr.mxu0 %v2899
        %v2901 = vand.u32 %v351, 4294901760
        %v2902 = vsub.f32 %v351, %v2901
        %v2903 = vand.u32 %v2902, 4294901760
        %2904 = vmatpush1.msra.mxu0 %v2903
        %v2905 = vand.u32 %v354, 4294901760
        %v2906 = vsub.f32 %v354, %v2905
        %v2907 = vand.u32 %v2906, 4294901760
        %2908 = vmatprep.subr.mxu0 %v2907
        %v2909 = vand.u32 %v353, 4294901760
        %v2910 = vsub.f32 %v353, %v2909
        %v2911 = vand.u32 %v2910, 4294901760
        %2912 = vmatpush1.msra.mxu0 %v2911
        %v2913 = vand.u32 %v356, 4294901760
        %v2914 = vsub.f32 %v356, %v2913
        %v2915 = vand.u32 %v2914, 4294901760
        %2916 = vmatprep.subr.mxu0 %v2915
        %v2917 = vand.u32 %v355, 4294901760
        %v2918 = vsub.f32 %v355, %v2917
        %v2919 = vand.u32 %v2918, 4294901760
        %2920 = vmatpush1.msra.mxu0 %v2919
        %v2921 = vand.u32 %v230, 4294901760
        %2922 = vmatprep.mubr.f32.mxu0 %v2921
        %v2923 = vand.u32 %v229, 4294901760
        %2924 = vmatmul.mubr.f32.gmra.mrb[0].mxu0 %v2923
        %v2925 = vpop.f32.mrb[0].mxu0
        %v2926 = vadd.f32 %v2289, %v2925
        %v2927 = vpop.f32.mrb[0].mxu0
        %v2928 = vadd.f32 %v2291, %v2927
        %v2929 = vand.u32 %v232, 4294901760
        %2930 = vmatprep.mubr.f32.mxu0 %v2929
        %v2931 = vand.u32 %v231, 4294901760
        %2932 = vmatmul.mubr.f32.gmra.mrb[0].mxu0 %v2931
        %v2933 = vpop.f32.mrb[0].mxu0
        %v2934 = vadd.f32 %v2301, %v2933
        %v2935 = vpop.f32.mrb[0].mxu0
        %v2936 = vadd.f32 %v2303, %v2935
        %v2937 = vand.u32 %v234, 4294901760
        %2938 = vmatprep.mubr.f32.mxu0 %v2937
        %v2939 = vand.u32 %v233, 4294901760
        %2940 = vmatmul.mubr.f32.gmra.mrb[0].mxu0 %v2939
        %v2941 = vpop.f32.mrb[0].mxu0
        %v2942 = vadd.f32 %v2313, %v2941
        %v2943 = vpop.f32.mrb[0].mxu0
        %v2944 = vadd.f32 %v2315, %v2943
        %v2945 = vand.u32 %v236, 4294901760
        %2946 = vmatprep.mubr.f32.mxu0 %v2945
        %v2947 = vand.u32 %v235, 4294901760
        %2948 = vmatmul.mubr.f32.gmra.mrb[0].mxu0 %v2947
        %v2949 = vpop.f32.mrb[0].mxu0
        %v2950 = vadd.f32 %v2325, %v2949
        %v2951 = vpop.f32.mrb[0].mxu0
        %v2952 = vadd.f32 %v2327, %v2951
        %v2953 = vand.u32 %v238, 4294901760
        %2954 = vmatprep.mubr.f32.mxu0 %v2953
        %v2955 = vand.u32 %v237, 4294901760
        %2956 = vmatmul.mubr.f32.gmra.mrb[0].mxu0 %v2955
        %v2957 = vpop.f32.mrb[0].mxu0
        %v2958 = vadd.f32 %v2337, %v2957
        %v2959 = vpop.f32.mrb[0].mxu0
        %v2960 = vadd.f32 %v2339, %v2959
        %v2961 = vand.u32 %v240, 4294901760
        %2962 = vmatprep.mubr.f32.mxu0 %v2961
        %v2963 = vand.u32 %v239, 4294901760
        %2964 = vmatmul.mubr.f32.gmra.mrb[0].mxu0 %v2963
        %v2965 = vpop.f32.mrb[0].mxu0
        %v2966 = vadd.f32 %v2349, %v2965
        %v2967 = vpop.f32.mrb[0].mxu0
        %v2968 = vadd.f32 %v2351, %v2967
        %v2969 = vand.u32 %v242, 4294901760
        %2970 = vmatprep.mubr.f32.mxu0 %v2969
        %v2971 = vand.u32 %v241, 4294901760
        %2972 = vmatmul.mubr.f32.gmra.mrb[0].mxu0 %v2971
        %v2973 = vpop.f32.mrb[0].mxu0
        %v2974 = vadd.f32 %v2361, %v2973
        %v2975 = vpop.f32.mrb[0].mxu0
        %v2976 = vadd.f32 %v2363, %v2975
        %v2977 = vand.u32 %v244, 4294901760
        %2978 = vmatprep.mubr.f32.mxu0 %v2977
        %v2979 = vand.u32 %v243, 4294901760
        %2980 = vmatmul.mubr.f32.gmra.mrb[0].mxu0 %v2979
        %v2981 = vpop.f32.mrb[0].mxu0
        %v2982 = vadd.f32 %v2373, %v2981
        %v2983 = vpop.f32.mrb[0].mxu0
        %v2984 = vadd.f32 %v2375, %v2983
        %v2985 = vand.u32 %v246, 4294901760
        %2986 = vmatprep.mubr.f32.mxu0 %v2985
        %v2987 = vand.u32 %v245, 4294901760
        %2988 = vmatmul.mubr.f32.gmra.mrb[0].mxu0 %v2987
        %v2989 = vpop.f32.mrb[0].mxu0
        %v2990 = vadd.f32 %v2385, %v2989
        %v2991 = vpop.f32.mrb[0].mxu0
        %v2992 = vadd.f32 %v2387, %v2991
        %v2993 = vand.u32 %v248, 4294901760
        %2994 = vmatprep.mubr.f32.mxu0 %v2993
        %v2995 = vand.u32 %v247, 4294901760
        %2996 = vmatmul.mubr.f32.gmra.mrb[0].mxu0 %v2995
        %v2997 = vpop.f32.mrb[0].mxu0
        %v2998 = vadd.f32 %v2397, %v2997
        %v2999 = vpop.f32.mrb[0].mxu0
        %v3000 = vadd.f32 %v2399, %v2999
        %v3001 = vand.u32 %v250, 4294901760
        %3002 = vmatprep.mubr.f32.mxu0 %v3001
        %v3003 = vand.u32 %v249, 4294901760
        %3004 = vmatmul.mubr.f32.gmra.mrb[0].mxu0 %v3003
        %v3005 = vpop.f32.mrb[0].mxu0
        %v3006 = vadd.f32 %v2409, %v3005
        %v3007 = vpop.f32.mrb[0].mxu0
        %v3008 = vadd.f32 %v2411, %v3007
        %v3009 = vand.u32 %v252, 4294901760
        %3010 = vmatprep.mubr.f32.mxu0 %v3009
        %v3011 = vand.u32 %v251, 4294901760
        %3012 = vmatmul.mubr.f32.gmra.mrb[0].mxu0 %v3011
        %v3013 = vpop.f32.mrb[0].mxu0
        %v3014 = vadd.f32 %v2421, %v3013
        %v3015 = vpop.f32.mrb[0].mxu0
        %v3016 = vadd.f32 %v2423, %v3015
        %v3017 = vand.u32 %v254, 4294901760
        %3018 = vmatprep.mubr.f32.mxu0 %v3017
        %v3019 = vand.u32 %v253, 4294901760
        %3020 = vmatmul.mubr.f32.gmra.mrb[0].mxu0 %v3019
        %v3021 = vpop.f32.mrb[0].mxu0
        %v3022 = vadd.f32 %v2433, %v3021
        %v3023 = vpop.f32.mrb[0].mxu0
        %v3024 = vadd.f32 %v2435, %v3023
        %v3025 = vand.u32 %v256, 4294901760
        %3026 = vmatprep.mubr.f32.mxu0 %v3025
        %v3027 = vand.u32 %v255, 4294901760
        %3028 = vmatmul.mubr.f32.gmra.mrb[0].mxu0 %v3027
        %v3029 = vpop.f32.mrb[0].mxu0
        %v3030 = vadd.f32 %v2445, %v3029
        %v3031 = vpop.f32.mrb[0].mxu0
        %v3032 = vadd.f32 %v2447, %v3031
        %v3033 = vand.u32 %v258, 4294901760
        %3034 = vmatprep.mubr.f32.mxu0 %v3033
        %v3035 = vand.u32 %v257, 4294901760
        %3036 = vmatmul.mubr.f32.gmra.mrb[0].mxu0 %v3035
        %v3037 = vpop.f32.mrb[0].mxu0
        %v3038 = vadd.f32 %v2457, %v3037
        %v3039 = vpop.f32.mrb[0].mxu0
        %v3040 = vadd.f32 %v2459, %v3039
        %v3041 = vand.u32 %v260, 4294901760
        %3042 = vmatprep.mubr.f32.mxu0 %v3041
        %v3043 = vand.u32 %v259, 4294901760
        %3044 = vmatmul.mubr.f32.gmra.mrb[0].mxu0 %v3043
        %v3045 = vpop.f32.mrb[0].mxu0
        %v3046 = vadd.f32 %v2469, %v3045
        %v3047 = vpop.f32.mrb[0].mxu0
        %v3048 = vadd.f32 %v2471, %v3047
        %v3049 = vand.u32 %v262, 4294901760
        %3050 = vmatprep.mubr.f32.mxu0 %v3049
        %v3051 = vand.u32 %v261, 4294901760
        %3052 = vmatmul.mubr.f32.gmra.mrb[0].mxu0 %v3051
        %v3053 = vpop.f32.mrb[0].mxu0
        %v3054 = vadd.f32 %v2481, %v3053
        %v3055 = vpop.f32.mrb[0].mxu0
        %v3056 = vadd.f32 %v2483, %v3055
        %v3057 = vand.u32 %v264, 4294901760
        %3058 = vmatprep.mubr.f32.mxu0 %v3057
        %v3059 = vand.u32 %v263, 4294901760
        %3060 = vmatmul.mubr.f32.gmra.mrb[0].mxu0 %v3059
        %v3061 = vpop.f32.mrb[0].mxu0
        %v3062 = vadd.f32 %v2493, %v3061
        %v3063 = vpop.f32.mrb[0].mxu0
        %v3064 = vadd.f32 %v2495, %v3063
        %v3065 = vand.u32 %v266, 4294901760
        %3066 = vmatprep.mubr.f32.mxu0 %v3065
        %v3067 = vand.u32 %v265, 4294901760
        %3068 = vmatmul.mubr.f32.gmra.mrb[0].mxu0 %v3067
        %v3069 = vpop.f32.mrb[0].mxu0
        %v3070 = vadd.f32 %v2505, %v3069
        %v3071 = vpop.f32.mrb[0].mxu0
        %v3072 = vadd.f32 %v2507, %v3071
        %v3073 = vand.u32 %v268, 4294901760
        %3074 = vmatprep.mubr.f32.mxu0 %v3073
        %v3075 = vand.u32 %v267, 4294901760
        %3076 = vmatmul.mubr.f32.gmra.mrb[0].mxu0 %v3075
        %v3077 = vpop.f32.mrb[0].mxu0
        %v3078 = vadd.f32 %v2517, %v3077
        %v3079 = vpop.f32.mrb[0].mxu0
        %v3080 = vadd.f32 %v2519, %v3079
        %v3081 = vand.u32 %v270, 4294901760
        %3082 = vmatprep.mubr.f32.mxu0 %v3081
        %v3083 = vand.u32 %v269, 4294901760
        %3084 = vmatmul.mubr.f32.gmra.mrb[0].mxu0 %v3083
        %v3085 = vpop.f32.mrb[0].mxu0
        %v3086 = vadd.f32 %v2529, %v3085
        %v3087 = vpop.f32.mrb[0].mxu0
        %v3088 = vadd.f32 %v2531, %v3087
        %v3089 = vand.u32 %v272, 4294901760
        %3090 = vmatprep.mubr.f32.mxu0 %v3089
        %v3091 = vand.u32 %v271, 4294901760
        %3092 = vmatmul.mubr.f32.gmra.mrb[0].mxu0 %v3091
        %v3093 = vpop.f32.mrb[0].mxu0
        %v3094 = vadd.f32 %v2541, %v3093
        %v3095 = vpop.f32.mrb[0].mxu0
        %v3096 = vadd.f32 %v2543, %v3095
        %v3097 = vand.u32 %v274, 4294901760
        %3098 = vmatprep.mubr.f32.mxu0 %v3097
        %v3099 = vand.u32 %v273, 4294901760
        %3100 = vmatmul.mubr.f32.gmra.mrb[0].mxu0 %v3099
        %v3101 = vpop.f32.mrb[0].mxu0
        %v3102 = vadd.f32 %v2553, %v3101
        %v3103 = vpop.f32.mrb[0].mxu0
        %v3104 = vadd.f32 %v2555, %v3103
        %v3105 = vand.u32 %v276, 4294901760
        %3106 = vmatprep.mubr.f32.mxu0 %v3105
        %v3107 = vand.u32 %v275, 4294901760
        %3108 = vmatmul.mubr.f32.gmra.mrb[0].mxu0 %v3107
        %v3109 = vpop.f32.mrb[0].mxu0
        %v3110 = vadd.f32 %v2565, %v3109
        %v3111 = vpop.f32.mrb[0].mxu0
        %v3112 = vadd.f32 %v2567, %v3111
        %v3113 = vand.u32 %v278, 4294901760
        %3114 = vmatprep.mubr.f32.mxu0 %v3113
        %v3115 = vand.u32 %v277, 4294901760
        %3116 = vmatmul.mubr.f32.gmra.mrb[0].mxu0 %v3115
        %v3117 = vpop.f32.mrb[0].mxu0
        %v3118 = vadd.f32 %v2577, %v3117
        %v3119 = vpop.f32.mrb[0].mxu0
        %v3120 = vadd.f32 %v2579, %v3119
        %v3121 = vand.u32 %v280, 4294901760
        %3122 = vmatprep.mubr.f32.mxu0 %v3121
        %v3123 = vand.u32 %v279, 4294901760
        %3124 = vmatmul.mubr.f32.gmra.mrb[0].mxu0 %v3123
        %v3125 = vpop.f32.mrb[0].mxu0
        %v3126 = vadd.f32 %v2589, %v3125
        %v3127 = vpop.f32.mrb[0].mxu0
        %v3128 = vadd.f32 %v2591, %v3127
        %v3129 = vand.u32 %v282, 4294901760
        %3130 = vmatprep.mubr.f32.mxu0 %v3129
        %v3131 = vand.u32 %v281, 4294901760
        %3132 = vmatmul.mubr.f32.gmra.mrb[0].mxu0 %v3131
        %v3133 = vpop.f32.mrb[0].mxu0
        %v3134 = vadd.f32 %v2601, %v3133
        %v3135 = vpop.f32.mrb[0].mxu0
        %v3136 = vadd.f32 %v2603, %v3135
        %v3137 = vand.u32 %v284, 4294901760
        %3138 = vmatprep.mubr.f32.mxu0 %v3137
        %v3139 = vand.u32 %v283, 4294901760
        %3140 = vmatmul.mubr.f32.gmra.mrb[0].mxu0 %v3139
        %v3141 = vpop.f32.mrb[0].mxu0
        %v3142 = vadd.f32 %v2613, %v3141
        %v3143 = vpop.f32.mrb[0].mxu0
        %v3144 = vadd.f32 %v2615, %v3143
        %v3145 = vand.u32 %v286, 4294901760
        %3146 = vmatprep.mubr.f32.mxu0 %v3145
        %v3147 = vand.u32 %v285, 4294901760
        %3148 = vmatmul.mubr.f32.gmra.mrb[0].mxu0 %v3147
        %v3149 = vpop.f32.mrb[0].mxu0
        %v3150 = vadd.f32 %v2625, %v3149
        %v3151 = vpop.f32.mrb[0].mxu0
        %v3152 = vadd.f32 %v2627, %v3151
        %v3153 = vand.u32 %v288, 4294901760
        %3154 = vmatprep.mubr.f32.mxu0 %v3153
        %v3155 = vand.u32 %v287, 4294901760
        %3156 = vmatmul.mubr.f32.gmra.mrb[0].mxu0 %v3155
        %v3157 = vpop.f32.mrb[0].mxu0
        %v3158 = vadd.f32 %v2637, %v3157
        %v3159 = vpop.f32.mrb[0].mxu0
        %v3160 = vadd.f32 %v2639, %v3159
        %v3161 = vand.u32 %v290, 4294901760
        %3162 = vmatprep.mubr.f32.mxu0 %v3161
        %v3163 = vand.u32 %v289, 4294901760
        %3164 = vmatmul.mubr.f32.gmra.mrb[0].mxu0 %v3163
        %v3165 = vpop.f32.mrb[0].mxu0
        %v3166 = vadd.f32 %v2649, %v3165
        %v3167 = vpop.f32.mrb[0].mxu0
        %v3168 = vadd.f32 %v2651, %v3167
        %v3169 = vand.u32 %v292, 4294901760
        %3170 = vmatprep.mubr.f32.mxu0 %v3169
        %v3171 = vand.u32 %v291, 4294901760
        %3172 = vmatmul.mubr.f32.gmra.mrb[0].mxu0 %v3171
        %v3173 = vpop.f32.mrb[0].mxu0
        %v3174 = vadd.f32 %v2661, %v3173
        %v3175 = vpop.f32.mrb[0].mxu0
        %v3176 = vadd.f32 %v2663, %v3175
        %3177 = vdwg.mxu0
        %v3178 = vand.u32 %v294, 4294901760
        %3179 = vmatprep.subr.mxu0 %v3178
        %v3180 = vand.u32 %v293, 4294901760
        %3181 = vmatpush1.msra.mxu0 %v3180
        %v3182 = vand.u32 %v296, 4294901760
        %3183 = vmatprep.subr.mxu0 %v3182
        %v3184 = vand.u32 %v295, 4294901760
        %3185 = vmatpush1.msra.mxu0 %v3184
        %v3186 = vand.u32 %v298, 4294901760
        %3187 = vmatprep.subr.mxu0 %v3186
        %v3188 = vand.u32 %v297, 4294901760
        %3189 = vmatpush1.msra.mxu0 %v3188
        %v3190 = vand.u32 %v300, 4294901760
        %3191 = vmatprep.subr.mxu0 %v3190
        %v3192 = vand.u32 %v299, 4294901760
        %3193 = vmatpush1.msra.mxu0 %v3192
        %v3194 = vand.u32 %v302, 4294901760
        %3195 = vmatprep.subr.mxu0 %v3194
        %v3196 = vand.u32 %v301, 4294901760
        %3197 = vmatpush1.msra.mxu0 %v3196
        %v3198 = vand.u32 %v304, 4294901760
        %3199 = vmatprep.subr.mxu0 %v3198
        %v3200 = vand.u32 %v303, 4294901760
        %3201 = vmatpush1.msra.mxu0 %v3200
        %v3202 = vand.u32 %v306, 4294901760
        %3203 = vmatprep.subr.mxu0 %v3202
        %v3204 = vand.u32 %v305, 4294901760
        %3205 = vmatpush1.msra.mxu0 %v3204
        %v3206 = vand.u32 %v308, 4294901760
        %3207 = vmatprep.subr.mxu0 %v3206
        %v3208 = vand.u32 %v307, 4294901760
        %3209 = vmatpush1.msra.mxu0 %v3208
        %v3210 = vand.u32 %v310, 4294901760
        %3211 = vmatprep.subr.mxu0 %v3210
        %v3212 = vand.u32 %v309, 4294901760
        %3213 = vmatpush1.msra.mxu0 %v3212
        %v3214 = vand.u32 %v312, 4294901760
        %3215 = vmatprep.subr.mxu0 %v3214
        %v3216 = vand.u32 %v311, 4294901760
        %3217 = vmatpush1.msra.mxu0 %v3216
        %v3218 = vand.u32 %v314, 4294901760
        %3219 = vmatprep.subr.mxu0 %v3218
        %v3220 = vand.u32 %v313, 4294901760
        %3221 = vmatpush1.msra.mxu0 %v3220
        %v3222 = vand.u32 %v316, 4294901760
        %3223 = vmatprep.subr.mxu0 %v3222
        %v3224 = vand.u32 %v315, 4294901760
        %3225 = vmatpush1.msra.mxu0 %v3224
        %v3226 = vand.u32 %v318, 4294901760
        %3227 = vmatprep.subr.mxu0 %v3226
        %v3228 = vand.u32 %v317, 4294901760
        %3229 = vmatpush1.msra.mxu0 %v3228
        %v3230 = vand.u32 %v320, 4294901760
        %3231 = vmatprep.subr.mxu0 %v3230
        %v3232 = vand.u32 %v319, 4294901760
        %3233 = vmatpush1.msra.mxu0 %v3232
        %v3234 = vand.u32 %v322, 4294901760
        %3235 = vmatprep.subr.mxu0 %v3234
        %v3236 = vand.u32 %v321, 4294901760
        %3237 = vmatpush1.msra.mxu0 %v3236
        %v3238 = vand.u32 %v324, 4294901760
        %3239 = vmatprep.subr.mxu0 %v3238
        %v3240 = vand.u32 %v323, 4294901760
        %3241 = vmatpush1.msra.mxu0 %v3240
        %v3242 = vand.u32 %v326, 4294901760
        %3243 = vmatprep.subr.mxu0 %v3242
        %v3244 = vand.u32 %v325, 4294901760
        %3245 = vmatpush1.msra.mxu0 %v3244
        %v3246 = vand.u32 %v328, 4294901760
        %3247 = vmatprep.subr.mxu0 %v3246
        %v3248 = vand.u32 %v327, 4294901760
        %3249 = vmatpush1.msra.mxu0 %v3248
        %v3250 = vand.u32 %v330, 4294901760
        %3251 = vmatprep.subr.mxu0 %v3250
        %v3252 = vand.u32 %v329, 4294901760
        %3253 = vmatpush1.msra.mxu0 %v3252
        %v3254 = vand.u32 %v332, 4294901760
        %3255 = vmatprep.subr.mxu0 %v3254
        %v3256 = vand.u32 %v331, 4294901760
        %3257 = vmatpush1.msra.mxu0 %v3256
        %v3258 = vand.u32 %v334, 4294901760
        %3259 = vmatprep.subr.mxu0 %v3258
        %v3260 = vand.u32 %v333, 4294901760
        %3261 = vmatpush1.msra.mxu0 %v3260
        %v3262 = vand.u32 %v336, 4294901760
        %3263 = vmatprep.subr.mxu0 %v3262
        %v3264 = vand.u32 %v335, 4294901760
        %3265 = vmatpush1.msra.mxu0 %v3264
        %v3266 = vand.u32 %v338, 4294901760
        %3267 = vmatprep.subr.mxu0 %v3266
        %v3268 = vand.u32 %v337, 4294901760
        %3269 = vmatpush1.msra.mxu0 %v3268
        %v3270 = vand.u32 %v340, 4294901760
        %3271 = vmatprep.subr.mxu0 %v3270
        %v3272 = vand.u32 %v339, 4294901760
        %3273 = vmatpush1.msra.mxu0 %v3272
        %v3274 = vand.u32 %v342, 4294901760
        %3275 = vmatprep.subr.mxu0 %v3274
        %v3276 = vand.u32 %v341, 4294901760
        %3277 = vmatpush1.msra.mxu0 %v3276
        %v3278 = vand.u32 %v344, 4294901760
        %3279 = vmatprep.subr.mxu0 %v3278
        %v3280 = vand.u32 %v343, 4294901760
        %3281 = vmatpush1.msra.mxu0 %v3280
        %v3282 = vand.u32 %v346, 4294901760
        %3283 = vmatprep.subr.mxu0 %v3282
        %v3284 = vand.u32 %v345, 4294901760
        %3285 = vmatpush1.msra.mxu0 %v3284
        %v3286 = vand.u32 %v348, 4294901760
        %3287 = vmatprep.subr.mxu0 %v3286
        %v3288 = vand.u32 %v347, 4294901760
        %3289 = vmatpush1.msra.mxu0 %v3288
        %v3290 = vand.u32 %v350, 4294901760
        %3291 = vmatprep.subr.mxu0 %v3290
        %v3292 = vand.u32 %v349, 4294901760
        %3293 = vmatpush1.msra.mxu0 %v3292
        %v3294 = vand.u32 %v352, 4294901760
        %3295 = vmatprep.subr.mxu0 %v3294
        %v3296 = vand.u32 %v351, 4294901760
        %3297 = vmatpush1.msra.mxu0 %v3296
        %v3298 = vand.u32 %v354, 4294901760
        %3299 = vmatprep.subr.mxu0 %v3298
        %v3300 = vand.u32 %v353, 4294901760
        %3301 = vmatpush1.msra.mxu0 %v3300
        %v3302 = vand.u32 %v356, 4294901760
        %3303 = vmatprep.subr.mxu0 %v3302
        %v3304 = vand.u32 %v355, 4294901760
        %3305 = vmatpush1.msra.mxu0 %v3304
        %v3306 = vand.u32 %v230, 4294901760
        %3307 = vmatprep.mubr.f32.mxu0 %v3306
        %v3308 = vand.u32 %v229, 4294901760
        %3309 = vmatmul.mubr.f32.gmra.mrb[0].mxu0 %v3308
        %v3310 = vpop.f32.mrb[0].mxu0
        %v3311 = vadd.f32 %v2926, %v3310
        %v3312 = vpop.f32.mrb[0].mxu0
        %v3313 = vadd.f32 %v2928, %v3312
        %v3314 = vand.u32 %v232, 4294901760
        %3315 = vmatprep.mubr.f32.mxu0 %v3314
        %v3316 = vand.u32 %v231, 4294901760
        %3317 = vmatmul.mubr.f32.gmra.mrb[0].mxu0 %v3316
        %v3318 = vpop.f32.mrb[0].mxu0
        %v3319 = vadd.f32 %v2934, %v3318
        %v3320 = vpop.f32.mrb[0].mxu0
        %v3321 = vadd.f32 %v2936, %v3320
        %v3322 = vand.u32 %v234, 4294901760
        %3323 = vmatprep.mubr.f32.mxu0 %v3322
        %v3324 = vand.u32 %v233, 4294901760
        %3325 = vmatmul.mubr.f32.gmra.mrb[0].mxu0 %v3324
        %v3326 = vpop.f32.mrb[0].mxu0
        %v3327 = vadd.f32 %v2942, %v3326
        %v3328 = vpop.f32.mrb[0].mxu0
        %v3329 = vadd.f32 %v2944, %v3328
        %v3330 = vand.u32 %v236, 4294901760
        %3331 = vmatprep.mubr.f32.mxu0 %v3330
        %v3332 = vand.u32 %v235, 4294901760
        %3333 = vmatmul.mubr.f32.gmra.mrb[0].mxu0 %v3332
        %v3334 = vpop.f32.mrb[0].mxu0
        %v3335 = vadd.f32 %v2950, %v3334
        %v3336 = vpop.f32.mrb[0].mxu0
        %v3337 = vadd.f32 %v2952, %v3336
        %v3338 = vand.u32 %v238, 4294901760
        %3339 = vmatprep.mubr.f32.mxu0 %v3338
        %v3340 = vand.u32 %v237, 4294901760
        %3341 = vmatmul.mubr.f32.gmra.mrb[0].mxu0 %v3340
        %v3342 = vpop.f32.mrb[0].mxu0
        %v3343 = vadd.f32 %v2958, %v3342
        %v3344 = vpop.f32.mrb[0].mxu0
        %v3345 = vadd.f32 %v2960, %v3344
        %v3346 = vand.u32 %v240, 4294901760
        %3347 = vmatprep.mubr.f32.mxu0 %v3346
        %v3348 = vand.u32 %v239, 4294901760
        %3349 = vmatmul.mubr.f32.gmra.mrb[0].mxu0 %v3348
        %v3350 = vpop.f32.mrb[0].mxu0
        %v3351 = vadd.f32 %v2966, %v3350
        %v3352 = vpop.f32.mrb[0].mxu0
        %v3353 = vadd.f32 %v2968, %v3352
        %v3354 = vand.u32 %v242, 4294901760
        %3355 = vmatprep.mubr.f32.mxu0 %v3354
        %v3356 = vand.u32 %v241, 4294901760
        %3357 = vmatmul.mubr.f32.gmra.mrb[0].mxu0 %v3356
        %v3358 = vpop.f32.mrb[0].mxu0
        %v3359 = vadd.f32 %v2974, %v3358
        %v3360 = vpop.f32.mrb[0].mxu0
        %v3361 = vadd.f32 %v2976, %v3360
        %v3362 = vand.u32 %v244, 4294901760
        %3363 = vmatprep.mubr.f32.mxu0 %v3362
        %v3364 = vand.u32 %v243, 4294901760
        %3365 = vmatmul.mubr.f32.gmra.mrb[0].mxu0 %v3364
        %v3366 = vpop.f32.mrb[0].mxu0
        %v3367 = vadd.f32 %v2982, %v3366
        %v3368 = vpop.f32.mrb[0].mxu0
        %v3369 = vadd.f32 %v2984, %v3368
        %v3370 = vand.u32 %v246, 4294901760
        %3371 = vmatprep.mubr.f32.mxu0 %v3370
        %v3372 = vand.u32 %v245, 4294901760
        %3373 = vmatmul.mubr.f32.gmra.mrb[0].mxu0 %v3372
        %v3374 = vpop.f32.mrb[0].mxu0
        %v3375 = vadd.f32 %v2990, %v3374
        %v3376 = vpop.f32.mrb[0].mxu0
        %v3377 = vadd.f32 %v2992, %v3376
        %v3378 = vand.u32 %v248, 4294901760
        %3379 = vmatprep.mubr.f32.mxu0 %v3378
        %v3380 = vand.u32 %v247, 4294901760
        %3381 = vmatmul.mubr.f32.gmra.mrb[0].mxu0 %v3380
        %v3382 = vpop.f32.mrb[0].mxu0
        %v3383 = vadd.f32 %v2998, %v3382
        %v3384 = vpop.f32.mrb[0].mxu0
        %v3385 = vadd.f32 %v3000, %v3384
        %v3386 = vand.u32 %v250, 4294901760
        %3387 = vmatprep.mubr.f32.mxu0 %v3386
        %v3388 = vand.u32 %v249, 4294901760
        %3389 = vmatmul.mubr.f32.gmra.mrb[0].mxu0 %v3388
        %v3390 = vpop.f32.mrb[0].mxu0
        %v3391 = vadd.f32 %v3006, %v3390
        %v3392 = vpop.f32.mrb[0].mxu0
        %v3393 = vadd.f32 %v3008, %v3392
        %v3394 = vand.u32 %v252, 4294901760
        %3395 = vmatprep.mubr.f32.mxu0 %v3394
        %v3396 = vand.u32 %v251, 4294901760
        %3397 = vmatmul.mubr.f32.gmra.mrb[0].mxu0 %v3396
        %v3398 = vpop.f32.mrb[0].mxu0
        %v3399 = vadd.f32 %v3014, %v3398
        %v3400 = vpop.f32.mrb[0].mxu0
        %v3401 = vadd.f32 %v3016, %v3400
        %v3402 = vand.u32 %v254, 4294901760
        %3403 = vmatprep.mubr.f32.mxu0 %v3402
        %v3404 = vand.u32 %v253, 4294901760
        %3405 = vmatmul.mubr.f32.gmra.mrb[0].mxu0 %v3404
        %v3406 = vpop.f32.mrb[0].mxu0
        %v3407 = vadd.f32 %v3022, %v3406
        %v3408 = vpop.f32.mrb[0].mxu0
        %v3409 = vadd.f32 %v3024, %v3408
        %v3410 = vand.u32 %v256, 4294901760
        %3411 = vmatprep.mubr.f32.mxu0 %v3410
        %v3412 = vand.u32 %v255, 4294901760
        %3413 = vmatmul.mubr.f32.gmra.mrb[0].mxu0 %v3412
        %v3414 = vpop.f32.mrb[0].mxu0
        %v3415 = vadd.f32 %v3030, %v3414
        %v3416 = vpop.f32.mrb[0].mxu0
        %v3417 = vadd.f32 %v3032, %v3416
        %v3418 = vand.u32 %v258, 4294901760
        %3419 = vmatprep.mubr.f32.mxu0 %v3418
        %v3420 = vand.u32 %v257, 4294901760
        %3421 = vmatmul.mubr.f32.gmra.mrb[0].mxu0 %v3420
        %v3422 = vpop.f32.mrb[0].mxu0
        %v3423 = vadd.f32 %v3038, %v3422
        %v3424 = vpop.f32.mrb[0].mxu0
        %v3425 = vadd.f32 %v3040, %v3424
        %v3426 = vand.u32 %v260, 4294901760
        %3427 = vmatprep.mubr.f32.mxu0 %v3426
        %v3428 = vand.u32 %v259, 4294901760
        %3429 = vmatmul.mubr.f32.gmra.mrb[0].mxu0 %v3428
        %v3430 = vpop.f32.mrb[0].mxu0
        %v3431 = vadd.f32 %v3046, %v3430
        %v3432 = vpop.f32.mrb[0].mxu0
        %v3433 = vadd.f32 %v3048, %v3432
        %v3434 = vand.u32 %v262, 4294901760
        %3435 = vmatprep.mubr.f32.mxu0 %v3434
        %v3436 = vand.u32 %v261, 4294901760
        %3437 = vmatmul.mubr.f32.gmra.mrb[0].mxu0 %v3436
        %v3438 = vpop.f32.mrb[0].mxu0
        %v3439 = vadd.f32 %v3054, %v3438
        %v3440 = vpop.f32.mrb[0].mxu0
        %v3441 = vadd.f32 %v3056, %v3440
        %v3442 = vand.u32 %v264, 4294901760
        %3443 = vmatprep.mubr.f32.mxu0 %v3442
        %v3444 = vand.u32 %v263, 4294901760
        %3445 = vmatmul.mubr.f32.gmra.mrb[0].mxu0 %v3444
        %v3446 = vpop.f32.mrb[0].mxu0
        %v3447 = vadd.f32 %v3062, %v3446
        %v3448 = vpop.f32.mrb[0].mxu0
        %v3449 = vadd.f32 %v3064, %v3448
        %v3450 = vand.u32 %v266, 4294901760
        %3451 = vmatprep.mubr.f32.mxu0 %v3450
        %v3452 = vand.u32 %v265, 4294901760
        %3453 = vmatmul.mubr.f32.gmra.mrb[0].mxu0 %v3452
        %v3454 = vpop.f32.mrb[0].mxu0
        %v3455 = vadd.f32 %v3070, %v3454
        %v3456 = vpop.f32.mrb[0].mxu0
        %v3457 = vadd.f32 %v3072, %v3456
        %v3458 = vand.u32 %v268, 4294901760
        %3459 = vmatprep.mubr.f32.mxu0 %v3458
        %v3460 = vand.u32 %v267, 4294901760
        %3461 = vmatmul.mubr.f32.gmra.mrb[0].mxu0 %v3460
        %v3462 = vpop.f32.mrb[0].mxu0
        %v3463 = vadd.f32 %v3078, %v3462
        %v3464 = vpop.f32.mrb[0].mxu0
        %v3465 = vadd.f32 %v3080, %v3464
        %v3466 = vand.u32 %v270, 4294901760
        %3467 = vmatprep.mubr.f32.mxu0 %v3466
        %v3468 = vand.u32 %v269, 4294901760
        %3469 = vmatmul.mubr.f32.gmra.mrb[0].mxu0 %v3468
        %v3470 = vpop.f32.mrb[0].mxu0
        %v3471 = vadd.f32 %v3086, %v3470
        %v3472 = vpop.f32.mrb[0].mxu0
        %v3473 = vadd.f32 %v3088, %v3472
        %v3474 = vand.u32 %v272, 4294901760
        %3475 = vmatprep.mubr.f32.mxu0 %v3474
        %v3476 = vand.u32 %v271, 4294901760
        %3477 = vmatmul.mubr.f32.gmra.mrb[0].mxu0 %v3476
        %v3478 = vpop.f32.mrb[0].mxu0
        %v3479 = vadd.f32 %v3094, %v3478
        %v3480 = vpop.f32.mrb[0].mxu0
        %v3481 = vadd.f32 %v3096, %v3480
        %v3482 = vand.u32 %v274, 4294901760
        %3483 = vmatprep.mubr.f32.mxu0 %v3482
        %v3484 = vand.u32 %v273, 4294901760
        %3485 = vmatmul.mubr.f32.gmra.mrb[0].mxu0 %v3484
        %v3486 = vpop.f32.mrb[0].mxu0
        %v3487 = vadd.f32 %v3102, %v3486
        %v3488 = vpop.f32.mrb[0].mxu0
        %v3489 = vadd.f32 %v3104, %v3488
        %v3490 = vand.u32 %v276, 4294901760
        %3491 = vmatprep.mubr.f32.mxu0 %v3490
        %v3492 = vand.u32 %v275, 4294901760
        %3493 = vmatmul.mubr.f32.gmra.mrb[0].mxu0 %v3492
        %v3494 = vpop.f32.mrb[0].mxu0
        %v3495 = vadd.f32 %v3110, %v3494
        %v3496 = vpop.f32.mrb[0].mxu0
        %v3497 = vadd.f32 %v3112, %v3496
        %v3498 = vand.u32 %v278, 4294901760
        %3499 = vmatprep.mubr.f32.mxu0 %v3498
        %v3500 = vand.u32 %v277, 4294901760
        %3501 = vmatmul.mubr.f32.gmra.mrb[0].mxu0 %v3500
        %v3502 = vpop.f32.mrb[0].mxu0
        %v3503 = vadd.f32 %v3118, %v3502
        %v3504 = vpop.f32.mrb[0].mxu0
        %v3505 = vadd.f32 %v3120, %v3504
        %v3506 = vand.u32 %v280, 4294901760
        %3507 = vmatprep.mubr.f32.mxu0 %v3506
        %v3508 = vand.u32 %v279, 4294901760
        %3509 = vmatmul.mubr.f32.gmra.mrb[0].mxu0 %v3508
        %v3510 = vpop.f32.mrb[0].mxu0
        %v3511 = vadd.f32 %v3126, %v3510
        %v3512 = vpop.f32.mrb[0].mxu0
        %v3513 = vadd.f32 %v3128, %v3512
        %v3514 = vand.u32 %v282, 4294901760
        %3515 = vmatprep.mubr.f32.mxu0 %v3514
        %v3516 = vand.u32 %v281, 4294901760
        %3517 = vmatmul.mubr.f32.gmra.mrb[0].mxu0 %v3516
        %v3518 = vpop.f32.mrb[0].mxu0
        %v3519 = vadd.f32 %v3134, %v3518
        %v3520 = vpop.f32.mrb[0].mxu0
        %v3521 = vadd.f32 %v3136, %v3520
        %v3522 = vand.u32 %v284, 4294901760
        %3523 = vmatprep.mubr.f32.mxu0 %v3522
        %v3524 = vand.u32 %v283, 4294901760
        %3525 = vmatmul.mubr.f32.gmra.mrb[0].mxu0 %v3524
        %v3526 = vpop.f32.mrb[0].mxu0
        %v3527 = vadd.f32 %v3142, %v3526
        %v3528 = vpop.f32.mrb[0].mxu0
        %v3529 = vadd.f32 %v3144, %v3528
        %v3530 = vand.u32 %v286, 4294901760
        %3531 = vmatprep.mubr.f32.mxu0 %v3530
        %v3532 = vand.u32 %v285, 4294901760
        %3533 = vmatmul.mubr.f32.gmra.mrb[0].mxu0 %v3532
        %v3534 = vpop.f32.mrb[0].mxu0
        %v3535 = vadd.f32 %v3150, %v3534
        %v3536 = vpop.f32.mrb[0].mxu0
        %v3537 = vadd.f32 %v3152, %v3536
        %v3538 = vand.u32 %v288, 4294901760
        %3539 = vmatprep.mubr.f32.mxu0 %v3538
        %v3540 = vand.u32 %v287, 4294901760
        %3541 = vmatmul.mubr.f32.gmra.mrb[0].mxu0 %v3540
        %v3542 = vpop.f32.mrb[0].mxu0
        %v3543 = vadd.f32 %v3158, %v3542
        %v3544 = vpop.f32.mrb[0].mxu0
        %v3545 = vadd.f32 %v3160, %v3544
        %v3546 = vand.u32 %v290, 4294901760
        %3547 = vmatprep.mubr.f32.mxu0 %v3546
        %v3548 = vand.u32 %v289, 4294901760
        %3549 = vmatmul.mubr.f32.gmra.mrb[0].mxu0 %v3548
        %v3550 = vpop.f32.mrb[0].mxu0
        %v3551 = vadd.f32 %v3166, %v3550
        %v3552 = vpop.f32.mrb[0].mxu0
        %v3553 = vadd.f32 %v3168, %v3552
        %v3554 = vand.u32 %v292, 4294901760
        %3555 = vmatprep.mubr.f32.mxu0 %v3554
        %v3556 = vand.u32 %v291, 4294901760
        %3557 = vmatmul.mubr.f32.gmra.mrb[0].mxu0 %v3556
        %v3558 = vpop.f32.mrb[0].mxu0
        %v3559 = vadd.f32 %v3174, %v3558
        %v3560 = vpop.f32.mrb[0].mxu0
        %v3561 = vadd.f32 %v3176, %v3560
        %3562 = vdwg.mxu0
        %v3563 = vadd.f32 %v165, %v3311
        %v3564 = vadd.f32 %v166, %v3313
        %v3565 = vadd.f32 %v167, %v3319
        %v3566 = vadd.f32 %v168, %v3321
        %v3567 = vadd.f32 %v169, %v3327
        %v3568 = vadd.f32 %v170, %v3329
        %v3569 = vadd.f32 %v171, %v3335
        %v3570 = vadd.f32 %v172, %v3337
        %v3571 = vadd.f32 %v173, %v3343
        %v3572 = vadd.f32 %v174, %v3345
        %v3573 = vadd.f32 %v175, %v3351
        %v3574 = vadd.f32 %v176, %v3353
        %v3575 = vadd.f32 %v177, %v3359
        %v3576 = vadd.f32 %v178, %v3361
        %v3577 = vadd.f32 %v179, %v3367
        %v3578 = vadd.f32 %v180, %v3369
        %v3579 = vadd.f32 %v181, %v3375
        %v3580 = vadd.f32 %v182, %v3377
        %v3581 = vadd.f32 %v183, %v3383
        %v3582 = vadd.f32 %v184, %v3385
        %v3583 = vadd.f32 %v185, %v3391
        %v3584 = vadd.f32 %v186, %v3393
        %v3585 = vadd.f32 %v187, %v3399
        %v3586 = vadd.f32 %v188, %v3401
        %v3587 = vadd.f32 %v189, %v3407
        %v3588 = vadd.f32 %v190, %v3409
        %v3589 = vadd.f32 %v191, %v3415
        %v3590 = vadd.f32 %v192, %v3417
        %v3591 = vadd.f32 %v193, %v3423
        %v3592 = vadd.f32 %v194, %v3425
        %v3593 = vadd.f32 %v195, %v3431
        %v3594 = vadd.f32 %v196, %v3433
        %v3595 = vadd.f32 %v197, %v3439
        %v3596 = vadd.f32 %v198, %v3441
        %v3597 = vadd.f32 %v199, %v3447
        %v3598 = vadd.f32 %v200, %v3449
        %v3599 = vadd.f32 %v201, %v3455
        %v3600 = vadd.f32 %v202, %v3457
        %v3601 = vadd.f32 %v203, %v3463
        %v3602 = vadd.f32 %v204, %v3465
        %v3603 = vadd.f32 %v205, %v3471
        %v3604 = vadd.f32 %v206, %v3473
        %v3605 = vadd.f32 %v207, %v3479
        %v3606 = vadd.f32 %v208, %v3481
        %v3607 = vadd.f32 %v209, %v3487
        %v3608 = vadd.f32 %v210, %v3489
        %v3609 = vadd.f32 %v211, %v3495
        %v3610 = vadd.f32 %v212, %v3497
        %v3611 = vadd.f32 %v213, %v3503
        %v3612 = vadd.f32 %v214, %v3505
        %v3613 = vadd.f32 %v215, %v3511
        %v3614 = vadd.f32 %v216, %v3513
        %v3615 = vadd.f32 %v217, %v3519
        %v3616 = vadd.f32 %v218, %v3521
        %v3617 = vadd.f32 %v219, %v3527
        %v3618 = vadd.f32 %v220, %v3529
        %v3619 = vadd.f32 %v221, %v3535
        %v3620 = vadd.f32 %v222, %v3537
        %v3621 = vadd.f32 %v223, %v3543
        %v3622 = vadd.f32 %v224, %v3545
        %v3623 = vadd.f32 %v225, %v3551
        %v3624 = vadd.f32 %v226, %v3553
        %v3625 = vadd.f32 %v227, %v3559
        %v3626 = vadd.f32 %v228, %v3561
        %3627 = vst [vmem:[#allocation14] sm:$0xff] %v3563
        %3628 = vst [vmem:[#allocation14 + $0x8] sm:$0xff] %v3564
        %3629 = vst [vmem:[#allocation14 + $0x10] sm:$0xff] %v3565
        %3630 = vst [vmem:[#allocation14 + $0x18] sm:$0xff] %v3566
        %3631 = vst [vmem:[#allocation14 + $0x20] sm:$0xff] %v3567
        %3632 = vst [vmem:[#allocation14 + $0x28] sm:$0xff] %v3568
        %3633 = vst [vmem:[#allocation14 + $0x30] sm:$0xff] %v3569
        %3634 = vst [vmem:[#allocation14 + $0x38] sm:$0xff] %v3570
        %3635 = vst [vmem:[#allocation14 + $0x40] sm:$0xff] %v3571
        %3636 = vst [vmem:[#allocation14 + $0x48] sm:$0xff] %v3572
        %3637 = vst [vmem:[#allocation14 + $0x50] sm:$0xff] %v3573
        %3638 = vst [vmem:[#allocation14 + $0x58] sm:$0xff] %v3574
        %3639 = vst [vmem:[#allocation14 + $0x60] sm:$0xff] %v3575
        %3640 = vst [vmem:[#allocation14 + $0x68] sm:$0xff] %v3576
        %3641 = vst [vmem:[#allocation14 + $0x70] sm:$0xff] %v3577
        %3642 = vst [vmem:[#allocation14 + $0x78] sm:$0xff] %v3578
        %3643 = vst [vmem:[#allocation14 + $0x80] sm:$0xff] %v3579
        %3644 = vst [vmem:[#allocation14 + $0x88] sm:$0xff] %v3580
        %3645 = vst [vmem:[#allocation14 + $0x90] sm:$0xff] %v3581
        %3646 = vst [vmem:[#allocation14 + $0x98] sm:$0xff] %v3582
        %3647 = vst [vmem:[#allocation14 + $0xa0] sm:$0xff] %v3583
        %3648 = vst [vmem:[#allocation14 + $0xa8] sm:$0xff] %v3584
        %3649 = vst [vmem:[#allocation14 + $0xb0] sm:$0xff] %v3585
        %3650 = vst [vmem:[#allocation14 + $0xb8] sm:$0xff] %v3586
        %3651 = vst [vmem:[#allocation14 + $0xc0] sm:$0xff] %v3587
        %3652 = vst [vmem:[#allocation14 + $0xc8] sm:$0xff] %v3588
        %3653 = vst [vmem:[#allocation14 + $0xd0] sm:$0xff] %v3589
        %3654 = vst [vmem:[#allocation14 + $0xd8] sm:$0xff] %v3590
        %3655 = vst [vmem:[#allocation14 + $0xe0] sm:$0xff] %v3591
        %3656 = vst [vmem:[#allocation14 + $0xe8] sm:$0xff] %v3592
        %3657 = vst [vmem:[#allocation14 + $0xf0] sm:$0xff] %v3593
        %3658 = vst [vmem:[#allocation14 + $0xf8] sm:$0xff] %v3594
        %3659 = vst [vmem:[#allocation14 + $0x100] sm:$0xff] %v3595
        %3660 = vst [vmem:[#allocation14 + $0x108] sm:$0xff] %v3596
        %3661 = vst [vmem:[#allocation14 + $0x110] sm:$0xff] %v3597
        %3662 = vst [vmem:[#allocation14 + $0x118] sm:$0xff] %v3598
        %3663 = vst [vmem:[#allocation14 + $0x120] sm:$0xff] %v3599
        %3664 = vst [vmem:[#allocation14 + $0x128] sm:$0xff] %v3600
        %3665 = vst [vmem:[#allocation14 + $0x130] sm:$0xff] %v3601
        %3666 = vst [vmem:[#allocation14 + $0x138] sm:$0xff] %v3602
        %3667 = vst [vmem:[#allocation14 + $0x140] sm:$0xff] %v3603
        %3668 = vst [vmem:[#allocation14 + $0x148] sm:$0xff] %v3604
        %3669 = vst [vmem:[#allocation14 + $0x150] sm:$0xff] %v3605
        %3670 = vst [vmem:[#allocation14 + $0x158] sm:$0xff] %v3606
        %3671 = vst [vmem:[#allocation14 + $0x160] sm:$0xff] %v3607
        %3672 = vst [vmem:[#allocation14 + $0x168] sm:$0xff] %v3608
        %3673 = vst [vmem:[#allocation14 + $0x170] sm:$0xff] %v3609
        %3674 = vst [vmem:[#allocation14 + $0x178] sm:$0xff] %v3610
        %3675 = vst [vmem:[#allocation14 + $0x180] sm:$0xff] %v3611
        %3676 = vst [vmem:[#allocation14 + $0x188] sm:$0xff] %v3612
        %3677 = vst [vmem:[#allocation14 + $0x190] sm:$0xff] %v3613
        %3678 = vst [vmem:[#allocation14 + $0x198] sm:$0xff] %v3614
        %3679 = vst [vmem:[#allocation14 + $0x1a0] sm:$0xff] %v3615
        %3680 = vst [vmem:[#allocation14 + $0x1a8] sm:$0xff] %v3616
        %3681 = vst [vmem:[#allocation14 + $0x1b0] sm:$0xff] %v3617
        %3682 = vst [vmem:[#allocation14 + $0x1b8] sm:$0xff] %v3618
        %3683 = vst [vmem:[#allocation14 + $0x1c0] sm:$0xff] %v3619
        %3684 = vst [vmem:[#allocation14 + $0x1c8] sm:$0xff] %v3620
        %3685 = vst [vmem:[#allocation14 + $0x1d0] sm:$0xff] %v3621
        %3686 = vst [vmem:[#allocation14 + $0x1d8] sm:$0xff] %v3622
        %3687 = vst [vmem:[#allocation14 + $0x1e0] sm:$0xff] %v3623
        %3688 = vst [vmem:[#allocation14 + $0x1e8] sm:$0xff] %v3624
        %3689 = vst [vmem:[#allocation14 + $0x1f0] sm:$0xff] %v3625
        %3690 = vst [vmem:[#allocation14 + $0x1f8] sm:$0xff] %v3626
      $region29: #{lower_triangular_matmul.1} parent=20 // pred_fallthru
        _
      %p3691 = scmp.eq.s32.totalorder %s88, %s86
      // Predicated region
      $region30: #{lower_triangular_matmul.1} parent=20 // pred_check
        %p3692 = pneg %p3691
      $region31: #{lower_triangular_matmul.1} parent=20 // pred_check_branch
        %3694 = sbr.rel (%p3692) target = $region33
      $region32: #{lower_triangular_matmul.1} parent=20 // pred_region
        %v3695 = vlaneseq
        %v3696 = vshrl.u32 %v3695, 7
        %v3697 = vadd.s32 %v3696, 8
        %v3698 = vadd.s32 %v3696, 16
        %v3699 = vadd.s32 %v3696, 24
        %v3700 = vadd.s32 %v3696, 32
        %v3701 = vadd.s32 %v3696, 40
        %v3702 = vadd.s32 %v3696, 48
        %v3703 = vadd.s32 %v3696, 56
        %v3704 = vadd.s32 %v3696, 64
        %v3705 = vadd.s32 %v3696, 72
        %v3706 = vadd.s32 %v3696, 80
        %v3707 = vadd.s32 %v3696, 88
        %v3708 = vadd.s32 %v3696, 96
        %v3709 = vadd.s32 %v3696, 104
        %v3710 = vadd.s32 %v3696, 112
        %v3711 = vadd.s32 %v3696, 120
        %v3712 = vadd.s32 %v3696, 128
        %v3713 = vadd.s32 %v3696, 136
        %v3714 = vadd.s32 %v3696, 144
        %v3715 = vadd.s32 %v3696, 152
        %v3716 = vadd.s32 %v3696, 160
        %v3717 = vadd.s32 %v3696, 168
        %v3718 = vadd.s32 %v3696, 176
        %v3719 = vadd.s32 %v3696, 184
        %v3720 = vadd.s32 %v3696, 192
        %v3721 = vadd.s32 %v3696, 200
        %v3722 = vadd.s32 %v3696, 208
        %v3723 = vadd.s32 %v3696, 216
        %v3724 = vadd.s32 %v3696, 224
        %v3725 = vadd.s32 %v3696, 232
        %v3726 = vadd.s32 %v3696, 240
        %v3727 = vadd.s32 %v3696, 248
        %v3728 = vlaneseq
        %v3729 = vand.u32 %v3728, 127
        %v3730 = vadd.s32 %v3729, 128
        %vm3731 = vcmp.le.s32.totalorder %v3729, %v3696
        %vm3732 = vcmp.le.s32.totalorder %v3730, %v3696
        %vm3733 = vcmp.le.s32.totalorder %v3729, %v3697
        %vm3734 = vcmp.le.s32.totalorder %v3730, %v3697
        %vm3735 = vcmp.le.s32.totalorder %v3729, %v3698
        %vm3736 = vcmp.le.s32.totalorder %v3730, %v3698
        %vm3737 = vcmp.le.s32.totalorder %v3729, %v3699
        %vm3738 = vcmp.le.s32.totalorder %v3730, %v3699
        %vm3739 = vcmp.le.s32.totalorder %v3729, %v3700
        %vm3740 = vcmp.le.s32.totalorder %v3730, %v3700
        %vm3741 = vcmp.le.s32.totalorder %v3729, %v3701
        %vm3742 = vcmp.le.s32.totalorder %v3730, %v3701
        %vm3743 = vcmp.le.s32.totalorder %v3729, %v3702
        %vm3744 = vcmp.le.s32.totalorder %v3730, %v3702
        %vm3745 = vcmp.le.s32.totalorder %v3729, %v3703
        %vm3746 = vcmp.le.s32.totalorder %v3730, %v3703
        %vm3747 = vcmp.le.s32.totalorder %v3729, %v3704
        %vm3748 = vcmp.le.s32.totalorder %v3730, %v3704
        %vm3749 = vcmp.le.s32.totalorder %v3729, %v3705
        %vm3750 = vcmp.le.s32.totalorder %v3730, %v3705
        %vm3751 = vcmp.le.s32.totalorder %v3729, %v3706
        %vm3752 = vcmp.le.s32.totalorder %v3730, %v3706
        %vm3753 = vcmp.le.s32.totalorder %v3729, %v3707
        %vm3754 = vcmp.le.s32.totalorder %v3730, %v3707
        %vm3755 = vcmp.le.s32.totalorder %v3729, %v3708
        %vm3756 = vcmp.le.s32.totalorder %v3730, %v3708
        %vm3757 = vcmp.le.s32.totalorder %v3729, %v3709
        %vm3758 = vcmp.le.s32.totalorder %v3730, %v3709
        %vm3759 = vcmp.le.s32.totalorder %v3729, %v3710
        %vm3760 = vcmp.le.s32.totalorder %v3730, %v3710
        %vm3761 = vcmp.le.s32.totalorder %v3729, %v3711
        %vm3762 = vcmp.le.s32.totalorder %v3730, %v3711
        %vm3763 = vcmp.le.s32.totalorder %v3729, %v3712
        %vm3764 = vcmp.le.s32.totalorder %v3730, %v3712
        %vm3765 = vcmp.le.s32.totalorder %v3729, %v3713
        %vm3766 = vcmp.le.s32.totalorder %v3730, %v3713
        %vm3767 = vcmp.le.s32.totalorder %v3729, %v3714
        %vm3768 = vcmp.le.s32.totalorder %v3730, %v3714
        %vm3769 = vcmp.le.s32.totalorder %v3729, %v3715
        %vm3770 = vcmp.le.s32.totalorder %v3730, %v3715
        %vm3771 = vcmp.le.s32.totalorder %v3729, %v3716
        %vm3772 = vcmp.le.s32.totalorder %v3730, %v3716
        %vm3773 = vcmp.le.s32.totalorder %v3729, %v3717
        %vm3774 = vcmp.le.s32.totalorder %v3730, %v3717
        %vm3775 = vcmp.le.s32.totalorder %v3729, %v3718
        %vm3776 = vcmp.le.s32.totalorder %v3730, %v3718
        %vm3777 = vcmp.le.s32.totalorder %v3729, %v3719
        %vm3778 = vcmp.le.s32.totalorder %v3730, %v3719
        %vm3779 = vcmp.le.s32.totalorder %v3729, %v3720
        %vm3780 = vcmp.le.s32.totalorder %v3730, %v3720
        %vm3781 = vcmp.le.s32.totalorder %v3729, %v3721
        %vm3782 = vcmp.le.s32.totalorder %v3730, %v3721
        %vm3783 = vcmp.le.s32.totalorder %v3729, %v3722
        %vm3784 = vcmp.le.s32.totalorder %v3730, %v3722
        %vm3785 = vcmp.le.s32.totalorder %v3729, %v3723
        %vm3786 = vcmp.le.s32.totalorder %v3730, %v3723
        %vm3787 = vcmp.le.s32.totalorder %v3729, %v3724
        %vm3788 = vcmp.le.s32.totalorder %v3730, %v3724
        %vm3789 = vcmp.le.s32.totalorder %v3729, %v3725
        %vm3790 = vcmp.le.s32.totalorder %v3730, %v3725
        %vm3791 = vcmp.le.s32.totalorder %v3729, %v3726
        %vm3792 = vcmp.le.s32.totalorder %v3730, %v3726
        %vm3793 = vcmp.le.s32.totalorder %v3729, %v3727
        %vm3794 = vcmp.le.s32.totalorder %v3730, %v3727
        %v3795 = vld [vmem:[#allocation9] sm:$0xff]
        %v3796 = vld [vmem:[#allocation9 + $0x8] sm:$0xff]
        %v3797 = vld [vmem:[#allocation9 + $0x10] sm:$0xff]
        %v3798 = vld [vmem:[#allocation9 + $0x18] sm:$0xff]
        %v3799 = vld [vmem:[#allocation9 + $0x20] sm:$0xff]
        %v3800 = vld [vmem:[#allocation9 + $0x28] sm:$0xff]
        %v3801 = vld [vmem:[#allocation9 + $0x30] sm:$0xff]
        %v3802 = vld [vmem:[#allocation9 + $0x38] sm:$0xff]
        %v3803 = vld [vmem:[#allocation9 + $0x40] sm:$0xff]
        %v3804 = vld [vmem:[#allocation9 + $0x48] sm:$0xff]
        %v3805 = vld [vmem:[#allocation9 + $0x50] sm:$0xff]
        %v3806 = vld [vmem:[#allocation9 + $0x58] sm:$0xff]
        %v3807 = vld [vmem:[#allocation9 + $0x60] sm:$0xff]
        %v3808 = vld [vmem:[#allocation9 + $0x68] sm:$0xff]
        %v3809 = vld [vmem:[#allocation9 + $0x70] sm:$0xff]
        %v3810 = vld [vmem:[#allocation9 + $0x78] sm:$0xff]
        %v3811 = vld [vmem:[#allocation9 + $0x80] sm:$0xff]
        %v3812 = vld [vmem:[#allocation9 + $0x88] sm:$0xff]
        %v3813 = vld [vmem:[#allocation9 + $0x90] sm:$0xff]
        %v3814 = vld [vmem:[#allocation9 + $0x98] sm:$0xff]
        %v3815 = vld [vmem:[#allocation9 + $0xa0] sm:$0xff]
        %v3816 = vld [vmem:[#allocation9 + $0xa8] sm:$0xff]
        %v3817 = vld [vmem:[#allocation9 + $0xb0] sm:$0xff]
        %v3818 = vld [vmem:[#allocation9 + $0xb8] sm:$0xff]
        %v3819 = vld [vmem:[#allocation9 + $0xc0] sm:$0xff]
        %v3820 = vld [vmem:[#allocation9 + $0xc8] sm:$0xff]
        %v3821 = vld [vmem:[#allocation9 + $0xd0] sm:$0xff]
        %v3822 = vld [vmem:[#allocation9 + $0xd8] sm:$0xff]
        %v3823 = vld [vmem:[#allocation9 + $0xe0] sm:$0xff]
        %v3824 = vld [vmem:[#allocation9 + $0xe8] sm:$0xff]
        %v3825 = vld [vmem:[#allocation9 + $0xf0] sm:$0xff]
        %v3826 = vld [vmem:[#allocation9 + $0xf8] sm:$0xff]
        %v3827 = vld [vmem:[#allocation9 + $0x100] sm:$0xff]
        %v3828 = vld [vmem:[#allocation9 + $0x108] sm:$0xff]
        %v3829 = vld [vmem:[#allocation9 + $0x110] sm:$0xff]
        %v3830 = vld [vmem:[#allocation9 + $0x118] sm:$0xff]
        %v3831 = vld [vmem:[#allocation9 + $0x120] sm:$0xff]
        %v3832 = vld [vmem:[#allocation9 + $0x128] sm:$0xff]
        %v3833 = vld [vmem:[#allocation9 + $0x130] sm:$0xff]
        %v3834 = vld [vmem:[#allocation9 + $0x138] sm:$0xff]
        %v3835 = vld [vmem:[#allocation9 + $0x140] sm:$0xff]
        %v3836 = vld [vmem:[#allocation9 + $0x148] sm:$0xff]
        %v3837 = vld [vmem:[#allocation9 + $0x150] sm:$0xff]
        %v3838 = vld [vmem:[#allocation9 + $0x158] sm:$0xff]
        %v3839 = vld [vmem:[#allocation9 + $0x160] sm:$0xff]
        %v3840 = vld [vmem:[#allocation9 + $0x168] sm:$0xff]
        %v3841 = vld [vmem:[#allocation9 + $0x170] sm:$0xff]
        %v3842 = vld [vmem:[#allocation9 + $0x178] sm:$0xff]
        %v3843 = vld [vmem:[#allocation9 + $0x180] sm:$0xff]
        %v3844 = vld [vmem:[#allocation9 + $0x188] sm:$0xff]
        %v3845 = vld [vmem:[#allocation9 + $0x190] sm:$0xff]
        %v3846 = vld [vmem:[#allocation9 + $0x198] sm:$0xff]
        %v3847 = vld [vmem:[#allocation9 + $0x1a0] sm:$0xff]
        %v3848 = vld [vmem:[#allocation9 + $0x1a8] sm:$0xff]
        %v3849 = vld [vmem:[#allocation9 + $0x1b0] sm:$0xff]
        %v3850 = vld [vmem:[#allocation9 + $0x1b8] sm:$0xff]
        %v3851 = vld [vmem:[#allocation9 + $0x1c0] sm:$0xff]
        %v3852 = vld [vmem:[#allocation9 + $0x1c8] sm:$0xff]
        %v3853 = vld [vmem:[#allocation9 + $0x1d0] sm:$0xff]
        %v3854 = vld [vmem:[#allocation9 + $0x1d8] sm:$0xff]
        %v3855 = vld [vmem:[#allocation9 + $0x1e0] sm:$0xff]
        %v3856 = vld [vmem:[#allocation9 + $0x1e8] sm:$0xff]
        %v3857 = vld [vmem:[#allocation9 + $0x1f0] sm:$0xff]
        %v3858 = vld [vmem:[#allocation9 + $0x1f8] sm:$0xff]
        %v3859 = vsel %vm3731, %v3795, 0.0
        %v3860 = vsel %vm3732, %v3796, 0.0
        %v3861 = vsel %vm3733, %v3797, 0.0
        %v3862 = vsel %vm3734, %v3798, 0.0
        %v3863 = vsel %vm3735, %v3799, 0.0
        %v3864 = vsel %vm3736, %v3800, 0.0
        %v3865 = vsel %vm3737, %v3801, 0.0
        %v3866 = vsel %vm3738, %v3802, 0.0
        %v3867 = vsel %vm3739, %v3803, 0.0
        %v3868 = vsel %vm3740, %v3804, 0.0
        %v3869 = vsel %vm3741, %v3805, 0.0
        %v3870 = vsel %vm3742, %v3806, 0.0
        %v3871 = vsel %vm3743, %v3807, 0.0
        %v3872 = vsel %vm3744, %v3808, 0.0
        %v3873 = vsel %vm3745, %v3809, 0.0
        %v3874 = vsel %vm3746, %v3810, 0.0
        %v3875 = vsel %vm3747, %v3811, 0.0
        %v3876 = vsel %vm3748, %v3812, 0.0
        %v3877 = vsel %vm3749, %v3813, 0.0
        %v3878 = vsel %vm3750, %v3814, 0.0
        %v3879 = vsel %vm3751, %v3815, 0.0
        %v3880 = vsel %vm3752, %v3816, 0.0
        %v3881 = vsel %vm3753, %v3817, 0.0
        %v3882 = vsel %vm3754, %v3818, 0.0
        %v3883 = vsel %vm3755, %v3819, 0.0
        %v3884 = vsel %vm3756, %v3820, 0.0
        %v3885 = vsel %vm3757, %v3821, 0.0
        %v3886 = vsel %vm3758, %v3822, 0.0
        %v3887 = vsel %vm3759, %v3823, 0.0
        %v3888 = vsel %vm3760, %v3824, 0.0
        %v3889 = vsel %vm3761, %v3825, 0.0
        %v3890 = vsel %vm3762, %v3826, 0.0
        %v3891 = vsel %vm3763, %v3827, 0.0
        %v3892 = vsel %vm3764, %v3828, 0.0
        %v3893 = vsel %vm3765, %v3829, 0.0
        %v3894 = vsel %vm3766, %v3830, 0.0
        %v3895 = vsel %vm3767, %v3831, 0.0
        %v3896 = vsel %vm3768, %v3832, 0.0
        %v3897 = vsel %vm3769, %v3833, 0.0
        %v3898 = vsel %vm3770, %v3834, 0.0
        %v3899 = vsel %vm3771, %v3835, 0.0
        %v3900 = vsel %vm3772, %v3836, 0.0
        %v3901 = vsel %vm3773, %v3837, 0.0
        %v3902 = vsel %vm3774, %v3838, 0.0
        %v3903 = vsel %vm3775, %v3839, 0.0
        %v3904 = vsel %vm3776, %v3840, 0.0
        %v3905 = vsel %vm3777, %v3841, 0.0
        %v3906 = vsel %vm3778, %v3842, 0.0
        %v3907 = vsel %vm3779, %v3843, 0.0
        %v3908 = vsel %vm3780, %v3844, 0.0
        %v3909 = vsel %vm3781, %v3845, 0.0
        %v3910 = vsel %vm3782, %v3846, 0.0
        %v3911 = vsel %vm3783, %v3847, 0.0
        %v3912 = vsel %vm3784, %v3848, 0.0
        %v3913 = vsel %vm3785, %v3849, 0.0
        %v3914 = vsel %vm3786, %v3850, 0.0
        %v3915 = vsel %vm3787, %v3851, 0.0
        %v3916 = vsel %vm3788, %v3852, 0.0
        %v3917 = vsel %vm3789, %v3853, 0.0
        %v3918 = vsel %vm3790, %v3854, 0.0
        %v3919 = vsel %vm3791, %v3855, 0.0
        %v3920 = vsel %vm3792, %v3856, 0.0
        %v3921 = vsel %vm3793, %v3857, 0.0
        %v3922 = vsel %vm3794, %v3858, 0.0
        %v3923 = vld [vmem:[#allocation14] sm:$0xff]
        %v3924 = vld [vmem:[#allocation14 + $0x8] sm:$0xff]
        %v3925 = vld [vmem:[#allocation14 + $0x10] sm:$0xff]
        %v3926 = vld [vmem:[#allocation14 + $0x18] sm:$0xff]
        %v3927 = vld [vmem:[#allocation14 + $0x20] sm:$0xff]
        %v3928 = vld [vmem:[#allocation14 + $0x28] sm:$0xff]
        %v3929 = vld [vmem:[#allocation14 + $0x30] sm:$0xff]
        %v3930 = vld [vmem:[#allocation14 + $0x38] sm:$0xff]
        %v3931 = vld [vmem:[#allocation14 + $0x40] sm:$0xff]
        %v3932 = vld [vmem:[#allocation14 + $0x48] sm:$0xff]
        %v3933 = vld [vmem:[#allocation14 + $0x50] sm:$0xff]
        %v3934 = vld [vmem:[#allocation14 + $0x58] sm:$0xff]
        %v3935 = vld [vmem:[#allocation14 + $0x60] sm:$0xff]
        %v3936 = vld [vmem:[#allocation14 + $0x68] sm:$0xff]
        %v3937 = vld [vmem:[#allocation14 + $0x70] sm:$0xff]
        %v3938 = vld [vmem:[#allocation14 + $0x78] sm:$0xff]
        %v3939 = vld [vmem:[#allocation14 + $0x80] sm:$0xff]
        %v3940 = vld [vmem:[#allocation14 + $0x88] sm:$0xff]
        %v3941 = vld [vmem:[#allocation14 + $0x90] sm:$0xff]
        %v3942 = vld [vmem:[#allocation14 + $0x98] sm:$0xff]
        %v3943 = vld [vmem:[#allocation14 + $0xa0] sm:$0xff]
        %v3944 = vld [vmem:[#allocation14 + $0xa8] sm:$0xff]
        %v3945 = vld [vmem:[#allocation14 + $0xb0] sm:$0xff]
        %v3946 = vld [vmem:[#allocation14 + $0xb8] sm:$0xff]
        %v3947 = vld [vmem:[#allocation14 + $0xc0] sm:$0xff]
        %v3948 = vld [vmem:[#allocation14 + $0xc8] sm:$0xff]
        %v3949 = vld [vmem:[#allocation14 + $0xd0] sm:$0xff]
        %v3950 = vld [vmem:[#allocation14 + $0xd8] sm:$0xff]
        %v3951 = vld [vmem:[#allocation14 + $0xe0] sm:$0xff]
        %v3952 = vld [vmem:[#allocation14 + $0xe8] sm:$0xff]
        %v3953 = vld [vmem:[#allocation14 + $0xf0] sm:$0xff]
        %v3954 = vld [vmem:[#allocation14 + $0xf8] sm:$0xff]
        %v3955 = vld [vmem:[#allocation14 + $0x100] sm:$0xff]
        %v3956 = vld [vmem:[#allocation14 + $0x108] sm:$0xff]
        %v3957 = vld [vmem:[#allocation14 + $0x110] sm:$0xff]
        %v3958 = vld [vmem:[#allocation14 + $0x118] sm:$0xff]
        %v3959 = vld [vmem:[#allocation14 + $0x120] sm:$0xff]
        %v3960 = vld [vmem:[#allocation14 + $0x128] sm:$0xff]
        %v3961 = vld [vmem:[#allocation14 + $0x130] sm:$0xff]
        %v3962 = vld [vmem:[#allocation14 + $0x138] sm:$0xff]
        %v3963 = vld [vmem:[#allocation14 + $0x140] sm:$0xff]
        %v3964 = vld [vmem:[#allocation14 + $0x148] sm:$0xff]
        %v3965 = vld [vmem:[#allocation14 + $0x150] sm:$0xff]
        %v3966 = vld [vmem:[#allocation14 + $0x158] sm:$0xff]
        %v3967 = vld [vmem:[#allocation14 + $0x160] sm:$0xff]
        %v3968 = vld [vmem:[#allocation14 + $0x168] sm:$0xff]
        %v3969 = vld [vmem:[#allocation14 + $0x170] sm:$0xff]
        %v3970 = vld [vmem:[#allocation14 + $0x178] sm:$0xff]
        %v3971 = vld [vmem:[#allocation14 + $0x180] sm:$0xff]
        %v3972 = vld [vmem:[#allocation14 + $0x188] sm:$0xff]
        %v3973 = vld [vmem:[#allocation14 + $0x190] sm:$0xff]
        %v3974 = vld [vmem:[#allocation14 + $0x198] sm:$0xff]
        %v3975 = vld [vmem:[#allocation14 + $0x1a0] sm:$0xff]
        %v3976 = vld [vmem:[#allocation14 + $0x1a8] sm:$0xff]
        %v3977 = vld [vmem:[#allocation14 + $0x1b0] sm:$0xff]
        %v3978 = vld [vmem:[#allocation14 + $0x1b8] sm:$0xff]
        %v3979 = vld [vmem:[#allocation14 + $0x1c0] sm:$0xff]
        %v3980 = vld [vmem:[#allocation14 + $0x1c8] sm:$0xff]
        %v3981 = vld [vmem:[#allocation14 + $0x1d0] sm:$0xff]
        %v3982 = vld [vmem:[#allocation14 + $0x1d8] sm:$0xff]
        %v3983 = vld [vmem:[#allocation14 + $0x1e0] sm:$0xff]
        %v3984 = vld [vmem:[#allocation14 + $0x1e8] sm:$0xff]
        %v3985 = vld [vmem:[#allocation14 + $0x1f0] sm:$0xff]
        %v3986 = vld [vmem:[#allocation14 + $0x1f8] sm:$0xff]
        %v3987 = vld [vmem:[#allocation12] sm:$0xff]
        %v3988 = vld [vmem:[#allocation12 + $0x8] sm:$0xff]
        %v3989 = vld [vmem:[#allocation12 + $0x10] sm:$0xff]
        %v3990 = vld [vmem:[#allocation12 + $0x18] sm:$0xff]
        %v3991 = vld [vmem:[#allocation12 + $0x20] sm:$0xff]
        %v3992 = vld [vmem:[#allocation12 + $0x28] sm:$0xff]
        %v3993 = vld [vmem:[#allocation12 + $0x30] sm:$0xff]
        %v3994 = vld [vmem:[#allocation12 + $0x38] sm:$0xff]
        %v3995 = vld [vmem:[#allocation12 + $0x40] sm:$0xff]
        %v3996 = vld [vmem:[#allocation12 + $0x48] sm:$0xff]
        %v3997 = vld [vmem:[#allocation12 + $0x50] sm:$0xff]
        %v3998 = vld [vmem:[#allocation12 + $0x58] sm:$0xff]
        %v3999 = vld [vmem:[#allocation12 + $0x60] sm:$0xff]
        %v4000 = vld [vmem:[#allocation12 + $0x68] sm:$0xff]
        %v4001 = vld [vmem:[#allocation12 + $0x70] sm:$0xff]
        %v4002 = vld [vmem:[#allocation12 + $0x78] sm:$0xff]
        %v4003 = vld [vmem:[#allocation12 + $0x80] sm:$0xff]
        %v4004 = vld [vmem:[#allocation12 + $0x88] sm:$0xff]
        %v4005 = vld [vmem:[#allocation12 + $0x90] sm:$0xff]
        %v4006 = vld [vmem:[#allocation12 + $0x98] sm:$0xff]
        %v4007 = vld [vmem:[#allocation12 + $0xa0] sm:$0xff]
        %v4008 = vld [vmem:[#allocation12 + $0xa8] sm:$0xff]
        %v4009 = vld [vmem:[#allocation12 + $0xb0] sm:$0xff]
        %v4010 = vld [vmem:[#allocation12 + $0xb8] sm:$0xff]
        %v4011 = vld [vmem:[#allocation12 + $0xc0] sm:$0xff]
        %v4012 = vld [vmem:[#allocation12 + $0xc8] sm:$0xff]
        %v4013 = vld [vmem:[#allocation12 + $0xd0] sm:$0xff]
        %v4014 = vld [vmem:[#allocation12 + $0xd8] sm:$0xff]
        %v4015 = vld [vmem:[#allocation12 + $0xe0] sm:$0xff]
        %v4016 = vld [vmem:[#allocation12 + $0xe8] sm:$0xff]
        %v4017 = vld [vmem:[#allocation12 + $0xf0] sm:$0xff]
        %v4018 = vld [vmem:[#allocation12 + $0xf8] sm:$0xff]
        %v4019 = vld [vmem:[#allocation12 + $0x100] sm:$0xff]
        %v4020 = vld [vmem:[#allocation12 + $0x108] sm:$0xff]
        %v4021 = vld [vmem:[#allocation12 + $0x110] sm:$0xff]
        %v4022 = vld [vmem:[#allocation12 + $0x118] sm:$0xff]
        %v4023 = vld [vmem:[#allocation12 + $0x120] sm:$0xff]
        %v4024 = vld [vmem:[#allocation12 + $0x128] sm:$0xff]
        %v4025 = vld [vmem:[#allocation12 + $0x130] sm:$0xff]
        %v4026 = vld [vmem:[#allocation12 + $0x138] sm:$0xff]
        %v4027 = vld [vmem:[#allocation12 + $0x140] sm:$0xff]
        %v4028 = vld [vmem:[#allocation12 + $0x148] sm:$0xff]
        %v4029 = vld [vmem:[#allocation12 + $0x150] sm:$0xff]
        %v4030 = vld [vmem:[#allocation12 + $0x158] sm:$0xff]
        %v4031 = vld [vmem:[#allocation12 + $0x160] sm:$0xff]
        %v4032 = vld [vmem:[#allocation12 + $0x168] sm:$0xff]
        %v4033 = vld [vmem:[#allocation12 + $0x170] sm:$0xff]
        %v4034 = vld [vmem:[#allocation12 + $0x178] sm:$0xff]
        %v4035 = vld [vmem:[#allocation12 + $0x180] sm:$0xff]
        %v4036 = vld [vmem:[#allocation12 + $0x188] sm:$0xff]
        %v4037 = vld [vmem:[#allocation12 + $0x190] sm:$0xff]
        %v4038 = vld [vmem:[#allocation12 + $0x198] sm:$0xff]
        %v4039 = vld [vmem:[#allocation12 + $0x1a0] sm:$0xff]
        %v4040 = vld [vmem:[#allocation12 + $0x1a8] sm:$0xff]
        %v4041 = vld [vmem:[#allocation12 + $0x1b0] sm:$0xff]
        %v4042 = vld [vmem:[#allocation12 + $0x1b8] sm:$0xff]
        %v4043 = vld [vmem:[#allocation12 + $0x1c0] sm:$0xff]
        %v4044 = vld [vmem:[#allocation12 + $0x1c8] sm:$0xff]
        %v4045 = vld [vmem:[#allocation12 + $0x1d0] sm:$0xff]
        %v4046 = vld [vmem:[#allocation12 + $0x1d8] sm:$0xff]
        %v4047 = vld [vmem:[#allocation12 + $0x1e0] sm:$0xff]
        %v4048 = vld [vmem:[#allocation12 + $0x1e8] sm:$0xff]
        %v4049 = vld [vmem:[#allocation12 + $0x1f0] sm:$0xff]
        %v4050 = vld [vmem:[#allocation12 + $0x1f8] sm:$0xff]
        %v4051 = vand.u32 %v3988, 4294901760
        %4052 = vmatprep.subr.mxu0 %v4051
        %v4053 = vand.u32 %v3987, 4294901760
        %4054 = vmatpush1.msra.mxu0 %v4053
        %v4055 = vand.u32 %v3990, 4294901760
        %4056 = vmatprep.subr.mxu0 %v4055
        %v4057 = vand.u32 %v3989, 4294901760
        %4058 = vmatpush1.msra.mxu0 %v4057
        %v4059 = vand.u32 %v3992, 4294901760
        %4060 = vmatprep.subr.mxu0 %v4059
        %v4061 = vand.u32 %v3991, 4294901760
        %4062 = vmatpush1.msra.mxu0 %v4061
        %v4063 = vand.u32 %v3994, 4294901760
        %4064 = vmatprep.subr.mxu0 %v4063
        %v4065 = vand.u32 %v3993, 4294901760
        %4066 = vmatpush1.msra.mxu0 %v4065
        %v4067 = vand.u32 %v3996, 4294901760
        %4068 = vmatprep.subr.mxu0 %v4067
        %v4069 = vand.u32 %v3995, 4294901760
        %4070 = vmatpush1.msra.mxu0 %v4069
        %v4071 = vand.u32 %v3998, 4294901760
        %4072 = vmatprep.subr.mxu0 %v4071
        %v4073 = vand.u32 %v3997, 4294901760
        %4074 = vmatpush1.msra.mxu0 %v4073
        %v4075 = vand.u32 %v4000, 4294901760
        %4076 = vmatprep.subr.mxu0 %v4075
        %v4077 = vand.u32 %v3999, 4294901760
        %4078 = vmatpush1.msra.mxu0 %v4077
        %v4079 = vand.u32 %v4002, 4294901760
        %4080 = vmatprep.subr.mxu0 %v4079
        %v4081 = vand.u32 %v4001, 4294901760
        %4082 = vmatpush1.msra.mxu0 %v4081
        %v4083 = vand.u32 %v4004, 4294901760
        %4084 = vmatprep.subr.mxu0 %v4083
        %v4085 = vand.u32 %v4003, 4294901760
        %4086 = vmatpush1.msra.mxu0 %v4085
        %v4087 = vand.u32 %v4006, 4294901760
        %4088 = vmatprep.subr.mxu0 %v4087
        %v4089 = vand.u32 %v4005, 4294901760
        %4090 = vmatpush1.msra.mxu0 %v4089
        %v4091 = vand.u32 %v4008, 4294901760
        %4092 = vmatprep.subr.mxu0 %v4091
        %v4093 = vand.u32 %v4007, 4294901760
        %4094 = vmatpush1.msra.mxu0 %v4093
        %v4095 = vand.u32 %v4010, 4294901760
        %4096 = vmatprep.subr.mxu0 %v4095
        %v4097 = vand.u32 %v4009, 4294901760
        %4098 = vmatpush1.msra.mxu0 %v4097
        %v4099 = vand.u32 %v4012, 4294901760
        %4100 = vmatprep.subr.mxu0 %v4099
        %v4101 = vand.u32 %v4011, 4294901760
        %4102 = vmatpush1.msra.mxu0 %v4101
        %v4103 = vand.u32 %v4014, 4294901760
        %4104 = vmatprep.subr.mxu0 %v4103
        %v4105 = vand.u32 %v4013, 4294901760
        %4106 = vmatpush1.msra.mxu0 %v4105
        %v4107 = vand.u32 %v4016, 4294901760
        %4108 = vmatprep.subr.mxu0 %v4107
        %v4109 = vand.u32 %v4015, 4294901760
        %4110 = vmatpush1.msra.mxu0 %v4109
        %v4111 = vand.u32 %v4018, 4294901760
        %4112 = vmatprep.subr.mxu0 %v4111
        %v4113 = vand.u32 %v4017, 4294901760
        %4114 = vmatpush1.msra.mxu0 %v4113
        %v4115 = vand.u32 %v4020, 4294901760
        %4116 = vmatprep.subr.mxu0 %v4115
        %v4117 = vand.u32 %v4019, 4294901760
        %4118 = vmatpush1.msra.mxu0 %v4117
        %v4119 = vand.u32 %v4022, 4294901760
        %4120 = vmatprep.subr.mxu0 %v4119
        %v4121 = vand.u32 %v4021, 4294901760
        %4122 = vmatpush1.msra.mxu0 %v4121
        %v4123 = vand.u32 %v4024, 4294901760
        %4124 = vmatprep.subr.mxu0 %v4123
        %v4125 = vand.u32 %v4023, 4294901760
        %4126 = vmatpush1.msra.mxu0 %v4125
        %v4127 = vand.u32 %v4026, 4294901760
        %4128 = vmatprep.subr.mxu0 %v4127
        %v4129 = vand.u32 %v4025, 4294901760
        %4130 = vmatpush1.msra.mxu0 %v4129
        %v4131 = vand.u32 %v4028, 4294901760
        %4132 = vmatprep.subr.mxu0 %v4131
        %v4133 = vand.u32 %v4027, 4294901760
        %4134 = vmatpush1.msra.mxu0 %v4133
        %v4135 = vand.u32 %v4030, 4294901760
        %4136 = vmatprep.subr.mxu0 %v4135
        %v4137 = vand.u32 %v4029, 4294901760
        %4138 = vmatpush1.msra.mxu0 %v4137
        %v4139 = vand.u32 %v4032, 4294901760
        %4140 = vmatprep.subr.mxu0 %v4139
        %v4141 = vand.u32 %v4031, 4294901760
        %4142 = vmatpush1.msra.mxu0 %v4141
        %v4143 = vand.u32 %v4034, 4294901760
        %4144 = vmatprep.subr.mxu0 %v4143
        %v4145 = vand.u32 %v4033, 4294901760
        %4146 = vmatpush1.msra.mxu0 %v4145
        %v4147 = vand.u32 %v4036, 4294901760
        %4148 = vmatprep.subr.mxu0 %v4147
        %v4149 = vand.u32 %v4035, 4294901760
        %4150 = vmatpush1.msra.mxu0 %v4149
        %v4151 = vand.u32 %v4038, 4294901760
        %4152 = vmatprep.subr.mxu0 %v4151
        %v4153 = vand.u32 %v4037, 4294901760
        %4154 = vmatpush1.msra.mxu0 %v4153
        %v4155 = vand.u32 %v4040, 4294901760
        %4156 = vmatprep.subr.mxu0 %v4155
        %v4157 = vand.u32 %v4039, 4294901760
        %4158 = vmatpush1.msra.mxu0 %v4157
        %v4159 = vand.u32 %v4042, 4294901760
        %4160 = vmatprep.subr.mxu0 %v4159
        %v4161 = vand.u32 %v4041, 4294901760
        %4162 = vmatpush1.msra.mxu0 %v4161
        %v4163 = vand.u32 %v4044, 4294901760
        %4164 = vmatprep.subr.mxu0 %v4163
        %v4165 = vand.u32 %v4043, 4294901760
        %4166 = vmatpush1.msra.mxu0 %v4165
        %v4167 = vand.u32 %v4046, 4294901760
        %4168 = vmatprep.subr.mxu0 %v4167
        %v4169 = vand.u32 %v4045, 4294901760
        %4170 = vmatpush1.msra.mxu0 %v4169
        %v4171 = vand.u32 %v4048, 4294901760
        %4172 = vmatprep.subr.mxu0 %v4171
        %v4173 = vand.u32 %v4047, 4294901760
        %4174 = vmatpush1.msra.mxu0 %v4173
        %v4175 = vand.u32 %v4050, 4294901760
        %4176 = vmatprep.subr.mxu0 %v4175
        %v4177 = vand.u32 %v4049, 4294901760
        %4178 = vmatpush1.msra.mxu0 %v4177
        %v4179 = vand.u32 %v3860, 4294901760
        %v4180 = vsub.f32 %v3860, %v4179
        %v4181 = vand.u32 %v4180, 4294901760
        %v4182 = vsub.f32 %v4180, %v4181
        %v4183 = vand.u32 %v4182, 4294901760
        %4184 = vmatprep.mubr.f32.mxu0 %v4183
        %v4185 = vand.u32 %v3859, 4294901760
        %v4186 = vsub.f32 %v3859, %v4185
        %v4187 = vand.u32 %v4186, 4294901760
        %v4188 = vsub.f32 %v4186, %v4187
        %v4189 = vand.u32 %v4188, 4294901760
        %4190 = vmatmul.mubr.f32.gmra.mrb[0].mxu0 %v4189
        %v4191 = vpop.f32.mrb[0].mxu0
        %v4192 = vadd.f32 0.0, %v4191
        %v4193 = vpop.f32.mrb[0].mxu0
        %v4194 = vadd.f32 0.0, %v4193
        %v4195 = vand.u32 %v3862, 4294901760
        %v4196 = vsub.f32 %v3862, %v4195
        %v4197 = vand.u32 %v4196, 4294901760
        %v4198 = vsub.f32 %v4196, %v4197
        %v4199 = vand.u32 %v4198, 4294901760
        %4200 = vmatprep.mubr.f32.mxu0 %v4199
        %v4201 = vand.u32 %v3861, 4294901760
        %v4202 = vsub.f32 %v3861, %v4201
        %v4203 = vand.u32 %v4202, 4294901760
        %v4204 = vsub.f32 %v4202, %v4203
        %v4205 = vand.u32 %v4204, 4294901760
        %4206 = vmatmul.mubr.f32.gmra.mrb[0].mxu0 %v4205
        %v4207 = vpop.f32.mrb[0].mxu0
        %v4208 = vadd.f32 0.0, %v4207
        %v4209 = vpop.f32.mrb[0].mxu0
        %v4210 = vadd.f32 0.0, %v4209
        %v4211 = vand.u32 %v3864, 4294901760
        %v4212 = vsub.f32 %v3864, %v4211
        %v4213 = vand.u32 %v4212, 4294901760
        %v4214 = vsub.f32 %v4212, %v4213
        %v4215 = vand.u32 %v4214, 4294901760
        %4216 = vmatprep.mubr.f32.mxu0 %v4215
        %v4217 = vand.u32 %v3863, 4294901760
        %v4218 = vsub.f32 %v3863, %v4217
        %v4219 = vand.u32 %v4218, 4294901760
        %v4220 = vsub.f32 %v4218, %v4219
        %v4221 = vand.u32 %v4220, 4294901760
        %4222 = vmatmul.mubr.f32.gmra.mrb[0].mxu0 %v4221
        %v4223 = vpop.f32.mrb[0].mxu0
        %v4224 = vadd.f32 0.0, %v4223
        %v4225 = vpop.f32.mrb[0].mxu0
        %v4226 = vadd.f32 0.0, %v4225
        %v4227 = vand.u32 %v3866, 4294901760
        %v4228 = vsub.f32 %v3866, %v4227
        %v4229 = vand.u32 %v4228, 4294901760
        %v4230 = vsub.f32 %v4228, %v4229
        %v4231 = vand.u32 %v4230, 4294901760
        %4232 = vmatprep.mubr.f32.mxu0 %v4231
        %v4233 = vand.u32 %v3865, 4294901760
        %v4234 = vsub.f32 %v3865, %v4233
        %v4235 = vand.u32 %v4234, 4294901760
        %v4236 = vsub.f32 %v4234, %v4235
        %v4237 = vand.u32 %v4236, 4294901760
        %4238 = vmatmul.mubr.f32.gmra.mrb[0].mxu0 %v4237
        %v4239 = vpop.f32.mrb[0].mxu0
        %v4240 = vadd.f32 0.0, %v4239
        %v4241 = vpop.f32.mrb[0].mxu0
        %v4242 = vadd.f32 0.0, %v4241
        %v4243 = vand.u32 %v3868, 4294901760
        %v4244 = vsub.f32 %v3868, %v4243
        %v4245 = vand.u32 %v4244, 4294901760
        %v4246 = vsub.f32 %v4244, %v4245
        %v4247 = vand.u32 %v4246, 4294901760
        %4248 = vmatprep.mubr.f32.mxu0 %v4247
        %v4249 = vand.u32 %v3867, 4294901760
        %v4250 = vsub.f32 %v3867, %v4249
        %v4251 = vand.u32 %v4250, 4294901760
        %v4252 = vsub.f32 %v4250, %v4251
        %v4253 = vand.u32 %v4252, 4294901760
        %4254 = vmatmul.mubr.f32.gmra.mrb[0].mxu0 %v4253
        %v4255 = vpop.f32.mrb[0].mxu0
        %v4256 = vadd.f32 0.0, %v4255
        %v4257 = vpop.f32.mrb[0].mxu0
        %v4258 = vadd.f32 0.0, %v4257
        %v4259 = vand.u32 %v3870, 4294901760
        %v4260 = vsub.f32 %v3870, %v4259
        %v4261 = vand.u32 %v4260, 4294901760
        %v4262 = vsub.f32 %v4260, %v4261
        %v4263 = vand.u32 %v4262, 4294901760
        %4264 = vmatprep.mubr.f32.mxu0 %v4263
        %v4265 = vand.u32 %v3869, 4294901760
        %v4266 = vsub.f32 %v3869, %v4265
        %v4267 = vand.u32 %v4266, 4294901760
        %v4268 = vsub.f32 %v4266, %v4267
        %v4269 = vand.u32 %v4268, 4294901760
        %4270 = vmatmul.mubr.f32.gmra.mrb[0].mxu0 %v4269
        %v4271 = vpop.f32.mrb[0].mxu0
        %v4272 = vadd.f32 0.0, %v4271
        %v4273 = vpop.f32.mrb[0].mxu0
        %v4274 = vadd.f32 0.0, %v4273
        %v4275 = vand.u32 %v3872, 4294901760
        %v4276 = vsub.f32 %v3872, %v4275
        %v4277 = vand.u32 %v4276, 4294901760
        %v4278 = vsub.f32 %v4276, %v4277
        %v4279 = vand.u32 %v4278, 4294901760
        %4280 = vmatprep.mubr.f32.mxu0 %v4279
        %v4281 = vand.u32 %v3871, 4294901760
        %v4282 = vsub.f32 %v3871, %v4281
        %v4283 = vand.u32 %v4282, 4294901760
        %v4284 = vsub.f32 %v4282, %v4283
        %v4285 = vand.u32 %v4284, 4294901760
        %4286 = vmatmul.mubr.f32.gmra.mrb[0].mxu0 %v4285
        %v4287 = vpop.f32.mrb[0].mxu0
        %v4288 = vadd.f32 0.0, %v4287
        %v4289 = vpop.f32.mrb[0].mxu0
        %v4290 = vadd.f32 0.0, %v4289
        %v4291 = vand.u32 %v3874, 4294901760
        %v4292 = vsub.f32 %v3874, %v4291
        %v4293 = vand.u32 %v4292, 4294901760
        %v4294 = vsub.f32 %v4292, %v4293
        %v4295 = vand.u32 %v4294, 4294901760
        %4296 = vmatprep.mubr.f32.mxu0 %v4295
        %v4297 = vand.u32 %v3873, 4294901760
        %v4298 = vsub.f32 %v3873, %v4297
        %v4299 = vand.u32 %v4298, 4294901760
        %v4300 = vsub.f32 %v4298, %v4299
        %v4301 = vand.u32 %v4300, 4294901760
        %4302 = vmatmul.mubr.f32.gmra.mrb[0].mxu0 %v4301
        %v4303 = vpop.f32.mrb[0].mxu0
        %v4304 = vadd.f32 0.0, %v4303
        %v4305 = vpop.f32.mrb[0].mxu0
        %v4306 = vadd.f32 0.0, %v4305
        %v4307 = vand.u32 %v3876, 4294901760
        %v4308 = vsub.f32 %v3876, %v4307
        %v4309 = vand.u32 %v4308, 4294901760
        %v4310 = vsub.f32 %v4308, %v4309
        %v4311 = vand.u32 %v4310, 4294901760
        %4312 = vmatprep.mubr.f32.mxu0 %v4311
        %v4313 = vand.u32 %v3875, 4294901760
        %v4314 = vsub.f32 %v3875, %v4313
        %v4315 = vand.u32 %v4314, 4294901760
        %v4316 = vsub.f32 %v4314, %v4315
        %v4317 = vand.u32 %v4316, 4294901760
        %4318 = vmatmul.mubr.f32.gmra.mrb[0].mxu0 %v4317
        %v4319 = vpop.f32.mrb[0].mxu0
        %v4320 = vadd.f32 0.0, %v4319
        %v4321 = vpop.f32.mrb[0].mxu0
        %v4322 = vadd.f32 0.0, %v4321
        %v4323 = vand.u32 %v3878, 4294901760
        %v4324 = vsub.f32 %v3878, %v4323
        %v4325 = vand.u32 %v4324, 4294901760
        %v4326 = vsub.f32 %v4324, %v4325
        %v4327 = vand.u32 %v4326, 4294901760
        %4328 = vmatprep.mubr.f32.mxu0 %v4327
        %v4329 = vand.u32 %v3877, 4294901760
        %v4330 = vsub.f32 %v3877, %v4329
        %v4331 = vand.u32 %v4330, 4294901760
        %v4332 = vsub.f32 %v4330, %v4331
        %v4333 = vand.u32 %v4332, 4294901760
        %4334 = vmatmul.mubr.f32.gmra.mrb[0].mxu0 %v4333
        %v4335 = vpop.f32.mrb[0].mxu0
        %v4336 = vadd.f32 0.0, %v4335
        %v4337 = vpop.f32.mrb[0].mxu0
        %v4338 = vadd.f32 0.0, %v4337
        %v4339 = vand.u32 %v3880, 4294901760
        %v4340 = vsub.f32 %v3880, %v4339
        %v4341 = vand.u32 %v4340, 4294901760
        %v4342 = vsub.f32 %v4340, %v4341
        %v4343 = vand.u32 %v4342, 4294901760
        %4344 = vmatprep.mubr.f32.mxu0 %v4343
        %v4345 = vand.u32 %v3879, 4294901760
        %v4346 = vsub.f32 %v3879, %v4345
        %v4347 = vand.u32 %v4346, 4294901760
        %v4348 = vsub.f32 %v4346, %v4347
        %v4349 = vand.u32 %v4348, 4294901760
        %4350 = vmatmul.mubr.f32.gmra.mrb[0].mxu0 %v4349
        %v4351 = vpop.f32.mrb[0].mxu0
        %v4352 = vadd.f32 0.0, %v4351
        %v4353 = vpop.f32.mrb[0].mxu0
        %v4354 = vadd.f32 0.0, %v4353
        %v4355 = vand.u32 %v3882, 4294901760
        %v4356 = vsub.f32 %v3882, %v4355
        %v4357 = vand.u32 %v4356, 4294901760
        %v4358 = vsub.f32 %v4356, %v4357
        %v4359 = vand.u32 %v4358, 4294901760
        %4360 = vmatprep.mubr.f32.mxu0 %v4359
        %v4361 = vand.u32 %v3881, 4294901760
        %v4362 = vsub.f32 %v3881, %v4361
        %v4363 = vand.u32 %v4362, 4294901760
        %v4364 = vsub.f32 %v4362, %v4363
        %v4365 = vand.u32 %v4364, 4294901760
        %4366 = vmatmul.mubr.f32.gmra.mrb[0].mxu0 %v4365
        %v4367 = vpop.f32.mrb[0].mxu0
        %v4368 = vadd.f32 0.0, %v4367
        %v4369 = vpop.f32.mrb[0].mxu0
        %v4370 = vadd.f32 0.0, %v4369
        %v4371 = vand.u32 %v3884, 4294901760
        %v4372 = vsub.f32 %v3884, %v4371
        %v4373 = vand.u32 %v4372, 4294901760
        %v4374 = vsub.f32 %v4372, %v4373
        %v4375 = vand.u32 %v4374, 4294901760
        %4376 = vmatprep.mubr.f32.mxu0 %v4375
        %v4377 = vand.u32 %v3883, 4294901760
        %v4378 = vsub.f32 %v3883, %v4377
        %v4379 = vand.u32 %v4378, 4294901760
        %v4380 = vsub.f32 %v4378, %v4379
        %v4381 = vand.u32 %v4380, 4294901760
        %4382 = vmatmul.mubr.f32.gmra.mrb[0].mxu0 %v4381
        %v4383 = vpop.f32.mrb[0].mxu0
        %v4384 = vadd.f32 0.0, %v4383
        %v4385 = vpop.f32.mrb[0].mxu0
        %v4386 = vadd.f32 0.0, %v4385
        %v4387 = vand.u32 %v3886, 4294901760
        %v4388 = vsub.f32 %v3886, %v4387
        %v4389 = vand.u32 %v4388, 4294901760
        %v4390 = vsub.f32 %v4388, %v4389
        %v4391 = vand.u32 %v4390, 4294901760
        %4392 = vmatprep.mubr.f32.mxu0 %v4391
        %v4393 = vand.u32 %v3885, 4294901760
        %v4394 = vsub.f32 %v3885, %v4393
        %v4395 = vand.u32 %v4394, 4294901760
        %v4396 = vsub.f32 %v4394, %v4395
        %v4397 = vand.u32 %v4396, 4294901760
        %4398 = vmatmul.mubr.f32.gmra.mrb[0].mxu0 %v4397
        %v4399 = vpop.f32.mrb[0].mxu0
        %v4400 = vadd.f32 0.0, %v4399
        %v4401 = vpop.f32.mrb[0].mxu0
        %v4402 = vadd.f32 0.0, %v4401
        %v4403 = vand.u32 %v3888, 4294901760
        %v4404 = vsub.f32 %v3888, %v4403
        %v4405 = vand.u32 %v4404, 4294901760
        %v4406 = vsub.f32 %v4404, %v4405
        %v4407 = vand.u32 %v4406, 4294901760
        %4408 = vmatprep.mubr.f32.mxu0 %v4407
        %v4409 = vand.u32 %v3887, 4294901760
        %v4410 = vsub.f32 %v3887, %v4409
        %v4411 = vand.u32 %v4410, 4294901760
        %v4412 = vsub.f32 %v4410, %v4411
        %v4413 = vand.u32 %v4412, 4294901760
        %4414 = vmatmul.mubr.f32.gmra.mrb[0].mxu0 %v4413
        %v4415 = vpop.f32.mrb[0].mxu0
        %v4416 = vadd.f32 0.0, %v4415
        %v4417 = vpop.f32.mrb[0].mxu0
        %v4418 = vadd.f32 0.0, %v4417
        %v4419 = vand.u32 %v3890, 4294901760
        %v4420 = vsub.f32 %v3890, %v4419
        %v4421 = vand.u32 %v4420, 4294901760
        %v4422 = vsub.f32 %v4420, %v4421
        %v4423 = vand.u32 %v4422, 4294901760
        %4424 = vmatprep.mubr.f32.mxu0 %v4423
        %v4425 = vand.u32 %v3889, 4294901760
        %v4426 = vsub.f32 %v3889, %v4425
        %v4427 = vand.u32 %v4426, 4294901760
        %v4428 = vsub.f32 %v4426, %v4427
        %v4429 = vand.u32 %v4428, 4294901760
        %4430 = vmatmul.mubr.f32.gmra.mrb[0].mxu0 %v4429
        %v4431 = vpop.f32.mrb[0].mxu0
        %v4432 = vadd.f32 0.0, %v4431
        %v4433 = vpop.f32.mrb[0].mxu0
        %v4434 = vadd.f32 0.0, %v4433
        %v4435 = vand.u32 %v3892, 4294901760
        %v4436 = vsub.f32 %v3892, %v4435
        %v4437 = vand.u32 %v4436, 4294901760
        %v4438 = vsub.f32 %v4436, %v4437
        %v4439 = vand.u32 %v4438, 4294901760
        %4440 = vmatprep.mubr.f32.mxu0 %v4439
        %v4441 = vand.u32 %v3891, 4294901760
        %v4442 = vsub.f32 %v3891, %v4441
        %v4443 = vand.u32 %v4442, 4294901760
        %v4444 = vsub.f32 %v4442, %v4443
        %v4445 = vand.u32 %v4444, 4294901760
        %4446 = vmatmul.mubr.f32.gmra.mrb[0].mxu0 %v4445
        %v4447 = vpop.f32.mrb[0].mxu0
        %v4448 = vadd.f32 0.0, %v4447
        %v4449 = vpop.f32.mrb[0].mxu0
        %v4450 = vadd.f32 0.0, %v4449
        %v4451 = vand.u32 %v3894, 4294901760
        %v4452 = vsub.f32 %v3894, %v4451
        %v4453 = vand.u32 %v4452, 4294901760
        %v4454 = vsub.f32 %v4452, %v4453
        %v4455 = vand.u32 %v4454, 4294901760
        %4456 = vmatprep.mubr.f32.mxu0 %v4455
        %v4457 = vand.u32 %v3893, 4294901760
        %v4458 = vsub.f32 %v3893, %v4457
        %v4459 = vand.u32 %v4458, 4294901760
        %v4460 = vsub.f32 %v4458, %v4459
        %v4461 = vand.u32 %v4460, 4294901760
        %4462 = vmatmul.mubr.f32.gmra.mrb[0].mxu0 %v4461
        %v4463 = vpop.f32.mrb[0].mxu0
        %v4464 = vadd.f32 0.0, %v4463
        %v4465 = vpop.f32.mrb[0].mxu0
        %v4466 = vadd.f32 0.0, %v4465
        %v4467 = vand.u32 %v3896, 4294901760
        %v4468 = vsub.f32 %v3896, %v4467
        %v4469 = vand.u32 %v4468, 4294901760
        %v4470 = vsub.f32 %v4468, %v4469
        %v4471 = vand.u32 %v4470, 4294901760
        %4472 = vmatprep.mubr.f32.mxu0 %v4471
        %v4473 = vand.u32 %v3895, 4294901760
        %v4474 = vsub.f32 %v3895, %v4473
        %v4475 = vand.u32 %v4474, 4294901760
        %v4476 = vsub.f32 %v4474, %v4475
        %v4477 = vand.u32 %v4476, 4294901760
        %4478 = vmatmul.mubr.f32.gmra.mrb[0].mxu0 %v4477
        %v4479 = vpop.f32.mrb[0].mxu0
        %v4480 = vadd.f32 0.0, %v4479
        %v4481 = vpop.f32.mrb[0].mxu0
        %v4482 = vadd.f32 0.0, %v4481
        %v4483 = vand.u32 %v3898, 4294901760
        %v4484 = vsub.f32 %v3898, %v4483
        %v4485 = vand.u32 %v4484, 4294901760
        %v4486 = vsub.f32 %v4484, %v4485
        %v4487 = vand.u32 %v4486, 4294901760
        %4488 = vmatprep.mubr.f32.mxu0 %v4487
        %v4489 = vand.u32 %v3897, 4294901760
        %v4490 = vsub.f32 %v3897, %v4489
        %v4491 = vand.u32 %v4490, 4294901760
        %v4492 = vsub.f32 %v4490, %v4491
        %v4493 = vand.u32 %v4492, 4294901760
        %4494 = vmatmul.mubr.f32.gmra.mrb[0].mxu0 %v4493
        %v4495 = vpop.f32.mrb[0].mxu0
        %v4496 = vadd.f32 0.0, %v4495
        %v4497 = vpop.f32.mrb[0].mxu0
        %v4498 = vadd.f32 0.0, %v4497
        %v4499 = vand.u32 %v3900, 4294901760
        %v4500 = vsub.f32 %v3900, %v4499
        %v4501 = vand.u32 %v4500, 4294901760
        %v4502 = vsub.f32 %v4500, %v4501
        %v4503 = vand.u32 %v4502, 4294901760
        %4504 = vmatprep.mubr.f32.mxu0 %v4503
        %v4505 = vand.u32 %v3899, 4294901760
        %v4506 = vsub.f32 %v3899, %v4505
        %v4507 = vand.u32 %v4506, 4294901760
        %v4508 = vsub.f32 %v4506, %v4507
        %v4509 = vand.u32 %v4508, 4294901760
        %4510 = vmatmul.mubr.f32.gmra.mrb[0].mxu0 %v4509
        %v4511 = vpop.f32.mrb[0].mxu0
        %v4512 = vadd.f32 0.0, %v4511
        %v4513 = vpop.f32.mrb[0].mxu0
        %v4514 = vadd.f32 0.0, %v4513
        %v4515 = vand.u32 %v3902, 4294901760
        %v4516 = vsub.f32 %v3902, %v4515
        %v4517 = vand.u32 %v4516, 4294901760
        %v4518 = vsub.f32 %v4516, %v4517
        %v4519 = vand.u32 %v4518, 4294901760
        %4520 = vmatprep.mubr.f32.mxu0 %v4519
        %v4521 = vand.u32 %v3901, 4294901760
        %v4522 = vsub.f32 %v3901, %v4521
        %v4523 = vand.u32 %v4522, 4294901760
        %v4524 = vsub.f32 %v4522, %v4523
        %v4525 = vand.u32 %v4524, 4294901760
        %4526 = vmatmul.mubr.f32.gmra.mrb[0].mxu0 %v4525
        %v4527 = vpop.f32.mrb[0].mxu0
        %v4528 = vadd.f32 0.0, %v4527
        %v4529 = vpop.f32.mrb[0].mxu0
        %v4530 = vadd.f32 0.0, %v4529
        %v4531 = vand.u32 %v3904, 4294901760
        %v4532 = vsub.f32 %v3904, %v4531
        %v4533 = vand.u32 %v4532, 4294901760
        %v4534 = vsub.f32 %v4532, %v4533
        %v4535 = vand.u32 %v4534, 4294901760
        %4536 = vmatprep.mubr.f32.mxu0 %v4535
        %v4537 = vand.u32 %v3903, 4294901760
        %v4538 = vsub.f32 %v3903, %v4537
        %v4539 = vand.u32 %v4538, 4294901760
        %v4540 = vsub.f32 %v4538, %v4539
        %v4541 = vand.u32 %v4540, 4294901760
        %4542 = vmatmul.mubr.f32.gmra.mrb[0].mxu0 %v4541
        %v4543 = vpop.f32.mrb[0].mxu0
        %v4544 = vadd.f32 0.0, %v4543
        %v4545 = vpop.f32.mrb[0].mxu0
        %v4546 = vadd.f32 0.0, %v4545
        %v4547 = vand.u32 %v3906, 4294901760
        %v4548 = vsub.f32 %v3906, %v4547
        %v4549 = vand.u32 %v4548, 4294901760
        %v4550 = vsub.f32 %v4548, %v4549
        %v4551 = vand.u32 %v4550, 4294901760
        %4552 = vmatprep.mubr.f32.mxu0 %v4551
        %v4553 = vand.u32 %v3905, 4294901760
        %v4554 = vsub.f32 %v3905, %v4553
        %v4555 = vand.u32 %v4554, 4294901760
        %v4556 = vsub.f32 %v4554, %v4555
        %v4557 = vand.u32 %v4556, 4294901760
        %4558 = vmatmul.mubr.f32.gmra.mrb[0].mxu0 %v4557
        %v4559 = vpop.f32.mrb[0].mxu0
        %v4560 = vadd.f32 0.0, %v4559
        %v4561 = vpop.f32.mrb[0].mxu0
        %v4562 = vadd.f32 0.0, %v4561
        %v4563 = vand.u32 %v3908, 4294901760
        %v4564 = vsub.f32 %v3908, %v4563
        %v4565 = vand.u32 %v4564, 4294901760
        %v4566 = vsub.f32 %v4564, %v4565
        %v4567 = vand.u32 %v4566, 4294901760
        %4568 = vmatprep.mubr.f32.mxu0 %v4567
        %v4569 = vand.u32 %v3907, 4294901760
        %v4570 = vsub.f32 %v3907, %v4569
        %v4571 = vand.u32 %v4570, 4294901760
        %v4572 = vsub.f32 %v4570, %v4571
        %v4573 = vand.u32 %v4572, 4294901760
        %4574 = vmatmul.mubr.f32.gmra.mrb[0].mxu0 %v4573
        %v4575 = vpop.f32.mrb[0].mxu0
        %v4576 = vadd.f32 0.0, %v4575
        %v4577 = vpop.f32.mrb[0].mxu0
        %v4578 = vadd.f32 0.0, %v4577
        %v4579 = vand.u32 %v3910, 4294901760
        %v4580 = vsub.f32 %v3910, %v4579
        %v4581 = vand.u32 %v4580, 4294901760
        %v4582 = vsub.f32 %v4580, %v4581
        %v4583 = vand.u32 %v4582, 4294901760
        %4584 = vmatprep.mubr.f32.mxu0 %v4583
        %v4585 = vand.u32 %v3909, 4294901760
        %v4586 = vsub.f32 %v3909, %v4585
        %v4587 = vand.u32 %v4586, 4294901760
        %v4588 = vsub.f32 %v4586, %v4587
        %v4589 = vand.u32 %v4588, 4294901760
        %4590 = vmatmul.mubr.f32.gmra.mrb[0].mxu0 %v4589
        %v4591 = vpop.f32.mrb[0].mxu0
        %v4592 = vadd.f32 0.0, %v4591
        %v4593 = vpop.f32.mrb[0].mxu0
        %v4594 = vadd.f32 0.0, %v4593
        %v4595 = vand.u32 %v3912, 4294901760
        %v4596 = vsub.f32 %v3912, %v4595
        %v4597 = vand.u32 %v4596, 4294901760
        %v4598 = vsub.f32 %v4596, %v4597
        %v4599 = vand.u32 %v4598, 4294901760
        %4600 = vmatprep.mubr.f32.mxu0 %v4599
        %v4601 = vand.u32 %v3911, 4294901760
        %v4602 = vsub.f32 %v3911, %v4601
        %v4603 = vand.u32 %v4602, 4294901760
        %v4604 = vsub.f32 %v4602, %v4603
        %v4605 = vand.u32 %v4604, 4294901760
        %4606 = vmatmul.mubr.f32.gmra.mrb[0].mxu0 %v4605
        %v4607 = vpop.f32.mrb[0].mxu0
        %v4608 = vadd.f32 0.0, %v4607
        %v4609 = vpop.f32.mrb[0].mxu0
        %v4610 = vadd.f32 0.0, %v4609
        %v4611 = vand.u32 %v3914, 4294901760
        %v4612 = vsub.f32 %v3914, %v4611
        %v4613 = vand.u32 %v4612, 4294901760
        %v4614 = vsub.f32 %v4612, %v4613
        %v4615 = vand.u32 %v4614, 4294901760
        %4616 = vmatprep.mubr.f32.mxu0 %v4615
        %v4617 = vand.u32 %v3913, 4294901760
        %v4618 = vsub.f32 %v3913, %v4617
        %v4619 = vand.u32 %v4618, 4294901760
        %v4620 = vsub.f32 %v4618, %v4619
        %v4621 = vand.u32 %v4620, 4294901760
        %4622 = vmatmul.mubr.f32.gmra.mrb[0].mxu0 %v4621
        %v4623 = vpop.f32.mrb[0].mxu0
        %v4624 = vadd.f32 0.0, %v4623
        %v4625 = vpop.f32.mrb[0].mxu0
        %v4626 = vadd.f32 0.0, %v4625
        %v4627 = vand.u32 %v3916, 4294901760
        %v4628 = vsub.f32 %v3916, %v4627
        %v4629 = vand.u32 %v4628, 4294901760
        %v4630 = vsub.f32 %v4628, %v4629
        %v4631 = vand.u32 %v4630, 4294901760
        %4632 = vmatprep.mubr.f32.mxu0 %v4631
        %v4633 = vand.u32 %v3915, 4294901760
        %v4634 = vsub.f32 %v3915, %v4633
        %v4635 = vand.u32 %v4634, 4294901760
        %v4636 = vsub.f32 %v4634, %v4635
        %v4637 = vand.u32 %v4636, 4294901760
        %4638 = vmatmul.mubr.f32.gmra.mrb[0].mxu0 %v4637
        %v4639 = vpop.f32.mrb[0].mxu0
        %v4640 = vadd.f32 0.0, %v4639
        %v4641 = vpop.f32.mrb[0].mxu0
        %v4642 = vadd.f32 0.0, %v4641
        %v4643 = vand.u32 %v3918, 4294901760
        %v4644 = vsub.f32 %v3918, %v4643
        %v4645 = vand.u32 %v4644, 4294901760
        %v4646 = vsub.f32 %v4644, %v4645
        %v4647 = vand.u32 %v4646, 4294901760
        %4648 = vmatprep.mubr.f32.mxu0 %v4647
        %v4649 = vand.u32 %v3917, 4294901760
        %v4650 = vsub.f32 %v3917, %v4649
        %v4651 = vand.u32 %v4650, 4294901760
        %v4652 = vsub.f32 %v4650, %v4651
        %v4653 = vand.u32 %v4652, 4294901760
        %4654 = vmatmul.mubr.f32.gmra.mrb[0].mxu0 %v4653
        %v4655 = vpop.f32.mrb[0].mxu0
        %v4656 = vadd.f32 0.0, %v4655
        %v4657 = vpop.f32.mrb[0].mxu0
        %v4658 = vadd.f32 0.0, %v4657
        %v4659 = vand.u32 %v3920, 4294901760
        %v4660 = vsub.f32 %v3920, %v4659
        %v4661 = vand.u32 %v4660, 4294901760
        %v4662 = vsub.f32 %v4660, %v4661
        %v4663 = vand.u32 %v4662, 4294901760
        %4664 = vmatprep.mubr.f32.mxu0 %v4663
        %v4665 = vand.u32 %v3919, 4294901760
        %v4666 = vsub.f32 %v3919, %v4665
        %v4667 = vand.u32 %v4666, 4294901760
        %v4668 = vsub.f32 %v4666, %v4667
        %v4669 = vand.u32 %v4668, 4294901760
        %4670 = vmatmul.mubr.f32.gmra.mrb[0].mxu0 %v4669
        %v4671 = vpop.f32.mrb[0].mxu0
        %v4672 = vadd.f32 0.0, %v4671
        %v4673 = vpop.f32.mrb[0].mxu0
        %v4674 = vadd.f32 0.0, %v4673
        %v4675 = vand.u32 %v3922, 4294901760
        %v4676 = vsub.f32 %v3922, %v4675
        %v4677 = vand.u32 %v4676, 4294901760
        %v4678 = vsub.f32 %v4676, %v4677
        %v4679 = vand.u32 %v4678, 4294901760
        %4680 = vmatprep.mubr.f32.mxu0 %v4679
        %v4681 = vand.u32 %v3921, 4294901760
        %v4682 = vsub.f32 %v3921, %v4681
        %v4683 = vand.u32 %v4682, 4294901760
        %v4684 = vsub.f32 %v4682, %v4683
        %v4685 = vand.u32 %v4684, 4294901760
        %4686 = vmatmul.mubr.f32.gmra.mrb[0].mxu0 %v4685
        %v4687 = vpop.f32.mrb[0].mxu0
        %v4688 = vadd.f32 0.0, %v4687
        %v4689 = vpop.f32.mrb[0].mxu0
        %v4690 = vadd.f32 0.0, %v4689
        %4691 = vdwg.mxu0
        %v4692 = vand.u32 %v3988, 4294901760
        %v4693 = vsub.f32 %v3988, %v4692
        %v4694 = vand.u32 %v4693, 4294901760
        %v4695 = vsub.f32 %v4693, %v4694
        %v4696 = vand.u32 %v4695, 4294901760
        %4697 = vmatprep.subr.mxu0 %v4696
        %v4698 = vand.u32 %v3987, 4294901760
        %v4699 = vsub.f32 %v3987, %v4698
        %v4700 = vand.u32 %v4699, 4294901760
        %v4701 = vsub.f32 %v4699, %v4700
        %v4702 = vand.u32 %v4701, 4294901760
        %4703 = vmatpush1.msra.mxu0 %v4702
        %v4704 = vand.u32 %v3990, 4294901760
        %v4705 = vsub.f32 %v3990, %v4704
        %v4706 = vand.u32 %v4705, 4294901760
        %v4707 = vsub.f32 %v4705, %v4706
        %v4708 = vand.u32 %v4707, 4294901760
        %4709 = vmatprep.subr.mxu0 %v4708
        %v4710 = vand.u32 %v3989, 4294901760
        %v4711 = vsub.f32 %v3989, %v4710
        %v4712 = vand.u32 %v4711, 4294901760
        %v4713 = vsub.f32 %v4711, %v4712
        %v4714 = vand.u32 %v4713, 4294901760
        %4715 = vmatpush1.msra.mxu0 %v4714
        %v4716 = vand.u32 %v3992, 4294901760
        %v4717 = vsub.f32 %v3992, %v4716
        %v4718 = vand.u32 %v4717, 4294901760
        %v4719 = vsub.f32 %v4717, %v4718
        %v4720 = vand.u32 %v4719, 4294901760
        %4721 = vmatprep.subr.mxu0 %v4720
        %v4722 = vand.u32 %v3991, 4294901760
        %v4723 = vsub.f32 %v3991, %v4722
        %v4724 = vand.u32 %v4723, 4294901760
        %v4725 = vsub.f32 %v4723, %v4724
        %v4726 = vand.u32 %v4725, 4294901760
        %4727 = vmatpush1.msra.mxu0 %v4726
        %v4728 = vand.u32 %v3994, 4294901760
        %v4729 = vsub.f32 %v3994, %v4728
        %v4730 = vand.u32 %v4729, 4294901760
        %v4731 = vsub.f32 %v4729, %v4730
        %v4732 = vand.u32 %v4731, 4294901760
        %4733 = vmatprep.subr.mxu0 %v4732
        %v4734 = vand.u32 %v3993, 4294901760
        %v4735 = vsub.f32 %v3993, %v4734
        %v4736 = vand.u32 %v4735, 4294901760
        %v4737 = vsub.f32 %v4735, %v4736
        %v4738 = vand.u32 %v4737, 4294901760
        %4739 = vmatpush1.msra.mxu0 %v4738
        %v4740 = vand.u32 %v3996, 4294901760
        %v4741 = vsub.f32 %v3996, %v4740
        %v4742 = vand.u32 %v4741, 4294901760
        %v4743 = vsub.f32 %v4741, %v4742
        %v4744 = vand.u32 %v4743, 4294901760
        %4745 = vmatprep.subr.mxu0 %v4744
        %v4746 = vand.u32 %v3995, 4294901760
        %v4747 = vsub.f32 %v3995, %v4746
        %v4748 = vand.u32 %v4747, 4294901760
        %v4749 = vsub.f32 %v4747, %v4748
        %v4750 = vand.u32 %v4749, 4294901760
        %4751 = vmatpush1.msra.mxu0 %v4750
        %v4752 = vand.u32 %v3998, 4294901760
        %v4753 = vsub.f32 %v3998, %v4752
        %v4754 = vand.u32 %v4753, 4294901760
        %v4755 = vsub.f32 %v4753, %v4754
        %v4756 = vand.u32 %v4755, 4294901760
        %4757 = vmatprep.subr.mxu0 %v4756
        %v4758 = vand.u32 %v3997, 4294901760
        %v4759 = vsub.f32 %v3997, %v4758
        %v4760 = vand.u32 %v4759, 4294901760
        %v4761 = vsub.f32 %v4759, %v4760
        %v4762 = vand.u32 %v4761, 4294901760
        %4763 = vmatpush1.msra.mxu0 %v4762
        %v4764 = vand.u32 %v4000, 4294901760
        %v4765 = vsub.f32 %v4000, %v4764
        %v4766 = vand.u32 %v4765, 4294901760
        %v4767 = vsub.f32 %v4765, %v4766
        %v4768 = vand.u32 %v4767, 4294901760
        %4769 = vmatprep.subr.mxu0 %v4768
        %v4770 = vand.u32 %v3999, 4294901760
        %v4771 = vsub.f32 %v3999, %v4770
        %v4772 = vand.u32 %v4771, 4294901760
        %v4773 = vsub.f32 %v4771, %v4772
        %v4774 = vand.u32 %v4773, 4294901760
        %4775 = vmatpush1.msra.mxu0 %v4774
        %v4776 = vand.u32 %v4002, 4294901760
        %v4777 = vsub.f32 %v4002, %v4776
        %v4778 = vand.u32 %v4777, 4294901760
        %v4779 = vsub.f32 %v4777, %v4778
        %v4780 = vand.u32 %v4779, 4294901760
        %4781 = vmatprep.subr.mxu0 %v4780
        %v4782 = vand.u32 %v4001, 4294901760
        %v4783 = vsub.f32 %v4001, %v4782
        %v4784 = vand.u32 %v4783, 4294901760
        %v4785 = vsub.f32 %v4783, %v4784
        %v4786 = vand.u32 %v4785, 4294901760
        %4787 = vmatpush1.msra.mxu0 %v4786
        %v4788 = vand.u32 %v4004, 4294901760
        %v4789 = vsub.f32 %v4004, %v4788
        %v4790 = vand.u32 %v4789, 4294901760
        %v4791 = vsub.f32 %v4789, %v4790
        %v4792 = vand.u32 %v4791, 4294901760
        %4793 = vmatprep.subr.mxu0 %v4792
        %v4794 = vand.u32 %v4003, 4294901760
        %v4795 = vsub.f32 %v4003, %v4794
        %v4796 = vand.u32 %v4795, 4294901760
        %v4797 = vsub.f32 %v4795, %v4796
        %v4798 = vand.u32 %v4797, 4294901760
        %4799 = vmatpush1.msra.mxu0 %v4798
        %v4800 = vand.u32 %v4006, 4294901760
        %v4801 = vsub.f32 %v4006, %v4800
        %v4802 = vand.u32 %v4801, 4294901760
        %v4803 = vsub.f32 %v4801, %v4802
        %v4804 = vand.u32 %v4803, 4294901760
        %4805 = vmatprep.subr.mxu0 %v4804
        %v4806 = vand.u32 %v4005, 4294901760
        %v4807 = vsub.f32 %v4005, %v4806
        %v4808 = vand.u32 %v4807, 4294901760
        %v4809 = vsub.f32 %v4807, %v4808
        %v4810 = vand.u32 %v4809, 4294901760
        %4811 = vmatpush1.msra.mxu0 %v4810
        %v4812 = vand.u32 %v4008, 4294901760
        %v4813 = vsub.f32 %v4008, %v4812
        %v4814 = vand.u32 %v4813, 4294901760
        %v4815 = vsub.f32 %v4813, %v4814
        %v4816 = vand.u32 %v4815, 4294901760
        %4817 = vmatprep.subr.mxu0 %v4816
        %v4818 = vand.u32 %v4007, 4294901760
        %v4819 = vsub.f32 %v4007, %v4818
        %v4820 = vand.u32 %v4819, 4294901760
        %v4821 = vsub.f32 %v4819, %v4820
        %v4822 = vand.u32 %v4821, 4294901760
        %4823 = vmatpush1.msra.mxu0 %v4822
        %v4824 = vand.u32 %v4010, 4294901760
        %v4825 = vsub.f32 %v4010, %v4824
        %v4826 = vand.u32 %v4825, 4294901760
        %v4827 = vsub.f32 %v4825, %v4826
        %v4828 = vand.u32 %v4827, 4294901760
        %4829 = vmatprep.subr.mxu0 %v4828
        %v4830 = vand.u32 %v4009, 4294901760
        %v4831 = vsub.f32 %v4009, %v4830
        %v4832 = vand.u32 %v4831, 4294901760
        %v4833 = vsub.f32 %v4831, %v4832
        %v4834 = vand.u32 %v4833, 4294901760
        %4835 = vmatpush1.msra.mxu0 %v4834
        %v4836 = vand.u32 %v4012, 4294901760
        %v4837 = vsub.f32 %v4012, %v4836
        %v4838 = vand.u32 %v4837, 4294901760
        %v4839 = vsub.f32 %v4837, %v4838
        %v4840 = vand.u32 %v4839, 4294901760
        %4841 = vmatprep.subr.mxu0 %v4840
        %v4842 = vand.u32 %v4011, 4294901760
        %v4843 = vsub.f32 %v4011, %v4842
        %v4844 = vand.u32 %v4843, 4294901760
        %v4845 = vsub.f32 %v4843, %v4844
        %v4846 = vand.u32 %v4845, 4294901760
        %4847 = vmatpush1.msra.mxu0 %v4846
        %v4848 = vand.u32 %v4014, 4294901760
        %v4849 = vsub.f32 %v4014, %v4848
        %v4850 = vand.u32 %v4849, 4294901760
        %v4851 = vsub.f32 %v4849, %v4850
        %v4852 = vand.u32 %v4851, 4294901760
        %4853 = vmatprep.subr.mxu0 %v4852
        %v4854 = vand.u32 %v4013, 4294901760
        %v4855 = vsub.f32 %v4013, %v4854
        %v4856 = vand.u32 %v4855, 4294901760
        %v4857 = vsub.f32 %v4855, %v4856
        %v4858 = vand.u32 %v4857, 4294901760
        %4859 = vmatpush1.msra.mxu0 %v4858
        %v4860 = vand.u32 %v4016, 4294901760
        %v4861 = vsub.f32 %v4016, %v4860
        %v4862 = vand.u32 %v4861, 4294901760
        %v4863 = vsub.f32 %v4861, %v4862
        %v4864 = vand.u32 %v4863, 4294901760
        %4865 = vmatprep.subr.mxu0 %v4864
        %v4866 = vand.u32 %v4015, 4294901760
        %v4867 = vsub.f32 %v4015, %v4866
        %v4868 = vand.u32 %v4867, 4294901760
        %v4869 = vsub.f32 %v4867, %v4868
        %v4870 = vand.u32 %v4869, 4294901760
        %4871 = vmatpush1.msra.mxu0 %v4870
        %v4872 = vand.u32 %v4018, 4294901760
        %v4873 = vsub.f32 %v4018, %v4872
        %v4874 = vand.u32 %v4873, 4294901760
        %v4875 = vsub.f32 %v4873, %v4874
        %v4876 = vand.u32 %v4875, 4294901760
        %4877 = vmatprep.subr.mxu0 %v4876
        %v4878 = vand.u32 %v4017, 4294901760
        %v4879 = vsub.f32 %v4017, %v4878
        %v4880 = vand.u32 %v4879, 4294901760
        %v4881 = vsub.f32 %v4879, %v4880
        %v4882 = vand.u32 %v4881, 4294901760
        %4883 = vmatpush1.msra.mxu0 %v4882
        %v4884 = vand.u32 %v4020, 4294901760
        %v4885 = vsub.f32 %v4020, %v4884
        %v4886 = vand.u32 %v4885, 4294901760
        %v4887 = vsub.f32 %v4885, %v4886
        %v4888 = vand.u32 %v4887, 4294901760
        %4889 = vmatprep.subr.mxu0 %v4888
        %v4890 = vand.u32 %v4019, 4294901760
        %v4891 = vsub.f32 %v4019, %v4890
        %v4892 = vand.u32 %v4891, 4294901760
        %v4893 = vsub.f32 %v4891, %v4892
        %v4894 = vand.u32 %v4893, 4294901760
        %4895 = vmatpush1.msra.mxu0 %v4894
        %v4896 = vand.u32 %v4022, 4294901760
        %v4897 = vsub.f32 %v4022, %v4896
        %v4898 = vand.u32 %v4897, 4294901760
        %v4899 = vsub.f32 %v4897, %v4898
        %v4900 = vand.u32 %v4899, 4294901760
        %4901 = vmatprep.subr.mxu0 %v4900
        %v4902 = vand.u32 %v4021, 4294901760
        %v4903 = vsub.f32 %v4021, %v4902
        %v4904 = vand.u32 %v4903, 4294901760
        %v4905 = vsub.f32 %v4903, %v4904
        %v4906 = vand.u32 %v4905, 4294901760
        %4907 = vmatpush1.msra.mxu0 %v4906
        %v4908 = vand.u32 %v4024, 4294901760
        %v4909 = vsub.f32 %v4024, %v4908
        %v4910 = vand.u32 %v4909, 4294901760
        %v4911 = vsub.f32 %v4909, %v4910
        %v4912 = vand.u32 %v4911, 4294901760
        %4913 = vmatprep.subr.mxu0 %v4912
        %v4914 = vand.u32 %v4023, 4294901760
        %v4915 = vsub.f32 %v4023, %v4914
        %v4916 = vand.u32 %v4915, 4294901760
        %v4917 = vsub.f32 %v4915, %v4916
        %v4918 = vand.u32 %v4917, 4294901760
        %4919 = vmatpush1.msra.mxu0 %v4918
        %v4920 = vand.u32 %v4026, 4294901760
        %v4921 = vsub.f32 %v4026, %v4920
        %v4922 = vand.u32 %v4921, 4294901760
        %v4923 = vsub.f32 %v4921, %v4922
        %v4924 = vand.u32 %v4923, 4294901760
        %4925 = vmatprep.subr.mxu0 %v4924
        %v4926 = vand.u32 %v4025, 4294901760
        %v4927 = vsub.f32 %v4025, %v4926
        %v4928 = vand.u32 %v4927, 4294901760
        %v4929 = vsub.f32 %v4927, %v4928
        %v4930 = vand.u32 %v4929, 4294901760
        %4931 = vmatpush1.msra.mxu0 %v4930
        %v4932 = vand.u32 %v4028, 4294901760
        %v4933 = vsub.f32 %v4028, %v4932
        %v4934 = vand.u32 %v4933, 4294901760
        %v4935 = vsub.f32 %v4933, %v4934
        %v4936 = vand.u32 %v4935, 4294901760
        %4937 = vmatprep.subr.mxu0 %v4936
        %v4938 = vand.u32 %v4027, 4294901760
        %v4939 = vsub.f32 %v4027, %v4938
        %v4940 = vand.u32 %v4939, 4294901760
        %v4941 = vsub.f32 %v4939, %v4940
        %v4942 = vand.u32 %v4941, 4294901760
        %4943 = vmatpush1.msra.mxu0 %v4942
        %v4944 = vand.u32 %v4030, 4294901760
        %v4945 = vsub.f32 %v4030, %v4944
        %v4946 = vand.u32 %v4945, 4294901760
        %v4947 = vsub.f32 %v4945, %v4946
        %v4948 = vand.u32 %v4947, 4294901760
        %4949 = vmatprep.subr.mxu0 %v4948
        %v4950 = vand.u32 %v4029, 4294901760
        %v4951 = vsub.f32 %v4029, %v4950
        %v4952 = vand.u32 %v4951, 4294901760
        %v4953 = vsub.f32 %v4951, %v4952
        %v4954 = vand.u32 %v4953, 4294901760
        %4955 = vmatpush1.msra.mxu0 %v4954
        %v4956 = vand.u32 %v4032, 4294901760
        %v4957 = vsub.f32 %v4032, %v4956
        %v4958 = vand.u32 %v4957, 4294901760
        %v4959 = vsub.f32 %v4957, %v4958
        %v4960 = vand.u32 %v4959, 4294901760
        %4961 = vmatprep.subr.mxu0 %v4960
        %v4962 = vand.u32 %v4031, 4294901760
        %v4963 = vsub.f32 %v4031, %v4962
        %v4964 = vand.u32 %v4963, 4294901760
        %v4965 = vsub.f32 %v4963, %v4964
        %v4966 = vand.u32 %v4965, 4294901760
        %4967 = vmatpush1.msra.mxu0 %v4966
        %v4968 = vand.u32 %v4034, 4294901760
        %v4969 = vsub.f32 %v4034, %v4968
        %v4970 = vand.u32 %v4969, 4294901760
        %v4971 = vsub.f32 %v4969, %v4970
        %v4972 = vand.u32 %v4971, 4294901760
        %4973 = vmatprep.subr.mxu0 %v4972
        %v4974 = vand.u32 %v4033, 4294901760
        %v4975 = vsub.f32 %v4033, %v4974
        %v4976 = vand.u32 %v4975, 4294901760
        %v4977 = vsub.f32 %v4975, %v4976
        %v4978 = vand.u32 %v4977, 4294901760
        %4979 = vmatpush1.msra.mxu0 %v4978
        %v4980 = vand.u32 %v4036, 4294901760
        %v4981 = vsub.f32 %v4036, %v4980
        %v4982 = vand.u32 %v4981, 4294901760
        %v4983 = vsub.f32 %v4981, %v4982
        %v4984 = vand.u32 %v4983, 4294901760
        %4985 = vmatprep.subr.mxu0 %v4984
        %v4986 = vand.u32 %v4035, 4294901760
        %v4987 = vsub.f32 %v4035, %v4986
        %v4988 = vand.u32 %v4987, 4294901760
        %v4989 = vsub.f32 %v4987, %v4988
        %v4990 = vand.u32 %v4989, 4294901760
        %4991 = vmatpush1.msra.mxu0 %v4990
        %v4992 = vand.u32 %v4038, 4294901760
        %v4993 = vsub.f32 %v4038, %v4992
        %v4994 = vand.u32 %v4993, 4294901760
        %v4995 = vsub.f32 %v4993, %v4994
        %v4996 = vand.u32 %v4995, 4294901760
        %4997 = vmatprep.subr.mxu0 %v4996
        %v4998 = vand.u32 %v4037, 4294901760
        %v4999 = vsub.f32 %v4037, %v4998
        %v5000 = vand.u32 %v4999, 4294901760
        %v5001 = vsub.f32 %v4999, %v5000
        %v5002 = vand.u32 %v5001, 4294901760
        %5003 = vmatpush1.msra.mxu0 %v5002
        %v5004 = vand.u32 %v4040, 4294901760
        %v5005 = vsub.f32 %v4040, %v5004
        %v5006 = vand.u32 %v5005, 4294901760
        %v5007 = vsub.f32 %v5005, %v5006
        %v5008 = vand.u32 %v5007, 4294901760
        %5009 = vmatprep.subr.mxu0 %v5008
        %v5010 = vand.u32 %v4039, 4294901760
        %v5011 = vsub.f32 %v4039, %v5010
        %v5012 = vand.u32 %v5011, 4294901760
        %v5013 = vsub.f32 %v5011, %v5012
        %v5014 = vand.u32 %v5013, 4294901760
        %5015 = vmatpush1.msra.mxu0 %v5014
        %v5016 = vand.u32 %v4042, 4294901760
        %v5017 = vsub.f32 %v4042, %v5016
        %v5018 = vand.u32 %v5017, 4294901760
        %v5019 = vsub.f32 %v5017, %v5018
        %v5020 = vand.u32 %v5019, 4294901760
        %5021 = vmatprep.subr.mxu0 %v5020
        %v5022 = vand.u32 %v4041, 4294901760
        %v5023 = vsub.f32 %v4041, %v5022
        %v5024 = vand.u32 %v5023, 4294901760
        %v5025 = vsub.f32 %v5023, %v5024
        %v5026 = vand.u32 %v5025, 4294901760
        %5027 = vmatpush1.msra.mxu0 %v5026
        %v5028 = vand.u32 %v4044, 4294901760
        %v5029 = vsub.f32 %v4044, %v5028
        %v5030 = vand.u32 %v5029, 4294901760
        %v5031 = vsub.f32 %v5029, %v5030
        %v5032 = vand.u32 %v5031, 4294901760
        %5033 = vmatprep.subr.mxu0 %v5032
        %v5034 = vand.u32 %v4043, 4294901760
        %v5035 = vsub.f32 %v4043, %v5034
        %v5036 = vand.u32 %v5035, 4294901760
        %v5037 = vsub.f32 %v5035, %v5036
        %v5038 = vand.u32 %v5037, 4294901760
        %5039 = vmatpush1.msra.mxu0 %v5038
        %v5040 = vand.u32 %v4046, 4294901760
        %v5041 = vsub.f32 %v4046, %v5040
        %v5042 = vand.u32 %v5041, 4294901760
        %v5043 = vsub.f32 %v5041, %v5042
        %v5044 = vand.u32 %v5043, 4294901760
        %5045 = vmatprep.subr.mxu0 %v5044
        %v5046 = vand.u32 %v4045, 4294901760
        %v5047 = vsub.f32 %v4045, %v5046
        %v5048 = vand.u32 %v5047, 4294901760
        %v5049 = vsub.f32 %v5047, %v5048
        %v5050 = vand.u32 %v5049, 4294901760
        %5051 = vmatpush1.msra.mxu0 %v5050
        %v5052 = vand.u32 %v4048, 4294901760
        %v5053 = vsub.f32 %v4048, %v5052
        %v5054 = vand.u32 %v5053, 4294901760
        %v5055 = vsub.f32 %v5053, %v5054
        %v5056 = vand.u32 %v5055, 4294901760
        %5057 = vmatprep.subr.mxu0 %v5056
        %v5058 = vand.u32 %v4047, 4294901760
        %v5059 = vsub.f32 %v4047, %v5058
        %v5060 = vand.u32 %v5059, 4294901760
        %v5061 = vsub.f32 %v5059, %v5060
        %v5062 = vand.u32 %v5061, 4294901760
        %5063 = vmatpush1.msra.mxu0 %v5062
        %v5064 = vand.u32 %v4050, 4294901760
        %v5065 = vsub.f32 %v4050, %v5064
        %v5066 = vand.u32 %v5065, 4294901760
        %v5067 = vsub.f32 %v5065, %v5066
        %v5068 = vand.u32 %v5067, 4294901760
        %5069 = vmatprep.subr.mxu0 %v5068
        %v5070 = vand.u32 %v4049, 4294901760
        %v5071 = vsub.f32 %v4049, %v5070
        %v5072 = vand.u32 %v5071, 4294901760
        %v5073 = vsub.f32 %v5071, %v5072
        %v5074 = vand.u32 %v5073, 4294901760
        %5075 = vmatpush1.msra.mxu0 %v5074
        %v5076 = vand.u32 %v3860, 4294901760
        %5077 = vmatprep.mubr.f32.mxu0 %v5076
        %v5078 = vand.u32 %v3859, 4294901760
        %5079 = vmatmul.mubr.f32.gmra.mrb[0].mxu0 %v5078
        %v5080 = vpop.f32.mrb[0].mxu0
        %v5081 = vadd.f32 %v4192, %v5080
        %v5082 = vpop.f32.mrb[0].mxu0
        %v5083 = vadd.f32 %v4194, %v5082
        %v5084 = vand.u32 %v3862, 4294901760
        %5085 = vmatprep.mubr.f32.mxu0 %v5084
        %v5086 = vand.u32 %v3861, 4294901760
        %5087 = vmatmul.mubr.f32.gmra.mrb[0].mxu0 %v5086
        %v5088 = vpop.f32.mrb[0].mxu0
        %v5089 = vadd.f32 %v4208, %v5088
        %v5090 = vpop.f32.mrb[0].mxu0
        %v5091 = vadd.f32 %v4210, %v5090
        %v5092 = vand.u32 %v3864, 4294901760
        %5093 = vmatprep.mubr.f32.mxu0 %v5092
        %v5094 = vand.u32 %v3863, 4294901760
        %5095 = vmatmul.mubr.f32.gmra.mrb[0].mxu0 %v5094
        %v5096 = vpop.f32.mrb[0].mxu0
        %v5097 = vadd.f32 %v4224, %v5096
        %v5098 = vpop.f32.mrb[0].mxu0
        %v5099 = vadd.f32 %v4226, %v5098
        %v5100 = vand.u32 %v3866, 4294901760
        %5101 = vmatprep.mubr.f32.mxu0 %v5100
        %v5102 = vand.u32 %v3865, 4294901760
        %5103 = vmatmul.mubr.f32.gmra.mrb[0].mxu0 %v5102
        %v5104 = vpop.f32.mrb[0].mxu0
        %v5105 = vadd.f32 %v4240, %v5104
        %v5106 = vpop.f32.mrb[0].mxu0
        %v5107 = vadd.f32 %v4242, %v5106
        %v5108 = vand.u32 %v3868, 4294901760
        %5109 = vmatprep.mubr.f32.mxu0 %v5108
        %v5110 = vand.u32 %v3867, 4294901760
        %5111 = vmatmul.mubr.f32.gmra.mrb[0].mxu0 %v5110
        %v5112 = vpop.f32.mrb[0].mxu0
        %v5113 = vadd.f32 %v4256, %v5112
        %v5114 = vpop.f32.mrb[0].mxu0
        %v5115 = vadd.f32 %v4258, %v5114
        %v5116 = vand.u32 %v3870, 4294901760
        %5117 = vmatprep.mubr.f32.mxu0 %v5116
        %v5118 = vand.u32 %v3869, 4294901760
        %5119 = vmatmul.mubr.f32.gmra.mrb[0].mxu0 %v5118
        %v5120 = vpop.f32.mrb[0].mxu0
        %v5121 = vadd.f32 %v4272, %v5120
        %v5122 = vpop.f32.mrb[0].mxu0
        %v5123 = vadd.f32 %v4274, %v5122
        %v5124 = vand.u32 %v3872, 4294901760
        %5125 = vmatprep.mubr.f32.mxu0 %v5124
        %v5126 = vand.u32 %v3871, 4294901760
        %5127 = vmatmul.mubr.f32.gmra.mrb[0].mxu0 %v5126
        %v5128 = vpop.f32.mrb[0].mxu0
        %v5129 = vadd.f32 %v4288, %v5128
        %v5130 = vpop.f32.mrb[0].mxu0
        %v5131 = vadd.f32 %v4290, %v5130
        %v5132 = vand.u32 %v3874, 4294901760
        %5133 = vmatprep.mubr.f32.mxu0 %v5132
        %v5134 = vand.u32 %v3873, 4294901760
        %5135 = vmatmul.mubr.f32.gmra.mrb[0].mxu0 %v5134
        %v5136 = vpop.f32.mrb[0].mxu0
        %v5137 = vadd.f32 %v4304, %v5136
        %v5138 = vpop.f32.mrb[0].mxu0
        %v5139 = vadd.f32 %v4306, %v5138
        %v5140 = vand.u32 %v3876, 4294901760
        %5141 = vmatprep.mubr.f32.mxu0 %v5140
        %v5142 = vand.u32 %v3875, 4294901760
        %5143 = vmatmul.mubr.f32.gmra.mrb[0].mxu0 %v5142
        %v5144 = vpop.f32.mrb[0].mxu0
        %v5145 = vadd.f32 %v4320, %v5144
        %v5146 = vpop.f32.mrb[0].mxu0
        %v5147 = vadd.f32 %v4322, %v5146
        %v5148 = vand.u32 %v3878, 4294901760
        %5149 = vmatprep.mubr.f32.mxu0 %v5148
        %v5150 = vand.u32 %v3877, 4294901760
        %5151 = vmatmul.mubr.f32.gmra.mrb[0].mxu0 %v5150
        %v5152 = vpop.f32.mrb[0].mxu0
        %v5153 = vadd.f32 %v4336, %v5152
        %v5154 = vpop.f32.mrb[0].mxu0
        %v5155 = vadd.f32 %v4338, %v5154
        %v5156 = vand.u32 %v3880, 4294901760
        %5157 = vmatprep.mubr.f32.mxu0 %v5156
        %v5158 = vand.u32 %v3879, 4294901760
        %5159 = vmatmul.mubr.f32.gmra.mrb[0].mxu0 %v5158
        %v5160 = vpop.f32.mrb[0].mxu0
        %v5161 = vadd.f32 %v4352, %v5160
        %v5162 = vpop.f32.mrb[0].mxu0
        %v5163 = vadd.f32 %v4354, %v5162
        %v5164 = vand.u32 %v3882, 4294901760
        %5165 = vmatprep.mubr.f32.mxu0 %v5164
        %v5166 = vand.u32 %v3881, 4294901760
        %5167 = vmatmul.mubr.f32.gmra.mrb[0].mxu0 %v5166
        %v5168 = vpop.f32.mrb[0].mxu0
        %v5169 = vadd.f32 %v4368, %v5168
        %v5170 = vpop.f32.mrb[0].mxu0
        %v5171 = vadd.f32 %v4370, %v5170
        %v5172 = vand.u32 %v3884, 4294901760
        %5173 = vmatprep.mubr.f32.mxu0 %v5172
        %v5174 = vand.u32 %v3883, 4294901760
        %5175 = vmatmul.mubr.f32.gmra.mrb[0].mxu0 %v5174
        %v5176 = vpop.f32.mrb[0].mxu0
        %v5177 = vadd.f32 %v4384, %v5176
        %v5178 = vpop.f32.mrb[0].mxu0
        %v5179 = vadd.f32 %v4386, %v5178
        %v5180 = vand.u32 %v3886, 4294901760
        %5181 = vmatprep.mubr.f32.mxu0 %v5180
        %v5182 = vand.u32 %v3885, 4294901760
        %5183 = vmatmul.mubr.f32.gmra.mrb[0].mxu0 %v5182
        %v5184 = vpop.f32.mrb[0].mxu0
        %v5185 = vadd.f32 %v4400, %v5184
        %v5186 = vpop.f32.mrb[0].mxu0
        %v5187 = vadd.f32 %v4402, %v5186
        %v5188 = vand.u32 %v3888, 4294901760
        %5189 = vmatprep.mubr.f32.mxu0 %v5188
        %v5190 = vand.u32 %v3887, 4294901760
        %5191 = vmatmul.mubr.f32.gmra.mrb[0].mxu0 %v5190
        %v5192 = vpop.f32.mrb[0].mxu0
        %v5193 = vadd.f32 %v4416, %v5192
        %v5194 = vpop.f32.mrb[0].mxu0
        %v5195 = vadd.f32 %v4418, %v5194
        %v5196 = vand.u32 %v3890, 4294901760
        %5197 = vmatprep.mubr.f32.mxu0 %v5196
        %v5198 = vand.u32 %v3889, 4294901760
        %5199 = vmatmul.mubr.f32.gmra.mrb[0].mxu0 %v5198
        %v5200 = vpop.f32.mrb[0].mxu0
        %v5201 = vadd.f32 %v4432, %v5200
        %v5202 = vpop.f32.mrb[0].mxu0
        %v5203 = vadd.f32 %v4434, %v5202
        %v5204 = vand.u32 %v3892, 4294901760
        %5205 = vmatprep.mubr.f32.mxu0 %v5204
        %v5206 = vand.u32 %v3891, 4294901760
        %5207 = vmatmul.mubr.f32.gmra.mrb[0].mxu0 %v5206
        %v5208 = vpop.f32.mrb[0].mxu0
        %v5209 = vadd.f32 %v4448, %v5208
        %v5210 = vpop.f32.mrb[0].mxu0
        %v5211 = vadd.f32 %v4450, %v5210
        %v5212 = vand.u32 %v3894, 4294901760
        %5213 = vmatprep.mubr.f32.mxu0 %v5212
        %v5214 = vand.u32 %v3893, 4294901760
        %5215 = vmatmul.mubr.f32.gmra.mrb[0].mxu0 %v5214
        %v5216 = vpop.f32.mrb[0].mxu0
        %v5217 = vadd.f32 %v4464, %v5216
        %v5218 = vpop.f32.mrb[0].mxu0
        %v5219 = vadd.f32 %v4466, %v5218
        %v5220 = vand.u32 %v3896, 4294901760
        %5221 = vmatprep.mubr.f32.mxu0 %v5220
        %v5222 = vand.u32 %v3895, 4294901760
        %5223 = vmatmul.mubr.f32.gmra.mrb[0].mxu0 %v5222
        %v5224 = vpop.f32.mrb[0].mxu0
        %v5225 = vadd.f32 %v4480, %v5224
        %v5226 = vpop.f32.mrb[0].mxu0
        %v5227 = vadd.f32 %v4482, %v5226
        %v5228 = vand.u32 %v3898, 4294901760
        %5229 = vmatprep.mubr.f32.mxu0 %v5228
        %v5230 = vand.u32 %v3897, 4294901760
        %5231 = vmatmul.mubr.f32.gmra.mrb[0].mxu0 %v5230
        %v5232 = vpop.f32.mrb[0].mxu0
        %v5233 = vadd.f32 %v4496, %v5232
        %v5234 = vpop.f32.mrb[0].mxu0
        %v5235 = vadd.f32 %v4498, %v5234
        %v5236 = vand.u32 %v3900, 4294901760
        %5237 = vmatprep.mubr.f32.mxu0 %v5236
        %v5238 = vand.u32 %v3899, 4294901760
        %5239 = vmatmul.mubr.f32.gmra.mrb[0].mxu0 %v5238
        %v5240 = vpop.f32.mrb[0].mxu0
        %v5241 = vadd.f32 %v4512, %v5240
        %v5242 = vpop.f32.mrb[0].mxu0
        %v5243 = vadd.f32 %v4514, %v5242
        %v5244 = vand.u32 %v3902, 4294901760
        %5245 = vmatprep.mubr.f32.mxu0 %v5244
        %v5246 = vand.u32 %v3901, 4294901760
        %5247 = vmatmul.mubr.f32.gmra.mrb[0].mxu0 %v5246
        %v5248 = vpop.f32.mrb[0].mxu0
        %v5249 = vadd.f32 %v4528, %v5248
        %v5250 = vpop.f32.mrb[0].mxu0
        %v5251 = vadd.f32 %v4530, %v5250
        %v5252 = vand.u32 %v3904, 4294901760
        %5253 = vmatprep.mubr.f32.mxu0 %v5252
        %v5254 = vand.u32 %v3903, 4294901760
        %5255 = vmatmul.mubr.f32.gmra.mrb[0].mxu0 %v5254
        %v5256 = vpop.f32.mrb[0].mxu0
        %v5257 = vadd.f32 %v4544, %v5256
        %v5258 = vpop.f32.mrb[0].mxu0
        %v5259 = vadd.f32 %v4546, %v5258
        %v5260 = vand.u32 %v3906, 4294901760
        %5261 = vmatprep.mubr.f32.mxu0 %v5260
        %v5262 = vand.u32 %v3905, 4294901760
        %5263 = vmatmul.mubr.f32.gmra.mrb[0].mxu0 %v5262
        %v5264 = vpop.f32.mrb[0].mxu0
        %v5265 = vadd.f32 %v4560, %v5264
        %v5266 = vpop.f32.mrb[0].mxu0
        %v5267 = vadd.f32 %v4562, %v5266
        %v5268 = vand.u32 %v3908, 4294901760
        %5269 = vmatprep.mubr.f32.mxu0 %v5268
        %v5270 = vand.u32 %v3907, 4294901760
        %5271 = vmatmul.mubr.f32.gmra.mrb[0].mxu0 %v5270
        %v5272 = vpop.f32.mrb[0].mxu0
        %v5273 = vadd.f32 %v4576, %v5272
        %v5274 = vpop.f32.mrb[0].mxu0
        %v5275 = vadd.f32 %v4578, %v5274
        %v5276 = vand.u32 %v3910, 4294901760
        %5277 = vmatprep.mubr.f32.mxu0 %v5276
        %v5278 = vand.u32 %v3909, 4294901760
        %5279 = vmatmul.mubr.f32.gmra.mrb[0].mxu0 %v5278
        %v5280 = vpop.f32.mrb[0].mxu0
        %v5281 = vadd.f32 %v4592, %v5280
        %v5282 = vpop.f32.mrb[0].mxu0
        %v5283 = vadd.f32 %v4594, %v5282
        %v5284 = vand.u32 %v3912, 4294901760
        %5285 = vmatprep.mubr.f32.mxu0 %v5284
        %v5286 = vand.u32 %v3911, 4294901760
        %5287 = vmatmul.mubr.f32.gmra.mrb[0].mxu0 %v5286
        %v5288 = vpop.f32.mrb[0].mxu0
        %v5289 = vadd.f32 %v4608, %v5288
        %v5290 = vpop.f32.mrb[0].mxu0
        %v5291 = vadd.f32 %v4610, %v5290
        %v5292 = vand.u32 %v3914, 4294901760
        %5293 = vmatprep.mubr.f32.mxu0 %v5292
        %v5294 = vand.u32 %v3913, 4294901760
        %5295 = vmatmul.mubr.f32.gmra.mrb[0].mxu0 %v5294
        %v5296 = vpop.f32.mrb[0].mxu0
        %v5297 = vadd.f32 %v4624, %v5296
        %v5298 = vpop.f32.mrb[0].mxu0
        %v5299 = vadd.f32 %v4626, %v5298
        %v5300 = vand.u32 %v3916, 4294901760
        %5301 = vmatprep.mubr.f32.mxu0 %v5300
        %v5302 = vand.u32 %v3915, 4294901760
        %5303 = vmatmul.mubr.f32.gmra.mrb[0].mxu0 %v5302
        %v5304 = vpop.f32.mrb[0].mxu0
        %v5305 = vadd.f32 %v4640, %v5304
        %v5306 = vpop.f32.mrb[0].mxu0
        %v5307 = vadd.f32 %v4642, %v5306
        %v5308 = vand.u32 %v3918, 4294901760
        %5309 = vmatprep.mubr.f32.mxu0 %v5308
        %v5310 = vand.u32 %v3917, 4294901760
        %5311 = vmatmul.mubr.f32.gmra.mrb[0].mxu0 %v5310
        %v5312 = vpop.f32.mrb[0].mxu0
        %v5313 = vadd.f32 %v4656, %v5312
        %v5314 = vpop.f32.mrb[0].mxu0
        %v5315 = vadd.f32 %v4658, %v5314
        %v5316 = vand.u32 %v3920, 4294901760
        %5317 = vmatprep.mubr.f32.mxu0 %v5316
        %v5318 = vand.u32 %v3919, 4294901760
        %5319 = vmatmul.mubr.f32.gmra.mrb[0].mxu0 %v5318
        %v5320 = vpop.f32.mrb[0].mxu0
        %v5321 = vadd.f32 %v4672, %v5320
        %v5322 = vpop.f32.mrb[0].mxu0
        %v5323 = vadd.f32 %v4674, %v5322
        %v5324 = vand.u32 %v3922, 4294901760
        %5325 = vmatprep.mubr.f32.mxu0 %v5324
        %v5326 = vand.u32 %v3921, 4294901760
        %5327 = vmatmul.mubr.f32.gmra.mrb[0].mxu0 %v5326
        %v5328 = vpop.f32.mrb[0].mxu0
        %v5329 = vadd.f32 %v4688, %v5328
        %v5330 = vpop.f32.mrb[0].mxu0
        %v5331 = vadd.f32 %v4690, %v5330
        %5332 = vdwg.mxu0
        %v5333 = vand.u32 %v3988, 4294901760
        %v5334 = vsub.f32 %v3988, %v5333
        %5335 = vmatprep.subr.mxu0 %v5334
        %v5336 = vand.u32 %v3987, 4294901760
        %v5337 = vsub.f32 %v3987, %v5336
        %5338 = vmatpush1.msra.mxu0 %v5337
        %v5339 = vand.u32 %v3990, 4294901760
        %v5340 = vsub.f32 %v3990, %v5339
        %5341 = vmatprep.subr.mxu0 %v5340
        %v5342 = vand.u32 %v3989, 4294901760
        %v5343 = vsub.f32 %v3989, %v5342
        %5344 = vmatpush1.msra.mxu0 %v5343
        %v5345 = vand.u32 %v3992, 4294901760
        %v5346 = vsub.f32 %v3992, %v5345
        %5347 = vmatprep.subr.mxu0 %v5346
        %v5348 = vand.u32 %v3991, 4294901760
        %v5349 = vsub.f32 %v3991, %v5348
        %5350 = vmatpush1.msra.mxu0 %v5349
        %v5351 = vand.u32 %v3994, 4294901760
        %v5352 = vsub.f32 %v3994, %v5351
        %5353 = vmatprep.subr.mxu0 %v5352
        %v5354 = vand.u32 %v3993, 4294901760
        %v5355 = vsub.f32 %v3993, %v5354
        %5356 = vmatpush1.msra.mxu0 %v5355
        %v5357 = vand.u32 %v3996, 4294901760
        %v5358 = vsub.f32 %v3996, %v5357
        %5359 = vmatprep.subr.mxu0 %v5358
        %v5360 = vand.u32 %v3995, 4294901760
        %v5361 = vsub.f32 %v3995, %v5360
        %5362 = vmatpush1.msra.mxu0 %v5361
        %v5363 = vand.u32 %v3998, 4294901760
        %v5364 = vsub.f32 %v3998, %v5363
        %5365 = vmatprep.subr.mxu0 %v5364
        %v5366 = vand.u32 %v3997, 4294901760
        %v5367 = vsub.f32 %v3997, %v5366
        %5368 = vmatpush1.msra.mxu0 %v5367
        %v5369 = vand.u32 %v4000, 4294901760
        %v5370 = vsub.f32 %v4000, %v5369
        %5371 = vmatprep.subr.mxu0 %v5370
        %v5372 = vand.u32 %v3999, 4294901760
        %v5373 = vsub.f32 %v3999, %v5372
        %5374 = vmatpush1.msra.mxu0 %v5373
        %v5375 = vand.u32 %v4002, 4294901760
        %v5376 = vsub.f32 %v4002, %v5375
        %5377 = vmatprep.subr.mxu0 %v5376
        %v5378 = vand.u32 %v4001, 4294901760
        %v5379 = vsub.f32 %v4001, %v5378
        %5380 = vmatpush1.msra.mxu0 %v5379
        %v5381 = vand.u32 %v4004, 4294901760
        %v5382 = vsub.f32 %v4004, %v5381
        %5383 = vmatprep.subr.mxu0 %v5382
        %v5384 = vand.u32 %v4003, 4294901760
        %v5385 = vsub.f32 %v4003, %v5384
        %5386 = vmatpush1.msra.mxu0 %v5385
        %v5387 = vand.u32 %v4006, 4294901760
        %v5388 = vsub.f32 %v4006, %v5387
        %5389 = vmatprep.subr.mxu0 %v5388
        %v5390 = vand.u32 %v4005, 4294901760
        %v5391 = vsub.f32 %v4005, %v5390
        %5392 = vmatpush1.msra.mxu0 %v5391
        %v5393 = vand.u32 %v4008, 4294901760
        %v5394 = vsub.f32 %v4008, %v5393
        %5395 = vmatprep.subr.mxu0 %v5394
        %v5396 = vand.u32 %v4007, 4294901760
        %v5397 = vsub.f32 %v4007, %v5396
        %5398 = vmatpush1.msra.mxu0 %v5397
        %v5399 = vand.u32 %v4010, 4294901760
        %v5400 = vsub.f32 %v4010, %v5399
        %5401 = vmatprep.subr.mxu0 %v5400
        %v5402 = vand.u32 %v4009, 4294901760
        %v5403 = vsub.f32 %v4009, %v5402
        %5404 = vmatpush1.msra.mxu0 %v5403
        %v5405 = vand.u32 %v4012, 4294901760
        %v5406 = vsub.f32 %v4012, %v5405
        %5407 = vmatprep.subr.mxu0 %v5406
        %v5408 = vand.u32 %v4011, 4294901760
        %v5409 = vsub.f32 %v4011, %v5408
        %5410 = vmatpush1.msra.mxu0 %v5409
        %v5411 = vand.u32 %v4014, 4294901760
        %v5412 = vsub.f32 %v4014, %v5411
        %5413 = vmatprep.subr.mxu0 %v5412
        %v5414 = vand.u32 %v4013, 4294901760
        %v5415 = vsub.f32 %v4013, %v5414
        %5416 = vmatpush1.msra.mxu0 %v5415
        %v5417 = vand.u32 %v4016, 4294901760
        %v5418 = vsub.f32 %v4016, %v5417
        %5419 = vmatprep.subr.mxu0 %v5418
        %v5420 = vand.u32 %v4015, 4294901760
        %v5421 = vsub.f32 %v4015, %v5420
        %5422 = vmatpush1.msra.mxu0 %v5421
        %v5423 = vand.u32 %v4018, 4294901760
        %v5424 = vsub.f32 %v4018, %v5423
        %5425 = vmatprep.subr.mxu0 %v5424
        %v5426 = vand.u32 %v4017, 4294901760
        %v5427 = vsub.f32 %v4017, %v5426
        %5428 = vmatpush1.msra.mxu0 %v5427
        %v5429 = vand.u32 %v4020, 4294901760
        %v5430 = vsub.f32 %v4020, %v5429
        %5431 = vmatprep.subr.mxu0 %v5430
        %v5432 = vand.u32 %v4019, 4294901760
        %v5433 = vsub.f32 %v4019, %v5432
        %5434 = vmatpush1.msra.mxu0 %v5433
        %v5435 = vand.u32 %v4022, 4294901760
        %v5436 = vsub.f32 %v4022, %v5435
        %5437 = vmatprep.subr.mxu0 %v5436
        %v5438 = vand.u32 %v4021, 4294901760
        %v5439 = vsub.f32 %v4021, %v5438
        %5440 = vmatpush1.msra.mxu0 %v5439
        %v5441 = vand.u32 %v4024, 4294901760
        %v5442 = vsub.f32 %v4024, %v5441
        %5443 = vmatprep.subr.mxu0 %v5442
        %v5444 = vand.u32 %v4023, 4294901760
        %v5445 = vsub.f32 %v4023, %v5444
        %5446 = vmatpush1.msra.mxu0 %v5445
        %v5447 = vand.u32 %v4026, 4294901760
        %v5448 = vsub.f32 %v4026, %v5447
        %5449 = vmatprep.subr.mxu0 %v5448
        %v5450 = vand.u32 %v4025, 4294901760
        %v5451 = vsub.f32 %v4025, %v5450
        %5452 = vmatpush1.msra.mxu0 %v5451
        %v5453 = vand.u32 %v4028, 4294901760
        %v5454 = vsub.f32 %v4028, %v5453
        %5455 = vmatprep.subr.mxu0 %v5454
        %v5456 = vand.u32 %v4027, 4294901760
        %v5457 = vsub.f32 %v4027, %v5456
        %5458 = vmatpush1.msra.mxu0 %v5457
        %v5459 = vand.u32 %v4030, 4294901760
        %v5460 = vsub.f32 %v4030, %v5459
        %5461 = vmatprep.subr.mxu0 %v5460
        %v5462 = vand.u32 %v4029, 4294901760
        %v5463 = vsub.f32 %v4029, %v5462
        %5464 = vmatpush1.msra.mxu0 %v5463
        %v5465 = vand.u32 %v4032, 4294901760
        %v5466 = vsub.f32 %v4032, %v5465
        %5467 = vmatprep.subr.mxu0 %v5466
        %v5468 = vand.u32 %v4031, 4294901760
        %v5469 = vsub.f32 %v4031, %v5468
        %5470 = vmatpush1.msra.mxu0 %v5469
        %v5471 = vand.u32 %v4034, 4294901760
        %v5472 = vsub.f32 %v4034, %v5471
        %5473 = vmatprep.subr.mxu0 %v5472
        %v5474 = vand.u32 %v4033, 4294901760
        %v5475 = vsub.f32 %v4033, %v5474
        %5476 = vmatpush1.msra.mxu0 %v5475
        %v5477 = vand.u32 %v4036, 4294901760
        %v5478 = vsub.f32 %v4036, %v5477
        %5479 = vmatprep.subr.mxu0 %v5478
        %v5480 = vand.u32 %v4035, 4294901760
        %v5481 = vsub.f32 %v4035, %v5480
        %5482 = vmatpush1.msra.mxu0 %v5481
        %v5483 = vand.u32 %v4038, 4294901760
        %v5484 = vsub.f32 %v4038, %v5483
        %5485 = vmatprep.subr.mxu0 %v5484
        %v5486 = vand.u32 %v4037, 4294901760
        %v5487 = vsub.f32 %v4037, %v5486
        %5488 = vmatpush1.msra.mxu0 %v5487
        %v5489 = vand.u32 %v4040, 4294901760
        %v5490 = vsub.f32 %v4040, %v5489
        %5491 = vmatprep.subr.mxu0 %v5490
        %v5492 = vand.u32 %v4039, 4294901760
        %v5493 = vsub.f32 %v4039, %v5492
        %5494 = vmatpush1.msra.mxu0 %v5493
        %v5495 = vand.u32 %v4042, 4294901760
        %v5496 = vsub.f32 %v4042, %v5495
        %5497 = vmatprep.subr.mxu0 %v5496
        %v5498 = vand.u32 %v4041, 4294901760
        %v5499 = vsub.f32 %v4041, %v5498
        %5500 = vmatpush1.msra.mxu0 %v5499
        %v5501 = vand.u32 %v4044, 4294901760
        %v5502 = vsub.f32 %v4044, %v5501
        %5503 = vmatprep.subr.mxu0 %v5502
        %v5504 = vand.u32 %v4043, 4294901760
        %v5505 = vsub.f32 %v4043, %v5504
        %5506 = vmatpush1.msra.mxu0 %v5505
        %v5507 = vand.u32 %v4046, 4294901760
        %v5508 = vsub.f32 %v4046, %v5507
        %5509 = vmatprep.subr.mxu0 %v5508
        %v5510 = vand.u32 %v4045, 4294901760
        %v5511 = vsub.f32 %v4045, %v5510
        %5512 = vmatpush1.msra.mxu0 %v5511
        %v5513 = vand.u32 %v4048, 4294901760
        %v5514 = vsub.f32 %v4048, %v5513
        %5515 = vmatprep.subr.mxu0 %v5514
        %v5516 = vand.u32 %v4047, 4294901760
        %v5517 = vsub.f32 %v4047, %v5516
        %5518 = vmatpush1.msra.mxu0 %v5517
        %v5519 = vand.u32 %v4050, 4294901760
        %v5520 = vsub.f32 %v4050, %v5519
        %5521 = vmatprep.subr.mxu0 %v5520
        %v5522 = vand.u32 %v4049, 4294901760
        %v5523 = vsub.f32 %v4049, %v5522
        %5524 = vmatpush1.msra.mxu0 %v5523
        %v5525 = vand.u32 %v3860, 4294901760
        %v5526 = vsub.f32 %v3860, %v5525
        %5527 = vmatprep.mubr.f32.mxu0 %v5526
        %v5528 = vand.u32 %v3859, 4294901760
        %v5529 = vsub.f32 %v3859, %v5528
        %5530 = vmatmul.mubr.f32.gmra.mrb[0].mxu0 %v5529
        %v5531 = vpop.f32.mrb[0].mxu0
        %v5532 = vadd.f32 %v5081, %v5531
        %v5533 = vpop.f32.mrb[0].mxu0
        %v5534 = vadd.f32 %v5083, %v5533
        %v5535 = vand.u32 %v3862, 4294901760
        %v5536 = vsub.f32 %v3862, %v5535
        %5537 = vmatprep.mubr.f32.mxu0 %v5536
        %v5538 = vand.u32 %v3861, 4294901760
        %v5539 = vsub.f32 %v3861, %v5538
        %5540 = vmatmul.mubr.f32.gmra.mrb[0].mxu0 %v5539
        %v5541 = vpop.f32.mrb[0].mxu0
        %v5542 = vadd.f32 %v5089, %v5541
        %v5543 = vpop.f32.mrb[0].mxu0
        %v5544 = vadd.f32 %v5091, %v5543
        %v5545 = vand.u32 %v3864, 4294901760
        %v5546 = vsub.f32 %v3864, %v5545
        %5547 = vmatprep.mubr.f32.mxu0 %v5546
        %v5548 = vand.u32 %v3863, 4294901760
        %v5549 = vsub.f32 %v3863, %v5548
        %5550 = vmatmul.mubr.f32.gmra.mrb[0].mxu0 %v5549
        %v5551 = vpop.f32.mrb[0].mxu0
        %v5552 = vadd.f32 %v5097, %v5551
        %v5553 = vpop.f32.mrb[0].mxu0
        %v5554 = vadd.f32 %v5099, %v5553
        %v5555 = vand.u32 %v3866, 4294901760
        %v5556 = vsub.f32 %v3866, %v5555
        %5557 = vmatprep.mubr.f32.mxu0 %v5556
        %v5558 = vand.u32 %v3865, 4294901760
        %v5559 = vsub.f32 %v3865, %v5558
        %5560 = vmatmul.mubr.f32.gmra.mrb[0].mxu0 %v5559
        %v5561 = vpop.f32.mrb[0].mxu0
        %v5562 = vadd.f32 %v5105, %v5561
        %v5563 = vpop.f32.mrb[0].mxu0
        %v5564 = vadd.f32 %v5107, %v5563
        %v5565 = vand.u32 %v3868, 4294901760
        %v5566 = vsub.f32 %v3868, %v5565
        %5567 = vmatprep.mubr.f32.mxu0 %v5566
        %v5568 = vand.u32 %v3867, 4294901760
        %v5569 = vsub.f32 %v3867, %v5568
        %5570 = vmatmul.mubr.f32.gmra.mrb[0].mxu0 %v5569
        %v5571 = vpop.f32.mrb[0].mxu0
        %v5572 = vadd.f32 %v5113, %v5571
        %v5573 = vpop.f32.mrb[0].mxu0
        %v5574 = vadd.f32 %v5115, %v5573
        %v5575 = vand.u32 %v3870, 4294901760
        %v5576 = vsub.f32 %v3870, %v5575
        %5577 = vmatprep.mubr.f32.mxu0 %v5576
        %v5578 = vand.u32 %v3869, 4294901760
        %v5579 = vsub.f32 %v3869, %v5578
        %5580 = vmatmul.mubr.f32.gmra.mrb[0].mxu0 %v5579
        %v5581 = vpop.f32.mrb[0].mxu0
        %v5582 = vadd.f32 %v5121, %v5581
        %v5583 = vpop.f32.mrb[0].mxu0
        %v5584 = vadd.f32 %v5123, %v5583
        %v5585 = vand.u32 %v3872, 4294901760
        %v5586 = vsub.f32 %v3872, %v5585
        %5587 = vmatprep.mubr.f32.mxu0 %v5586
        %v5588 = vand.u32 %v3871, 4294901760
        %v5589 = vsub.f32 %v3871, %v5588
        %5590 = vmatmul.mubr.f32.gmra.mrb[0].mxu0 %v5589
        %v5591 = vpop.f32.mrb[0].mxu0
        %v5592 = vadd.f32 %v5129, %v5591
        %v5593 = vpop.f32.mrb[0].mxu0
        %v5594 = vadd.f32 %v5131, %v5593
        %v5595 = vand.u32 %v3874, 4294901760
        %v5596 = vsub.f32 %v3874, %v5595
        %5597 = vmatprep.mubr.f32.mxu0 %v5596
        %v5598 = vand.u32 %v3873, 4294901760
        %v5599 = vsub.f32 %v3873, %v5598
        %5600 = vmatmul.mubr.f32.gmra.mrb[0].mxu0 %v5599
        %v5601 = vpop.f32.mrb[0].mxu0
        %v5602 = vadd.f32 %v5137, %v5601
        %v5603 = vpop.f32.mrb[0].mxu0
        %v5604 = vadd.f32 %v5139, %v5603
        %v5605 = vand.u32 %v3876, 4294901760
        %v5606 = vsub.f32 %v3876, %v5605
        %5607 = vmatprep.mubr.f32.mxu0 %v5606
        %v5608 = vand.u32 %v3875, 4294901760
        %v5609 = vsub.f32 %v3875, %v5608
        %5610 = vmatmul.mubr.f32.gmra.mrb[0].mxu0 %v5609
        %v5611 = vpop.f32.mrb[0].mxu0
        %v5612 = vadd.f32 %v5145, %v5611
        %v5613 = vpop.f32.mrb[0].mxu0
        %v5614 = vadd.f32 %v5147, %v5613
        %v5615 = vand.u32 %v3878, 4294901760
        %v5616 = vsub.f32 %v3878, %v5615
        %5617 = vmatprep.mubr.f32.mxu0 %v5616
        %v5618 = vand.u32 %v3877, 4294901760
        %v5619 = vsub.f32 %v3877, %v5618
        %5620 = vmatmul.mubr.f32.gmra.mrb[0].mxu0 %v5619
        %v5621 = vpop.f32.mrb[0].mxu0
        %v5622 = vadd.f32 %v5153, %v5621
        %v5623 = vpop.f32.mrb[0].mxu0
        %v5624 = vadd.f32 %v5155, %v5623
        %v5625 = vand.u32 %v3880, 4294901760
        %v5626 = vsub.f32 %v3880, %v5625
        %5627 = vmatprep.mubr.f32.mxu0 %v5626
        %v5628 = vand.u32 %v3879, 4294901760
        %v5629 = vsub.f32 %v3879, %v5628
        %5630 = vmatmul.mubr.f32.gmra.mrb[0].mxu0 %v5629
        %v5631 = vpop.f32.mrb[0].mxu0
        %v5632 = vadd.f32 %v5161, %v5631
        %v5633 = vpop.f32.mrb[0].mxu0
        %v5634 = vadd.f32 %v5163, %v5633
        %v5635 = vand.u32 %v3882, 4294901760
        %v5636 = vsub.f32 %v3882, %v5635
        %5637 = vmatprep.mubr.f32.mxu0 %v5636
        %v5638 = vand.u32 %v3881, 4294901760
        %v5639 = vsub.f32 %v3881, %v5638
        %5640 = vmatmul.mubr.f32.gmra.mrb[0].mxu0 %v5639
        %v5641 = vpop.f32.mrb[0].mxu0
        %v5642 = vadd.f32 %v5169, %v5641
        %v5643 = vpop.f32.mrb[0].mxu0
        %v5644 = vadd.f32 %v5171, %v5643
        %v5645 = vand.u32 %v3884, 4294901760
        %v5646 = vsub.f32 %v3884, %v5645
        %5647 = vmatprep.mubr.f32.mxu0 %v5646
        %v5648 = vand.u32 %v3883, 4294901760
        %v5649 = vsub.f32 %v3883, %v5648
        %5650 = vmatmul.mubr.f32.gmra.mrb[0].mxu0 %v5649
        %v5651 = vpop.f32.mrb[0].mxu0
        %v5652 = vadd.f32 %v5177, %v5651
        %v5653 = vpop.f32.mrb[0].mxu0
        %v5654 = vadd.f32 %v5179, %v5653
        %v5655 = vand.u32 %v3886, 4294901760
        %v5656 = vsub.f32 %v3886, %v5655
        %5657 = vmatprep.mubr.f32.mxu0 %v5656
        %v5658 = vand.u32 %v3885, 4294901760
        %v5659 = vsub.f32 %v3885, %v5658
        %5660 = vmatmul.mubr.f32.gmra.mrb[0].mxu0 %v5659
        %v5661 = vpop.f32.mrb[0].mxu0
        %v5662 = vadd.f32 %v5185, %v5661
        %v5663 = vpop.f32.mrb[0].mxu0
        %v5664 = vadd.f32 %v5187, %v5663
        %v5665 = vand.u32 %v3888, 4294901760
        %v5666 = vsub.f32 %v3888, %v5665
        %5667 = vmatprep.mubr.f32.mxu0 %v5666
        %v5668 = vand.u32 %v3887, 4294901760
        %v5669 = vsub.f32 %v3887, %v5668
        %5670 = vmatmul.mubr.f32.gmra.mrb[0].mxu0 %v5669
        %v5671 = vpop.f32.mrb[0].mxu0
        %v5672 = vadd.f32 %v5193, %v5671
        %v5673 = vpop.f32.mrb[0].mxu0
        %v5674 = vadd.f32 %v5195, %v5673
        %v5675 = vand.u32 %v3890, 4294901760
        %v5676 = vsub.f32 %v3890, %v5675
        %5677 = vmatprep.mubr.f32.mxu0 %v5676
        %v5678 = vand.u32 %v3889, 4294901760
        %v5679 = vsub.f32 %v3889, %v5678
        %5680 = vmatmul.mubr.f32.gmra.mrb[0].mxu0 %v5679
        %v5681 = vpop.f32.mrb[0].mxu0
        %v5682 = vadd.f32 %v5201, %v5681
        %v5683 = vpop.f32.mrb[0].mxu0
        %v5684 = vadd.f32 %v5203, %v5683
        %v5685 = vand.u32 %v3892, 4294901760
        %v5686 = vsub.f32 %v3892, %v5685
        %5687 = vmatprep.mubr.f32.mxu0 %v5686
        %v5688 = vand.u32 %v3891, 4294901760
        %v5689 = vsub.f32 %v3891, %v5688
        %5690 = vmatmul.mubr.f32.gmra.mrb[0].mxu0 %v5689
        %v5691 = vpop.f32.mrb[0].mxu0
        %v5692 = vadd.f32 %v5209, %v5691
        %v5693 = vpop.f32.mrb[0].mxu0
        %v5694 = vadd.f32 %v5211, %v5693
        %v5695 = vand.u32 %v3894, 4294901760
        %v5696 = vsub.f32 %v3894, %v5695
        %5697 = vmatprep.mubr.f32.mxu0 %v5696
        %v5698 = vand.u32 %v3893, 4294901760
        %v5699 = vsub.f32 %v3893, %v5698
        %5700 = vmatmul.mubr.f32.gmra.mrb[0].mxu0 %v5699
        %v5701 = vpop.f32.mrb[0].mxu0
        %v5702 = vadd.f32 %v5217, %v5701
        %v5703 = vpop.f32.mrb[0].mxu0
        %v5704 = vadd.f32 %v5219, %v5703
        %v5705 = vand.u32 %v3896, 4294901760
        %v5706 = vsub.f32 %v3896, %v5705
        %5707 = vmatprep.mubr.f32.mxu0 %v5706
        %v5708 = vand.u32 %v3895, 4294901760
        %v5709 = vsub.f32 %v3895, %v5708
        %5710 = vmatmul.mubr.f32.gmra.mrb[0].mxu0 %v5709
        %v5711 = vpop.f32.mrb[0].mxu0
        %v5712 = vadd.f32 %v5225, %v5711
        %v5713 = vpop.f32.mrb[0].mxu0
        %v5714 = vadd.f32 %v5227, %v5713
        %v5715 = vand.u32 %v3898, 4294901760
        %v5716 = vsub.f32 %v3898, %v5715
        %5717 = vmatprep.mubr.f32.mxu0 %v5716
        %v5718 = vand.u32 %v3897, 4294901760
        %v5719 = vsub.f32 %v3897, %v5718
        %5720 = vmatmul.mubr.f32.gmra.mrb[0].mxu0 %v5719
        %v5721 = vpop.f32.mrb[0].mxu0
        %v5722 = vadd.f32 %v5233, %v5721
        %v5723 = vpop.f32.mrb[0].mxu0
        %v5724 = vadd.f32 %v5235, %v5723
        %v5725 = vand.u32 %v3900, 4294901760
        %v5726 = vsub.f32 %v3900, %v5725
        %5727 = vmatprep.mubr.f32.mxu0 %v5726
        %v5728 = vand.u32 %v3899, 4294901760
        %v5729 = vsub.f32 %v3899, %v5728
        %5730 = vmatmul.mubr.f32.gmra.mrb[0].mxu0 %v5729
        %v5731 = vpop.f32.mrb[0].mxu0
        %v5732 = vadd.f32 %v5241, %v5731
        %v5733 = vpop.f32.mrb[0].mxu0
        %v5734 = vadd.f32 %v5243, %v5733
        %v5735 = vand.u32 %v3902, 4294901760
        %v5736 = vsub.f32 %v3902, %v5735
        %5737 = vmatprep.mubr.f32.mxu0 %v5736
        %v5738 = vand.u32 %v3901, 4294901760
        %v5739 = vsub.f32 %v3901, %v5738
        %5740 = vmatmul.mubr.f32.gmra.mrb[0].mxu0 %v5739
        %v5741 = vpop.f32.mrb[0].mxu0
        %v5742 = vadd.f32 %v5249, %v5741
        %v5743 = vpop.f32.mrb[0].mxu0
        %v5744 = vadd.f32 %v5251, %v5743
        %v5745 = vand.u32 %v3904, 4294901760
        %v5746 = vsub.f32 %v3904, %v5745
        %5747 = vmatprep.mubr.f32.mxu0 %v5746
        %v5748 = vand.u32 %v3903, 4294901760
        %v5749 = vsub.f32 %v3903, %v5748
        %5750 = vmatmul.mubr.f32.gmra.mrb[0].mxu0 %v5749
        %v5751 = vpop.f32.mrb[0].mxu0
        %v5752 = vadd.f32 %v5257, %v5751
        %v5753 = vpop.f32.mrb[0].mxu0
        %v5754 = vadd.f32 %v5259, %v5753
        %v5755 = vand.u32 %v3906, 4294901760
        %v5756 = vsub.f32 %v3906, %v5755
        %5757 = vmatprep.mubr.f32.mxu0 %v5756
        %v5758 = vand.u32 %v3905, 4294901760
        %v5759 = vsub.f32 %v3905, %v5758
        %5760 = vmatmul.mubr.f32.gmra.mrb[0].mxu0 %v5759
        %v5761 = vpop.f32.mrb[0].mxu0
        %v5762 = vadd.f32 %v5265, %v5761
        %v5763 = vpop.f32.mrb[0].mxu0
        %v5764 = vadd.f32 %v5267, %v5763
        %v5765 = vand.u32 %v3908, 4294901760
        %v5766 = vsub.f32 %v3908, %v5765
        %5767 = vmatprep.mubr.f32.mxu0 %v5766
        %v5768 = vand.u32 %v3907, 4294901760
        %v5769 = vsub.f32 %v3907, %v5768
        %5770 = vmatmul.mubr.f32.gmra.mrb[0].mxu0 %v5769
        %v5771 = vpop.f32.mrb[0].mxu0
        %v5772 = vadd.f32 %v5273, %v5771
        %v5773 = vpop.f32.mrb[0].mxu0
        %v5774 = vadd.f32 %v5275, %v5773
        %v5775 = vand.u32 %v3910, 4294901760
        %v5776 = vsub.f32 %v3910, %v5775
        %5777 = vmatprep.mubr.f32.mxu0 %v5776
        %v5778 = vand.u32 %v3909, 4294901760
        %v5779 = vsub.f32 %v3909, %v5778
        %5780 = vmatmul.mubr.f32.gmra.mrb[0].mxu0 %v5779
        %v5781 = vpop.f32.mrb[0].mxu0
        %v5782 = vadd.f32 %v5281, %v5781
        %v5783 = vpop.f32.mrb[0].mxu0
        %v5784 = vadd.f32 %v5283, %v5783
        %v5785 = vand.u32 %v3912, 4294901760
        %v5786 = vsub.f32 %v3912, %v5785
        %5787 = vmatprep.mubr.f32.mxu0 %v5786
        %v5788 = vand.u32 %v3911, 4294901760
        %v5789 = vsub.f32 %v3911, %v5788
        %5790 = vmatmul.mubr.f32.gmra.mrb[0].mxu0 %v5789
        %v5791 = vpop.f32.mrb[0].mxu0
        %v5792 = vadd.f32 %v5289, %v5791
        %v5793 = vpop.f32.mrb[0].mxu0
        %v5794 = vadd.f32 %v5291, %v5793
        %v5795 = vand.u32 %v3914, 4294901760
        %v5796 = vsub.f32 %v3914, %v5795
        %5797 = vmatprep.mubr.f32.mxu0 %v5796
        %v5798 = vand.u32 %v3913, 4294901760
        %v5799 = vsub.f32 %v3913, %v5798
        %5800 = vmatmul.mubr.f32.gmra.mrb[0].mxu0 %v5799
        %v5801 = vpop.f32.mrb[0].mxu0
        %v5802 = vadd.f32 %v5297, %v5801
        %v5803 = vpop.f32.mrb[0].mxu0
        %v5804 = vadd.f32 %v5299, %v5803
        %v5805 = vand.u32 %v3916, 4294901760
        %v5806 = vsub.f32 %v3916, %v5805
        %5807 = vmatprep.mubr.f32.mxu0 %v5806
        %v5808 = vand.u32 %v3915, 4294901760
        %v5809 = vsub.f32 %v3915, %v5808
        %5810 = vmatmul.mubr.f32.gmra.mrb[0].mxu0 %v5809
        %v5811 = vpop.f32.mrb[0].mxu0
        %v5812 = vadd.f32 %v5305, %v5811
        %v5813 = vpop.f32.mrb[0].mxu0
        %v5814 = vadd.f32 %v5307, %v5813
        %v5815 = vand.u32 %v3918, 4294901760
        %v5816 = vsub.f32 %v3918, %v5815
        %5817 = vmatprep.mubr.f32.mxu0 %v5816
        %v5818 = vand.u32 %v3917, 4294901760
        %v5819 = vsub.f32 %v3917, %v5818
        %5820 = vmatmul.mubr.f32.gmra.mrb[0].mxu0 %v5819
        %v5821 = vpop.f32.mrb[0].mxu0
        %v5822 = vadd.f32 %v5313, %v5821
        %v5823 = vpop.f32.mrb[0].mxu0
        %v5824 = vadd.f32 %v5315, %v5823
        %v5825 = vand.u32 %v3920, 4294901760
        %v5826 = vsub.f32 %v3920, %v5825
        %5827 = vmatprep.mubr.f32.mxu0 %v5826
        %v5828 = vand.u32 %v3919, 4294901760
        %v5829 = vsub.f32 %v3919, %v5828
        %5830 = vmatmul.mubr.f32.gmra.mrb[0].mxu0 %v5829
        %v5831 = vpop.f32.mrb[0].mxu0
        %v5832 = vadd.f32 %v5321, %v5831
        %v5833 = vpop.f32.mrb[0].mxu0
        %v5834 = vadd.f32 %v5323, %v5833
        %v5835 = vand.u32 %v3922, 4294901760
        %v5836 = vsub.f32 %v3922, %v5835
        %5837 = vmatprep.mubr.f32.mxu0 %v5836
        %v5838 = vand.u32 %v3921, 4294901760
        %v5839 = vsub.f32 %v3921, %v5838
        %5840 = vmatmul.mubr.f32.gmra.mrb[0].mxu0 %v5839
        %v5841 = vpop.f32.mrb[0].mxu0
        %v5842 = vadd.f32 %v5329, %v5841
        %v5843 = vpop.f32.mrb[0].mxu0
        %v5844 = vadd.f32 %v5331, %v5843
        %5845 = vdwg.mxu0
        %v5846 = vand.u32 %v3988, 4294901760
        %5847 = vmatprep.subr.mxu0 %v5846
        %v5848 = vand.u32 %v3987, 4294901760
        %5849 = vmatpush1.msra.mxu0 %v5848
        %v5850 = vand.u32 %v3990, 4294901760
        %5851 = vmatprep.subr.mxu0 %v5850
        %v5852 = vand.u32 %v3989, 4294901760
        %5853 = vmatpush1.msra.mxu0 %v5852
        %v5854 = vand.u32 %v3992, 4294901760
        %5855 = vmatprep.subr.mxu0 %v5854
        %v5856 = vand.u32 %v3991, 4294901760
        %5857 = vmatpush1.msra.mxu0 %v5856
        %v5858 = vand.u32 %v3994, 4294901760
        %5859 = vmatprep.subr.mxu0 %v5858
        %v5860 = vand.u32 %v3993, 4294901760
        %5861 = vmatpush1.msra.mxu0 %v5860
        %v5862 = vand.u32 %v3996, 4294901760
        %5863 = vmatprep.subr.mxu0 %v5862
        %v5864 = vand.u32 %v3995, 4294901760
        %5865 = vmatpush1.msra.mxu0 %v5864
        %v5866 = vand.u32 %v3998, 4294901760
        %5867 = vmatprep.subr.mxu0 %v5866
        %v5868 = vand.u32 %v3997, 4294901760
        %5869 = vmatpush1.msra.mxu0 %v5868
        %v5870 = vand.u32 %v4000, 4294901760
        %5871 = vmatprep.subr.mxu0 %v5870
        %v5872 = vand.u32 %v3999, 4294901760
        %5873 = vmatpush1.msra.mxu0 %v5872
        %v5874 = vand.u32 %v4002, 4294901760
        %5875 = vmatprep.subr.mxu0 %v5874
        %v5876 = vand.u32 %v4001, 4294901760
        %5877 = vmatpush1.msra.mxu0 %v5876
        %v5878 = vand.u32 %v4004, 4294901760
        %5879 = vmatprep.subr.mxu0 %v5878
        %v5880 = vand.u32 %v4003, 4294901760
        %5881 = vmatpush1.msra.mxu0 %v5880
        %v5882 = vand.u32 %v4006, 4294901760
        %5883 = vmatprep.subr.mxu0 %v5882
        %v5884 = vand.u32 %v4005, 4294901760
        %5885 = vmatpush1.msra.mxu0 %v5884
        %v5886 = vand.u32 %v4008, 4294901760
        %5887 = vmatprep.subr.mxu0 %v5886
        %v5888 = vand.u32 %v4007, 4294901760
        %5889 = vmatpush1.msra.mxu0 %v5888
        %v5890 = vand.u32 %v4010, 4294901760
        %5891 = vmatprep.subr.mxu0 %v5890
        %v5892 = vand.u32 %v4009, 4294901760
        %5893 = vmatpush1.msra.mxu0 %v5892
        %v5894 = vand.u32 %v4012, 4294901760
        %5895 = vmatprep.subr.mxu0 %v5894
        %v5896 = vand.u32 %v4011, 4294901760
        %5897 = vmatpush1.msra.mxu0 %v5896
        %v5898 = vand.u32 %v4014, 4294901760
        %5899 = vmatprep.subr.mxu0 %v5898
        %v5900 = vand.u32 %v4013, 4294901760
        %5901 = vmatpush1.msra.mxu0 %v5900
        %v5902 = vand.u32 %v4016, 4294901760
        %5903 = vmatprep.subr.mxu0 %v5902
        %v5904 = vand.u32 %v4015, 4294901760
        %5905 = vmatpush1.msra.mxu0 %v5904
        %v5906 = vand.u32 %v4018, 4294901760
        %5907 = vmatprep.subr.mxu0 %v5906
        %v5908 = vand.u32 %v4017, 4294901760
        %5909 = vmatpush1.msra.mxu0 %v5908
        %v5910 = vand.u32 %v4020, 4294901760
        %5911 = vmatprep.subr.mxu0 %v5910
        %v5912 = vand.u32 %v4019, 4294901760
        %5913 = vmatpush1.msra.mxu0 %v5912
        %v5914 = vand.u32 %v4022, 4294901760
        %5915 = vmatprep.subr.mxu0 %v5914
        %v5916 = vand.u32 %v4021, 4294901760
        %5917 = vmatpush1.msra.mxu0 %v5916
        %v5918 = vand.u32 %v4024, 4294901760
        %5919 = vmatprep.subr.mxu0 %v5918
        %v5920 = vand.u32 %v4023, 4294901760
        %5921 = vmatpush1.msra.mxu0 %v5920
        %v5922 = vand.u32 %v4026, 4294901760
        %5923 = vmatprep.subr.mxu0 %v5922
        %v5924 = vand.u32 %v4025, 4294901760
        %5925 = vmatpush1.msra.mxu0 %v5924
        %v5926 = vand.u32 %v4028, 4294901760
        %5927 = vmatprep.subr.mxu0 %v5926
        %v5928 = vand.u32 %v4027, 4294901760
        %5929 = vmatpush1.msra.mxu0 %v5928
        %v5930 = vand.u32 %v4030, 4294901760
        %5931 = vmatprep.subr.mxu0 %v5930
        %v5932 = vand.u32 %v4029, 4294901760
        %5933 = vmatpush1.msra.mxu0 %v5932
        %v5934 = vand.u32 %v4032, 4294901760
        %5935 = vmatprep.subr.mxu0 %v5934
        %v5936 = vand.u32 %v4031, 4294901760
        %5937 = vmatpush1.msra.mxu0 %v5936
        %v5938 = vand.u32 %v4034, 4294901760
        %5939 = vmatprep.subr.mxu0 %v5938
        %v5940 = vand.u32 %v4033, 4294901760
        %5941 = vmatpush1.msra.mxu0 %v5940
        %v5942 = vand.u32 %v4036, 4294901760
        %5943 = vmatprep.subr.mxu0 %v5942
        %v5944 = vand.u32 %v4035, 4294901760
        %5945 = vmatpush1.msra.mxu0 %v5944
        %v5946 = vand.u32 %v4038, 4294901760
        %5947 = vmatprep.subr.mxu0 %v5946
        %v5948 = vand.u32 %v4037, 4294901760
        %5949 = vmatpush1.msra.mxu0 %v5948
        %v5950 = vand.u32 %v4040, 4294901760
        %5951 = vmatprep.subr.mxu0 %v5950
        %v5952 = vand.u32 %v4039, 4294901760
        %5953 = vmatpush1.msra.mxu0 %v5952
        %v5954 = vand.u32 %v4042, 4294901760
        %5955 = vmatprep.subr.mxu0 %v5954
        %v5956 = vand.u32 %v4041, 4294901760
        %5957 = vmatpush1.msra.mxu0 %v5956
        %v5958 = vand.u32 %v4044, 4294901760
        %5959 = vmatprep.subr.mxu0 %v5958
        %v5960 = vand.u32 %v4043, 4294901760
        %5961 = vmatpush1.msra.mxu0 %v5960
        %v5962 = vand.u32 %v4046, 4294901760
        %5963 = vmatprep.subr.mxu0 %v5962
        %v5964 = vand.u32 %v4045, 4294901760
        %5965 = vmatpush1.msra.mxu0 %v5964
        %v5966 = vand.u32 %v4048, 4294901760
        %5967 = vmatprep.subr.mxu0 %v5966
        %v5968 = vand.u32 %v4047, 4294901760
        %5969 = vmatpush1.msra.mxu0 %v5968
        %v5970 = vand.u32 %v4050, 4294901760
        %5971 = vmatprep.subr.mxu0 %v5970
        %v5972 = vand.u32 %v4049, 4294901760
        %5973 = vmatpush1.msra.mxu0 %v5972
        %v5974 = vand.u32 %v3860, 4294901760
        %v5975 = vsub.f32 %v3860, %v5974
        %v5976 = vand.u32 %v5975, 4294901760
        %5977 = vmatprep.mubr.f32.mxu0 %v5976
        %v5978 = vand.u32 %v3859, 4294901760
        %v5979 = vsub.f32 %v3859, %v5978
        %v5980 = vand.u32 %v5979, 4294901760
        %5981 = vmatmul.mubr.f32.gmra.mrb[0].mxu0 %v5980
        %v5982 = vpop.f32.mrb[0].mxu0
        %v5983 = vadd.f32 %v5532, %v5982
        %v5984 = vpop.f32.mrb[0].mxu0
        %v5985 = vadd.f32 %v5534, %v5984
        %v5986 = vand.u32 %v3862, 4294901760
        %v5987 = vsub.f32 %v3862, %v5986
        %v5988 = vand.u32 %v5987, 4294901760
        %5989 = vmatprep.mubr.f32.mxu0 %v5988
        %v5990 = vand.u32 %v3861, 4294901760
        %v5991 = vsub.f32 %v3861, %v5990
        %v5992 = vand.u32 %v5991, 4294901760
        %5993 = vmatmul.mubr.f32.gmra.mrb[0].mxu0 %v5992
        %v5994 = vpop.f32.mrb[0].mxu0
        %v5995 = vadd.f32 %v5542, %v5994
        %v5996 = vpop.f32.mrb[0].mxu0
        %v5997 = vadd.f32 %v5544, %v5996
        %v5998 = vand.u32 %v3864, 4294901760
        %v5999 = vsub.f32 %v3864, %v5998
        %v6000 = vand.u32 %v5999, 4294901760
        %6001 = vmatprep.mubr.f32.mxu0 %v6000
        %v6002 = vand.u32 %v3863, 4294901760
        %v6003 = vsub.f32 %v3863, %v6002
        %v6004 = vand.u32 %v6003, 4294901760
        %6005 = vmatmul.mubr.f32.gmra.mrb[0].mxu0 %v6004
        %v6006 = vpop.f32.mrb[0].mxu0
        %v6007 = vadd.f32 %v5552, %v6006
        %v6008 = vpop.f32.mrb[0].mxu0
        %v6009 = vadd.f32 %v5554, %v6008
        %v6010 = vand.u32 %v3866, 4294901760
        %v6011 = vsub.f32 %v3866, %v6010
        %v6012 = vand.u32 %v6011, 4294901760
        %6013 = vmatprep.mubr.f32.mxu0 %v6012
        %v6014 = vand.u32 %v3865, 4294901760
        %v6015 = vsub.f32 %v3865, %v6014
        %v6016 = vand.u32 %v6015, 4294901760
        %6017 = vmatmul.mubr.f32.gmra.mrb[0].mxu0 %v6016
        %v6018 = vpop.f32.mrb[0].mxu0
        %v6019 = vadd.f32 %v5562, %v6018
        %v6020 = vpop.f32.mrb[0].mxu0
        %v6021 = vadd.f32 %v5564, %v6020
        %v6022 = vand.u32 %v3868, 4294901760
        %v6023 = vsub.f32 %v3868, %v6022
        %v6024 = vand.u32 %v6023, 4294901760
        %6025 = vmatprep.mubr.f32.mxu0 %v6024
        %v6026 = vand.u32 %v3867, 4294901760
        %v6027 = vsub.f32 %v3867, %v6026
        %v6028 = vand.u32 %v6027, 4294901760
        %6029 = vmatmul.mubr.f32.gmra.mrb[0].mxu0 %v6028
        %v6030 = vpop.f32.mrb[0].mxu0
        %v6031 = vadd.f32 %v5572, %v6030
        %v6032 = vpop.f32.mrb[0].mxu0
        %v6033 = vadd.f32 %v5574, %v6032
        %v6034 = vand.u32 %v3870, 4294901760
        %v6035 = vsub.f32 %v3870, %v6034
        %v6036 = vand.u32 %v6035, 4294901760
        %6037 = vmatprep.mubr.f32.mxu0 %v6036
        %v6038 = vand.u32 %v3869, 4294901760
        %v6039 = vsub.f32 %v3869, %v6038
        %v6040 = vand.u32 %v6039, 4294901760
        %6041 = vmatmul.mubr.f32.gmra.mrb[0].mxu0 %v6040
        %v6042 = vpop.f32.mrb[0].mxu0
        %v6043 = vadd.f32 %v5582, %v6042
        %v6044 = vpop.f32.mrb[0].mxu0
        %v6045 = vadd.f32 %v5584, %v6044
        %v6046 = vand.u32 %v3872, 4294901760
        %v6047 = vsub.f32 %v3872, %v6046
        %v6048 = vand.u32 %v6047, 4294901760
        %6049 = vmatprep.mubr.f32.mxu0 %v6048
        %v6050 = vand.u32 %v3871, 4294901760
        %v6051 = vsub.f32 %v3871, %v6050
        %v6052 = vand.u32 %v6051, 4294901760
        %6053 = vmatmul.mubr.f32.gmra.mrb[0].mxu0 %v6052
        %v6054 = vpop.f32.mrb[0].mxu0
        %v6055 = vadd.f32 %v5592, %v6054
        %v6056 = vpop.f32.mrb[0].mxu0
        %v6057 = vadd.f32 %v5594, %v6056
        %v6058 = vand.u32 %v3874, 4294901760
        %v6059 = vsub.f32 %v3874, %v6058
        %v6060 = vand.u32 %v6059, 4294901760
        %6061 = vmatprep.mubr.f32.mxu0 %v6060
        %v6062 = vand.u32 %v3873, 4294901760
        %v6063 = vsub.f32 %v3873, %v6062
        %v6064 = vand.u32 %v6063, 4294901760
        %6065 = vmatmul.mubr.f32.gmra.mrb[0].mxu0 %v6064
        %v6066 = vpop.f32.mrb[0].mxu0
        %v6067 = vadd.f32 %v5602, %v6066
        %v6068 = vpop.f32.mrb[0].mxu0
        %v6069 = vadd.f32 %v5604, %v6068
        %v6070 = vand.u32 %v3876, 4294901760
        %v6071 = vsub.f32 %v3876, %v6070
        %v6072 = vand.u32 %v6071, 4294901760
        %6073 = vmatprep.mubr.f32.mxu0 %v6072
        %v6074 = vand.u32 %v3875, 4294901760
        %v6075 = vsub.f32 %v3875, %v6074
        %v6076 = vand.u32 %v6075, 4294901760
        %6077 = vmatmul.mubr.f32.gmra.mrb[0].mxu0 %v6076
        %v6078 = vpop.f32.mrb[0].mxu0
        %v6079 = vadd.f32 %v5612, %v6078
        %v6080 = vpop.f32.mrb[0].mxu0
        %v6081 = vadd.f32 %v5614, %v6080
        %v6082 = vand.u32 %v3878, 4294901760
        %v6083 = vsub.f32 %v3878, %v6082
        %v6084 = vand.u32 %v6083, 4294901760
        %6085 = vmatprep.mubr.f32.mxu0 %v6084
        %v6086 = vand.u32 %v3877, 4294901760
        %v6087 = vsub.f32 %v3877, %v6086
        %v6088 = vand.u32 %v6087, 4294901760
        %6089 = vmatmul.mubr.f32.gmra.mrb[0].mxu0 %v6088
        %v6090 = vpop.f32.mrb[0].mxu0
        %v6091 = vadd.f32 %v5622, %v6090
        %v6092 = vpop.f32.mrb[0].mxu0
        %v6093 = vadd.f32 %v5624, %v6092
        %v6094 = vand.u32 %v3880, 4294901760
        %v6095 = vsub.f32 %v3880, %v6094
        %v6096 = vand.u32 %v6095, 4294901760
        %6097 = vmatprep.mubr.f32.mxu0 %v6096
        %v6098 = vand.u32 %v3879, 4294901760
        %v6099 = vsub.f32 %v3879, %v6098
        %v6100 = vand.u32 %v6099, 4294901760
        %6101 = vmatmul.mubr.f32.gmra.mrb[0].mxu0 %v6100
        %v6102 = vpop.f32.mrb[0].mxu0
        %v6103 = vadd.f32 %v5632, %v6102
        %v6104 = vpop.f32.mrb[0].mxu0
        %v6105 = vadd.f32 %v5634, %v6104
        %v6106 = vand.u32 %v3882, 4294901760
        %v6107 = vsub.f32 %v3882, %v6106
        %v6108 = vand.u32 %v6107, 4294901760
        %6109 = vmatprep.mubr.f32.mxu0 %v6108
        %v6110 = vand.u32 %v3881, 4294901760
        %v6111 = vsub.f32 %v3881, %v6110
        %v6112 = vand.u32 %v6111, 4294901760
        %6113 = vmatmul.mubr.f32.gmra.mrb[0].mxu0 %v6112
        %v6114 = vpop.f32.mrb[0].mxu0
        %v6115 = vadd.f32 %v5642, %v6114
        %v6116 = vpop.f32.mrb[0].mxu0
        %v6117 = vadd.f32 %v5644, %v6116
        %v6118 = vand.u32 %v3884, 4294901760
        %v6119 = vsub.f32 %v3884, %v6118
        %v6120 = vand.u32 %v6119, 4294901760
        %6121 = vmatprep.mubr.f32.mxu0 %v6120
        %v6122 = vand.u32 %v3883, 4294901760
        %v6123 = vsub.f32 %v3883, %v6122
        %v6124 = vand.u32 %v6123, 4294901760
        %6125 = vmatmul.mubr.f32.gmra.mrb[0].mxu0 %v6124
        %v6126 = vpop.f32.mrb[0].mxu0
        %v6127 = vadd.f32 %v5652, %v6126
        %v6128 = vpop.f32.mrb[0].mxu0
        %v6129 = vadd.f32 %v5654, %v6128
        %v6130 = vand.u32 %v3886, 4294901760
        %v6131 = vsub.f32 %v3886, %v6130
        %v6132 = vand.u32 %v6131, 4294901760
        %6133 = vmatprep.mubr.f32.mxu0 %v6132
        %v6134 = vand.u32 %v3885, 4294901760
        %v6135 = vsub.f32 %v3885, %v6134
        %v6136 = vand.u32 %v6135, 4294901760
        %6137 = vmatmul.mubr.f32.gmra.mrb[0].mxu0 %v6136
        %v6138 = vpop.f32.mrb[0].mxu0
        %v6139 = vadd.f32 %v5662, %v6138
        %v6140 = vpop.f32.mrb[0].mxu0
        %v6141 = vadd.f32 %v5664, %v6140
        %v6142 = vand.u32 %v3888, 4294901760
        %v6143 = vsub.f32 %v3888, %v6142
        %v6144 = vand.u32 %v6143, 4294901760
        %6145 = vmatprep.mubr.f32.mxu0 %v6144
        %v6146 = vand.u32 %v3887, 4294901760
        %v6147 = vsub.f32 %v3887, %v6146
        %v6148 = vand.u32 %v6147, 4294901760
        %6149 = vmatmul.mubr.f32.gmra.mrb[0].mxu0 %v6148
        %v6150 = vpop.f32.mrb[0].mxu0
        %v6151 = vadd.f32 %v5672, %v6150
        %v6152 = vpop.f32.mrb[0].mxu0
        %v6153 = vadd.f32 %v5674, %v6152
        %v6154 = vand.u32 %v3890, 4294901760
        %v6155 = vsub.f32 %v3890, %v6154
        %v6156 = vand.u32 %v6155, 4294901760
        %6157 = vmatprep.mubr.f32.mxu0 %v6156
        %v6158 = vand.u32 %v3889, 4294901760
        %v6159 = vsub.f32 %v3889, %v6158
        %v6160 = vand.u32 %v6159, 4294901760
        %6161 = vmatmul.mubr.f32.gmra.mrb[0].mxu0 %v6160
        %v6162 = vpop.f32.mrb[0].mxu0
        %v6163 = vadd.f32 %v5682, %v6162
        %v6164 = vpop.f32.mrb[0].mxu0
        %v6165 = vadd.f32 %v5684, %v6164
        %v6166 = vand.u32 %v3892, 4294901760
        %v6167 = vsub.f32 %v3892, %v6166
        %v6168 = vand.u32 %v6167, 4294901760
        %6169 = vmatprep.mubr.f32.mxu0 %v6168
        %v6170 = vand.u32 %v3891, 4294901760
        %v6171 = vsub.f32 %v3891, %v6170
        %v6172 = vand.u32 %v6171, 4294901760
        %6173 = vmatmul.mubr.f32.gmra.mrb[0].mxu0 %v6172
        %v6174 = vpop.f32.mrb[0].mxu0
        %v6175 = vadd.f32 %v5692, %v6174
        %v6176 = vpop.f32.mrb[0].mxu0
        %v6177 = vadd.f32 %v5694, %v6176
        %v6178 = vand.u32 %v3894, 4294901760
        %v6179 = vsub.f32 %v3894, %v6178
        %v6180 = vand.u32 %v6179, 4294901760
        %6181 = vmatprep.mubr.f32.mxu0 %v6180
        %v6182 = vand.u32 %v3893, 4294901760
        %v6183 = vsub.f32 %v3893, %v6182
        %v6184 = vand.u32 %v6183, 4294901760
        %6185 = vmatmul.mubr.f32.gmra.mrb[0].mxu0 %v6184
        %v6186 = vpop.f32.mrb[0].mxu0
        %v6187 = vadd.f32 %v5702, %v6186
        %v6188 = vpop.f32.mrb[0].mxu0
        %v6189 = vadd.f32 %v5704, %v6188
        %v6190 = vand.u32 %v3896, 4294901760
        %v6191 = vsub.f32 %v3896, %v6190
        %v6192 = vand.u32 %v6191, 4294901760
        %6193 = vmatprep.mubr.f32.mxu0 %v6192
        %v6194 = vand.u32 %v3895, 4294901760
        %v6195 = vsub.f32 %v3895, %v6194
        %v6196 = vand.u32 %v6195, 4294901760
        %6197 = vmatmul.mubr.f32.gmra.mrb[0].mxu0 %v6196
        %v6198 = vpop.f32.mrb[0].mxu0
        %v6199 = vadd.f32 %v5712, %v6198
        %v6200 = vpop.f32.mrb[0].mxu0
        %v6201 = vadd.f32 %v5714, %v6200
        %v6202 = vand.u32 %v3898, 4294901760
        %v6203 = vsub.f32 %v3898, %v6202
        %v6204 = vand.u32 %v6203, 4294901760
        %6205 = vmatprep.mubr.f32.mxu0 %v6204
        %v6206 = vand.u32 %v3897, 4294901760
        %v6207 = vsub.f32 %v3897, %v6206
        %v6208 = vand.u32 %v6207, 4294901760
        %6209 = vmatmul.mubr.f32.gmra.mrb[0].mxu0 %v6208
        %v6210 = vpop.f32.mrb[0].mxu0
        %v6211 = vadd.f32 %v5722, %v6210
        %v6212 = vpop.f32.mrb[0].mxu0
        %v6213 = vadd.f32 %v5724, %v6212
        %v6214 = vand.u32 %v3900, 4294901760
        %v6215 = vsub.f32 %v3900, %v6214
        %v6216 = vand.u32 %v6215, 4294901760
        %6217 = vmatprep.mubr.f32.mxu0 %v6216
        %v6218 = vand.u32 %v3899, 4294901760
        %v6219 = vsub.f32 %v3899, %v6218
        %v6220 = vand.u32 %v6219, 4294901760
        %6221 = vmatmul.mubr.f32.gmra.mrb[0].mxu0 %v6220
        %v6222 = vpop.f32.mrb[0].mxu0
        %v6223 = vadd.f32 %v5732, %v6222
        %v6224 = vpop.f32.mrb[0].mxu0
        %v6225 = vadd.f32 %v5734, %v6224
        %v6226 = vand.u32 %v3902, 4294901760
        %v6227 = vsub.f32 %v3902, %v6226
        %v6228 = vand.u32 %v6227, 4294901760
        %6229 = vmatprep.mubr.f32.mxu0 %v6228
        %v6230 = vand.u32 %v3901, 4294901760
        %v6231 = vsub.f32 %v3901, %v6230
        %v6232 = vand.u32 %v6231, 4294901760
        %6233 = vmatmul.mubr.f32.gmra.mrb[0].mxu0 %v6232
        %v6234 = vpop.f32.mrb[0].mxu0
        %v6235 = vadd.f32 %v5742, %v6234
        %v6236 = vpop.f32.mrb[0].mxu0
        %v6237 = vadd.f32 %v5744, %v6236
        %v6238 = vand.u32 %v3904, 4294901760
        %v6239 = vsub.f32 %v3904, %v6238
        %v6240 = vand.u32 %v6239, 4294901760
        %6241 = vmatprep.mubr.f32.mxu0 %v6240
        %v6242 = vand.u32 %v3903, 4294901760
        %v6243 = vsub.f32 %v3903, %v6242
        %v6244 = vand.u32 %v6243, 4294901760
        %6245 = vmatmul.mubr.f32.gmra.mrb[0].mxu0 %v6244
        %v6246 = vpop.f32.mrb[0].mxu0
        %v6247 = vadd.f32 %v5752, %v6246
        %v6248 = vpop.f32.mrb[0].mxu0
        %v6249 = vadd.f32 %v5754, %v6248
        %v6250 = vand.u32 %v3906, 4294901760
        %v6251 = vsub.f32 %v3906, %v6250
        %v6252 = vand.u32 %v6251, 4294901760
        %6253 = vmatprep.mubr.f32.mxu0 %v6252
        %v6254 = vand.u32 %v3905, 4294901760
        %v6255 = vsub.f32 %v3905, %v6254
        %v6256 = vand.u32 %v6255, 4294901760
        %6257 = vmatmul.mubr.f32.gmra.mrb[0].mxu0 %v6256
        %v6258 = vpop.f32.mrb[0].mxu0
        %v6259 = vadd.f32 %v5762, %v6258
        %v6260 = vpop.f32.mrb[0].mxu0
        %v6261 = vadd.f32 %v5764, %v6260
        %v6262 = vand.u32 %v3908, 4294901760
        %v6263 = vsub.f32 %v3908, %v6262
        %v6264 = vand.u32 %v6263, 4294901760
        %6265 = vmatprep.mubr.f32.mxu0 %v6264
        %v6266 = vand.u32 %v3907, 4294901760
        %v6267 = vsub.f32 %v3907, %v6266
        %v6268 = vand.u32 %v6267, 4294901760
        %6269 = vmatmul.mubr.f32.gmra.mrb[0].mxu0 %v6268
        %v6270 = vpop.f32.mrb[0].mxu0
        %v6271 = vadd.f32 %v5772, %v6270
        %v6272 = vpop.f32.mrb[0].mxu0
        %v6273 = vadd.f32 %v5774, %v6272
        %v6274 = vand.u32 %v3910, 4294901760
        %v6275 = vsub.f32 %v3910, %v6274
        %v6276 = vand.u32 %v6275, 4294901760
        %6277 = vmatprep.mubr.f32.mxu0 %v6276
        %v6278 = vand.u32 %v3909, 4294901760
        %v6279 = vsub.f32 %v3909, %v6278
        %v6280 = vand.u32 %v6279, 4294901760
        %6281 = vmatmul.mubr.f32.gmra.mrb[0].mxu0 %v6280
        %v6282 = vpop.f32.mrb[0].mxu0
        %v6283 = vadd.f32 %v5782, %v6282
        %v6284 = vpop.f32.mrb[0].mxu0
        %v6285 = vadd.f32 %v5784, %v6284
        %v6286 = vand.u32 %v3912, 4294901760
        %v6287 = vsub.f32 %v3912, %v6286
        %v6288 = vand.u32 %v6287, 4294901760
        %6289 = vmatprep.mubr.f32.mxu0 %v6288
        %v6290 = vand.u32 %v3911, 4294901760
        %v6291 = vsub.f32 %v3911, %v6290
        %v6292 = vand.u32 %v6291, 4294901760
        %6293 = vmatmul.mubr.f32.gmra.mrb[0].mxu0 %v6292
        %v6294 = vpop.f32.mrb[0].mxu0
        %v6295 = vadd.f32 %v5792, %v6294
        %v6296 = vpop.f32.mrb[0].mxu0
        %v6297 = vadd.f32 %v5794, %v6296
        %v6298 = vand.u32 %v3914, 4294901760
        %v6299 = vsub.f32 %v3914, %v6298
        %v6300 = vand.u32 %v6299, 4294901760
        %6301 = vmatprep.mubr.f32.mxu0 %v6300
        %v6302 = vand.u32 %v3913, 4294901760
        %v6303 = vsub.f32 %v3913, %v6302
        %v6304 = vand.u32 %v6303, 4294901760
        %6305 = vmatmul.mubr.f32.gmra.mrb[0].mxu0 %v6304
        %v6306 = vpop.f32.mrb[0].mxu0
        %v6307 = vadd.f32 %v5802, %v6306
        %v6308 = vpop.f32.mrb[0].mxu0
        %v6309 = vadd.f32 %v5804, %v6308
        %v6310 = vand.u32 %v3916, 4294901760
        %v6311 = vsub.f32 %v3916, %v6310
        %v6312 = vand.u32 %v6311, 4294901760
        %6313 = vmatprep.mubr.f32.mxu0 %v6312
        %v6314 = vand.u32 %v3915, 4294901760
        %v6315 = vsub.f32 %v3915, %v6314
        %v6316 = vand.u32 %v6315, 4294901760
        %6317 = vmatmul.mubr.f32.gmra.mrb[0].mxu0 %v6316
        %v6318 = vpop.f32.mrb[0].mxu0
        %v6319 = vadd.f32 %v5812, %v6318
        %v6320 = vpop.f32.mrb[0].mxu0
        %v6321 = vadd.f32 %v5814, %v6320
        %v6322 = vand.u32 %v3918, 4294901760
        %v6323 = vsub.f32 %v3918, %v6322
        %v6324 = vand.u32 %v6323, 4294901760
        %6325 = vmatprep.mubr.f32.mxu0 %v6324
        %v6326 = vand.u32 %v3917, 4294901760
        %v6327 = vsub.f32 %v3917, %v6326
        %v6328 = vand.u32 %v6327, 4294901760
        %6329 = vmatmul.mubr.f32.gmra.mrb[0].mxu0 %v6328
        %v6330 = vpop.f32.mrb[0].mxu0
        %v6331 = vadd.f32 %v5822, %v6330
        %v6332 = vpop.f32.mrb[0].mxu0
        %v6333 = vadd.f32 %v5824, %v6332
        %v6334 = vand.u32 %v3920, 4294901760
        %v6335 = vsub.f32 %v3920, %v6334
        %v6336 = vand.u32 %v6335, 4294901760
        %6337 = vmatprep.mubr.f32.mxu0 %v6336
        %v6338 = vand.u32 %v3919, 4294901760
        %v6339 = vsub.f32 %v3919, %v6338
        %v6340 = vand.u32 %v6339, 4294901760
        %6341 = vmatmul.mubr.f32.gmra.mrb[0].mxu0 %v6340
        %v6342 = vpop.f32.mrb[0].mxu0
        %v6343 = vadd.f32 %v5832, %v6342
        %v6344 = vpop.f32.mrb[0].mxu0
        %v6345 = vadd.f32 %v5834, %v6344
        %v6346 = vand.u32 %v3922, 4294901760
        %v6347 = vsub.f32 %v3922, %v6346
        %v6348 = vand.u32 %v6347, 4294901760
        %6349 = vmatprep.mubr.f32.mxu0 %v6348
        %v6350 = vand.u32 %v3921, 4294901760
        %v6351 = vsub.f32 %v3921, %v6350
        %v6352 = vand.u32 %v6351, 4294901760
        %6353 = vmatmul.mubr.f32.gmra.mrb[0].mxu0 %v6352
        %v6354 = vpop.f32.mrb[0].mxu0
        %v6355 = vadd.f32 %v5842, %v6354
        %v6356 = vpop.f32.mrb[0].mxu0
        %v6357 = vadd.f32 %v5844, %v6356
        %6358 = vdwg.mxu0
        %v6359 = vand.u32 %v3988, 4294901760
        %v6360 = vsub.f32 %v3988, %v6359
        %v6361 = vand.u32 %v6360, 4294901760
        %6362 = vmatprep.subr.mxu0 %v6361
        %v6363 = vand.u32 %v3987, 4294901760
        %v6364 = vsub.f32 %v3987, %v6363
        %v6365 = vand.u32 %v6364, 4294901760
        %6366 = vmatpush1.msra.mxu0 %v6365
        %v6367 = vand.u32 %v3990, 4294901760
        %v6368 = vsub.f32 %v3990, %v6367
        %v6369 = vand.u32 %v6368, 4294901760
        %6370 = vmatprep.subr.mxu0 %v6369
        %v6371 = vand.u32 %v3989, 4294901760
        %v6372 = vsub.f32 %v3989, %v6371
        %v6373 = vand.u32 %v6372, 4294901760
        %6374 = vmatpush1.msra.mxu0 %v6373
        %v6375 = vand.u32 %v3992, 4294901760
        %v6376 = vsub.f32 %v3992, %v6375
        %v6377 = vand.u32 %v6376, 4294901760
        %6378 = vmatprep.subr.mxu0 %v6377
        %v6379 = vand.u32 %v3991, 4294901760
        %v6380 = vsub.f32 %v3991, %v6379
        %v6381 = vand.u32 %v6380, 4294901760
        %6382 = vmatpush1.msra.mxu0 %v6381
        %v6383 = vand.u32 %v3994, 4294901760
        %v6384 = vsub.f32 %v3994, %v6383
        %v6385 = vand.u32 %v6384, 4294901760
        %6386 = vmatprep.subr.mxu0 %v6385
        %v6387 = vand.u32 %v3993, 4294901760
        %v6388 = vsub.f32 %v3993, %v6387
        %v6389 = vand.u32 %v6388, 4294901760
        %6390 = vmatpush1.msra.mxu0 %v6389
        %v6391 = vand.u32 %v3996, 4294901760
        %v6392 = vsub.f32 %v3996, %v6391
        %v6393 = vand.u32 %v6392, 4294901760
        %6394 = vmatprep.subr.mxu0 %v6393
        %v6395 = vand.u32 %v3995, 4294901760
        %v6396 = vsub.f32 %v3995, %v6395
        %v6397 = vand.u32 %v6396, 4294901760
        %6398 = vmatpush1.msra.mxu0 %v6397
        %v6399 = vand.u32 %v3998, 4294901760
        %v6400 = vsub.f32 %v3998, %v6399
        %v6401 = vand.u32 %v6400, 4294901760
        %6402 = vmatprep.subr.mxu0 %v6401
        %v6403 = vand.u32 %v3997, 4294901760
        %v6404 = vsub.f32 %v3997, %v6403
        %v6405 = vand.u32 %v6404, 4294901760
        %6406 = vmatpush1.msra.mxu0 %v6405
        %v6407 = vand.u32 %v4000, 4294901760
        %v6408 = vsub.f32 %v4000, %v6407
        %v6409 = vand.u32 %v6408, 4294901760
        %6410 = vmatprep.subr.mxu0 %v6409
        %v6411 = vand.u32 %v3999, 4294901760
        %v6412 = vsub.f32 %v3999, %v6411
        %v6413 = vand.u32 %v6412, 4294901760
        %6414 = vmatpush1.msra.mxu0 %v6413
        %v6415 = vand.u32 %v4002, 4294901760
        %v6416 = vsub.f32 %v4002, %v6415
        %v6417 = vand.u32 %v6416, 4294901760
        %6418 = vmatprep.subr.mxu0 %v6417
        %v6419 = vand.u32 %v4001, 4294901760
        %v6420 = vsub.f32 %v4001, %v6419
        %v6421 = vand.u32 %v6420, 4294901760
        %6422 = vmatpush1.msra.mxu0 %v6421
        %v6423 = vand.u32 %v4004, 4294901760
        %v6424 = vsub.f32 %v4004, %v6423
        %v6425 = vand.u32 %v6424, 4294901760
        %6426 = vmatprep.subr.mxu0 %v6425
        %v6427 = vand.u32 %v4003, 4294901760
        %v6428 = vsub.f32 %v4003, %v6427
        %v6429 = vand.u32 %v6428, 4294901760
        %6430 = vmatpush1.msra.mxu0 %v6429
        %v6431 = vand.u32 %v4006, 4294901760
        %v6432 = vsub.f32 %v4006, %v6431
        %v6433 = vand.u32 %v6432, 4294901760
        %6434 = vmatprep.subr.mxu0 %v6433
        %v6435 = vand.u32 %v4005, 4294901760
        %v6436 = vsub.f32 %v4005, %v6435
        %v6437 = vand.u32 %v6436, 4294901760
        %6438 = vmatpush1.msra.mxu0 %v6437
        %v6439 = vand.u32 %v4008, 4294901760
        %v6440 = vsub.f32 %v4008, %v6439
        %v6441 = vand.u32 %v6440, 4294901760
        %6442 = vmatprep.subr.mxu0 %v6441
        %v6443 = vand.u32 %v4007, 4294901760
        %v6444 = vsub.f32 %v4007, %v6443
        %v6445 = vand.u32 %v6444, 4294901760
        %6446 = vmatpush1.msra.mxu0 %v6445
        %v6447 = vand.u32 %v4010, 4294901760
        %v6448 = vsub.f32 %v4010, %v6447
        %v6449 = vand.u32 %v6448, 4294901760
        %6450 = vmatprep.subr.mxu0 %v6449
        %v6451 = vand.u32 %v4009, 4294901760
        %v6452 = vsub.f32 %v4009, %v6451
        %v6453 = vand.u32 %v6452, 4294901760
        %6454 = vmatpush1.msra.mxu0 %v6453
        %v6455 = vand.u32 %v4012, 4294901760
        %v6456 = vsub.f32 %v4012, %v6455
        %v6457 = vand.u32 %v6456, 4294901760
        %6458 = vmatprep.subr.mxu0 %v6457
        %v6459 = vand.u32 %v4011, 4294901760
        %v6460 = vsub.f32 %v4011, %v6459
        %v6461 = vand.u32 %v6460, 4294901760
        %6462 = vmatpush1.msra.mxu0 %v6461
        %v6463 = vand.u32 %v4014, 4294901760
        %v6464 = vsub.f32 %v4014, %v6463
        %v6465 = vand.u32 %v6464, 4294901760
        %6466 = vmatprep.subr.mxu0 %v6465
        %v6467 = vand.u32 %v4013, 4294901760
        %v6468 = vsub.f32 %v4013, %v6467
        %v6469 = vand.u32 %v6468, 4294901760
        %6470 = vmatpush1.msra.mxu0 %v6469
        %v6471 = vand.u32 %v4016, 4294901760
        %v6472 = vsub.f32 %v4016, %v6471
        %v6473 = vand.u32 %v6472, 4294901760
        %6474 = vmatprep.subr.mxu0 %v6473
        %v6475 = vand.u32 %v4015, 4294901760
        %v6476 = vsub.f32 %v4015, %v6475
        %v6477 = vand.u32 %v6476, 4294901760
        %6478 = vmatpush1.msra.mxu0 %v6477
        %v6479 = vand.u32 %v4018, 4294901760
        %v6480 = vsub.f32 %v4018, %v6479
        %v6481 = vand.u32 %v6480, 4294901760
        %6482 = vmatprep.subr.mxu0 %v6481
        %v6483 = vand.u32 %v4017, 4294901760
        %v6484 = vsub.f32 %v4017, %v6483
        %v6485 = vand.u32 %v6484, 4294901760
        %6486 = vmatpush1.msra.mxu0 %v6485
        %v6487 = vand.u32 %v4020, 4294901760
        %v6488 = vsub.f32 %v4020, %v6487
        %v6489 = vand.u32 %v6488, 4294901760
        %6490 = vmatprep.subr.mxu0 %v6489
        %v6491 = vand.u32 %v4019, 4294901760
        %v6492 = vsub.f32 %v4019, %v6491
        %v6493 = vand.u32 %v6492, 4294901760
        %6494 = vmatpush1.msra.mxu0 %v6493
        %v6495 = vand.u32 %v4022, 4294901760
        %v6496 = vsub.f32 %v4022, %v6495
        %v6497 = vand.u32 %v6496, 4294901760
        %6498 = vmatprep.subr.mxu0 %v6497
        %v6499 = vand.u32 %v4021, 4294901760
        %v6500 = vsub.f32 %v4021, %v6499
        %v6501 = vand.u32 %v6500, 4294901760
        %6502 = vmatpush1.msra.mxu0 %v6501
        %v6503 = vand.u32 %v4024, 4294901760
        %v6504 = vsub.f32 %v4024, %v6503
        %v6505 = vand.u32 %v6504, 4294901760
        %6506 = vmatprep.subr.mxu0 %v6505
        %v6507 = vand.u32 %v4023, 4294901760
        %v6508 = vsub.f32 %v4023, %v6507
        %v6509 = vand.u32 %v6508, 4294901760
        %6510 = vmatpush1.msra.mxu0 %v6509
        %v6511 = vand.u32 %v4026, 4294901760
        %v6512 = vsub.f32 %v4026, %v6511
        %v6513 = vand.u32 %v6512, 4294901760
        %6514 = vmatprep.subr.mxu0 %v6513
        %v6515 = vand.u32 %v4025, 4294901760
        %v6516 = vsub.f32 %v4025, %v6515
        %v6517 = vand.u32 %v6516, 4294901760
        %6518 = vmatpush1.msra.mxu0 %v6517
        %v6519 = vand.u32 %v4028, 4294901760
        %v6520 = vsub.f32 %v4028, %v6519
        %v6521 = vand.u32 %v6520, 4294901760
        %6522 = vmatprep.subr.mxu0 %v6521
        %v6523 = vand.u32 %v4027, 4294901760
        %v6524 = vsub.f32 %v4027, %v6523
        %v6525 = vand.u32 %v6524, 4294901760
        %6526 = vmatpush1.msra.mxu0 %v6525
        %v6527 = vand.u32 %v4030, 4294901760
        %v6528 = vsub.f32 %v4030, %v6527
        %v6529 = vand.u32 %v6528, 4294901760
        %6530 = vmatprep.subr.mxu0 %v6529
        %v6531 = vand.u32 %v4029, 4294901760
        %v6532 = vsub.f32 %v4029, %v6531
        %v6533 = vand.u32 %v6532, 4294901760
        %6534 = vmatpush1.msra.mxu0 %v6533
        %v6535 = vand.u32 %v4032, 4294901760
        %v6536 = vsub.f32 %v4032, %v6535
        %v6537 = vand.u32 %v6536, 4294901760
        %6538 = vmatprep.subr.mxu0 %v6537
        %v6539 = vand.u32 %v4031, 4294901760
        %v6540 = vsub.f32 %v4031, %v6539
        %v6541 = vand.u32 %v6540, 4294901760
        %6542 = vmatpush1.msra.mxu0 %v6541
        %v6543 = vand.u32 %v4034, 4294901760
        %v6544 = vsub.f32 %v4034, %v6543
        %v6545 = vand.u32 %v6544, 4294901760
        %6546 = vmatprep.subr.mxu0 %v6545
        %v6547 = vand.u32 %v4033, 4294901760
        %v6548 = vsub.f32 %v4033, %v6547
        %v6549 = vand.u32 %v6548, 4294901760
        %6550 = vmatpush1.msra.mxu0 %v6549
        %v6551 = vand.u32 %v4036, 4294901760
        %v6552 = vsub.f32 %v4036, %v6551
        %v6553 = vand.u32 %v6552, 4294901760
        %6554 = vmatprep.subr.mxu0 %v6553
        %v6555 = vand.u32 %v4035, 4294901760
        %v6556 = vsub.f32 %v4035, %v6555
        %v6557 = vand.u32 %v6556, 4294901760
        %6558 = vmatpush1.msra.mxu0 %v6557
        %v6559 = vand.u32 %v4038, 4294901760
        %v6560 = vsub.f32 %v4038, %v6559
        %v6561 = vand.u32 %v6560, 4294901760
        %6562 = vmatprep.subr.mxu0 %v6561
        %v6563 = vand.u32 %v4037, 4294901760
        %v6564 = vsub.f32 %v4037, %v6563
        %v6565 = vand.u32 %v6564, 4294901760
        %6566 = vmatpush1.msra.mxu0 %v6565
        %v6567 = vand.u32 %v4040, 4294901760
        %v6568 = vsub.f32 %v4040, %v6567
        %v6569 = vand.u32 %v6568, 4294901760
        %6570 = vmatprep.subr.mxu0 %v6569
        %v6571 = vand.u32 %v4039, 4294901760
        %v6572 = vsub.f32 %v4039, %v6571
        %v6573 = vand.u32 %v6572, 4294901760
        %6574 = vmatpush1.msra.mxu0 %v6573
        %v6575 = vand.u32 %v4042, 4294901760
        %v6576 = vsub.f32 %v4042, %v6575
        %v6577 = vand.u32 %v6576, 4294901760
        %6578 = vmatprep.subr.mxu0 %v6577
        %v6579 = vand.u32 %v4041, 4294901760
        %v6580 = vsub.f32 %v4041, %v6579
        %v6581 = vand.u32 %v6580, 4294901760
        %6582 = vmatpush1.msra.mxu0 %v6581
        %v6583 = vand.u32 %v4044, 4294901760
        %v6584 = vsub.f32 %v4044, %v6583
        %v6585 = vand.u32 %v6584, 4294901760
        %6586 = vmatprep.subr.mxu0 %v6585
        %v6587 = vand.u32 %v4043, 4294901760
        %v6588 = vsub.f32 %v4043, %v6587
        %v6589 = vand.u32 %v6588, 4294901760
        %6590 = vmatpush1.msra.mxu0 %v6589
        %v6591 = vand.u32 %v4046, 4294901760
        %v6592 = vsub.f32 %v4046, %v6591
        %v6593 = vand.u32 %v6592, 4294901760
        %6594 = vmatprep.subr.mxu0 %v6593
        %v6595 = vand.u32 %v4045, 4294901760
        %v6596 = vsub.f32 %v4045, %v6595
        %v6597 = vand.u32 %v6596, 4294901760
        %6598 = vmatpush1.msra.mxu0 %v6597
        %v6599 = vand.u32 %v4048, 4294901760
        %v6600 = vsub.f32 %v4048, %v6599
        %v6601 = vand.u32 %v6600, 4294901760
        %6602 = vmatprep.subr.mxu0 %v6601
        %v6603 = vand.u32 %v4047, 4294901760
        %v6604 = vsub.f32 %v4047, %v6603
        %v6605 = vand.u32 %v6604, 4294901760
        %6606 = vmatpush1.msra.mxu0 %v6605
        %v6607 = vand.u32 %v4050, 4294901760
        %v6608 = vsub.f32 %v4050, %v6607
        %v6609 = vand.u32 %v6608, 4294901760
        %6610 = vmatprep.subr.mxu0 %v6609
        %v6611 = vand.u32 %v4049, 4294901760
        %v6612 = vsub.f32 %v4049, %v6611
        %v6613 = vand.u32 %v6612, 4294901760
        %6614 = vmatpush1.msra.mxu0 %v6613
        %v6615 = vand.u32 %v3860, 4294901760
        %6616 = vmatprep.mubr.f32.mxu0 %v6615
        %v6617 = vand.u32 %v3859, 4294901760
        %6618 = vmatmul.mubr.f32.gmra.mrb[0].mxu0 %v6617
        %v6619 = vpop.f32.mrb[0].mxu0
        %v6620 = vadd.f32 %v5983, %v6619
        %v6621 = vpop.f32.mrb[0].mxu0
        %v6622 = vadd.f32 %v5985, %v6621
        %v6623 = vand.u32 %v3862, 4294901760
        %6624 = vmatprep.mubr.f32.mxu0 %v6623
        %v6625 = vand.u32 %v3861, 4294901760
        %6626 = vmatmul.mubr.f32.gmra.mrb[0].mxu0 %v6625
        %v6627 = vpop.f32.mrb[0].mxu0
        %v6628 = vadd.f32 %v5995, %v6627
        %v6629 = vpop.f32.mrb[0].mxu0
        %v6630 = vadd.f32 %v5997, %v6629
        %v6631 = vand.u32 %v3864, 4294901760
        %6632 = vmatprep.mubr.f32.mxu0 %v6631
        %v6633 = vand.u32 %v3863, 4294901760
        %6634 = vmatmul.mubr.f32.gmra.mrb[0].mxu0 %v6633
        %v6635 = vpop.f32.mrb[0].mxu0
        %v6636 = vadd.f32 %v6007, %v6635
        %v6637 = vpop.f32.mrb[0].mxu0
        %v6638 = vadd.f32 %v6009, %v6637
        %v6639 = vand.u32 %v3866, 4294901760
        %6640 = vmatprep.mubr.f32.mxu0 %v6639
        %v6641 = vand.u32 %v3865, 4294901760
        %6642 = vmatmul.mubr.f32.gmra.mrb[0].mxu0 %v6641
        %v6643 = vpop.f32.mrb[0].mxu0
        %v6644 = vadd.f32 %v6019, %v6643
        %v6645 = vpop.f32.mrb[0].mxu0
        %v6646 = vadd.f32 %v6021, %v6645
        %v6647 = vand.u32 %v3868, 4294901760
        %6648 = vmatprep.mubr.f32.mxu0 %v6647
        %v6649 = vand.u32 %v3867, 4294901760
        %6650 = vmatmul.mubr.f32.gmra.mrb[0].mxu0 %v6649
        %v6651 = vpop.f32.mrb[0].mxu0
        %v6652 = vadd.f32 %v6031, %v6651
        %v6653 = vpop.f32.mrb[0].mxu0
        %v6654 = vadd.f32 %v6033, %v6653
        %v6655 = vand.u32 %v3870, 4294901760
        %6656 = vmatprep.mubr.f32.mxu0 %v6655
        %v6657 = vand.u32 %v3869, 4294901760
        %6658 = vmatmul.mubr.f32.gmra.mrb[0].mxu0 %v6657
        %v6659 = vpop.f32.mrb[0].mxu0
        %v6660 = vadd.f32 %v6043, %v6659
        %v6661 = vpop.f32.mrb[0].mxu0
        %v6662 = vadd.f32 %v6045, %v6661
        %v6663 = vand.u32 %v3872, 4294901760
        %6664 = vmatprep.mubr.f32.mxu0 %v6663
        %v6665 = vand.u32 %v3871, 4294901760
        %6666 = vmatmul.mubr.f32.gmra.mrb[0].mxu0 %v6665
        %v6667 = vpop.f32.mrb[0].mxu0
        %v6668 = vadd.f32 %v6055, %v6667
        %v6669 = vpop.f32.mrb[0].mxu0
        %v6670 = vadd.f32 %v6057, %v6669
        %v6671 = vand.u32 %v3874, 4294901760
        %6672 = vmatprep.mubr.f32.mxu0 %v6671
        %v6673 = vand.u32 %v3873, 4294901760
        %6674 = vmatmul.mubr.f32.gmra.mrb[0].mxu0 %v6673
        %v6675 = vpop.f32.mrb[0].mxu0
        %v6676 = vadd.f32 %v6067, %v6675
        %v6677 = vpop.f32.mrb[0].mxu0
        %v6678 = vadd.f32 %v6069, %v6677
        %v6679 = vand.u32 %v3876, 4294901760
        %6680 = vmatprep.mubr.f32.mxu0 %v6679
        %v6681 = vand.u32 %v3875, 4294901760
        %6682 = vmatmul.mubr.f32.gmra.mrb[0].mxu0 %v6681
        %v6683 = vpop.f32.mrb[0].mxu0
        %v6684 = vadd.f32 %v6079, %v6683
        %v6685 = vpop.f32.mrb[0].mxu0
        %v6686 = vadd.f32 %v6081, %v6685
        %v6687 = vand.u32 %v3878, 4294901760
        %6688 = vmatprep.mubr.f32.mxu0 %v6687
        %v6689 = vand.u32 %v3877, 4294901760
        %6690 = vmatmul.mubr.f32.gmra.mrb[0].mxu0 %v6689
        %v6691 = vpop.f32.mrb[0].mxu0
        %v6692 = vadd.f32 %v6091, %v6691
        %v6693 = vpop.f32.mrb[0].mxu0
        %v6694 = vadd.f32 %v6093, %v6693
        %v6695 = vand.u32 %v3880, 4294901760
        %6696 = vmatprep.mubr.f32.mxu0 %v6695
        %v6697 = vand.u32 %v3879, 4294901760
        %6698 = vmatmul.mubr.f32.gmra.mrb[0].mxu0 %v6697
        %v6699 = vpop.f32.mrb[0].mxu0
        %v6700 = vadd.f32 %v6103, %v6699
        %v6701 = vpop.f32.mrb[0].mxu0
        %v6702 = vadd.f32 %v6105, %v6701
        %v6703 = vand.u32 %v3882, 4294901760
        %6704 = vmatprep.mubr.f32.mxu0 %v6703
        %v6705 = vand.u32 %v3881, 4294901760
        %6706 = vmatmul.mubr.f32.gmra.mrb[0].mxu0 %v6705
        %v6707 = vpop.f32.mrb[0].mxu0
        %v6708 = vadd.f32 %v6115, %v6707
        %v6709 = vpop.f32.mrb[0].mxu0
        %v6710 = vadd.f32 %v6117, %v6709
        %v6711 = vand.u32 %v3884, 4294901760
        %6712 = vmatprep.mubr.f32.mxu0 %v6711
        %v6713 = vand.u32 %v3883, 4294901760
        %6714 = vmatmul.mubr.f32.gmra.mrb[0].mxu0 %v6713
        %v6715 = vpop.f32.mrb[0].mxu0
        %v6716 = vadd.f32 %v6127, %v6715
        %v6717 = vpop.f32.mrb[0].mxu0
        %v6718 = vadd.f32 %v6129, %v6717
        %v6719 = vand.u32 %v3886, 4294901760
        %6720 = vmatprep.mubr.f32.mxu0 %v6719
        %v6721 = vand.u32 %v3885, 4294901760
        %6722 = vmatmul.mubr.f32.gmra.mrb[0].mxu0 %v6721
        %v6723 = vpop.f32.mrb[0].mxu0
        %v6724 = vadd.f32 %v6139, %v6723
        %v6725 = vpop.f32.mrb[0].mxu0
        %v6726 = vadd.f32 %v6141, %v6725
        %v6727 = vand.u32 %v3888, 4294901760
        %6728 = vmatprep.mubr.f32.mxu0 %v6727
        %v6729 = vand.u32 %v3887, 4294901760
        %6730 = vmatmul.mubr.f32.gmra.mrb[0].mxu0 %v6729
        %v6731 = vpop.f32.mrb[0].mxu0
        %v6732 = vadd.f32 %v6151, %v6731
        %v6733 = vpop.f32.mrb[0].mxu0
        %v6734 = vadd.f32 %v6153, %v6733
        %v6735 = vand.u32 %v3890, 4294901760
        %6736 = vmatprep.mubr.f32.mxu0 %v6735
        %v6737 = vand.u32 %v3889, 4294901760
        %6738 = vmatmul.mubr.f32.gmra.mrb[0].mxu0 %v6737
        %v6739 = vpop.f32.mrb[0].mxu0
        %v6740 = vadd.f32 %v6163, %v6739
        %v6741 = vpop.f32.mrb[0].mxu0
        %v6742 = vadd.f32 %v6165, %v6741
        %v6743 = vand.u32 %v3892, 4294901760
        %6744 = vmatprep.mubr.f32.mxu0 %v6743
        %v6745 = vand.u32 %v3891, 4294901760
        %6746 = vmatmul.mubr.f32.gmra.mrb[0].mxu0 %v6745
        %v6747 = vpop.f32.mrb[0].mxu0
        %v6748 = vadd.f32 %v6175, %v6747
        %v6749 = vpop.f32.mrb[0].mxu0
        %v6750 = vadd.f32 %v6177, %v6749
        %v6751 = vand.u32 %v3894, 4294901760
        %6752 = vmatprep.mubr.f32.mxu0 %v6751
        %v6753 = vand.u32 %v3893, 4294901760
        %6754 = vmatmul.mubr.f32.gmra.mrb[0].mxu0 %v6753
        %v6755 = vpop.f32.mrb[0].mxu0
        %v6756 = vadd.f32 %v6187, %v6755
        %v6757 = vpop.f32.mrb[0].mxu0
        %v6758 = vadd.f32 %v6189, %v6757
        %v6759 = vand.u32 %v3896, 4294901760
        %6760 = vmatprep.mubr.f32.mxu0 %v6759
        %v6761 = vand.u32 %v3895, 4294901760
        %6762 = vmatmul.mubr.f32.gmra.mrb[0].mxu0 %v6761
        %v6763 = vpop.f32.mrb[0].mxu0
        %v6764 = vadd.f32 %v6199, %v6763
        %v6765 = vpop.f32.mrb[0].mxu0
        %v6766 = vadd.f32 %v6201, %v6765
        %v6767 = vand.u32 %v3898, 4294901760
        %6768 = vmatprep.mubr.f32.mxu0 %v6767
        %v6769 = vand.u32 %v3897, 4294901760
        %6770 = vmatmul.mubr.f32.gmra.mrb[0].mxu0 %v6769
        %v6771 = vpop.f32.mrb[0].mxu0
        %v6772 = vadd.f32 %v6211, %v6771
        %v6773 = vpop.f32.mrb[0].mxu0
        %v6774 = vadd.f32 %v6213, %v6773
        %v6775 = vand.u32 %v3900, 4294901760
        %6776 = vmatprep.mubr.f32.mxu0 %v6775
        %v6777 = vand.u32 %v3899, 4294901760
        %6778 = vmatmul.mubr.f32.gmra.mrb[0].mxu0 %v6777
        %v6779 = vpop.f32.mrb[0].mxu0
        %v6780 = vadd.f32 %v6223, %v6779
        %v6781 = vpop.f32.mrb[0].mxu0
        %v6782 = vadd.f32 %v6225, %v6781
        %v6783 = vand.u32 %v3902, 4294901760
        %6784 = vmatprep.mubr.f32.mxu0 %v6783
        %v6785 = vand.u32 %v3901, 4294901760
        %6786 = vmatmul.mubr.f32.gmra.mrb[0].mxu0 %v6785
        %v6787 = vpop.f32.mrb[0].mxu0
        %v6788 = vadd.f32 %v6235, %v6787
        %v6789 = vpop.f32.mrb[0].mxu0
        %v6790 = vadd.f32 %v6237, %v6789
        %v6791 = vand.u32 %v3904, 4294901760
        %6792 = vmatprep.mubr.f32.mxu0 %v6791
        %v6793 = vand.u32 %v3903, 4294901760
        %6794 = vmatmul.mubr.f32.gmra.mrb[0].mxu0 %v6793
        %v6795 = vpop.f32.mrb[0].mxu0
        %v6796 = vadd.f32 %v6247, %v6795
        %v6797 = vpop.f32.mrb[0].mxu0
        %v6798 = vadd.f32 %v6249, %v6797
        %v6799 = vand.u32 %v3906, 4294901760
        %6800 = vmatprep.mubr.f32.mxu0 %v6799
        %v6801 = vand.u32 %v3905, 4294901760
        %6802 = vmatmul.mubr.f32.gmra.mrb[0].mxu0 %v6801
        %v6803 = vpop.f32.mrb[0].mxu0
        %v6804 = vadd.f32 %v6259, %v6803
        %v6805 = vpop.f32.mrb[0].mxu0
        %v6806 = vadd.f32 %v6261, %v6805
        %v6807 = vand.u32 %v3908, 4294901760
        %6808 = vmatprep.mubr.f32.mxu0 %v6807
        %v6809 = vand.u32 %v3907, 4294901760
        %6810 = vmatmul.mubr.f32.gmra.mrb[0].mxu0 %v6809
        %v6811 = vpop.f32.mrb[0].mxu0
        %v6812 = vadd.f32 %v6271, %v6811
        %v6813 = vpop.f32.mrb[0].mxu0
        %v6814 = vadd.f32 %v6273, %v6813
        %v6815 = vand.u32 %v3910, 4294901760
        %6816 = vmatprep.mubr.f32.mxu0 %v6815
        %v6817 = vand.u32 %v3909, 4294901760
        %6818 = vmatmul.mubr.f32.gmra.mrb[0].mxu0 %v6817
        %v6819 = vpop.f32.mrb[0].mxu0
        %v6820 = vadd.f32 %v6283, %v6819
        %v6821 = vpop.f32.mrb[0].mxu0
        %v6822 = vadd.f32 %v6285, %v6821
        %v6823 = vand.u32 %v3912, 4294901760
        %6824 = vmatprep.mubr.f32.mxu0 %v6823
        %v6825 = vand.u32 %v3911, 4294901760
        %6826 = vmatmul.mubr.f32.gmra.mrb[0].mxu0 %v6825
        %v6827 = vpop.f32.mrb[0].mxu0
        %v6828 = vadd.f32 %v6295, %v6827
        %v6829 = vpop.f32.mrb[0].mxu0
        %v6830 = vadd.f32 %v6297, %v6829
        %v6831 = vand.u32 %v3914, 4294901760
        %6832 = vmatprep.mubr.f32.mxu0 %v6831
        %v6833 = vand.u32 %v3913, 4294901760
        %6834 = vmatmul.mubr.f32.gmra.mrb[0].mxu0 %v6833
        %v6835 = vpop.f32.mrb[0].mxu0
        %v6836 = vadd.f32 %v6307, %v6835
        %v6837 = vpop.f32.mrb[0].mxu0
        %v6838 = vadd.f32 %v6309, %v6837
        %v6839 = vand.u32 %v3916, 4294901760
        %6840 = vmatprep.mubr.f32.mxu0 %v6839
        %v6841 = vand.u32 %v3915, 4294901760
        %6842 = vmatmul.mubr.f32.gmra.mrb[0].mxu0 %v6841
        %v6843 = vpop.f32.mrb[0].mxu0
        %v6844 = vadd.f32 %v6319, %v6843
        %v6845 = vpop.f32.mrb[0].mxu0
        %v6846 = vadd.f32 %v6321, %v6845
        %v6847 = vand.u32 %v3918, 4294901760
        %6848 = vmatprep.mubr.f32.mxu0 %v6847
        %v6849 = vand.u32 %v3917, 4294901760
        %6850 = vmatmul.mubr.f32.gmra.mrb[0].mxu0 %v6849
        %v6851 = vpop.f32.mrb[0].mxu0
        %v6852 = vadd.f32 %v6331, %v6851
        %v6853 = vpop.f32.mrb[0].mxu0
        %v6854 = vadd.f32 %v6333, %v6853
        %v6855 = vand.u32 %v3920, 4294901760
        %6856 = vmatprep.mubr.f32.mxu0 %v6855
        %v6857 = vand.u32 %v3919, 4294901760
        %6858 = vmatmul.mubr.f32.gmra.mrb[0].mxu0 %v6857
        %v6859 = vpop.f32.mrb[0].mxu0
        %v6860 = vadd.f32 %v6343, %v6859
        %v6861 = vpop.f32.mrb[0].mxu0
        %v6862 = vadd.f32 %v6345, %v6861
        %v6863 = vand.u32 %v3922, 4294901760
        %6864 = vmatprep.mubr.f32.mxu0 %v6863
        %v6865 = vand.u32 %v3921, 4294901760
        %6866 = vmatmul.mubr.f32.gmra.mrb[0].mxu0 %v6865
        %v6867 = vpop.f32.mrb[0].mxu0
        %v6868 = vadd.f32 %v6355, %v6867
        %v6869 = vpop.f32.mrb[0].mxu0
        %v6870 = vadd.f32 %v6357, %v6869
        %6871 = vdwg.mxu0
        %v6872 = vand.u32 %v3988, 4294901760
        %6873 = vmatprep.subr.mxu0 %v6872
        %v6874 = vand.u32 %v3987, 4294901760
        %6875 = vmatpush1.msra.mxu0 %v6874
        %v6876 = vand.u32 %v3990, 4294901760
        %6877 = vmatprep.subr.mxu0 %v6876
        %v6878 = vand.u32 %v3989, 4294901760
        %6879 = vmatpush1.msra.mxu0 %v6878
        %v6880 = vand.u32 %v3992, 4294901760
        %6881 = vmatprep.subr.mxu0 %v6880
        %v6882 = vand.u32 %v3991, 4294901760
        %6883 = vmatpush1.msra.mxu0 %v6882
        %v6884 = vand.u32 %v3994, 4294901760
        %6885 = vmatprep.subr.mxu0 %v6884
        %v6886 = vand.u32 %v3993, 4294901760
        %6887 = vmatpush1.msra.mxu0 %v6886
        %v6888 = vand.u32 %v3996, 4294901760
        %6889 = vmatprep.subr.mxu0 %v6888
        %v6890 = vand.u32 %v3995, 4294901760
        %6891 = vmatpush1.msra.mxu0 %v6890
        %v6892 = vand.u32 %v3998, 4294901760
        %6893 = vmatprep.subr.mxu0 %v6892
        %v6894 = vand.u32 %v3997, 4294901760
        %6895 = vmatpush1.msra.mxu0 %v6894
        %v6896 = vand.u32 %v4000, 4294901760
        %6897 = vmatprep.subr.mxu0 %v6896
        %v6898 = vand.u32 %v3999, 4294901760
        %6899 = vmatpush1.msra.mxu0 %v6898
        %v6900 = vand.u32 %v4002, 4294901760
        %6901 = vmatprep.subr.mxu0 %v6900
        %v6902 = vand.u32 %v4001, 4294901760
        %6903 = vmatpush1.msra.mxu0 %v6902
        %v6904 = vand.u32 %v4004, 4294901760
        %6905 = vmatprep.subr.mxu0 %v6904
        %v6906 = vand.u32 %v4003, 4294901760
        %6907 = vmatpush1.msra.mxu0 %v6906
        %v6908 = vand.u32 %v4006, 4294901760
        %6909 = vmatprep.subr.mxu0 %v6908
        %v6910 = vand.u32 %v4005, 4294901760
        %6911 = vmatpush1.msra.mxu0 %v6910
        %v6912 = vand.u32 %v4008, 4294901760
        %6913 = vmatprep.subr.mxu0 %v6912
        %v6914 = vand.u32 %v4007, 4294901760
        %6915 = vmatpush1.msra.mxu0 %v6914
        %v6916 = vand.u32 %v4010, 4294901760
        %6917 = vmatprep.subr.mxu0 %v6916
        %v6918 = vand.u32 %v4009, 4294901760
        %6919 = vmatpush1.msra.mxu0 %v6918
        %v6920 = vand.u32 %v4012, 4294901760
        %6921 = vmatprep.subr.mxu0 %v6920
        %v6922 = vand.u32 %v4011, 4294901760
        %6923 = vmatpush1.msra.mxu0 %v6922
        %v6924 = vand.u32 %v4014, 4294901760
        %6925 = vmatprep.subr.mxu0 %v6924
        %v6926 = vand.u32 %v4013, 4294901760
        %6927 = vmatpush1.msra.mxu0 %v6926
        %v6928 = vand.u32 %v4016, 4294901760
        %6929 = vmatprep.subr.mxu0 %v6928
        %v6930 = vand.u32 %v4015, 4294901760
        %6931 = vmatpush1.msra.mxu0 %v6930
        %v6932 = vand.u32 %v4018, 4294901760
        %6933 = vmatprep.subr.mxu0 %v6932
        %v6934 = vand.u32 %v4017, 4294901760
        %6935 = vmatpush1.msra.mxu0 %v6934
        %v6936 = vand.u32 %v4020, 4294901760
        %6937 = vmatprep.subr.mxu0 %v6936
        %v6938 = vand.u32 %v4019, 4294901760
        %6939 = vmatpush1.msra.mxu0 %v6938
        %v6940 = vand.u32 %v4022, 4294901760
        %6941 = vmatprep.subr.mxu0 %v6940
        %v6942 = vand.u32 %v4021, 4294901760
        %6943 = vmatpush1.msra.mxu0 %v6942
        %v6944 = vand.u32 %v4024, 4294901760
        %6945 = vmatprep.subr.mxu0 %v6944
        %v6946 = vand.u32 %v4023, 4294901760
        %6947 = vmatpush1.msra.mxu0 %v6946
        %v6948 = vand.u32 %v4026, 4294901760
        %6949 = vmatprep.subr.mxu0 %v6948
        %v6950 = vand.u32 %v4025, 4294901760
        %6951 = vmatpush1.msra.mxu0 %v6950
        %v6952 = vand.u32 %v4028, 4294901760
        %6953 = vmatprep.subr.mxu0 %v6952
        %v6954 = vand.u32 %v4027, 4294901760
        %6955 = vmatpush1.msra.mxu0 %v6954
        %v6956 = vand.u32 %v4030, 4294901760
        %6957 = vmatprep.subr.mxu0 %v6956
        %v6958 = vand.u32 %v4029, 4294901760
        %6959 = vmatpush1.msra.mxu0 %v6958
        %v6960 = vand.u32 %v4032, 4294901760
        %6961 = vmatprep.subr.mxu0 %v6960
        %v6962 = vand.u32 %v4031, 4294901760
        %6963 = vmatpush1.msra.mxu0 %v6962
        %v6964 = vand.u32 %v4034, 4294901760
        %6965 = vmatprep.subr.mxu0 %v6964
        %v6966 = vand.u32 %v4033, 4294901760
        %6967 = vmatpush1.msra.mxu0 %v6966
        %v6968 = vand.u32 %v4036, 4294901760
        %6969 = vmatprep.subr.mxu0 %v6968
        %v6970 = vand.u32 %v4035, 4294901760
        %6971 = vmatpush1.msra.mxu0 %v6970
        %v6972 = vand.u32 %v4038, 4294901760
        %6973 = vmatprep.subr.mxu0 %v6972
        %v6974 = vand.u32 %v4037, 4294901760
        %6975 = vmatpush1.msra.mxu0 %v6974
        %v6976 = vand.u32 %v4040, 4294901760
        %6977 = vmatprep.subr.mxu0 %v6976
        %v6978 = vand.u32 %v4039, 4294901760
        %6979 = vmatpush1.msra.mxu0 %v6978
        %v6980 = vand.u32 %v4042, 4294901760
        %6981 = vmatprep.subr.mxu0 %v6980
        %v6982 = vand.u32 %v4041, 4294901760
        %6983 = vmatpush1.msra.mxu0 %v6982
        %v6984 = vand.u32 %v4044, 4294901760
        %6985 = vmatprep.subr.mxu0 %v6984
        %v6986 = vand.u32 %v4043, 4294901760
        %6987 = vmatpush1.msra.mxu0 %v6986
        %v6988 = vand.u32 %v4046, 4294901760
        %6989 = vmatprep.subr.mxu0 %v6988
        %v6990 = vand.u32 %v4045, 4294901760
        %6991 = vmatpush1.msra.mxu0 %v6990
        %v6992 = vand.u32 %v4048, 4294901760
        %6993 = vmatprep.subr.mxu0 %v6992
        %v6994 = vand.u32 %v4047, 4294901760
        %6995 = vmatpush1.msra.mxu0 %v6994
        %v6996 = vand.u32 %v4050, 4294901760
        %6997 = vmatprep.subr.mxu0 %v6996
        %v6998 = vand.u32 %v4049, 4294901760
        %6999 = vmatpush1.msra.mxu0 %v6998
        %v7000 = vand.u32 %v3860, 4294901760
        %7001 = vmatprep.mubr.f32.mxu0 %v7000
        %v7002 = vand.u32 %v3859, 4294901760
        %7003 = vmatmul.mubr.f32.gmra.mrb[0].mxu0 %v7002
        %v7004 = vpop.f32.mrb[0].mxu0
        %v7005 = vadd.f32 %v6620, %v7004
        %v7006 = vpop.f32.mrb[0].mxu0
        %v7007 = vadd.f32 %v6622, %v7006
        %v7008 = vand.u32 %v3862, 4294901760
        %7009 = vmatprep.mubr.f32.mxu0 %v7008
        %v7010 = vand.u32 %v3861, 4294901760
        %7011 = vmatmul.mubr.f32.gmra.mrb[0].mxu0 %v7010
        %v7012 = vpop.f32.mrb[0].mxu0
        %v7013 = vadd.f32 %v6628, %v7012
        %v7014 = vpop.f32.mrb[0].mxu0
        %v7015 = vadd.f32 %v6630, %v7014
        %v7016 = vand.u32 %v3864, 4294901760
        %7017 = vmatprep.mubr.f32.mxu0 %v7016
        %v7018 = vand.u32 %v3863, 4294901760
        %7019 = vmatmul.mubr.f32.gmra.mrb[0].mxu0 %v7018
        %v7020 = vpop.f32.mrb[0].mxu0
        %v7021 = vadd.f32 %v6636, %v7020
        %v7022 = vpop.f32.mrb[0].mxu0
        %v7023 = vadd.f32 %v6638, %v7022
        %v7024 = vand.u32 %v3866, 4294901760
        %7025 = vmatprep.mubr.f32.mxu0 %v7024
        %v7026 = vand.u32 %v3865, 4294901760
        %7027 = vmatmul.mubr.f32.gmra.mrb[0].mxu0 %v7026
        %v7028 = vpop.f32.mrb[0].mxu0
        %v7029 = vadd.f32 %v6644, %v7028
        %v7030 = vpop.f32.mrb[0].mxu0
        %v7031 = vadd.f32 %v6646, %v7030
        %v7032 = vand.u32 %v3868, 4294901760
        %7033 = vmatprep.mubr.f32.mxu0 %v7032
        %v7034 = vand.u32 %v3867, 4294901760
        %7035 = vmatmul.mubr.f32.gmra.mrb[0].mxu0 %v7034
        %v7036 = vpop.f32.mrb[0].mxu0
        %v7037 = vadd.f32 %v6652, %v7036
        %v7038 = vpop.f32.mrb[0].mxu0
        %v7039 = vadd.f32 %v6654, %v7038
        %v7040 = vand.u32 %v3870, 4294901760
        %7041 = vmatprep.mubr.f32.mxu0 %v7040
        %v7042 = vand.u32 %v3869, 4294901760
        %7043 = vmatmul.mubr.f32.gmra.mrb[0].mxu0 %v7042
        %v7044 = vpop.f32.mrb[0].mxu0
        %v7045 = vadd.f32 %v6660, %v7044
        %v7046 = vpop.f32.mrb[0].mxu0
        %v7047 = vadd.f32 %v6662, %v7046
        %v7048 = vand.u32 %v3872, 4294901760
        %7049 = vmatprep.mubr.f32.mxu0 %v7048
        %v7050 = vand.u32 %v3871, 4294901760
        %7051 = vmatmul.mubr.f32.gmra.mrb[0].mxu0 %v7050
        %v7052 = vpop.f32.mrb[0].mxu0
        %v7053 = vadd.f32 %v6668, %v7052
        %v7054 = vpop.f32.mrb[0].mxu0
        %v7055 = vadd.f32 %v6670, %v7054
        %v7056 = vand.u32 %v3874, 4294901760
        %7057 = vmatprep.mubr.f32.mxu0 %v7056
        %v7058 = vand.u32 %v3873, 4294901760
        %7059 = vmatmul.mubr.f32.gmra.mrb[0].mxu0 %v7058
        %v7060 = vpop.f32.mrb[0].mxu0
        %v7061 = vadd.f32 %v6676, %v7060
        %v7062 = vpop.f32.mrb[0].mxu0
        %v7063 = vadd.f32 %v6678, %v7062
        %v7064 = vand.u32 %v3876, 4294901760
        %7065 = vmatprep.mubr.f32.mxu0 %v7064
        %v7066 = vand.u32 %v3875, 4294901760
        %7067 = vmatmul.mubr.f32.gmra.mrb[0].mxu0 %v7066
        %v7068 = vpop.f32.mrb[0].mxu0
        %v7069 = vadd.f32 %v6684, %v7068
        %v7070 = vpop.f32.mrb[0].mxu0
        %v7071 = vadd.f32 %v6686, %v7070
        %v7072 = vand.u32 %v3878, 4294901760
        %7073 = vmatprep.mubr.f32.mxu0 %v7072
        %v7074 = vand.u32 %v3877, 4294901760
        %7075 = vmatmul.mubr.f32.gmra.mrb[0].mxu0 %v7074
        %v7076 = vpop.f32.mrb[0].mxu0
        %v7077 = vadd.f32 %v6692, %v7076
        %v7078 = vpop.f32.mrb[0].mxu0
        %v7079 = vadd.f32 %v6694, %v7078
        %v7080 = vand.u32 %v3880, 4294901760
        %7081 = vmatprep.mubr.f32.mxu0 %v7080
        %v7082 = vand.u32 %v3879, 4294901760
        %7083 = vmatmul.mubr.f32.gmra.mrb[0].mxu0 %v7082
        %v7084 = vpop.f32.mrb[0].mxu0
        %v7085 = vadd.f32 %v6700, %v7084
        %v7086 = vpop.f32.mrb[0].mxu0
        %v7087 = vadd.f32 %v6702, %v7086
        %v7088 = vand.u32 %v3882, 4294901760
        %7089 = vmatprep.mubr.f32.mxu0 %v7088
        %v7090 = vand.u32 %v3881, 4294901760
        %7091 = vmatmul.mubr.f32.gmra.mrb[0].mxu0 %v7090
        %v7092 = vpop.f32.mrb[0].mxu0
        %v7093 = vadd.f32 %v6708, %v7092
        %v7094 = vpop.f32.mrb[0].mxu0
        %v7095 = vadd.f32 %v6710, %v7094
        %v7096 = vand.u32 %v3884, 4294901760
        %7097 = vmatprep.mubr.f32.mxu0 %v7096
        %v7098 = vand.u32 %v3883, 4294901760
        %7099 = vmatmul.mubr.f32.gmra.mrb[0].mxu0 %v7098
        %v7100 = vpop.f32.mrb[0].mxu0
        %v7101 = vadd.f32 %v6716, %v7100
        %v7102 = vpop.f32.mrb[0].mxu0
        %v7103 = vadd.f32 %v6718, %v7102
        %v7104 = vand.u32 %v3886, 4294901760
        %7105 = vmatprep.mubr.f32.mxu0 %v7104
        %v7106 = vand.u32 %v3885, 4294901760
        %7107 = vmatmul.mubr.f32.gmra.mrb[0].mxu0 %v7106
        %v7108 = vpop.f32.mrb[0].mxu0
        %v7109 = vadd.f32 %v6724, %v7108
        %v7110 = vpop.f32.mrb[0].mxu0
        %v7111 = vadd.f32 %v6726, %v7110
        %v7112 = vand.u32 %v3888, 4294901760
        %7113 = vmatprep.mubr.f32.mxu0 %v7112
        %v7114 = vand.u32 %v3887, 4294901760
        %7115 = vmatmul.mubr.f32.gmra.mrb[0].mxu0 %v7114
        %v7116 = vpop.f32.mrb[0].mxu0
        %v7117 = vadd.f32 %v6732, %v7116
        %v7118 = vpop.f32.mrb[0].mxu0
        %v7119 = vadd.f32 %v6734, %v7118
        %v7120 = vand.u32 %v3890, 4294901760
        %7121 = vmatprep.mubr.f32.mxu0 %v7120
        %v7122 = vand.u32 %v3889, 4294901760
        %7123 = vmatmul.mubr.f32.gmra.mrb[0].mxu0 %v7122
        %v7124 = vpop.f32.mrb[0].mxu0
        %v7125 = vadd.f32 %v6740, %v7124
        %v7126 = vpop.f32.mrb[0].mxu0
        %v7127 = vadd.f32 %v6742, %v7126
        %v7128 = vand.u32 %v3892, 4294901760
        %7129 = vmatprep.mubr.f32.mxu0 %v7128
        %v7130 = vand.u32 %v3891, 4294901760
        %7131 = vmatmul.mubr.f32.gmra.mrb[0].mxu0 %v7130
        %v7132 = vpop.f32.mrb[0].mxu0
        %v7133 = vadd.f32 %v6748, %v7132
        %v7134 = vpop.f32.mrb[0].mxu0
        %v7135 = vadd.f32 %v6750, %v7134
        %v7136 = vand.u32 %v3894, 4294901760
        %7137 = vmatprep.mubr.f32.mxu0 %v7136
        %v7138 = vand.u32 %v3893, 4294901760
        %7139 = vmatmul.mubr.f32.gmra.mrb[0].mxu0 %v7138
        %v7140 = vpop.f32.mrb[0].mxu0
        %v7141 = vadd.f32 %v6756, %v7140
        %v7142 = vpop.f32.mrb[0].mxu0
        %v7143 = vadd.f32 %v6758, %v7142
        %v7144 = vand.u32 %v3896, 4294901760
        %7145 = vmatprep.mubr.f32.mxu0 %v7144
        %v7146 = vand.u32 %v3895, 4294901760
        %7147 = vmatmul.mubr.f32.gmra.mrb[0].mxu0 %v7146
        %v7148 = vpop.f32.mrb[0].mxu0
        %v7149 = vadd.f32 %v6764, %v7148
        %v7150 = vpop.f32.mrb[0].mxu0
        %v7151 = vadd.f32 %v6766, %v7150
        %v7152 = vand.u32 %v3898, 4294901760
        %7153 = vmatprep.mubr.f32.mxu0 %v7152
        %v7154 = vand.u32 %v3897, 4294901760
        %7155 = vmatmul.mubr.f32.gmra.mrb[0].mxu0 %v7154
        %v7156 = vpop.f32.mrb[0].mxu0
        %v7157 = vadd.f32 %v6772, %v7156
        %v7158 = vpop.f32.mrb[0].mxu0
        %v7159 = vadd.f32 %v6774, %v7158
        %v7160 = vand.u32 %v3900, 4294901760
        %7161 = vmatprep.mubr.f32.mxu0 %v7160
        %v7162 = vand.u32 %v3899, 4294901760
        %7163 = vmatmul.mubr.f32.gmra.mrb[0].mxu0 %v7162
        %v7164 = vpop.f32.mrb[0].mxu0
        %v7165 = vadd.f32 %v6780, %v7164
        %v7166 = vpop.f32.mrb[0].mxu0
        %v7167 = vadd.f32 %v6782, %v7166
        %v7168 = vand.u32 %v3902, 4294901760
        %7169 = vmatprep.mubr.f32.mxu0 %v7168
        %v7170 = vand.u32 %v3901, 4294901760
        %7171 = vmatmul.mubr.f32.gmra.mrb[0].mxu0 %v7170
        %v7172 = vpop.f32.mrb[0].mxu0
        %v7173 = vadd.f32 %v6788, %v7172
        %v7174 = vpop.f32.mrb[0].mxu0
        %v7175 = vadd.f32 %v6790, %v7174
        %v7176 = vand.u32 %v3904, 4294901760
        %7177 = vmatprep.mubr.f32.mxu0 %v7176
        %v7178 = vand.u32 %v3903, 4294901760
        %7179 = vmatmul.mubr.f32.gmra.mrb[0].mxu0 %v7178
        %v7180 = vpop.f32.mrb[0].mxu0
        %v7181 = vadd.f32 %v6796, %v7180
        %v7182 = vpop.f32.mrb[0].mxu0
        %v7183 = vadd.f32 %v6798, %v7182
        %v7184 = vand.u32 %v3906, 4294901760
        %7185 = vmatprep.mubr.f32.mxu0 %v7184
        %v7186 = vand.u32 %v3905, 4294901760
        %7187 = vmatmul.mubr.f32.gmra.mrb[0].mxu0 %v7186
        %v7188 = vpop.f32.mrb[0].mxu0
        %v7189 = vadd.f32 %v6804, %v7188
        %v7190 = vpop.f32.mrb[0].mxu0
        %v7191 = vadd.f32 %v6806, %v7190
        %v7192 = vand.u32 %v3908, 4294901760
        %7193 = vmatprep.mubr.f32.mxu0 %v7192
        %v7194 = vand.u32 %v3907, 4294901760
        %7195 = vmatmul.mubr.f32.gmra.mrb[0].mxu0 %v7194
        %v7196 = vpop.f32.mrb[0].mxu0
        %v7197 = vadd.f32 %v6812, %v7196
        %v7198 = vpop.f32.mrb[0].mxu0
        %v7199 = vadd.f32 %v6814, %v7198
        %v7200 = vand.u32 %v3910, 4294901760
        %7201 = vmatprep.mubr.f32.mxu0 %v7200
        %v7202 = vand.u32 %v3909, 4294901760
        %7203 = vmatmul.mubr.f32.gmra.mrb[0].mxu0 %v7202
        %v7204 = vpop.f32.mrb[0].mxu0
        %v7205 = vadd.f32 %v6820, %v7204
        %v7206 = vpop.f32.mrb[0].mxu0
        %v7207 = vadd.f32 %v6822, %v7206
        %v7208 = vand.u32 %v3912, 4294901760
        %7209 = vmatprep.mubr.f32.mxu0 %v7208
        %v7210 = vand.u32 %v3911, 4294901760
        %7211 = vmatmul.mubr.f32.gmra.mrb[0].mxu0 %v7210
        %v7212 = vpop.f32.mrb[0].mxu0
        %v7213 = vadd.f32 %v6828, %v7212
        %v7214 = vpop.f32.mrb[0].mxu0
        %v7215 = vadd.f32 %v6830, %v7214
        %v7216 = vand.u32 %v3914, 4294901760
        %7217 = vmatprep.mubr.f32.mxu0 %v7216
        %v7218 = vand.u32 %v3913, 4294901760
        %7219 = vmatmul.mubr.f32.gmra.mrb[0].mxu0 %v7218
        %v7220 = vpop.f32.mrb[0].mxu0
        %v7221 = vadd.f32 %v6836, %v7220
        %v7222 = vpop.f32.mrb[0].mxu0
        %v7223 = vadd.f32 %v6838, %v7222
        %v7224 = vand.u32 %v3916, 4294901760
        %7225 = vmatprep.mubr.f32.mxu0 %v7224
        %v7226 = vand.u32 %v3915, 4294901760
        %7227 = vmatmul.mubr.f32.gmra.mrb[0].mxu0 %v7226
        %v7228 = vpop.f32.mrb[0].mxu0
        %v7229 = vadd.f32 %v6844, %v7228
        %v7230 = vpop.f32.mrb[0].mxu0
        %v7231 = vadd.f32 %v6846, %v7230
        %v7232 = vand.u32 %v3918, 4294901760
        %7233 = vmatprep.mubr.f32.mxu0 %v7232
        %v7234 = vand.u32 %v3917, 4294901760
        %7235 = vmatmul.mubr.f32.gmra.mrb[0].mxu0 %v7234
        %v7236 = vpop.f32.mrb[0].mxu0
        %v7237 = vadd.f32 %v6852, %v7236
        %v7238 = vpop.f32.mrb[0].mxu0
        %v7239 = vadd.f32 %v6854, %v7238
        %v7240 = vand.u32 %v3920, 4294901760
        %7241 = vmatprep.mubr.f32.mxu0 %v7240
        %v7242 = vand.u32 %v3919, 4294901760
        %7243 = vmatmul.mubr.f32.gmra.mrb[0].mxu0 %v7242
        %v7244 = vpop.f32.mrb[0].mxu0
        %v7245 = vadd.f32 %v6860, %v7244
        %v7246 = vpop.f32.mrb[0].mxu0
        %v7247 = vadd.f32 %v6862, %v7246
        %v7248 = vand.u32 %v3922, 4294901760
        %7249 = vmatprep.mubr.f32.mxu0 %v7248
        %v7250 = vand.u32 %v3921, 4294901760
        %7251 = vmatmul.mubr.f32.gmra.mrb[0].mxu0 %v7250
        %v7252 = vpop.f32.mrb[0].mxu0
        %v7253 = vadd.f32 %v6868, %v7252
        %v7254 = vpop.f32.mrb[0].mxu0
        %v7255 = vadd.f32 %v6870, %v7254
        %7256 = vdwg.mxu0
        %v7257 = vadd.f32 %v3923, %v7005
        %v7258 = vadd.f32 %v3924, %v7007
        %v7259 = vadd.f32 %v3925, %v7013
        %v7260 = vadd.f32 %v3926, %v7015
        %v7261 = vadd.f32 %v3927, %v7021
        %v7262 = vadd.f32 %v3928, %v7023
        %v7263 = vadd.f32 %v3929, %v7029
        %v7264 = vadd.f32 %v3930, %v7031
        %v7265 = vadd.f32 %v3931, %v7037
        %v7266 = vadd.f32 %v3932, %v7039
        %v7267 = vadd.f32 %v3933, %v7045
        %v7268 = vadd.f32 %v3934, %v7047
        %v7269 = vadd.f32 %v3935, %v7053
        %v7270 = vadd.f32 %v3936, %v7055
        %v7271 = vadd.f32 %v3937, %v7061
        %v7272 = vadd.f32 %v3938, %v7063
        %v7273 = vadd.f32 %v3939, %v7069
        %v7274 = vadd.f32 %v3940, %v7071
        %v7275 = vadd.f32 %v3941, %v7077
        %v7276 = vadd.f32 %v3942, %v7079
        %v7277 = vadd.f32 %v3943, %v7085
        %v7278 = vadd.f32 %v3944, %v7087
        %v7279 = vadd.f32 %v3945, %v7093
        %v7280 = vadd.f32 %v3946, %v7095
        %v7281 = vadd.f32 %v3947, %v7101
        %v7282 = vadd.f32 %v3948, %v7103
        %v7283 = vadd.f32 %v3949, %v7109
        %v7284 = vadd.f32 %v3950, %v7111
        %v7285 = vadd.f32 %v3951, %v7117
        %v7286 = vadd.f32 %v3952, %v7119
        %v7287 = vadd.f32 %v3953, %v7125
        %v7288 = vadd.f32 %v3954, %v7127
        %v7289 = vadd.f32 %v3955, %v7133
        %v7290 = vadd.f32 %v3956, %v7135
        %v7291 = vadd.f32 %v3957, %v7141
        %v7292 = vadd.f32 %v3958, %v7143
        %v7293 = vadd.f32 %v3959, %v7149
        %v7294 = vadd.f32 %v3960, %v7151
        %v7295 = vadd.f32 %v3961, %v7157
        %v7296 = vadd.f32 %v3962, %v7159
        %v7297 = vadd.f32 %v3963, %v7165
        %v7298 = vadd.f32 %v3964, %v7167
        %v7299 = vadd.f32 %v3965, %v7173
        %v7300 = vadd.f32 %v3966, %v7175
        %v7301 = vadd.f32 %v3967, %v7181
        %v7302 = vadd.f32 %v3968, %v7183
        %v7303 = vadd.f32 %v3969, %v7189
        %v7304 = vadd.f32 %v3970, %v7191
        %v7305 = vadd.f32 %v3971, %v7197
        %v7306 = vadd.f32 %v3972, %v7199
        %v7307 = vadd.f32 %v3973, %v7205
        %v7308 = vadd.f32 %v3974, %v7207
        %v7309 = vadd.f32 %v3975, %v7213
        %v7310 = vadd.f32 %v3976, %v7215
        %v7311 = vadd.f32 %v3977, %v7221
        %v7312 = vadd.f32 %v3978, %v7223
        %v7313 = vadd.f32 %v3979, %v7229
        %v7314 = vadd.f32 %v3980, %v7231
        %v7315 = vadd.f32 %v3981, %v7237
        %v7316 = vadd.f32 %v3982, %v7239
        %v7317 = vadd.f32 %v3983, %v7245
        %v7318 = vadd.f32 %v3984, %v7247
        %v7319 = vadd.f32 %v3985, %v7253
        %v7320 = vadd.f32 %v3986, %v7255
        %7321 = vst [vmem:[#allocation14] sm:$0xff] %v7257
        %7322 = vst [vmem:[#allocation14 + $0x8] sm:$0xff] %v7258
        %7323 = vst [vmem:[#allocation14 + $0x10] sm:$0xff] %v7259
        %7324 = vst [vmem:[#allocation14 + $0x18] sm:$0xff] %v7260
        %7325 = vst [vmem:[#allocation14 + $0x20] sm:$0xff] %v7261
        %7326 = vst [vmem:[#allocation14 + $0x28] sm:$0xff] %v7262
        %7327 = vst [vmem:[#allocation14 + $0x30] sm:$0xff] %v7263
        %7328 = vst [vmem:[#allocation14 + $0x38] sm:$0xff] %v7264
        %7329 = vst [vmem:[#allocation14 + $0x40] sm:$0xff] %v7265
        %7330 = vst [vmem:[#allocation14 + $0x48] sm:$0xff] %v7266
        %7331 = vst [vmem:[#allocation14 + $0x50] sm:$0xff] %v7267
        %7332 = vst [vmem:[#allocation14 + $0x58] sm:$0xff] %v7268
        %7333 = vst [vmem:[#allocation14 + $0x60] sm:$0xff] %v7269
        %7334 = vst [vmem:[#allocation14 + $0x68] sm:$0xff] %v7270
        %7335 = vst [vmem:[#allocation14 + $0x70] sm:$0xff] %v7271
        %7336 = vst [vmem:[#allocation14 + $0x78] sm:$0xff] %v7272
        %7337 = vst [vmem:[#allocation14 + $0x80] sm:$0xff] %v7273
        %7338 = vst [vmem:[#allocation14 + $0x88] sm:$0xff] %v7274
        %7339 = vst [vmem:[#allocation14 + $0x90] sm:$0xff] %v7275
        %7340 = vst [vmem:[#allocation14 + $0x98] sm:$0xff] %v7276
        %7341 = vst [vmem:[#allocation14 + $0xa0] sm:$0xff] %v7277
        %7342 = vst [vmem:[#allocation14 + $0xa8] sm:$0xff] %v7278
        %7343 = vst [vmem:[#allocation14 + $0xb0] sm:$0xff] %v7279
        %7344 = vst [vmem:[#allocation14 + $0xb8] sm:$0xff] %v7280
        %7345 = vst [vmem:[#allocation14 + $0xc0] sm:$0xff] %v7281
        %7346 = vst [vmem:[#allocation14 + $0xc8] sm:$0xff] %v7282
        %7347 = vst [vmem:[#allocation14 + $0xd0] sm:$0xff] %v7283
        %7348 = vst [vmem:[#allocation14 + $0xd8] sm:$0xff] %v7284
        %7349 = vst [vmem:[#allocation14 + $0xe0] sm:$0xff] %v7285
        %7350 = vst [vmem:[#allocation14 + $0xe8] sm:$0xff] %v7286
        %7351 = vst [vmem:[#allocation14 + $0xf0] sm:$0xff] %v7287
        %7352 = vst [vmem:[#allocation14 + $0xf8] sm:$0xff] %v7288
        %7353 = vst [vmem:[#allocation14 + $0x100] sm:$0xff] %v7289
        %7354 = vst [vmem:[#allocation14 + $0x108] sm:$0xff] %v7290
        %7355 = vst [vmem:[#allocation14 + $0x110] sm:$0xff] %v7291
        %7356 = vst [vmem:[#allocation14 + $0x118] sm:$0xff] %v7292
        %7357 = vst [vmem:[#allocation14 + $0x120] sm:$0xff] %v7293
        %7358 = vst [vmem:[#allocation14 + $0x128] sm:$0xff] %v7294
        %7359 = vst [vmem:[#allocation14 + $0x130] sm:$0xff] %v7295
        %7360 = vst [vmem:[#allocation14 + $0x138] sm:$0xff] %v7296
        %7361 = vst [vmem:[#allocation14 + $0x140] sm:$0xff] %v7297
        %7362 = vst [vmem:[#allocation14 + $0x148] sm:$0xff] %v7298
        %7363 = vst [vmem:[#allocation14 + $0x150] sm:$0xff] %v7299
        %7364 = vst [vmem:[#allocation14 + $0x158] sm:$0xff] %v7300
        %7365 = vst [vmem:[#allocation14 + $0x160] sm:$0xff] %v7301
        %7366 = vst [vmem:[#allocation14 + $0x168] sm:$0xff] %v7302
        %7367 = vst [vmem:[#allocation14 + $0x170] sm:$0xff] %v7303
        %7368 = vst [vmem:[#allocation14 + $0x178] sm:$0xff] %v7304
        %7369 = vst [vmem:[#allocation14 + $0x180] sm:$0xff] %v7305
        %7370 = vst [vmem:[#allocation14 + $0x188] sm:$0xff] %v7306
        %7371 = vst [vmem:[#allocation14 + $0x190] sm:$0xff] %v7307
        %7372 = vst [vmem:[#allocation14 + $0x198] sm:$0xff] %v7308
        %7373 = vst [vmem:[#allocation14 + $0x1a0] sm:$0xff] %v7309
        %7374 = vst [vmem:[#allocation14 + $0x1a8] sm:$0xff] %v7310
        %7375 = vst [vmem:[#allocation14 + $0x1b0] sm:$0xff] %v7311
        %7376 = vst [vmem:[#allocation14 + $0x1b8] sm:$0xff] %v7312
        %7377 = vst [vmem:[#allocation14 + $0x1c0] sm:$0xff] %v7313
        %7378 = vst [vmem:[#allocation14 + $0x1c8] sm:$0xff] %v7314
        %7379 = vst [vmem:[#allocation14 + $0x1d0] sm:$0xff] %v7315
        %7380 = vst [vmem:[#allocation14 + $0x1d8] sm:$0xff] %v7316
        %7381 = vst [vmem:[#allocation14 + $0x1e0] sm:$0xff] %v7317
        %7382 = vst [vmem:[#allocation14 + $0x1e8] sm:$0xff] %v7318
        %7383 = vst [vmem:[#allocation14 + $0x1f0] sm:$0xff] %v7319
        %7384 = vst [vmem:[#allocation14 + $0x1f8] sm:$0xff] %v7320
        %p7385 = scmp.eq.s32.totalorder %s86, %s87
        // Predicated region
        $region34: #{lower_triangular_matmul.1} parent=32 // pred_check
          %p7386 = pneg %p7385
        $region35: #{lower_triangular_matmul.1} parent=32 // pred_check_branch
          %7388 = sbr.rel (%p7386) target = $region37
        $region36: #{lower_triangular_matmul.1} parent=32 // pred_region
          %v7389 = vld [vmem:[#allocation14] sm:$0xff]
          %v7390 = vld [vmem:[#allocation14 + $0x8] sm:$0xff]
          %v7391 = vld [vmem:[#allocation14 + $0x10] sm:$0xff]
          %v7392 = vld [vmem:[#allocation14 + $0x18] sm:$0xff]
          %v7393 = vld [vmem:[#allocation14 + $0x20] sm:$0xff]
          %v7394 = vld [vmem:[#allocation14 + $0x28] sm:$0xff]
          %v7395 = vld [vmem:[#allocation14 + $0x30] sm:$0xff]
          %v7396 = vld [vmem:[#allocation14 + $0x38] sm:$0xff]
          %v7397 = vld [vmem:[#allocation14 + $0x40] sm:$0xff]
          %v7398 = vld [vmem:[#allocation14 + $0x48] sm:$0xff]
          %v7399 = vld [vmem:[#allocation14 + $0x50] sm:$0xff]
          %v7400 = vld [vmem:[#allocation14 + $0x58] sm:$0xff]
          %v7401 = vld [vmem:[#allocation14 + $0x60] sm:$0xff]
          %v7402 = vld [vmem:[#allocation14 + $0x68] sm:$0xff]
          %v7403 = vld [vmem:[#allocation14 + $0x70] sm:$0xff]
          %v7404 = vld [vmem:[#allocation14 + $0x78] sm:$0xff]
          %v7405 = vld [vmem:[#allocation14 + $0x80] sm:$0xff]
          %v7406 = vld [vmem:[#allocation14 + $0x88] sm:$0xff]
          %v7407 = vld [vmem:[#allocation14 + $0x90] sm:$0xff]
          %v7408 = vld [vmem:[#allocation14 + $0x98] sm:$0xff]
          %v7409 = vld [vmem:[#allocation14 + $0xa0] sm:$0xff]
          %v7410 = vld [vmem:[#allocation14 + $0xa8] sm:$0xff]
          %v7411 = vld [vmem:[#allocation14 + $0xb0] sm:$0xff]
          %v7412 = vld [vmem:[#allocation14 + $0xb8] sm:$0xff]
          %v7413 = vld [vmem:[#allocation14 + $0xc0] sm:$0xff]
          %v7414 = vld [vmem:[#allocation14 + $0xc8] sm:$0xff]
          %v7415 = vld [vmem:[#allocation14 + $0xd0] sm:$0xff]
          %v7416 = vld [vmem:[#allocation14 + $0xd8] sm:$0xff]
          %v7417 = vld [vmem:[#allocation14 + $0xe0] sm:$0xff]
          %v7418 = vld [vmem:[#allocation14 + $0xe8] sm:$0xff]
          %v7419 = vld [vmem:[#allocation14 + $0xf0] sm:$0xff]
          %v7420 = vld [vmem:[#allocation14 + $0xf8] sm:$0xff]
          %v7421 = vld [vmem:[#allocation14 + $0x100] sm:$0xff]
          %v7422 = vld [vmem:[#allocation14 + $0x108] sm:$0xff]
          %v7423 = vld [vmem:[#allocation14 + $0x110] sm:$0xff]
          %v7424 = vld [vmem:[#allocation14 + $0x118] sm:$0xff]
          %v7425 = vld [vmem:[#allocation14 + $0x120] sm:$0xff]
          %v7426 = vld [vmem:[#allocation14 + $0x128] sm:$0xff]
          %v7427 = vld [vmem:[#allocation14 + $0x130] sm:$0xff]
          %v7428 = vld [vmem:[#allocation14 + $0x138] sm:$0xff]
          %v7429 = vld [vmem:[#allocation14 + $0x140] sm:$0xff]
          %v7430 = vld [vmem:[#allocation14 + $0x148] sm:$0xff]
          %v7431 = vld [vmem:[#allocation14 + $0x150] sm:$0xff]
          %v7432 = vld [vmem:[#allocation14 + $0x158] sm:$0xff]
          %v7433 = vld [vmem:[#allocation14 + $0x160] sm:$0xff]
          %v7434 = vld [vmem:[#allocation14 + $0x168] sm:$0xff]
          %v7435 = vld [vmem:[#allocation14 + $0x170] sm:$0xff]
          %v7436 = vld [vmem:[#allocation14 + $0x178] sm:$0xff]
          %v7437 = vld [vmem:[#allocation14 + $0x180] sm:$0xff]
          %v7438 = vld [vmem:[#allocation14 + $0x188] sm:$0xff]
          %v7439 = vld [vmem:[#allocation14 + $0x190] sm:$0xff]
          %v7440 = vld [vmem:[#allocation14 + $0x198] sm:$0xff]
          %v7441 = vld [vmem:[#allocation14 + $0x1a0] sm:$0xff]
          %v7442 = vld [vmem:[#allocation14 + $0x1a8] sm:$0xff]
          %v7443 = vld [vmem:[#allocation14 + $0x1b0] sm:$0xff]
          %v7444 = vld [vmem:[#allocation14 + $0x1b8] sm:$0xff]
          %v7445 = vld [vmem:[#allocation14 + $0x1c0] sm:$0xff]
          %v7446 = vld [vmem:[#allocation14 + $0x1c8] sm:$0xff]
          %v7447 = vld [vmem:[#allocation14 + $0x1d0] sm:$0xff]
          %v7448 = vld [vmem:[#allocation14 + $0x1d8] sm:$0xff]
          %v7449 = vld [vmem:[#allocation14 + $0x1e0] sm:$0xff]
          %v7450 = vld [vmem:[#allocation14 + $0x1e8] sm:$0xff]
          %v7451 = vld [vmem:[#allocation14 + $0x1f0] sm:$0xff]
          %v7452 = vld [vmem:[#allocation14 + $0x1f8] sm:$0xff]
          %v7453 = vsel %vm3731, %v7389, 0.0
          %v7454 = vsel %vm3732, %v7390, 0.0
          %v7455 = vsel %vm3733, %v7391, 0.0
          %v7456 = vsel %vm3734, %v7392, 0.0
          %v7457 = vsel %vm3735, %v7393, 0.0
          %v7458 = vsel %vm3736, %v7394, 0.0
          %v7459 = vsel %vm3737, %v7395, 0.0
          %v7460 = vsel %vm3738, %v7396, 0.0
          %v7461 = vsel %vm3739, %v7397, 0.0
          %v7462 = vsel %vm3740, %v7398, 0.0
          %v7463 = vsel %vm3741, %v7399, 0.0
          %v7464 = vsel %vm3742, %v7400, 0.0
          %v7465 = vsel %vm3743, %v7401, 0.0
          %v7466 = vsel %vm3744, %v7402, 0.0
          %v7467 = vsel %vm3745, %v7403, 0.0
          %v7468 = vsel %vm3746, %v7404, 0.0
          %v7469 = vsel %vm3747, %v7405, 0.0
          %v7470 = vsel %vm3748, %v7406, 0.0
          %v7471 = vsel %vm3749, %v7407, 0.0
          %v7472 = vsel %vm3750, %v7408, 0.0
          %v7473 = vsel %vm3751, %v7409, 0.0
          %v7474 = vsel %vm3752, %v7410, 0.0
          %v7475 = vsel %vm3753, %v7411, 0.0
          %v7476 = vsel %vm3754, %v7412, 0.0
          %v7477 = vsel %vm3755, %v7413, 0.0
          %v7478 = vsel %vm3756, %v7414, 0.0
          %v7479 = vsel %vm3757, %v7415, 0.0
          %v7480 = vsel %vm3758, %v7416, 0.0
          %v7481 = vsel %vm3759, %v7417, 0.0
          %v7482 = vsel %vm3760, %v7418, 0.0
          %v7483 = vsel %vm3761, %v7419, 0.0
          %v7484 = vsel %vm3762, %v7420, 0.0
          %v7485 = vsel %vm3763, %v7421, 0.0
          %v7486 = vsel %vm3764, %v7422, 0.0
          %v7487 = vsel %vm3765, %v7423, 0.0
          %v7488 = vsel %vm3766, %v7424, 0.0
          %v7489 = vsel %vm3767, %v7425, 0.0
          %v7490 = vsel %vm3768, %v7426, 0.0
          %v7491 = vsel %vm3769, %v7427, 0.0
          %v7492 = vsel %vm3770, %v7428, 0.0
          %v7493 = vsel %vm3771, %v7429, 0.0
          %v7494 = vsel %vm3772, %v7430, 0.0
          %v7495 = vsel %vm3773, %v7431, 0.0
          %v7496 = vsel %vm3774, %v7432, 0.0
          %v7497 = vsel %vm3775, %v7433, 0.0
          %v7498 = vsel %vm3776, %v7434, 0.0
          %v7499 = vsel %vm3777, %v7435, 0.0
          %v7500 = vsel %vm3778, %v7436, 0.0
          %v7501 = vsel %vm3779, %v7437, 0.0
          %v7502 = vsel %vm3780, %v7438, 0.0
          %v7503 = vsel %vm3781, %v7439, 0.0
          %v7504 = vsel %vm3782, %v7440, 0.0
          %v7505 = vsel %vm3783, %v7441, 0.0
          %v7506 = vsel %vm3784, %v7442, 0.0
          %v7507 = vsel %vm3785, %v7443, 0.0
          %v7508 = vsel %vm3786, %v7444, 0.0
          %v7509 = vsel %vm3787, %v7445, 0.0
          %v7510 = vsel %vm3788, %v7446, 0.0
          %v7511 = vsel %vm3789, %v7447, 0.0
          %v7512 = vsel %vm3790, %v7448, 0.0
          %v7513 = vsel %vm3791, %v7449, 0.0
          %v7514 = vsel %vm3792, %v7450, 0.0
          %v7515 = vsel %vm3793, %v7451, 0.0
          %v7516 = vsel %vm3794, %v7452, 0.0
          %7517 = vst [vmem:[#allocation14] sm:$0xff] %v7453
          %7518 = vst [vmem:[#allocation14 + $0x8] sm:$0xff] %v7454
          %7519 = vst [vmem:[#allocation14 + $0x10] sm:$0xff] %v7455
          %7520 = vst [vmem:[#allocation14 + $0x18] sm:$0xff] %v7456
          %7521 = vst [vmem:[#allocation14 + $0x20] sm:$0xff] %v7457
          %7522 = vst [vmem:[#allocation14 + $0x28] sm:$0xff] %v7458
          %7523 = vst [vmem:[#allocation14 + $0x30] sm:$0xff] %v7459
          %7524 = vst [vmem:[#allocation14 + $0x38] sm:$0xff] %v7460
          %7525 = vst [vmem:[#allocation14 + $0x40] sm:$0xff] %v7461
          %7526 = vst [vmem:[#allocation14 + $0x48] sm:$0xff] %v7462
          %7527 = vst [vmem:[#allocation14 + $0x50] sm:$0xff] %v7463
          %7528 = vst [vmem:[#allocation14 + $0x58] sm:$0xff] %v7464
          %7529 = vst [vmem:[#allocation14 + $0x60] sm:$0xff] %v7465
          %7530 = vst [vmem:[#allocation14 + $0x68] sm:$0xff] %v7466
          %7531 = vst [vmem:[#allocation14 + $0x70] sm:$0xff] %v7467
          %7532 = vst [vmem:[#allocation14 + $0x78] sm:$0xff] %v7468
          %7533 = vst [vmem:[#allocation14 + $0x80] sm:$0xff] %v7469
          %7534 = vst [vmem:[#allocation14 + $0x88] sm:$0xff] %v7470
          %7535 = vst [vmem:[#allocation14 + $0x90] sm:$0xff] %v7471
          %7536 = vst [vmem:[#allocation14 + $0x98] sm:$0xff] %v7472
          %7537 = vst [vmem:[#allocation14 + $0xa0] sm:$0xff] %v7473
          %7538 = vst [vmem:[#allocation14 + $0xa8] sm:$0xff] %v7474
          %7539 = vst [vmem:[#allocation14 + $0xb0] sm:$0xff] %v7475
          %7540 = vst [vmem:[#allocation14 + $0xb8] sm:$0xff] %v7476
          %7541 = vst [vmem:[#allocation14 + $0xc0] sm:$0xff] %v7477
          %7542 = vst [vmem:[#allocation14 + $0xc8] sm:$0xff] %v7478
          %7543 = vst [vmem:[#allocation14 + $0xd0] sm:$0xff] %v7479
          %7544 = vst [vmem:[#allocation14 + $0xd8] sm:$0xff] %v7480
          %7545 = vst [vmem:[#allocation14 + $0xe0] sm:$0xff] %v7481
          %7546 = vst [vmem:[#allocation14 + $0xe8] sm:$0xff] %v7482
          %7547 = vst [vmem:[#allocation14 + $0xf0] sm:$0xff] %v7483
          %7548 = vst [vmem:[#allocation14 + $0xf8] sm:$0xff] %v7484
          %7549 = vst [vmem:[#allocation14 + $0x100] sm:$0xff] %v7485
          %7550 = vst [vmem:[#allocation14 + $0x108] sm:$0xff] %v7486
          %7551 = vst [vmem:[#allocation14 + $0x110] sm:$0xff] %v7487
          %7552 = vst [vmem:[#allocation14 + $0x118] sm:$0xff] %v7488
          %7553 = vst [vmem:[#allocation14 + $0x120] sm:$0xff] %v7489
          %7554 = vst [vmem:[#allocation14 + $0x128] sm:$0xff] %v7490
          %7555 = vst [vmem:[#allocation14 + $0x130] sm:$0xff] %v7491
          %7556 = vst [vmem:[#allocation14 + $0x138] sm:$0xff] %v7492
          %7557 = vst [vmem:[#allocation14 + $0x140] sm:$0xff] %v7493
          %7558 = vst [vmem:[#allocation14 + $0x148] sm:$0xff] %v7494
          %7559 = vst [vmem:[#allocation14 + $0x150] sm:$0xff] %v7495
          %7560 = vst [vmem:[#allocation14 + $0x158] sm:$0xff] %v7496
          %7561 = vst [vmem:[#allocation14 + $0x160] sm:$0xff] %v7497
          %7562 = vst [vmem:[#allocation14 + $0x168] sm:$0xff] %v7498
          %7563 = vst [vmem:[#allocation14 + $0x170] sm:$0xff] %v7499
          %7564 = vst [vmem:[#allocation14 + $0x178] sm:$0xff] %v7500
          %7565 = vst [vmem:[#allocation14 + $0x180] sm:$0xff] %v7501
          %7566 = vst [vmem:[#allocation14 + $0x188] sm:$0xff] %v7502
          %7567 = vst [vmem:[#allocation14 + $0x190] sm:$0xff] %v7503
          %7568 = vst [vmem:[#allocation14 + $0x198] sm:$0xff] %v7504
          %7569 = vst [vmem:[#allocation14 + $0x1a0] sm:$0xff] %v7505
          %7570 = vst [vmem:[#allocation14 + $0x1a8] sm:$0xff] %v7506
          %7571 = vst [vmem:[#allocation14 + $0x1b0] sm:$0xff] %v7507
          %7572 = vst [vmem:[#allocation14 + $0x1b8] sm:$0xff] %v7508
          %7573 = vst [vmem:[#allocation14 + $0x1c0] sm:$0xff] %v7509
          %7574 = vst [vmem:[#allocation14 + $0x1c8] sm:$0xff] %v7510
          %7575 = vst [vmem:[#allocation14 + $0x1d0] sm:$0xff] %v7511
          %7576 = vst [vmem:[#allocation14 + $0x1d8] sm:$0xff] %v7512
          %7577 = vst [vmem:[#allocation14 + $0x1e0] sm:$0xff] %v7513
          %7578 = vst [vmem:[#allocation14 + $0x1e8] sm:$0xff] %v7514
          %7579 = vst [vmem:[#allocation14 + $0x1f0] sm:$0xff] %v7515
          %7580 = vst [vmem:[#allocation14 + $0x1f8] sm:$0xff] %v7516
        $region37: #{lower_triangular_matmul.1} parent=32 // pred_fallthru
          _
      $region33: #{lower_triangular_matmul.1} parent=20 // pred_fallthru
        _
    $region21: #{lower_triangular_matmul.1} parent=1 // pred_fallthru
      _
    %p7581 = scmp.lt.s32.totalorder %s86, %s87
    // Predicated region
    $region38: #{lower_triangular_matmul.1} parent=1 // pred_check
      %p7582 = pneg %p7581
    $region39: #{lower_triangular_matmul.1} parent=1 // pred_check_branch
      %7584 = sbr.rel (%p7582) target = $region41
    $region40: #{lower_triangular_matmul.1} parent=1 // pred_region
      %7585 = vst [vmem:[#allocation14] sm:$0xff] 0.0
      %7586 = vst [vmem:[#allocation14 + $0x8] sm:$0xff] 0.0
      %7587 = vst [vmem:[#allocation14 + $0x10] sm:$0xff] 0.0
      %7588 = vst [vmem:[#allocation14 + $0x18] sm:$0xff] 0.0
      %7589 = vst [vmem:[#allocation14 + $0x20] sm:$0xff] 0.0
      %7590 = vst [vmem:[#allocation14 + $0x28] sm:$0xff] 0.0
      %7591 = vst [vmem:[#allocation14 + $0x30] sm:$0xff] 0.0
      %7592 = vst [vmem:[#allocation14 + $0x38] sm:$0xff] 0.0
      %7593 = vst [vmem:[#allocation14 + $0x40] sm:$0xff] 0.0
      %7594 = vst [vmem:[#allocation14 + $0x48] sm:$0xff] 0.0
      %7595 = vst [vmem:[#allocation14 + $0x50] sm:$0xff] 0.0
      %7596 = vst [vmem:[#allocation14 + $0x58] sm:$0xff] 0.0
      %7597 = vst [vmem:[#allocation14 + $0x60] sm:$0xff] 0.0
      %7598 = vst [vmem:[#allocation14 + $0x68] sm:$0xff] 0.0
      %7599 = vst [vmem:[#allocation14 + $0x70] sm:$0xff] 0.0
      %7600 = vst [vmem:[#allocation14 + $0x78] sm:$0xff] 0.0
      %7601 = vst [vmem:[#allocation14 + $0x80] sm:$0xff] 0.0
      %7602 = vst [vmem:[#allocation14 + $0x88] sm:$0xff] 0.0
      %7603 = vst [vmem:[#allocation14 + $0x90] sm:$0xff] 0.0
      %7604 = vst [vmem:[#allocation14 + $0x98] sm:$0xff] 0.0
      %7605 = vst [vmem:[#allocation14 + $0xa0] sm:$0xff] 0.0
      %7606 = vst [vmem:[#allocation14 + $0xa8] sm:$0xff] 0.0
      %7607 = vst [vmem:[#allocation14 + $0xb0] sm:$0xff] 0.0
      %7608 = vst [vmem:[#allocation14 + $0xb8] sm:$0xff] 0.0
      %7609 = vst [vmem:[#allocation14 + $0xc0] sm:$0xff] 0.0
      %7610 = vst [vmem:[#allocation14 + $0xc8] sm:$0xff] 0.0
      %7611 = vst [vmem:[#allocation14 + $0xd0] sm:$0xff] 0.0
      %7612 = vst [vmem:[#allocation14 + $0xd8] sm:$0xff] 0.0
      %7613 = vst [vmem:[#allocation14 + $0xe0] sm:$0xff] 0.0
      %7614 = vst [vmem:[#allocation14 + $0xe8] sm:$0xff] 0.0
      %7615 = vst [vmem:[#allocation14 + $0xf0] sm:$0xff] 0.0
      %7616 = vst [vmem:[#allocation14 + $0xf8] sm:$0xff] 0.0
      %7617 = vst [vmem:[#allocation14 + $0x100] sm:$0xff] 0.0
      %7618 = vst [vmem:[#allocation14 + $0x108] sm:$0xff] 0.0
      %7619 = vst [vmem:[#allocation14 + $0x110] sm:$0xff] 0.0
      %7620 = vst [vmem:[#allocation14 + $0x118] sm:$0xff] 0.0
      %7621 = vst [vmem:[#allocation14 + $0x120] sm:$0xff] 0.0
      %7622 = vst [vmem:[#allocation14 + $0x128] sm:$0xff] 0.0
      %7623 = vst [vmem:[#allocation14 + $0x130] sm:$0xff] 0.0
      %7624 = vst [vmem:[#allocation14 + $0x138] sm:$0xff] 0.0
      %7625 = vst [vmem:[#allocation14 + $0x140] sm:$0xff] 0.0
      %7626 = vst [vmem:[#allocation14 + $0x148] sm:$0xff] 0.0
      %7627 = vst [vmem:[#allocation14 + $0x150] sm:$0xff] 0.0
      %7628 = vst [vmem:[#allocation14 + $0x158] sm:$0xff] 0.0
      %7629 = vst [vmem:[#allocation14 + $0x160] sm:$0xff] 0.0
      %7630 = vst [vmem:[#allocation14 + $0x168] sm:$0xff] 0.0
      %7631 = vst [vmem:[#allocation14 + $0x170] sm:$0xff] 0.0
      %7632 = vst [vmem:[#allocation14 + $0x178] sm:$0xff] 0.0
      %7633 = vst [vmem:[#allocation14 + $0x180] sm:$0xff] 0.0
      %7634 = vst [vmem:[#allocation14 + $0x188] sm:$0xff] 0.0
      %7635 = vst [vmem:[#allocation14 + $0x190] sm:$0xff] 0.0
      %7636 = vst [vmem:[#allocation14 + $0x198] sm:$0xff] 0.0
      %7637 = vst [vmem:[#allocation14 + $0x1a0] sm:$0xff] 0.0
      %7638 = vst [vmem:[#allocation14 + $0x1a8] sm:$0xff] 0.0
      %7639 = vst [vmem:[#allocation14 + $0x1b0] sm:$0xff] 0.0
      %7640 = vst [vmem:[#allocation14 + $0x1b8] sm:$0xff] 0.0
      %7641 = vst [vmem:[#allocation14 + $0x1c0] sm:$0xff] 0.0
      %7642 = vst [vmem:[#allocation14 + $0x1c8] sm:$0xff] 0.0
      %7643 = vst [vmem:[#allocation14 + $0x1d0] sm:$0xff] 0.0
      %7644 = vst [vmem:[#allocation14 + $0x1d8] sm:$0xff] 0.0
      %7645 = vst [vmem:[#allocation14 + $0x1e0] sm:$0xff] 0.0
      %7646 = vst [vmem:[#allocation14 + $0x1e8] sm:$0xff] 0.0
      %7647 = vst [vmem:[#allocation14 + $0x1f0] sm:$0xff] 0.0
      %7648 = vst [vmem:[#allocation14 + $0x1f8] sm:$0xff] 0.0
    $region41: #{lower_triangular_matmul.1} parent=1 // pred_fallthru
      _
    // Predicated region
    $region42: #{lower_triangular_matmul.1} parent=1 // pred_check
      _
    $region43: #{lower_triangular_matmul.1} parent=1 // pred_check_branch
      %7650 = sbr.rel (0) target = $region45
    $region44: #{lower_triangular_matmul.1} parent=1 // pred_region
      %s7651 = sadd.s32 0, 0
      %s7652 = sld [smem:[#allocation3 + %s7651]]
      %s7653 = sld [smem:[#allocation4 + %s7651]]
      %s7654 = smul.u32 32, %s7652
      %s7655 = smul.u32 2, %s7653
      %s7657 = ssub.s32 8192, 8192
      %7658 = vsyncadd [#allocation11], %s7657
      %s7659 = smul.addr %s7654, 2
      %s7660 = sadd.s32 %s7655, %s7659
      %s7661 = smul.addr %s7660, 128
      %s7662 = scalar_lea.hbm %s8, %s7661
      %s7663 = sshll.u32 [#allocation14], 4
      %s7664 = int_to_ptr.vmem [resolvable:$true] %s7663
      %7669 = dma.vmem_to_hbm [thread:$0]  %s7664, 8192, %s7662, [#allocation11], 256, 256, 16
    $region45: #{lower_triangular_matmul.1} parent=1 // pred_fallthru
      _
    // Predicated region
    $region46: #{lower_triangular_matmul.1} parent=1 // pred_check
      _
    $region47: #{lower_triangular_matmul.1} parent=1 // pred_check_branch
      %7671 = sbr.rel (0) target = $region49
    $region48: #{lower_triangular_matmul.1} parent=1 // pred_region
      %7672 = dma.done [#allocation11], 8192
    $region49: #{lower_triangular_matmul.1} parent=1 // pred_fallthru
      _
    %7673 = vsyncpa [#allocation10], 1
    %7674 = vsyncpa [#allocation13], 1
    %7675 = vsyncpa [#allocation11], 1

</llo_original>
